<compile_context>
chip_gen: v7x
topology: tpu7x:2x2x1
jax: 0.10.0
libtpu: 0.0.40
codegen_flags: <defaults>
</compile_context>

<pallas_src>
import math
import functools

import jax
import jax.numpy as jnp
from jax.experimental import pallas as pl
from jax.experimental.pallas import tpu as pltpu


# ----------------------------------------------------------------------------
# Fused kernel: ROI max-pool + K-tiled fc6 + fc7 + fused heads + softmax.
# ----------------------------------------------------------------------------
def _roi_head_kernel(bounds_ref, feat_ref, w6_ref, b6_ref, w7_ref, b7_ref,
                     wh_ref, bh_ref, out_ref, pooled_ref, acc_ref,
                     *, pool_size, num_classes, kt, tk, out_pad):
    # bounds_ref : (nblk, 4*P) int32 packed [hstart | hend | wstart | wend]
    # feat_ref   : (C, H, W) float32 feature map (whole map resident)
    # w6_ref     : (tk, hid) bf16 fc6 K tile (rows permuted to bin-major order)
    # w7_ref     : (hid, hid) bf16 ; wh_ref: (hid, 5*nc) bf16 fused cls|bbox head
    # out_ref    : (nblk, out_pad) f32 = [cls | softmax(cls) | box | 0-pad]
    # pooled_ref : (nblk, P*P*C) bf16 scratch (bin-major pooled features)
    # acc_ref    : (nblk, hid)   f32 scratch (fc6 accumulator)
    p = pool_size
    nc = num_classes
    c, fh, fw = feat_ref.shape
    k = pl.program_id(1)

    # ---- Phase 1 (k == 0): separable ROI max-pool, one lane-dense store ----------
    @pl.when(k == 0)
    def _pool():
        bounds = bounds_ref[...]                    # (nblk, 4P) int32
        feat = feat_ref[...][None]                  # (1, C, H, W)
        h_iota = jax.lax.broadcasted_iota(jnp.int32, (1, 1, fh, 1), 2)
        w_iota = jax.lax.broadcasted_iota(jnp.int32, (1, 1, fw), 2)
        neg_inf = jnp.float32(-jnp.inf)

        # Row-band reduction: P masked maxes over H -> P x (nblk, C, W).
        bands, hempty = [], []
        for ph in range(p):
            hs = bounds[:, ph:ph + 1][:, :, None, None]            # (nblk,1,1,1)
            he = bounds[:, p + ph:p + ph + 1][:, :, None, None]
            msk = (h_iota >= hs) & (h_iota < he)                   # (nblk,1,H,1)
            bands.append(jnp.max(jnp.where(msk, feat, neg_inf), axis=2))  # (nblk,C,W)
            hempty.append(bounds[:, p + ph:p + ph + 1] <= bounds[:, ph:ph + 1])

        # Column-bin masks over W (shared across row bands).
        wmask, wempty = [], []
        for pw in range(p):
            ws = bounds[:, 2 * p + pw:2 * p + pw + 1][:, :, None]  # (nblk,1,1)
            we = bounds[:, 3 * p + pw:3 * p + pw + 1][:, :, None]
            wmask.append((w_iota >= ws) & (w_iota < we))           # (nblk,1,W)
            wempty.append(bounds[:, 3 * p + pw:3 * p + pw + 1]
                          <= bounds[:, 2 * p + pw:2 * p + pw + 1])

        # P*P cheap maxes over W of the (nblk, C, W) bands; empty bins -> 0
        # (matches torchvision roi_pool semantics).
        bins = []
        for ph in range(p):
            for pw in range(p):
                m = jnp.max(jnp.where(wmask[pw], bands[ph], neg_inf), axis=-1)  # (nblk,C)
                empty = hempty[ph] | wempty[pw]                                 # (nblk,1)
                bins.append(jnp.where(empty, jnp.float32(0.0), m))
        x = jnp.concatenate(bins, axis=-1)          # (nblk, P*P*C) bin-major
        pooled_ref[...] = x.astype(pooled_ref.dtype)   # single lane-dense store
        acc_ref[...] = jnp.zeros_like(acc_ref)

    # ---- Phase 2: K-tiled fc6 accumulation (bf16 operands, f32 accumulator) ------
    if kt == 1:
        xk = pooled_ref[...]
    else:
        off = pl.multiple_of(k * tk, tk)
        xk = pooled_ref[:, pl.ds(off, tk)]
    acc_ref[...] += jnp.dot(xk, w6_ref[...], preferred_element_type=jnp.float32)

    # ---- Phase 3 (k == last): bias/ReLU, fc7, fused heads, softmax, one store ----
    @pl.when(k == kt - 1)
    def _finish():
        h6 = jnp.maximum(acc_ref[...] + b6_ref[...], 0.0).astype(jnp.bfloat16)
        h7 = jnp.maximum(
            jnp.dot(h6, w7_ref[...], preferred_element_type=jnp.float32) + b7_ref[...],
            0.0).astype(jnp.bfloat16)
        scores = jnp.dot(h7, wh_ref[...], preferred_element_type=jnp.float32) + bh_ref[...]
        cls = scores[:, :nc]
        box = scores[:, nc:]
        mrow = jnp.max(cls, axis=-1, keepdims=True)
        e = jnp.exp(cls - mrow)
        prob = e / jnp.sum(e, axis=-1, keepdims=True)   # exact softmax (parity)
        pieces = [cls, prob, box]
        pad = out_pad - 6 * nc
        if pad:
            pieces.append(jnp.zeros((cls.shape[0], pad), jnp.float32))
        out_ref[...] = jnp.concatenate(pieces, axis=-1)  # single lane-dense store


def _round_up(x, m):
    return ((x + m - 1) // m) * m


def _num_tensorcores():
    # v7x has 2 TensorCores/chip; v5e/v6e have 1.  Fall back to 1 if unknown.
    try:
        return max(1, int(getattr(jax.devices()[0], "num_cores", 1)))
    except Exception:
        return 1


def _choose_fc6_ktiles(num_bins, c, hid, target_bytes=8 << 20):
    # Fewest K tiles whose bf16 fc6 weight tile fits the per-tile budget; tiles cover
    # whole bins so each K slice is a contiguous bin-major group of pooled features.
    for kt in range(1, num_bins + 1):
        if num_bins % kt:
            continue
        bins_per_tile = num_bins // kt
        tk = bins_per_tile * c
        if kt > 1 and tk % 8:
            continue
        if tk * hid * 2 <= target_bytes or kt == num_bins:
            return kt, bins_per_tile
    return num_bins, 1


def roi_head_pallas(feat_chw, bounds, kparams, num_classes, pool_size):
    c, fh, fw = feat_chw.shape
    n = bounds.shape[0]
    p = pool_size
    in_dim = p * p * c
    hid = kparams["w6p"].shape[1]
    nc = num_classes
    out_w = 6 * nc
    out_pad = _round_up(out_w, 128)

    # 2-way ROI split only on multi-TC parts (v7x) with enough rows per core; on
    # v5e/v6e it just serializes steps and shrinks the MXU M dimension.
    nb = 2 if (_num_tensorcores() >= 2 and n % 2 == 0 and (n // 2) >= 128) else 1
    nblk = n // nb

    # fc6 K-tiling (1 tile at demo sizes; multiple at realistic Faster-R-CNN sizes).
    kt, bins_per_tile = _choose_fc6_ktiles(p * p, c, hid)
    tk = bins_per_tile * c

    def inv(shape):
        return pl.BlockSpec(shape, lambda i, k: tuple(0 for _ in shape))

    grid_spec = pltpu.PrefetchScalarGridSpec(
        num_scalar_prefetch=0,
        grid=(nb, kt),
        in_specs=[
            pl.BlockSpec((nblk, 4 * p), lambda i, k: (i, 0)),   # packed bin bounds
            inv((c, fh, fw)),                                   # feature map
            pl.BlockSpec((tk, hid), lambda i, k: (k, 0)),       # fc6 weight K tile (bf16)
            inv((1, hid)),                                      # b6 (f32)
            inv((hid, hid)), inv((1, hid)),                     # w7 (bf16), b7
            inv((hid, 5 * nc)), inv((1, 5 * nc)),               # fused cls|bbox head
        ],
        out_specs=pl.BlockSpec((nblk, out_pad), lambda i, k: (i, 0)),
        scratch_shapes=[pltpu.VMEM((nblk, in_dim), jnp.bfloat16),   # pooled (bin-major)
                        pltpu.VMEM((nblk, hid), jnp.float32)],      # fc6 accumulator
    )

    # Explicit scoped-VMEM limit computed from tile sizes (+ headroom).
    vmem_bytes = (
        c * fh * fw * 4                         # feature map (f32)
        + 2 * tk * hid * 2                      # double-buffered fc6 bf16 K tile
        + hid * hid * 2 + hid * 5 * nc * 2      # fc7 / head weights (bf16)
        + (2 * hid + 5 * nc) * 4                # biases (f32)
        + 2 * nblk * 4 * p * 4                  # packed bounds
        + 2 * nblk * out_pad * 4                # output block
        + nblk * in_dim * 2 + nblk * hid * 4    # scratches
    )
    vmem_limit = min(int(vmem_bytes * 2) + (16 << 20), 100 << 20)

    out = pl.pallas_call(
        functools.partial(_roi_head_kernel, pool_size=p, num_classes=nc,
                          kt=kt, tk=tk, out_pad=out_pad),
        grid_spec=grid_spec,
        out_shape=jax.ShapeDtypeStruct((n, out_pad), jnp.float32),
        compiler_params=pltpu.CompilerParams(
            dimension_semantics=("parallel", "arbitrary"),
            vmem_limit_bytes=vmem_limit),
    )(bounds, feat_chw, kparams["w6p"], kparams["b6"], kparams["w7"],
      kparams["b7"], kparams["wh"], kparams["bh"])
    return out[:, :out_w]


# ----------------------------------------------------------------------------
# Plain-JAX glue: ROI quantization, box decoding + clamp (inference path)
# ----------------------------------------------------------------------------
def _round_half_away(x):
    # torchvision roi_pool uses C round() = half-away-from-zero.
    return jnp.where(x >= 0, jnp.floor(x + 0.5), jnp.ceil(x - 0.5))


def compute_bin_boundaries(proposals, spatial_scale, pool_size, feat_h, feat_w):
    p = pool_size
    x1, y1, x2, y2 = (proposals[:, 0], proposals[:, 1], proposals[:, 2], proposals[:, 3])
    rsw = _round_half_away(x1 * spatial_scale).astype(jnp.int32)
    rsh = _round_half_away(y1 * spatial_scale).astype(jnp.int32)
    rew = _round_half_away(x2 * spatial_scale).astype(jnp.int32)
    reh = _round_half_away(y2 * spatial_scale).astype(jnp.int32)
    roi_w = jnp.maximum(rew - rsw + 1, 1).astype(jnp.float32)
    roi_h = jnp.maximum(reh - rsh + 1, 1).astype(jnp.float32)
    bin_w = roi_w / p
    bin_h = roi_h / p

    bins = jnp.arange(p, dtype=jnp.float32)
    hstart = jnp.floor(bins[None, :] * bin_h[:, None]).astype(jnp.int32) + rsh[:, None]
    hend = jnp.ceil((bins[None, :] + 1.0) * bin_h[:, None]).astype(jnp.int32) + rsh[:, None]
    wstart = jnp.floor(bins[None, :] * bin_w[:, None]).astype(jnp.int32) + rsw[:, None]
    wend = jnp.ceil((bins[None, :] + 1.0) * bin_w[:, None]).astype(jnp.int32) + rsw[:, None]
    hstart = jnp.clip(hstart, 0, feat_h)
    hend = jnp.clip(hend, 0, feat_h)
    wstart = jnp.clip(wstart, 0, feat_w)
    wend = jnp.clip(wend, 0, feat_w)
    # Packed (N, 4*P) int32: [hstart | hend | wstart | wend]
    return jnp.concatenate([hstart, hend, wstart, wend], axis=1).astype(jnp.int32)


def apply_regression_pred_to_proposals(box_transform_pred, proposals):
    w = proposals[:, 2] - proposals[:, 0]
    h = proposals[:, 3] - proposals[:, 1]
    cx = proposals[:, 0] + 0.5 * w
    cy = proposals[:, 1] + 0.5 * h
    dx = box_transform_pred[..., 0]
    dy = box_transform_pred[..., 1]
    dw = jnp.minimum(box_transform_pred[..., 2], math.log(1000.0 / 16.0))
    dh = jnp.minimum(box_transform_pred[..., 3], math.log(1000.0 / 16.0))
    pcx = dx * w[:, None] + cx[:, None]
    pcy = dy * h[:, None] + cy[:, None]
    pw = jnp.exp(dw) * w[:, None]
    ph = jnp.exp(dh) * h[:, None]
    return jnp.stack(
        [pcx - 0.5 * pw, pcy - 0.5 * ph, pcx + 0.5 * pw, pcy + 0.5 * ph], axis=-1)


def clamp_boxes_to_image_boundary(boxes, image_shape):
    ih, iw = image_shape
    x = jnp.clip(boxes[..., 0::2], 0.0, float(iw))
    y = jnp.clip(boxes[..., 1::2], 0.0, float(ih))
    return jnp.stack([x[..., 0], y[..., 0], x[..., 1], y[..., 1]], axis=-1)


# ----------------------------------------------------------------------------
# ROIHead (inference)
# ----------------------------------------------------------------------------
class ROIHeadPallas:
    def __init__(self, model_config, num_classes, in_channels, key):
        self.num_classes = num_classes
        self.in_channels = in_channels
        self.pool_size = model_config["roi_pool_size"]
        self.fc_inner_dim = model_config["fc_inner_dim"]
        self.low_score_threshold = model_config["roi_score_threshold"]
        self.nms_threshold = model_config["roi_nms_threshold"]
        self.topK_detections = model_config["roi_topk_detections"]

        p = self.pool_size
        in_dim = in_channels * p * p
        hid = self.fc_inner_dim
        k = jax.random.split(key, 6)
        bound6 = 1.0 / math.sqrt(in_dim)
        bound7 = 1.0 / math.sqrt(hid)
        # Torch-layout params ((in, out) weights; fc6 row index = c*P*P + ph*P + pw).
        self.params = {
            "w6": jax.random.uniform(k[0], (in_dim, hid), jnp.float32, -bound6, bound6),
            "b6": jax.random.uniform(k[1], (1, hid), jnp.float32, -bound6, bound6),
            "w7": jax.random.uniform(k[2], (hid, hid), jnp.float32, -bound7, bound7),
            "b7": jax.random.uniform(k[3], (1, hid), jnp.float32, -bound7, bound7),
            "wc": 0.01 * jax.random.normal(k[4], (hid, num_classes), jnp.float32),
            "bc": jnp.zeros((1, num_classes), jnp.float32),
            "wb": 0.001 * jax.random.normal(k[5], (hid, num_classes * 4), jnp.float32),
            "bb": jnp.zeros((1, num_classes * 4), jnp.float32),
        }
        # Kernel-ready params: fc6 rows permuted to the kernel's bin-major pooled
        # layout, cls|bbox heads fused, weights stored bf16 (activations/accumulation
        # stay f32 inside the kernel).  On v7x an fp8 (e4m3) path would go here; on
        # v5e/v6e int8 — never share an int8 path with v7x (no integer MXU datapath).
        w6p = (self.params["w6"].reshape(in_channels, p * p, hid)
               .transpose(1, 0, 2).reshape(p * p * in_channels, hid))
        self.kparams = {
            "w6p": w6p.astype(jnp.bfloat16),
            "b6": self.params["b6"],
            "w7": self.params["w7"].astype(jnp.bfloat16),
            "b7": self.params["b7"],
            "wh": jnp.concatenate([self.params["wc"], self.params["wb"]],
                                  axis=1).astype(jnp.bfloat16),
            "bh": jnp.concatenate([self.params["bc"], self.params["bb"]], axis=1),
        }

    def __call__(self, feat, proposals, image_shape):
        # feat: (1, C, H, W) float32 (NCHW, batch 1 as in the reference forward)
        # proposals: (N, 4) xyxy in image coordinates
        _, c, fh, fw = feat.shape
        approx_scale = float(fh) / float(image_shape[0])
        spatial_scale = 2.0 ** round(math.log2(approx_scale))
        approx_scale_w = float(fw) / float(image_shape[1])
        assert spatial_scale == 2.0 ** round(math.log2(approx_scale_w))

        bounds = compute_bin_boundaries(proposals, spatial_scale, self.pool_size, fh, fw)

        out = roi_head_pallas(feat[0], bounds, self.kparams,
                              self.num_classes, self.pool_size)

        nc = self.num_classes
        n = out.shape[0]
        cls_scores = out[:, :nc]
        pred_scores = out[:, nc:2 * nc]
        box_transform_pred = out[:, 2 * nc:].reshape(n, nc, 4)

        pred_boxes = apply_regression_pred_to_proposals(box_transform_pred, proposals)
        pred_boxes = clamp_boxes_to_image_boundary(pred_boxes, image_shape)
        pred_labels = jnp.broadcast_to(jnp.arange(nc)[None, :], pred_scores.shape)

        # Drop background class, flatten (same as inference branch pre-filtering).
        pred_boxes = pred_boxes[:, 1:].reshape(-1, 4)
        pred_scores = pred_scores[:, 1:].reshape(-1)
        pred_labels = pred_labels[:, 1:].reshape(-1)

        # TODO(synk): filter_predictions (score/size filtering, per-class NMS, topK) has
        # data-dependent output shapes and no clean Pallas/TPU equivalent; returning
        # the dense per-(proposal, class) predictions instead.
        return {"boxes": pred_boxes, "scores": pred_scores,
                "labels": pred_labels, "cls_scores": cls_scores}


# ----------------------------------------------------------------------------
# Main
# ----------------------------------------------------------------------------
if __name__ == "__main__":
    key = jax.random.PRNGKey(0)
    k_feat, k_xy, k_wh, k_params = jax.random.split(key, 4)

    model_config = {
        "roi_batch_size": 128,
        "roi_pos_fraction": 0.25,
        "roi_iou_threshold": 0.5,
        "roi_low_bg_iou": 0.0,
        "roi_nms_threshold": 0.3,
        "roi_topk_detections": 100,
        "roi_score_threshold": 0.05,
        "roi_pool_size": 4,
        "fc_inner_dim": 32,
    }
    num_classes = 5
    in_channels = 4
    image_shape = (256, 256)
    num_proposals = 16

    feat = jax.random.normal(k_feat, (1, in_channels, 16, 16), jnp.float32)
    xy = jax.random.uniform(k_xy, (num_proposals, 2), jnp.float32, 0.0, 200.0)
    wh = jax.random.uniform(k_wh, (num_proposals, 2), jnp.float32, 24.0, 56.0)
    proposals = jnp.concatenate(
        [xy, jnp.minimum(xy + wh, 255.0)], axis=1).astype(jnp.float32)

    head = ROIHeadPallas(model_config, num_classes, in_channels, k_params)
    out = head(feat, proposals, image_shape)
    jax.block_until_ready(out)

    assert out["boxes"].shape == (num_proposals * (num_classes - 1), 4)
    assert out["scores"].shape == (num_proposals * (num_classes - 1),)
    assert out["labels"].shape == (num_proposals * (num_classes - 1),)
    assert out["cls_scores"].shape == (num_proposals, num_classes)
    print("KERNEL_OK")
</pallas_src>

<mosaic_0001>
module attributes {stable_mosaic.version = 11 : i64} {
  func.func @_roi_head_kernel(%arg0: i32, %arg1: i32, %arg2: memref<16x16xi32, #tpu.memory_space<vmem>>, %arg3: memref<4x16x16xf32, #tpu.memory_space<vmem>>, %arg4: memref<64x32xbf16, #tpu.memory_space<vmem>>, %arg5: memref<1x32xf32, #tpu.memory_space<vmem>>, %arg6: memref<32x32xbf16, #tpu.memory_space<vmem>>, %arg7: memref<1x32xf32, #tpu.memory_space<vmem>>, %arg8: memref<32x25xbf16, #tpu.memory_space<vmem>>, %arg9: memref<1x25xf32, #tpu.memory_space<vmem>>, %arg10: memref<16x128xf32, #tpu.memory_space<vmem>>, %arg11: memref<16x64xbf16, #tpu.memory_space<vmem>>, %arg12: memref<16x32xf32, #tpu.memory_space<vmem>>) attributes {dimension_semantics = [#tpu.dimension_semantics<parallel>, #tpu.dimension_semantics<arbitrary>], iteration_bounds = array<i64: 1, 1>, scalar_prefetch = 0 : i64, scratch_operands = 2 : i64, tpu.core_type = #tpu.core_type<tc>, window_params = [{transform_indices = @transform_0, window_bounds = array<i64: 16, 16>}, {pipeline_mode = #tpu.pipeline_mode<synchronous>, transform_indices = @transform_1, window_bounds = array<i64: 4, 16, 16>}, {transform_indices = @transform_2, window_bounds = array<i64: 64, 32>}, {pipeline_mode = #tpu.pipeline_mode<synchronous>, transform_indices = @transform_3, window_bounds = array<i64: 1, 32>}, {pipeline_mode = #tpu.pipeline_mode<synchronous>, transform_indices = @transform_4, window_bounds = array<i64: 32, 32>}, {pipeline_mode = #tpu.pipeline_mode<synchronous>, transform_indices = @transform_5, window_bounds = array<i64: 1, 32>}, {pipeline_mode = #tpu.pipeline_mode<synchronous>, transform_indices = @transform_6, window_bounds = array<i64: 32, 25>}, {pipeline_mode = #tpu.pipeline_mode<synchronous>, transform_indices = @transform_7, window_bounds = array<i64: 1, 25>}, {transform_indices = @transform_8, window_bounds = array<i64: 16, 128>}]} {
    %c0_i32 = arith.constant 0 : i32
    %0 = arith.cmpi eq, %arg1, %c0_i32 : i32
    %1 = arith.extui %0 : i1 to i32
    %c0_i32_0 = arith.constant 0 : i32
    %2 = arith.cmpi ne, %1, %c0_i32_0 : i32
    scf.if %2 {
      %c0_10 = arith.constant 0 : index
      %c0_11 = arith.constant 0 : index
      %12 = vector.load %arg2[%c0_10, %c0_11] : memref<16x16xi32, #tpu.memory_space<vmem>>, vector<16x16xi32>
      %c0_12 = arith.constant 0 : index
      %c0_13 = arith.constant 0 : index
      %c0_14 = arith.constant 0 : index
      %13 = vector.load %arg3[%c0_12, %c0_13, %c0_14] : memref<4x16x16xf32, #tpu.memory_space<vmem>>, vector<4x16x16xf32>
      %14 = vector.shape_cast %13 : vector<4x16x16xf32> to vector<1x4x16x16xf32>
      %15 = tpu.iota {dimensions = array<i32: 2>} : vector<1x1x16x1xi32>
      %16 = tpu.iota {dimensions = array<i32: 2>} : vector<1x1x16xi32>
      %17 = vector.extract_strided_slice %12 {offsets = [0, 0], sizes = [16, 1], strides = [1, 1]} : vector<16x16xi32> to vector<16x1xi32>
      %18 = vector.shape_cast %17 : vector<16x1xi32> to vector<16x1x1x1xi32>
      %19 = vector.extract_strided_slice %12 {offsets = [0, 4], sizes = [16, 1], strides = [1, 1]} : vector<16x16xi32> to vector<16x1xi32>
      %20 = vector.shape_cast %19 : vector<16x1xi32> to vector<16x1x1x1xi32>
      %21 = vector.broadcast %15 : vector<1x1x16x1xi32> to vector<16x1x16x1xi32>
      %22 = vector.broadcast %18 : vector<16x1x1x1xi32> to vector<16x1x16x1xi32>
      %23 = arith.cmpi sge, %21, %22 : vector<16x1x16x1xi32>
      %24 = vector.broadcast %15 : vector<1x1x16x1xi32> to vector<16x1x16x1xi32>
      %25 = vector.broadcast %20 : vector<16x1x1x1xi32> to vector<16x1x16x1xi32>
      %26 = arith.cmpi slt, %24, %25 : vector<16x1x16x1xi32>
      %27 = arith.andi %23, %26 : vector<16x1x16x1xi1>
      %cst_15 = arith.constant 0xFF800000 : f32
      %28 = vector.shape_cast %27 : vector<16x1x16x1xi1> to vector<16x1x16x1xi1>
      %29 = vector.broadcast %28 : vector<16x1x16x1xi1> to vector<16x4x16x16xi1>
      %30 = vector.shape_cast %14 : vector<1x4x16x16xf32> to vector<1x4x16x16xf32>
      %31 = vector.broadcast %30 : vector<1x4x16x16xf32> to vector<16x4x16x16xf32>
      %32 = vector.broadcast %cst_15 : f32 to vector<16x4x16x16xf32>
      %33 = arith.select %29, %31, %32 : vector<16x4x16x16xi1>, vector<16x4x16x16xf32>
      %cst_16 = arith.constant dense<0xFF800000> : vector<16x4x16xf32>
      %34 = vector.multi_reduction <maximumf>, %33, %cst_16 [2] : vector<16x4x16x16xf32> to vector<16x4x16xf32>
      %35 = vector.extract_strided_slice %12 {offsets = [0, 4], sizes = [16, 1], strides = [1, 1]} : vector<16x16xi32> to vector<16x1xi32>
      %36 = vector.extract_strided_slice %12 {offsets = [0, 0], sizes = [16, 1], strides = [1, 1]} : vector<16x16xi32> to vector<16x1xi32>
      %37 = arith.cmpi sle, %35, %36 : vector<16x1xi32>
      %38 = vector.extract_strided_slice %12 {offsets = [0, 1], sizes = [16, 1], strides = [1, 1]} : vector<16x16xi32> to vector<16x1xi32>
      %39 = vector.shape_cast %38 : vector<16x1xi32> to vector<16x1x1x1xi32>
      %40 = vector.extract_strided_slice %12 {offsets = [0, 5], sizes = [16, 1], strides = [1, 1]} : vector<16x16xi32> to vector<16x1xi32>
      %41 = vector.shape_cast %40 : vector<16x1xi32> to vector<16x1x1x1xi32>
      %42 = vector.broadcast %15 : vector<1x1x16x1xi32> to vector<16x1x16x1xi32>
      %43 = vector.broadcast %39 : vector<16x1x1x1xi32> to vector<16x1x16x1xi32>
      %44 = arith.cmpi sge, %42, %43 : vector<16x1x16x1xi32>
      %45 = vector.broadcast %15 : vector<1x1x16x1xi32> to vector<16x1x16x1xi32>
      %46 = vector.broadcast %41 : vector<16x1x1x1xi32> to vector<16x1x16x1xi32>
      %47 = arith.cmpi slt, %45, %46 : vector<16x1x16x1xi32>
      %48 = arith.andi %44, %47 : vector<16x1x16x1xi1>
      %cst_17 = arith.constant 0xFF800000 : f32
      %49 = vector.shape_cast %48 : vector<16x1x16x1xi1> to vector<16x1x16x1xi1>
      %50 = vector.broadcast %49 : vector<16x1x16x1xi1> to vector<16x4x16x16xi1>
      %51 = vector.shape_cast %14 : vector<1x4x16x16xf32> to vector<1x4x16x16xf32>
      %52 = vector.broadcast %51 : vector<1x4x16x16xf32> to vector<16x4x16x16xf32>
      %53 = vector.broadcast %cst_17 : f32 to vector<16x4x16x16xf32>
      %54 = arith.select %50, %52, %53 : vector<16x4x16x16xi1>, vector<16x4x16x16xf32>
      %cst_18 = arith.constant dense<0xFF800000> : vector<16x4x16xf32>
      %55 = vector.multi_reduction <maximumf>, %54, %cst_18 [2] : vector<16x4x16x16xf32> to vector<16x4x16xf32>
      %56 = vector.extract_strided_slice %12 {offsets = [0, 5], sizes = [16, 1], strides = [1, 1]} : vector<16x16xi32> to vector<16x1xi32>
      %57 = vector.extract_strided_slice %12 {offsets = [0, 1], sizes = [16, 1], strides = [1, 1]} : vector<16x16xi32> to vector<16x1xi32>
      %58 = arith.cmpi sle, %56, %57 : vector<16x1xi32>
      %59 = vector.extract_strided_slice %12 {offsets = [0, 2], sizes = [16, 1], strides = [1, 1]} : vector<16x16xi32> to vector<16x1xi32>
      %60 = vector.shape_cast %59 : vector<16x1xi32> to vector<16x1x1x1xi32>
      %61 = vector.extract_strided_slice %12 {offsets = [0, 6], sizes = [16, 1], strides = [1, 1]} : vector<16x16xi32> to vector<16x1xi32>
      %62 = vector.shape_cast %61 : vector<16x1xi32> to vector<16x1x1x1xi32>
      %63 = vector.broadcast %15 : vector<1x1x16x1xi32> to vector<16x1x16x1xi32>
      %64 = vector.broadcast %60 : vector<16x1x1x1xi32> to vector<16x1x16x1xi32>
      %65 = arith.cmpi sge, %63, %64 : vector<16x1x16x1xi32>
      %66 = vector.broadcast %15 : vector<1x1x16x1xi32> to vector<16x1x16x1xi32>
      %67 = vector.broadcast %62 : vector<16x1x1x1xi32> to vector<16x1x16x1xi32>
      %68 = arith.cmpi slt, %66, %67 : vector<16x1x16x1xi32>
      %69 = arith.andi %65, %68 : vector<16x1x16x1xi1>
      %cst_19 = arith.constant 0xFF800000 : f32
      %70 = vector.shape_cast %69 : vector<16x1x16x1xi1> to vector<16x1x16x1xi1>
      %71 = vector.broadcast %70 : vector<16x1x16x1xi1> to vector<16x4x16x16xi1>
      %72 = vector.shape_cast %14 : vector<1x4x16x16xf32> to vector<1x4x16x16xf32>
      %73 = vector.broadcast %72 : vector<1x4x16x16xf32> to vector<16x4x16x16xf32>
      %74 = vector.broadcast %cst_19 : f32 to vector<16x4x16x16xf32>
      %75 = arith.select %71, %73, %74 : vector<16x4x16x16xi1>, vector<16x4x16x16xf32>
      %cst_20 = arith.constant dense<0xFF800000> : vector<16x4x16xf32>
      %76 = vector.multi_reduction <maximumf>, %75, %cst_20 [2] : vector<16x4x16x16xf32> to vector<16x4x16xf32>
      %77 = vector.extract_strided_slice %12 {offsets = [0, 6], sizes = [16, 1], strides = [1, 1]} : vector<16x16xi32> to vector<16x1xi32>
      %78 = vector.extract_strided_slice %12 {offsets = [0, 2], sizes = [16, 1], strides = [1, 1]} : vector<16x16xi32> to vector<16x1xi32>
      %79 = arith.cmpi sle, %77, %78 : vector<16x1xi32>
      %80 = vector.extract_strided_slice %12 {offsets = [0, 3], sizes = [16, 1], strides = [1, 1]} : vector<16x16xi32> to vector<16x1xi32>
      %81 = vector.shape_cast %80 : vector<16x1xi32> to vector<16x1x1x1xi32>
      %82 = vector.extract_strided_slice %12 {offsets = [0, 7], sizes = [16, 1], strides = [1, 1]} : vector<16x16xi32> to vector<16x1xi32>
      %83 = vector.shape_cast %82 : vector<16x1xi32> to vector<16x1x1x1xi32>
      %84 = vector.broadcast %15 : vector<1x1x16x1xi32> to vector<16x1x16x1xi32>
      %85 = vector.broadcast %81 : vector<16x1x1x1xi32> to vector<16x1x16x1xi32>
      %86 = arith.cmpi sge, %84, %85 : vector<16x1x16x1xi32>
      %87 = vector.broadcast %15 : vector<1x1x16x1xi32> to vector<16x1x16x1xi32>
      %88 = vector.broadcast %83 : vector<16x1x1x1xi32> to vector<16x1x16x1xi32>
      %89 = arith.cmpi slt, %87, %88 : vector<16x1x16x1xi32>
      %90 = arith.andi %86, %89 : vector<16x1x16x1xi1>
      %cst_21 = arith.constant 0xFF800000 : f32
      %91 = vector.shape_cast %90 : vector<16x1x16x1xi1> to vector<16x1x16x1xi1>
      %92 = vector.broadcast %91 : vector<16x1x16x1xi1> to vector<16x4x16x16xi1>
      %93 = vector.shape_cast %14 : vector<1x4x16x16xf32> to vector<1x4x16x16xf32>
      %94 = vector.broadcast %93 : vector<1x4x16x16xf32> to vector<16x4x16x16xf32>
      %95 = vector.broadcast %cst_21 : f32 to vector<16x4x16x16xf32>
      %96 = arith.select %92, %94, %95 : vector<16x4x16x16xi1>, vector<16x4x16x16xf32>
      %cst_22 = arith.constant dense<0xFF800000> : vector<16x4x16xf32>
      %97 = vector.multi_reduction <maximumf>, %96, %cst_22 [2] : vector<16x4x16x16xf32> to vector<16x4x16xf32>
      %98 = vector.extract_strided_slice %12 {offsets = [0, 7], sizes = [16, 1], strides = [1, 1]} : vector<16x16xi32> to vector<16x1xi32>
      %99 = vector.extract_strided_slice %12 {offsets = [0, 3], sizes = [16, 1], strides = [1, 1]} : vector<16x16xi32> to vector<16x1xi32>
      %100 = arith.cmpi sle, %98, %99 : vector<16x1xi32>
      %101 = vector.extract_strided_slice %12 {offsets = [0, 8], sizes = [16, 1], strides = [1, 1]} : vector<16x16xi32> to vector<16x1xi32>
      %102 = vector.shape_cast %101 : vector<16x1xi32> to vector<16x1x1xi32>
      %103 = vector.extract_strided_slice %12 {offsets = [0, 12], sizes = [16, 1], strides = [1, 1]} : vector<16x16xi32> to vector<16x1xi32>
      %104 = vector.shape_cast %103 : vector<16x1xi32> to vector<16x1x1xi32>
      %105 = vector.broadcast %16 : vector<1x1x16xi32> to vector<16x1x16xi32>
      %106 = vector.broadcast %102 : vector<16x1x1xi32> to vector<16x1x16xi32>
      %107 = arith.cmpi sge, %105, %106 : vector<16x1x16xi32>
      %108 = vector.broadcast %16 : vector<1x1x16xi32> to vector<16x1x16xi32>
      %109 = vector.broadcast %104 : vector<16x1x1xi32> to vector<16x1x16xi32>
      %110 = arith.cmpi slt, %108, %109 : vector<16x1x16xi32>
      %111 = arith.andi %107, %110 : vector<16x1x16xi1>
      %112 = vector.extract_strided_slice %12 {offsets = [0, 12], sizes = [16, 1], strides = [1, 1]} : vector<16x16xi32> to vector<16x1xi32>
      %113 = vector.extract_strided_slice %12 {offsets = [0, 8], sizes = [16, 1], strides = [1, 1]} : vector<16x16xi32> to vector<16x1xi32>
      %114 = arith.cmpi sle, %112, %113 : vector<16x1xi32>
      %115 = vector.extract_strided_slice %12 {offsets = [0, 9], sizes = [16, 1], strides = [1, 1]} : vector<16x16xi32> to vector<16x1xi32>
      %116 = vector.shape_cast %115 : vector<16x1xi32> to vector<16x1x1xi32>
      %117 = vector.extract_strided_slice %12 {offsets = [0, 13], sizes = [16, 1], strides = [1, 1]} : vector<16x16xi32> to vector<16x1xi32>
      %118 = vector.shape_cast %117 : vector<16x1xi32> to vector<16x1x1xi32>
      %119 = vector.broadcast %16 : vector<1x1x16xi32> to vector<16x1x16xi32>
      %120 = vector.broadcast %116 : vector<16x1x1xi32> to vector<16x1x16xi32>
      %121 = arith.cmpi sge, %119, %120 : vector<16x1x16xi32>
      %122 = vector.broadcast %16 : vector<1x1x16xi32> to vector<16x1x16xi32>
      %123 = vector.broadcast %118 : vector<16x1x1xi32> to vector<16x1x16xi32>
      %124 = arith.cmpi slt, %122, %123 : vector<16x1x16xi32>
      %125 = arith.andi %121, %124 : vector<16x1x16xi1>
      %126 = vector.extract_strided_slice %12 {offsets = [0, 13], sizes = [16, 1], strides = [1, 1]} : vector<16x16xi32> to vector<16x1xi32>
      %127 = vector.extract_strided_slice %12 {offsets = [0, 9], sizes = [16, 1], strides = [1, 1]} : vector<16x16xi32> to vector<16x1xi32>
      %128 = arith.cmpi sle, %126, %127 : vector<16x1xi32>
      %129 = vector.extract_strided_slice %12 {offsets = [0, 10], sizes = [16, 1], strides = [1, 1]} : vector<16x16xi32> to vector<16x1xi32>
      %130 = vector.shape_cast %129 : vector<16x1xi32> to vector<16x1x1xi32>
      %131 = vector.extract_strided_slice %12 {offsets = [0, 14], sizes = [16, 1], strides = [1, 1]} : vector<16x16xi32> to vector<16x1xi32>
      %132 = vector.shape_cast %131 : vector<16x1xi32> to vector<16x1x1xi32>
      %133 = vector.broadcast %16 : vector<1x1x16xi32> to vector<16x1x16xi32>
      %134 = vector.broadcast %130 : vector<16x1x1xi32> to vector<16x1x16xi32>
      %135 = arith.cmpi sge, %133, %134 : vector<16x1x16xi32>
      %136 = vector.broadcast %16 : vector<1x1x16xi32> to vector<16x1x16xi32>
      %137 = vector.broadcast %132 : vector<16x1x1xi32> to vector<16x1x16xi32>
      %138 = arith.cmpi slt, %136, %137 : vector<16x1x16xi32>
      %139 = arith.andi %135, %138 : vector<16x1x16xi1>
      %140 = vector.extract_strided_slice %12 {offsets = [0, 14], sizes = [16, 1], strides = [1, 1]} : vector<16x16xi32> to vector<16x1xi32>
      %141 = vector.extract_strided_slice %12 {offsets = [0, 10], sizes = [16, 1], strides = [1, 1]} : vector<16x16xi32> to vector<16x1xi32>
      %142 = arith.cmpi sle, %140, %141 : vector<16x1xi32>
      %143 = vector.extract_strided_slice %12 {offsets = [0, 11], sizes = [16, 1], strides = [1, 1]} : vector<16x16xi32> to vector<16x1xi32>
      %144 = vector.shape_cast %143 : vector<16x1xi32> to vector<16x1x1xi32>
      %145 = vector.extract_strided_slice %12 {offsets = [0, 15], sizes = [16, 1], strides = [1, 1]} : vector<16x16xi32> to vector<16x1xi32>
      %146 = vector.shape_cast %145 : vector<16x1xi32> to vector<16x1x1xi32>
      %147 = vector.broadcast %16 : vector<1x1x16xi32> to vector<16x1x16xi32>
      %148 = vector.broadcast %144 : vector<16x1x1xi32> to vector<16x1x16xi32>
      %149 = arith.cmpi sge, %147, %148 : vector<16x1x16xi32>
      %150 = vector.broadcast %16 : vector<1x1x16xi32> to vector<16x1x16xi32>
      %151 = vector.broadcast %146 : vector<16x1x1xi32> to vector<16x1x16xi32>
      %152 = arith.cmpi slt, %150, %151 : vector<16x1x16xi32>
      %153 = arith.andi %149, %152 : vector<16x1x16xi1>
      %154 = vector.extract_strided_slice %12 {offsets = [0, 15], sizes = [16, 1], strides = [1, 1]} : vector<16x16xi32> to vector<16x1xi32>
      %155 = vector.extract_strided_slice %12 {offsets = [0, 11], sizes = [16, 1], strides = [1, 1]} : vector<16x16xi32> to vector<16x1xi32>
      %156 = arith.cmpi sle, %154, %155 : vector<16x1xi32>
      %cst_23 = arith.constant 0xFF800000 : f32
      %157 = vector.shape_cast %111 : vector<16x1x16xi1> to vector<16x1x16xi1>
      %158 = vector.broadcast %157 : vector<16x1x16xi1> to vector<16x4x16xi1>
      %159 = vector.broadcast %cst_23 : f32 to vector<16x4x16xf32>
      %160 = arith.select %158, %34, %159 : vector<16x4x16xi1>, vector<16x4x16xf32>
      %cst_24 = arith.constant dense<0xFF800000> : vector<16x4xf32>
      %161 = vector.multi_reduction <maximumf>, %160, %cst_24 [2] : vector<16x4x16xf32> to vector<16x4xf32>
      %162 = arith.ori %37, %114 : vector<16x1xi1>
      %cst_25 = arith.constant 0.000000e+00 : f32
      %163 = vector.shape_cast %162 : vector<16x1xi1> to vector<16x1xi1>
      %164 = vector.broadcast %163 : vector<16x1xi1> to vector<16x4xi1>
      %165 = vector.broadcast %cst_25 : f32 to vector<16x4xf32>
      %166 = arith.select %164, %165, %161 : vector<16x4xi1>, vector<16x4xf32>
      %cst_26 = arith.constant 0xFF800000 : f32
      %167 = vector.shape_cast %125 : vector<16x1x16xi1> to vector<16x1x16xi1>
      %168 = vector.broadcast %167 : vector<16x1x16xi1> to vector<16x4x16xi1>
      %169 = vector.broadcast %cst_26 : f32 to vector<16x4x16xf32>
      %170 = arith.select %168, %34, %169 : vector<16x4x16xi1>, vector<16x4x16xf32>
      %cst_27 = arith.constant dense<0xFF800000> : vector<16x4xf32>
      %171 = vector.multi_reduction <maximumf>, %170, %cst_27 [2] : vector<16x4x16xf32> to vector<16x4xf32>
      %172 = arith.ori %37, %128 : vector<16x1xi1>
      %cst_28 = arith.constant 0.000000e+00 : f32
      %173 = vector.shape_cast %172 : vector<16x1xi1> to vector<16x1xi1>
      %174 = vector.broadcast %173 : vector<16x1xi1> to vector<16x4xi1>
      %175 = vector.broadcast %cst_28 : f32 to vector<16x4xf32>
      %176 = arith.select %174, %175, %171 : vector<16x4xi1>, vector<16x4xf32>
      %cst_29 = arith.constant 0xFF800000 : f32
      %177 = vector.shape_cast %139 : vector<16x1x16xi1> to vector<16x1x16xi1>
      %178 = vector.broadcast %177 : vector<16x1x16xi1> to vector<16x4x16xi1>
      %179 = vector.broadcast %cst_29 : f32 to vector<16x4x16xf32>
      %180 = arith.select %178, %34, %179 : vector<16x4x16xi1>, vector<16x4x16xf32>
      %cst_30 = arith.constant dense<0xFF800000> : vector<16x4xf32>
      %181 = vector.multi_reduction <maximumf>, %180, %cst_30 [2] : vector<16x4x16xf32> to vector<16x4xf32>
      %182 = arith.ori %37, %142 : vector<16x1xi1>
      %cst_31 = arith.constant 0.000000e+00 : f32
      %183 = vector.shape_cast %182 : vector<16x1xi1> to vector<16x1xi1>
      %184 = vector.broadcast %183 : vector<16x1xi1> to vector<16x4xi1>
      %185 = vector.broadcast %cst_31 : f32 to vector<16x4xf32>
      %186 = arith.select %184, %185, %181 : vector<16x4xi1>, vector<16x4xf32>
      %cst_32 = arith.constant 0xFF800000 : f32
      %187 = vector.shape_cast %153 : vector<16x1x16xi1> to vector<16x1x16xi1>
      %188 = vector.broadcast %187 : vector<16x1x16xi1> to vector<16x4x16xi1>
      %189 = vector.broadcast %cst_32 : f32 to vector<16x4x16xf32>
      %190 = arith.select %188, %34, %189 : vector<16x4x16xi1>, vector<16x4x16xf32>
      %cst_33 = arith.constant dense<0xFF800000> : vector<16x4xf32>
      %191 = vector.multi_reduction <maximumf>, %190, %cst_33 [2] : vector<16x4x16xf32> to vector<16x4xf32>
      %192 = arith.ori %37, %156 : vector<16x1xi1>
      %cst_34 = arith.constant 0.000000e+00 : f32
      %193 = vector.shape_cast %192 : vector<16x1xi1> to vector<16x1xi1>
      %194 = vector.broadcast %193 : vector<16x1xi1> to vector<16x4xi1>
      %195 = vector.broadcast %cst_34 : f32 to vector<16x4xf32>
      %196 = arith.select %194, %195, %191 : vector<16x4xi1>, vector<16x4xf32>
      %cst_35 = arith.constant 0xFF800000 : f32
      %197 = vector.shape_cast %111 : vector<16x1x16xi1> to vector<16x1x16xi1>
      %198 = vector.broadcast %197 : vector<16x1x16xi1> to vector<16x4x16xi1>
      %199 = vector.broadcast %cst_35 : f32 to vector<16x4x16xf32>
      %200 = arith.select %198, %55, %199 : vector<16x4x16xi1>, vector<16x4x16xf32>
      %cst_36 = arith.constant dense<0xFF800000> : vector<16x4xf32>
      %201 = vector.multi_reduction <maximumf>, %200, %cst_36 [2] : vector<16x4x16xf32> to vector<16x4xf32>
      %202 = arith.ori %58, %114 : vector<16x1xi1>
      %cst_37 = arith.constant 0.000000e+00 : f32
      %203 = vector.shape_cast %202 : vector<16x1xi1> to vector<16x1xi1>
      %204 = vector.broadcast %203 : vector<16x1xi1> to vector<16x4xi1>
      %205 = vector.broadcast %cst_37 : f32 to vector<16x4xf32>
      %206 = arith.select %204, %205, %201 : vector<16x4xi1>, vector<16x4xf32>
      %cst_38 = arith.constant 0xFF800000 : f32
      %207 = vector.shape_cast %125 : vector<16x1x16xi1> to vector<16x1x16xi1>
      %208 = vector.broadcast %207 : vector<16x1x16xi1> to vector<16x4x16xi1>
      %209 = vector.broadcast %cst_38 : f32 to vector<16x4x16xf32>
      %210 = arith.select %208, %55, %209 : vector<16x4x16xi1>, vector<16x4x16xf32>
      %cst_39 = arith.constant dense<0xFF800000> : vector<16x4xf32>
      %211 = vector.multi_reduction <maximumf>, %210, %cst_39 [2] : vector<16x4x16xf32> to vector<16x4xf32>
      %212 = arith.ori %58, %128 : vector<16x1xi1>
      %cst_40 = arith.constant 0.000000e+00 : f32
      %213 = vector.shape_cast %212 : vector<16x1xi1> to vector<16x1xi1>
      %214 = vector.broadcast %213 : vector<16x1xi1> to vector<16x4xi1>
      %215 = vector.broadcast %cst_40 : f32 to vector<16x4xf32>
      %216 = arith.select %214, %215, %211 : vector<16x4xi1>, vector<16x4xf32>
      %cst_41 = arith.constant 0xFF800000 : f32
      %217 = vector.shape_cast %139 : vector<16x1x16xi1> to vector<16x1x16xi1>
      %218 = vector.broadcast %217 : vector<16x1x16xi1> to vector<16x4x16xi1>
      %219 = vector.broadcast %cst_41 : f32 to vector<16x4x16xf32>
      %220 = arith.select %218, %55, %219 : vector<16x4x16xi1>, vector<16x4x16xf32>
      %cst_42 = arith.constant dense<0xFF800000> : vector<16x4xf32>
      %221 = vector.multi_reduction <maximumf>, %220, %cst_42 [2] : vector<16x4x16xf32> to vector<16x4xf32>
      %222 = arith.ori %58, %142 : vector<16x1xi1>
      %cst_43 = arith.constant 0.000000e+00 : f32
      %223 = vector.shape_cast %222 : vector<16x1xi1> to vector<16x1xi1>
      %224 = vector.broadcast %223 : vector<16x1xi1> to vector<16x4xi1>
      %225 = vector.broadcast %cst_43 : f32 to vector<16x4xf32>
      %226 = arith.select %224, %225, %221 : vector<16x4xi1>, vector<16x4xf32>
      %cst_44 = arith.constant 0xFF800000 : f32
      %227 = vector.shape_cast %153 : vector<16x1x16xi1> to vector<16x1x16xi1>
      %228 = vector.broadcast %227 : vector<16x1x16xi1> to vector<16x4x16xi1>
      %229 = vector.broadcast %cst_44 : f32 to vector<16x4x16xf32>
      %230 = arith.select %228, %55, %229 : vector<16x4x16xi1>, vector<16x4x16xf32>
      %cst_45 = arith.constant dense<0xFF800000> : vector<16x4xf32>
      %231 = vector.multi_reduction <maximumf>, %230, %cst_45 [2] : vector<16x4x16xf32> to vector<16x4xf32>
      %232 = arith.ori %58, %156 : vector<16x1xi1>
      %cst_46 = arith.constant 0.000000e+00 : f32
      %233 = vector.shape_cast %232 : vector<16x1xi1> to vector<16x1xi1>
      %234 = vector.broadcast %233 : vector<16x1xi1> to vector<16x4xi1>
      %235 = vector.broadcast %cst_46 : f32 to vector<16x4xf32>
      %236 = arith.select %234, %235, %231 : vector<16x4xi1>, vector<16x4xf32>
      %cst_47 = arith.constant 0xFF800000 : f32
      %237 = vector.shape_cast %111 : vector<16x1x16xi1> to vector<16x1x16xi1>
      %238 = vector.broadcast %237 : vector<16x1x16xi1> to vector<16x4x16xi1>
      %239 = vector.broadcast %cst_47 : f32 to vector<16x4x16xf32>
      %240 = arith.select %238, %76, %239 : vector<16x4x16xi1>, vector<16x4x16xf32>
      %cst_48 = arith.constant dense<0xFF800000> : vector<16x4xf32>
      %241 = vector.multi_reduction <maximumf>, %240, %cst_48 [2] : vector<16x4x16xf32> to vector<16x4xf32>
      %242 = arith.ori %79, %114 : vector<16x1xi1>
      %cst_49 = arith.constant 0.000000e+00 : f32
      %243 = vector.shape_cast %242 : vector<16x1xi1> to vector<16x1xi1>
      %244 = vector.broadcast %243 : vector<16x1xi1> to vector<16x4xi1>
      %245 = vector.broadcast %cst_49 : f32 to vector<16x4xf32>
      %246 = arith.select %244, %245, %241 : vector<16x4xi1>, vector<16x4xf32>
      %cst_50 = arith.constant 0xFF800000 : f32
      %247 = vector.shape_cast %125 : vector<16x1x16xi1> to vector<16x1x16xi1>
      %248 = vector.broadcast %247 : vector<16x1x16xi1> to vector<16x4x16xi1>
      %249 = vector.broadcast %cst_50 : f32 to vector<16x4x16xf32>
      %250 = arith.select %248, %76, %249 : vector<16x4x16xi1>, vector<16x4x16xf32>
      %cst_51 = arith.constant dense<0xFF800000> : vector<16x4xf32>
      %251 = vector.multi_reduction <maximumf>, %250, %cst_51 [2] : vector<16x4x16xf32> to vector<16x4xf32>
      %252 = arith.ori %79, %128 : vector<16x1xi1>
      %cst_52 = arith.constant 0.000000e+00 : f32
      %253 = vector.shape_cast %252 : vector<16x1xi1> to vector<16x1xi1>
      %254 = vector.broadcast %253 : vector<16x1xi1> to vector<16x4xi1>
      %255 = vector.broadcast %cst_52 : f32 to vector<16x4xf32>
      %256 = arith.select %254, %255, %251 : vector<16x4xi1>, vector<16x4xf32>
      %cst_53 = arith.constant 0xFF800000 : f32
      %257 = vector.shape_cast %139 : vector<16x1x16xi1> to vector<16x1x16xi1>
      %258 = vector.broadcast %257 : vector<16x1x16xi1> to vector<16x4x16xi1>
      %259 = vector.broadcast %cst_53 : f32 to vector<16x4x16xf32>
      %260 = arith.select %258, %76, %259 : vector<16x4x16xi1>, vector<16x4x16xf32>
      %cst_54 = arith.constant dense<0xFF800000> : vector<16x4xf32>
      %261 = vector.multi_reduction <maximumf>, %260, %cst_54 [2] : vector<16x4x16xf32> to vector<16x4xf32>
      %262 = arith.ori %79, %142 : vector<16x1xi1>
      %cst_55 = arith.constant 0.000000e+00 : f32
      %263 = vector.shape_cast %262 : vector<16x1xi1> to vector<16x1xi1>
      %264 = vector.broadcast %263 : vector<16x1xi1> to vector<16x4xi1>
      %265 = vector.broadcast %cst_55 : f32 to vector<16x4xf32>
      %266 = arith.select %264, %265, %261 : vector<16x4xi1>, vector<16x4xf32>
      %cst_56 = arith.constant 0xFF800000 : f32
      %267 = vector.shape_cast %153 : vector<16x1x16xi1> to vector<16x1x16xi1>
      %268 = vector.broadcast %267 : vector<16x1x16xi1> to vector<16x4x16xi1>
      %269 = vector.broadcast %cst_56 : f32 to vector<16x4x16xf32>
      %270 = arith.select %268, %76, %269 : vector<16x4x16xi1>, vector<16x4x16xf32>
      %cst_57 = arith.constant dense<0xFF800000> : vector<16x4xf32>
      %271 = vector.multi_reduction <maximumf>, %270, %cst_57 [2] : vector<16x4x16xf32> to vector<16x4xf32>
      %272 = arith.ori %79, %156 : vector<16x1xi1>
      %cst_58 = arith.constant 0.000000e+00 : f32
      %273 = vector.shape_cast %272 : vector<16x1xi1> to vector<16x1xi1>
      %274 = vector.broadcast %273 : vector<16x1xi1> to vector<16x4xi1>
      %275 = vector.broadcast %cst_58 : f32 to vector<16x4xf32>
      %276 = arith.select %274, %275, %271 : vector<16x4xi1>, vector<16x4xf32>
      %cst_59 = arith.constant 0xFF800000 : f32
      %277 = vector.shape_cast %111 : vector<16x1x16xi1> to vector<16x1x16xi1>
      %278 = vector.broadcast %277 : vector<16x1x16xi1> to vector<16x4x16xi1>
      %279 = vector.broadcast %cst_59 : f32 to vector<16x4x16xf32>
      %280 = arith.select %278, %97, %279 : vector<16x4x16xi1>, vector<16x4x16xf32>
      %cst_60 = arith.constant dense<0xFF800000> : vector<16x4xf32>
      %281 = vector.multi_reduction <maximumf>, %280, %cst_60 [2] : vector<16x4x16xf32> to vector<16x4xf32>
      %282 = arith.ori %100, %114 : vector<16x1xi1>
      %cst_61 = arith.constant 0.000000e+00 : f32
      %283 = vector.shape_cast %282 : vector<16x1xi1> to vector<16x1xi1>
      %284 = vector.broadcast %283 : vector<16x1xi1> to vector<16x4xi1>
      %285 = vector.broadcast %cst_61 : f32 to vector<16x4xf32>
      %286 = arith.select %284, %285, %281 : vector<16x4xi1>, vector<16x4xf32>
      %cst_62 = arith.constant 0xFF800000 : f32
      %287 = vector.shape_cast %125 : vector<16x1x16xi1> to vector<16x1x16xi1>
      %288 = vector.broadcast %287 : vector<16x1x16xi1> to vector<16x4x16xi1>
      %289 = vector.broadcast %cst_62 : f32 to vector<16x4x16xf32>
      %290 = arith.select %288, %97, %289 : vector<16x4x16xi1>, vector<16x4x16xf32>
      %cst_63 = arith.constant dense<0xFF800000> : vector<16x4xf32>
      %291 = vector.multi_reduction <maximumf>, %290, %cst_63 [2] : vector<16x4x16xf32> to vector<16x4xf32>
      %292 = arith.ori %100, %128 : vector<16x1xi1>
      %cst_64 = arith.constant 0.000000e+00 : f32
      %293 = vector.shape_cast %292 : vector<16x1xi1> to vector<16x1xi1>
      %294 = vector.broadcast %293 : vector<16x1xi1> to vector<16x4xi1>
      %295 = vector.broadcast %cst_64 : f32 to vector<16x4xf32>
      %296 = arith.select %294, %295, %291 : vector<16x4xi1>, vector<16x4xf32>
      %cst_65 = arith.constant 0xFF800000 : f32
      %297 = vector.shape_cast %139 : vector<16x1x16xi1> to vector<16x1x16xi1>
      %298 = vector.broadcast %297 : vector<16x1x16xi1> to vector<16x4x16xi1>
      %299 = vector.broadcast %cst_65 : f32 to vector<16x4x16xf32>
      %300 = arith.select %298, %97, %299 : vector<16x4x16xi1>, vector<16x4x16xf32>
      %cst_66 = arith.constant dense<0xFF800000> : vector<16x4xf32>
      %301 = vector.multi_reduction <maximumf>, %300, %cst_66 [2] : vector<16x4x16xf32> to vector<16x4xf32>
      %302 = arith.ori %100, %142 : vector<16x1xi1>
      %cst_67 = arith.constant 0.000000e+00 : f32
      %303 = vector.shape_cast %302 : vector<16x1xi1> to vector<16x1xi1>
      %304 = vector.broadcast %303 : vector<16x1xi1> to vector<16x4xi1>
      %305 = vector.broadcast %cst_67 : f32 to vector<16x4xf32>
      %306 = arith.select %304, %305, %301 : vector<16x4xi1>, vector<16x4xf32>
      %cst_68 = arith.constant 0xFF800000 : f32
      %307 = vector.shape_cast %153 : vector<16x1x16xi1> to vector<16x1x16xi1>
      %308 = vector.broadcast %307 : vector<16x1x16xi1> to vector<16x4x16xi1>
      %309 = vector.broadcast %cst_68 : f32 to vector<16x4x16xf32>
      %310 = arith.select %308, %97, %309 : vector<16x4x16xi1>, vector<16x4x16xf32>
      %cst_69 = arith.constant dense<0xFF800000> : vector<16x4xf32>
      %311 = vector.multi_reduction <maximumf>, %310, %cst_69 [2] : vector<16x4x16xf32> to vector<16x4xf32>
      %312 = arith.ori %100, %156 : vector<16x1xi1>
      %cst_70 = arith.constant 0.000000e+00 : f32
      %313 = vector.shape_cast %312 : vector<16x1xi1> to vector<16x1xi1>
      %314 = vector.broadcast %313 : vector<16x1xi1> to vector<16x4xi1>
      %315 = vector.broadcast %cst_70 : f32 to vector<16x4xf32>
      %316 = arith.select %314, %315, %311 : vector<16x4xi1>, vector<16x4xf32>
      %317 = tpu.concatenate %166, %176, %186, %196, %206, %216, %226, %236, %246, %256, %266, %276, %286, %296, %306, %316 in 1 : vector<16x4xf32>, vector<16x4xf32>, vector<16x4xf32>, vector<16x4xf32>, vector<16x4xf32>, vector<16x4xf32>, vector<16x4xf32>, vector<16x4xf32>, vector<16x4xf32>, vector<16x4xf32>, vector<16x4xf32>, vector<16x4xf32>, vector<16x4xf32>, vector<16x4xf32>, vector<16x4xf32>, vector<16x4xf32> -> vector<16x64xf32>
      %318 = arith.truncf %317 : vector<16x64xf32> to vector<16x64xbf16>
      %c0_71 = arith.constant 0 : index
      %c0_72 = arith.constant 0 : index
      %319 = vector.load %arg11[%c0_71, %c0_72] : memref<16x64xbf16, #tpu.memory_space<vmem>>, vector<16x64xbf16>
      tpu.vector_store %arg11[%c0_71, %c0_72], %318 {strides = array<i32>} : memref<16x64xbf16, #tpu.memory_space<vmem>>, vector<16x64xbf16>,
      %cst_73 = arith.constant 0.000000e+00 : f32
      %320 = vector.broadcast %cst_73 : f32 to vector<16x32xf32>
      %c0_74 = arith.constant 0 : index
      %c0_75 = arith.constant 0 : index
      %321 = vector.load %arg12[%c0_74, %c0_75] : memref<16x32xf32, #tpu.memory_space<vmem>>, vector<16x32xf32>
      tpu.vector_store %arg12[%c0_74, %c0_75], %320 {strides = array<i32>} : memref<16x32xf32, #tpu.memory_space<vmem>>, vector<16x32xf32>,
    } else {
    }
    %c0 = arith.constant 0 : index
    %c0_1 = arith.constant 0 : index
    %3 = vector.load %arg11[%c0, %c0_1] : memref<16x64xbf16, #tpu.memory_space<vmem>>, vector<16x64xbf16>
    %c0_2 = arith.constant 0 : index
    %c0_3 = arith.constant 0 : index
    %4 = vector.load %arg12[%c0_2, %c0_3] : memref<16x32xf32, #tpu.memory_space<vmem>>, vector<16x32xf32>
    %c0_4 = arith.constant 0 : index
    %c0_5 = arith.constant 0 : index
    %5 = vector.load %arg4[%c0_4, %c0_5] : memref<64x32xbf16, #tpu.memory_space<vmem>>, vector<64x32xbf16>
    %cst = arith.constant dense<0.000000e+00> : vector<16x32xf32>
    %6 = tpu.matmul %3, %5, %cst {dimension_numbers = #tpu.dot_dimension_numbers<[1], [0], [0], [1], [0, 0, 1, 1], [], []>} : vector<16x64xbf16>, vector<64x32xbf16>, vector<16x32xf32> -> vector<16x32xf32>
    %7 = arith.addf %4, %6 : vector<16x32xf32>
    %c0_6 = arith.constant 0 : index
    %c0_7 = arith.constant 0 : index
    %8 = vector.load %arg12[%c0_6, %c0_7] : memref<16x32xf32, #tpu.memory_space<vmem>>, vector<16x32xf32>
    tpu.vector_store %arg12[%c0_6, %c0_7], %7 {strides = array<i32>} : memref<16x32xf32, #tpu.memory_space<vmem>>, vector<16x32xf32>,
    %c0_i32_8 = arith.constant 0 : i32
    %9 = arith.cmpi eq, %arg1, %c0_i32_8 : i32
    %10 = arith.extui %9 : i1 to i32
    %c0_i32_9 = arith.constant 0 : i32
    %11 = arith.cmpi ne, %10, %c0_i32_9 : i32
    scf.if %11 {
      %c0_10 = arith.constant 0 : index
      %c0_11 = arith.constant 0 : index
      %12 = vector.load %arg12[%c0_10, %c0_11] : memref<16x32xf32, #tpu.memory_space<vmem>>, vector<16x32xf32>
      %c0_12 = arith.constant 0 : index
      %c0_13 = arith.constant 0 : index
      %13 = vector.load %arg5[%c0_12, %c0_13] : memref<1x32xf32, #tpu.memory_space<vmem>>, vector<1x32xf32>
      %14 = vector.broadcast %13 : vector<1x32xf32> to vector<16x32xf32>
      %15 = arith.addf %12, %14 : vector<16x32xf32>
      %cst_14 = arith.constant 0.000000e+00 : f32
      %16 = vector.broadcast %cst_14 : f32 to vector<16x32xf32>
      %17 = arith.maximumf %15, %16 : vector<16x32xf32>
      %18 = arith.truncf %17 : vector<16x32xf32> to vector<16x32xbf16>
      %c0_15 = arith.constant 0 : index
      %c0_16 = arith.constant 0 : index
      %19 = vector.load %arg6[%c0_15, %c0_16] : memref<32x32xbf16, #tpu.memory_space<vmem>>, vector<32x32xbf16>
      %cst_17 = arith.constant dense<0.000000e+00> : vector<16x32xf32>
      %20 = tpu.matmul %18, %19, %cst_17 {dimension_numbers = #tpu.dot_dimension_numbers<[1], [0], [0], [1], [0, 0, 1, 1], [], []>} : vector<16x32xbf16>, vector<32x32xbf16>, vector<16x32xf32> -> vector<16x32xf32>
      %c0_18 = arith.constant 0 : index
      %c0_19 = arith.constant 0 : index
      %21 = vector.load %arg7[%c0_18, %c0_19] : memref<1x32xf32, #tpu.memory_space<vmem>>, vector<1x32xf32>
      %22 = vector.broadcast %21 : vector<1x32xf32> to vector<16x32xf32>
      %23 = arith.addf %20, %22 : vector<16x32xf32>
      %cst_20 = arith.constant 0.000000e+00 : f32
      %24 = vector.broadcast %cst_20 : f32 to vector<16x32xf32>
      %25 = arith.maximumf %23, %24 : vector<16x32xf32>
      %26 = arith.truncf %25 : vector<16x32xf32> to vector<16x32xbf16>
      %c0_21 = arith.constant 0 : index
      %c0_22 = arith.constant 0 : index
      %27 = vector.load %arg8[%c0_21, %c0_22] : memref<32x25xbf16, #tpu.memory_space<vmem>>, vector<32x25xbf16>
      %cst_23 = arith.constant dense<0.000000e+00> : vector<16x25xf32>
      %28 = tpu.matmul %26, %27, %cst_23 {dimension_numbers = #tpu.dot_dimension_numbers<[1], [0], [0], [1], [0, 0, 1, 1], [], []>} : vector<16x32xbf16>, vector<32x25xbf16>, vector<16x25xf32> -> vector<16x25xf32>
      %c0_24 = arith.constant 0 : index
      %c0_25 = arith.constant 0 : index
      %29 = vector.load %arg9[%c0_24, %c0_25] : memref<1x25xf32, #tpu.memory_space<vmem>>, vector<1x25xf32>
      %30 = vector.broadcast %29 : vector<1x25xf32> to vector<16x25xf32>
      %31 = arith.addf %28, %30 : vector<16x25xf32>
      %32 = vector.extract_strided_slice %31 {offsets = [0, 0], sizes = [16, 5], strides = [1, 1]} : vector<16x25xf32> to vector<16x5xf32>
      %33 = vector.extract_strided_slice %31 {offsets = [0, 5], sizes = [16, 20], strides = [1, 1]} : vector<16x25xf32> to vector<16x20xf32>
      %cst_26 = arith.constant dense<0xFF800000> : vector<16xf32>
      %34 = vector.multi_reduction <maximumf>, %32, %cst_26 [1] : vector<16x5xf32> to vector<16xf32>
      %35 = vector.shape_cast %34 : vector<16xf32> to vector<16x1xf32>
      %36 = vector.broadcast %35 : vector<16x1xf32> to vector<16x5xf32>
      %37 = arith.subf %32, %36 : vector<16x5xf32>
      %38 = math.exp %37 : vector<16x5xf32>
      %cst_27 = arith.constant dense<0.000000e+00> : vector<16xf32>
      %39 = vector.multi_reduction <add>, %38, %cst_27 [1] : vector<16x5xf32> to vector<16xf32>
      %40 = vector.shape_cast %39 : vector<16xf32> to vector<16x1xf32>
      %41 = vector.broadcast %40 : vector<16x1xf32> to vector<16x5xf32>
      %42 = arith.divf %38, %41 : vector<16x5xf32>
      %cst_28 = arith.constant 0.000000e+00 : f32
      %43 = vector.broadcast %cst_28 : f32 to vector<16x98xf32>
      %44 = tpu.concatenate %32, %42, %33, %43 in 1 : vector<16x5xf32>, vector<16x5xf32>, vector<16x20xf32>, vector<16x98xf32> -> vector<16x128xf32>
      %c0_29 = arith.constant 0 : index
      %c0_30 = arith.constant 0 : index
      %45 = vector.load %arg10[%c0_29, %c0_30] : memref<16x128xf32, #tpu.memory_space<vmem>>, vector<16x128xf32>
      tpu.vector_store %arg10[%c0_29, %c0_30], %44 {strides = array<i32>} : memref<16x128xf32, #tpu.memory_space<vmem>>, vector<16x128xf32>,
    } else {
    }
    return
  }
  func.func @transform_0(%arg0: i32, %arg1: i32) -> (i32, i32) {
    %c0_i32 = arith.constant 0 : i32
    %c0_i32_0 = arith.constant 0 : i32
    return %arg0, %c0_i32 : i32, i32
  }
  func.func @transform_1(%arg0: i32, %arg1: i32) -> (i32, i32, i32) {
    %c0_i32 = arith.constant 0 : i32
    %c0_i32_0 = arith.constant 0 : i32
    %c0_i32_1 = arith.constant 0 : i32
    %c0_i32_2 = arith.constant 0 : i32
    return %c0_i32, %c0_i32_0, %c0_i32_1 : i32, i32, i32
  }
  func.func @transform_2(%arg0: i32, %arg1: i32) -> (i32, i32) {
    %c0_i32 = arith.constant 0 : i32
    %c0_i32_0 = arith.constant 0 : i32
    return %arg1, %c0_i32 : i32, i32
  }
  func.func @transform_3(%arg0: i32, %arg1: i32) -> (i32, i32) {
    %c0_i32 = arith.constant 0 : i32
    %c0_i32_0 = arith.constant 0 : i32
    %c0_i32_1 = arith.constant 0 : i32
    return %c0_i32, %c0_i32_0 : i32, i32
  }
  func.func @transform_4(%arg0: i32, %arg1: i32) -> (i32, i32) {
    %c0_i32 = arith.constant 0 : i32
    %c0_i32_0 = arith.constant 0 : i32
    %c0_i32_1 = arith.constant 0 : i32
    return %c0_i32, %c0_i32_0 : i32, i32
  }
  func.func @transform_5(%arg0: i32, %arg1: i32) -> (i32, i32) {
    %c0_i32 = arith.constant 0 : i32
    %c0_i32_0 = arith.constant 0 : i32
    %c0_i32_1 = arith.constant 0 : i32
    return %c0_i32, %c0_i32_0 : i32, i32
  }
  func.func @transform_6(%arg0: i32, %arg1: i32) -> (i32, i32) {
    %c0_i32 = arith.constant 0 : i32
    %c0_i32_0 = arith.constant 0 : i32
    %c0_i32_1 = arith.constant 0 : i32
    return %c0_i32, %c0_i32_0 : i32, i32
  }
  func.func @transform_7(%arg0: i32, %arg1: i32) -> (i32, i32) {
    %c0_i32 = arith.constant 0 : i32
    %c0_i32_0 = arith.constant 0 : i32
    %c0_i32_1 = arith.constant 0 : i32
    return %c0_i32, %c0_i32_0 : i32, i32
  }
  func.func @transform_8(%arg0: i32, %arg1: i32) -> (i32, i32) {
    %c0_i32 = arith.constant 0 : i32
    %c0_i32_0 = arith.constant 0 : i32
    return %arg0, %c0_i32 : i32, i32
  }
}

</mosaic_0001>

<llo_original>
// kernel: tpu_custom_call.1
$region0: #{tpu_custom_call.1}
  #allocation0 [shape = 'u32[]', space=smem, size = 0x4, offset = 0x4, fixed_abs, tag = 'smem constant byte address 0x4 - core index']
  #allocation1 [shape = 'u32[144,128]{1,0:T(1,128)}', space=vmem, size = 0x12000, scoped, tag = 'internal scratch']
  #allocation2 [shape = 'bf16[16,64]{1,0:T(16,128)(2,1)}', space=vmem, size = 0x1000, scoped, tag = 'scratch operand']
  #allocation3 [shape = 'f32[16,32]{1,0:T(8,128)}', space=vmem, size = 0x2000, scoped, tag = 'scratch operand']
  %s0 = inlined_call_operand.vmem [shape: s32[16,16], index: 0, kind: input, shape index: {}]
  %s1 = inlined_call_operand.hbm [shape: f32[4,16,16], index: 1, kind: input, shape index: {}]
  %s2 = inlined_call_operand.vmem [shape: bf16[64,32], index: 2, kind: input, shape index: {}]
  %s3 = inlined_call_operand.vmem [shape: f32[1,32], index: 3, kind: input, shape index: {}]
  %s4 = inlined_call_operand.vmem [shape: bf16[32,32], index: 4, kind: input, shape index: {}]
  %s5 = inlined_call_operand.vmem [shape: f32[1,32], index: 5, kind: input, shape index: {}]
  %s6 = inlined_call_operand.vmem [shape: bf16[32,25], index: 6, kind: input, shape index: {}]
  %s7 = inlined_call_operand.vmem [shape: f32[1,25], index: 7, kind: input, shape index: {}]
  %s8 = inlined_call_operand.hbm [shape: f32[16,128], index: 8, kind: output, shape index: {}]
  %s9 = sld [smem:[#allocation0]]
  $region54: #{tpu_custom_call.1} parent=0
    _
  %s11 = ssub.s32 1, %s9
  %s12 = scalar_select 0, %s11, %s9
  $region1: #{tpu_custom_call.1} parent=0
    #allocation4 [shape = 'u8[32768]{0}', space=vmem, size = 0x8000, scoped, tag = 'input window, operand 1, single buffered']
    #allocation5 [shape = 's32[1]{0}', space=sflag, size = 0x4, scoped, tag = 'scoped memory for tpu_custom_call.1']
    #allocation6 [shape = 's32[1]{0}', space=sflag, size = 0x4, scoped, tag = 'scoped memory for tpu_custom_call.1']
    #allocation7 [shape = 'u8[8192]{0}', space=vmem, size = 0x2000, scoped, tag = 'output window, operand 0, single buffered']
    %13 = vsyncpa [#allocation5], 0
    %14 = vsyncpa [#allocation6], 0
    // Predicated region
    $region2: #{tpu_custom_call.1} parent=1 // pred_check
      _
    $region3: #{tpu_custom_call.1} parent=1 // pred_check_branch
      %16 = sbr.rel (0) target = $region5
    $region4: #{tpu_custom_call.1} parent=1 // pred_region
      _
    $region5: #{tpu_custom_call.1} parent=1 // pred_fallthru
      _
    // Predicated region
    $region6: #{tpu_custom_call.1} parent=1 // pred_check
      _
    $region7: #{tpu_custom_call.1} parent=1 // pred_check_branch
      %18 = sbr.rel (0) target = $region9
    $region8: #{tpu_custom_call.1} parent=1 // pred_region
      %s20 = ssub.s32 1024, 1024
      %21 = vsyncadd [#allocation5], %s20
      %s22 = sshll.u32 [#allocation4], 4
      %s23 = int_to_ptr.vmem [resolvable:$true] %s22
      %28 = dma.hbm_to_vmem [thread:$0]  %s1, 1024, %s23, [#allocation5], 128, 128, 8
    $region9: #{tpu_custom_call.1} parent=1 // pred_fallthru
      _
    // Predicated region
    $region10: #{tpu_custom_call.1} parent=1 // pred_check
      _
    $region11: #{tpu_custom_call.1} parent=1 // pred_check_branch
      %30 = sbr.rel (0) target = $region13
    $region12: #{tpu_custom_call.1} parent=1 // pred_region
      _
    $region13: #{tpu_custom_call.1} parent=1 // pred_fallthru
      _
    // Predicated region
    $region14: #{tpu_custom_call.1} parent=1 // pred_check
      _
    $region15: #{tpu_custom_call.1} parent=1 // pred_check_branch
      %32 = sbr.rel (0) target = $region17
    $region16: #{tpu_custom_call.1} parent=1 // pred_region
      _
    $region17: #{tpu_custom_call.1} parent=1 // pred_fallthru
      _
    // Predicated region
    $region18: #{tpu_custom_call.1} parent=1 // pred_check
      _
    $region19: #{tpu_custom_call.1} parent=1 // pred_check_branch
      %34 = sbr.rel (0) target = $region21
    $region20: #{tpu_custom_call.1} parent=1 // pred_region
      _
    $region21: #{tpu_custom_call.1} parent=1 // pred_fallthru
      _
    // Predicated region
    $region22: #{tpu_custom_call.1} parent=1 // pred_check
      _
    $region23: #{tpu_custom_call.1} parent=1 // pred_check_branch
      %36 = sbr.rel (0) target = $region25
    $region24: #{tpu_custom_call.1} parent=1 // pred_region
      _
    $region25: #{tpu_custom_call.1} parent=1 // pred_fallthru
      _
    // Predicated region
    $region26: #{tpu_custom_call.1} parent=1 // pred_check
      _
    $region27: #{tpu_custom_call.1} parent=1 // pred_check_branch
      %38 = sbr.rel (0) target = $region29
    $region28: #{tpu_custom_call.1} parent=1 // pred_region
      _
    $region29: #{tpu_custom_call.1} parent=1 // pred_fallthru
      _
    // Predicated region
    $region30: #{tpu_custom_call.1} parent=1 // pred_check
      _
    $region31: #{tpu_custom_call.1} parent=1 // pred_check_branch
      %40 = sbr.rel (0) target = $region33
    $region32: #{tpu_custom_call.1} parent=1 // pred_region
      _
    $region33: #{tpu_custom_call.1} parent=1 // pred_fallthru
      _
    // Predicated region
    $region34: #{tpu_custom_call.1} parent=1 // pred_check
      _
    $region35: #{tpu_custom_call.1} parent=1 // pred_check_branch
      %42 = sbr.rel (0) target = $region37
    $region36: #{tpu_custom_call.1} parent=1 // pred_region
      %43 = dma.done [#allocation5], 1024
    $region37: #{tpu_custom_call.1} parent=1 // pred_fallthru
      _
    %p45 = scmp.eq.s32.totalorder 0, 0
    // Predicated region
    $region38: #{tpu_custom_call.1} parent=1 // pred_check
      %p46 = pneg %p45
    $region39: #{tpu_custom_call.1} parent=1 // pred_check_branch
      %48 = sbr.rel (%p46) target = $region41
    $region40: #{tpu_custom_call.1} parent=1 // pred_region
      %v49 = vld [vmem:[%s0] sm:$0xff]
      %v50 = vld [vmem:[%s0 + $0x8] sm:$0xff]
      %v51 = vld [vmem:[#allocation4] sm:$0xff]
      %v52 = vld [vmem:[#allocation4 + $0x8] sm:$0xff]
      %v53 = vld [vmem:[#allocation4 + $0x10] sm:$0xff]
      %v54 = vld [vmem:[#allocation4 + $0x18] sm:$0xff]
      %v55 = vld [vmem:[#allocation4 + $0x20] sm:$0xff]
      %v56 = vld [vmem:[#allocation4 + $0x28] sm:$0xff]
      %v57 = vld [vmem:[#allocation4 + $0x30] sm:$0xff]
      %v58 = vld [vmem:[#allocation4 + $0x38] sm:$0xff]
      %v59 = vlaneseq
      %v60 = vshrl.u32 %v59, 7
      %v61 = vadd.s32 %v60, 8
      %v62 = vlaneseq
      %v63 = vand.u32 %v62, 127
      %v64 = vcombine.high %v49, %v49
      %v66 = vunpack.c.l.s4 1966171168
      %v67 = vunpack.c.0.s8 %v66
      %v68 = vlaneseq
      %v69 = vshrl.u32 %v68, 7
      %v70 = vsub.s32 %v67, %v69
      %v71 = vrot.slane %v49, %v70
      %v73 = vunpack.c.l.s4 1966171168
      %v74 = vunpack.c.0.s8 %v73
      %v75 = vlaneseq
      %v76 = vshrl.u32 %v75, 7
      %v77 = vsub.s32 %v74, %v76
      %v78 = vrot.slane %v64, %v77
      %v79 = vcombine.high %v71, %v71
      %v80 = vcombine.high %v78, %v78
      %v82 = vunpack.c.l.s4 1966171168
      %v83 = vunpack.c.0.s8 %v82
      %v84 = vlaneseq
      %v85 = vshrl.u32 %v84, 7
      %v86 = vsub.s32 %v83, %v85
      %v87 = vrot.slane %v71, %v86
      %v89 = vunpack.c.l.s4 1966171168
      %v90 = vunpack.c.0.s8 %v89
      %v91 = vlaneseq
      %v92 = vshrl.u32 %v91, 7
      %v93 = vsub.s32 %v90, %v92
      %v94 = vrot.slane %v78, %v93
      %v96 = vunpack.c.l.s4 1966171168
      %v97 = vunpack.c.0.s8 %v96
      %v98 = vlaneseq
      %v99 = vshrl.u32 %v98, 7
      %v100 = vsub.s32 %v97, %v99
      %v101 = vrot.slane %v79, %v100
      %v103 = vunpack.c.l.s4 1966171168
      %v104 = vunpack.c.0.s8 %v103
      %v105 = vlaneseq
      %v106 = vshrl.u32 %v105, 7
      %v107 = vsub.s32 %v104, %v106
      %v108 = vrot.slane %v80, %v107
      %v109 = vcombine.high %v87, %v87
      %v110 = vcombine.high %v94, %v94
      %v111 = vcombine.high %v101, %v101
      %v112 = vcombine.high %v108, %v108
      %v113 = vcombine.high %v50, %v50
      %v115 = vunpack.c.l.s4 1966171168
      %v116 = vunpack.c.0.s8 %v115
      %v117 = vlaneseq
      %v118 = vshrl.u32 %v117, 7
      %v119 = vsub.s32 %v116, %v118
      %v120 = vrot.slane %v50, %v119
      %v122 = vunpack.c.l.s4 1966171168
      %v123 = vunpack.c.0.s8 %v122
      %v124 = vlaneseq
      %v125 = vshrl.u32 %v124, 7
      %v126 = vsub.s32 %v123, %v125
      %v127 = vrot.slane %v113, %v126
      %v128 = vcombine.high %v120, %v120
      %v129 = vcombine.high %v127, %v127
      %v131 = vunpack.c.l.s4 1966171168
      %v132 = vunpack.c.0.s8 %v131
      %v133 = vlaneseq
      %v134 = vshrl.u32 %v133, 7
      %v135 = vsub.s32 %v132, %v134
      %v136 = vrot.slane %v120, %v135
      %v138 = vunpack.c.l.s4 1966171168
      %v139 = vunpack.c.0.s8 %v138
      %v140 = vlaneseq
      %v141 = vshrl.u32 %v140, 7
      %v142 = vsub.s32 %v139, %v141
      %v143 = vrot.slane %v127, %v142
      %v145 = vunpack.c.l.s4 1966171168
      %v146 = vunpack.c.0.s8 %v145
      %v147 = vlaneseq
      %v148 = vshrl.u32 %v147, 7
      %v149 = vsub.s32 %v146, %v148
      %v150 = vrot.slane %v128, %v149
      %v152 = vunpack.c.l.s4 1966171168
      %v153 = vunpack.c.0.s8 %v152
      %v154 = vlaneseq
      %v155 = vshrl.u32 %v154, 7
      %v156 = vsub.s32 %v153, %v155
      %v157 = vrot.slane %v129, %v156
      %v158 = vcombine.high %v136, %v136
      %v159 = vcombine.high %v143, %v143
      %v160 = vcombine.high %v150, %v150
      %v161 = vcombine.high %v157, %v157
      %v162 = vlaneseq
      %v163 = vshrl.u32 %v162, 7
      %v164 = vsub.s32 0, %v163
      %v165 = vrot.slane %v87, %v164
      %v166 = vlaneseq
      %v167 = vshrl.u32 %v166, 7
      %v168 = vsub.s32 0, %v167
      %v169 = vrot.slane %v101, %v168
      %v170 = vlaneseq
      %v171 = vshrl.u32 %v170, 7
      %v172 = vsub.s32 0, %v171
      %v173 = vrot.slane %v109, %v172
      %v174 = vlaneseq
      %v175 = vshrl.u32 %v174, 7
      %v176 = vsub.s32 0, %v175
      %v177 = vrot.slane %v111, %v176
      %v178 = vlaneseq
      %v179 = vshrl.u32 %v178, 7
      %v180 = vsub.s32 0, %v179
      %v181 = vrot.slane %v94, %v180
      %v182 = vlaneseq
      %v183 = vshrl.u32 %v182, 7
      %v184 = vsub.s32 0, %v183
      %v185 = vrot.slane %v108, %v184
      %v186 = vlaneseq
      %v187 = vshrl.u32 %v186, 7
      %v188 = vsub.s32 0, %v187
      %v189 = vrot.slane %v110, %v188
      %v190 = vlaneseq
      %v191 = vshrl.u32 %v190, 7
      %v192 = vsub.s32 0, %v191
      %v193 = vrot.slane %v112, %v192
      %v194 = vlaneseq
      %v195 = vshrl.u32 %v194, 7
      %v196 = vsub.s32 0, %v195
      %v197 = vrot.slane %v136, %v196
      %v198 = vlaneseq
      %v199 = vshrl.u32 %v198, 7
      %v200 = vsub.s32 0, %v199
      %v201 = vrot.slane %v150, %v200
      %v202 = vlaneseq
      %v203 = vshrl.u32 %v202, 7
      %v204 = vsub.s32 0, %v203
      %v205 = vrot.slane %v158, %v204
      %v206 = vlaneseq
      %v207 = vshrl.u32 %v206, 7
      %v208 = vsub.s32 0, %v207
      %v209 = vrot.slane %v160, %v208
      %v210 = vlaneseq
      %v211 = vshrl.u32 %v210, 7
      %v212 = vsub.s32 0, %v211
      %v213 = vrot.slane %v143, %v212
      %v214 = vlaneseq
      %v215 = vshrl.u32 %v214, 7
      %v216 = vsub.s32 0, %v215
      %v217 = vrot.slane %v157, %v216
      %v218 = vlaneseq
      %v219 = vshrl.u32 %v218, 7
      %v220 = vsub.s32 0, %v219
      %v221 = vrot.slane %v159, %v220
      %v222 = vlaneseq
      %v223 = vshrl.u32 %v222, 7
      %v224 = vsub.s32 0, %v223
      %v225 = vrot.slane %v161, %v224
      %vm226 = vcmp.ge.s32.totalorder %v60, %v165
      %vm227 = vcmp.ge.s32.totalorder %v61, %v165
      %vm228 = vcmp.ge.s32.totalorder %v60, %v169
      %vm229 = vcmp.ge.s32.totalorder %v61, %v169
      %vm230 = vcmp.ge.s32.totalorder %v60, %v173
      %vm231 = vcmp.ge.s32.totalorder %v61, %v173
      %vm232 = vcmp.ge.s32.totalorder %v60, %v177
      %vm233 = vcmp.ge.s32.totalorder %v61, %v177
      %vm234 = vcmp.ge.s32.totalorder %v60, %v181
      %vm235 = vcmp.ge.s32.totalorder %v61, %v181
      %vm236 = vcmp.ge.s32.totalorder %v60, %v185
      %vm237 = vcmp.ge.s32.totalorder %v61, %v185
      %vm238 = vcmp.ge.s32.totalorder %v60, %v189
      %vm239 = vcmp.ge.s32.totalorder %v61, %v189
      %vm240 = vcmp.ge.s32.totalorder %v60, %v193
      %vm241 = vcmp.ge.s32.totalorder %v61, %v193
      %vm242 = vcmp.ge.s32.totalorder %v60, %v197
      %vm243 = vcmp.ge.s32.totalorder %v61, %v197
      %vm244 = vcmp.ge.s32.totalorder %v60, %v201
      %vm245 = vcmp.ge.s32.totalorder %v61, %v201
      %vm246 = vcmp.ge.s32.totalorder %v60, %v205
      %vm247 = vcmp.ge.s32.totalorder %v61, %v205
      %vm248 = vcmp.ge.s32.totalorder %v60, %v209
      %vm249 = vcmp.ge.s32.totalorder %v61, %v209
      %vm250 = vcmp.ge.s32.totalorder %v60, %v213
      %vm251 = vcmp.ge.s32.totalorder %v61, %v213
      %vm252 = vcmp.ge.s32.totalorder %v60, %v217
      %vm253 = vcmp.ge.s32.totalorder %v61, %v217
      %vm254 = vcmp.ge.s32.totalorder %v60, %v221
      %vm255 = vcmp.ge.s32.totalorder %v61, %v221
      %vm256 = vcmp.ge.s32.totalorder %v60, %v225
      %vm257 = vcmp.ge.s32.totalorder %v61, %v225
      %vm258 = vcmp.lt.s32.totalorder %v60, %v165
      %vm259 = vcmp.lt.s32.totalorder %v61, %v165
      %vm260 = vcmp.lt.s32.totalorder %v60, %v169
      %vm261 = vcmp.lt.s32.totalorder %v61, %v169
      %vm262 = vcmp.lt.s32.totalorder %v60, %v173
      %vm263 = vcmp.lt.s32.totalorder %v61, %v173
      %vm264 = vcmp.lt.s32.totalorder %v60, %v177
      %vm265 = vcmp.lt.s32.totalorder %v61, %v177
      %vm266 = vcmp.lt.s32.totalorder %v60, %v181
      %vm267 = vcmp.lt.s32.totalorder %v61, %v181
      %vm268 = vcmp.lt.s32.totalorder %v60, %v185
      %vm269 = vcmp.lt.s32.totalorder %v61, %v185
      %vm270 = vcmp.lt.s32.totalorder %v60, %v189
      %vm271 = vcmp.lt.s32.totalorder %v61, %v189
      %vm272 = vcmp.lt.s32.totalorder %v60, %v193
      %vm273 = vcmp.lt.s32.totalorder %v61, %v193
      %vm274 = vcmp.lt.s32.totalorder %v60, %v197
      %vm275 = vcmp.lt.s32.totalorder %v61, %v197
      %vm276 = vcmp.lt.s32.totalorder %v60, %v201
      %vm277 = vcmp.lt.s32.totalorder %v61, %v201
      %vm278 = vcmp.lt.s32.totalorder %v60, %v205
      %vm279 = vcmp.lt.s32.totalorder %v61, %v205
      %vm280 = vcmp.lt.s32.totalorder %v60, %v209
      %vm281 = vcmp.lt.s32.totalorder %v61, %v209
      %vm282 = vcmp.lt.s32.totalorder %v60, %v213
      %vm283 = vcmp.lt.s32.totalorder %v61, %v213
      %vm284 = vcmp.lt.s32.totalorder %v60, %v217
      %vm285 = vcmp.lt.s32.totalorder %v61, %v217
      %vm286 = vcmp.lt.s32.totalorder %v60, %v221
      %vm287 = vcmp.lt.s32.totalorder %v61, %v221
      %vm288 = vcmp.lt.s32.totalorder %v60, %v225
      %vm289 = vcmp.lt.s32.totalorder %v61, %v225
      %v290 = vsel %vm258, 1, 0
      %v291 = vsel %vm259, 1, 0
      %v292 = vsel %vm260, 1, 0
      %v293 = vsel %vm261, 1, 0
      %v294 = vsel %vm262, 1, 0
      %v295 = vsel %vm263, 1, 0
      %v296 = vsel %vm264, 1, 0
      %v297 = vsel %vm265, 1, 0
      %v298 = vsel %vm266, 1, 0
      %v299 = vsel %vm267, 1, 0
      %v300 = vsel %vm268, 1, 0
      %v301 = vsel %vm269, 1, 0
      %v302 = vsel %vm270, 1, 0
      %v303 = vsel %vm271, 1, 0
      %v304 = vsel %vm272, 1, 0
      %v305 = vsel %vm273, 1, 0
      %v306 = vsel %vm274, 1, 0
      %v307 = vsel %vm275, 1, 0
      %v308 = vsel %vm276, 1, 0
      %v309 = vsel %vm277, 1, 0
      %v310 = vsel %vm278, 1, 0
      %v311 = vsel %vm279, 1, 0
      %v312 = vsel %vm280, 1, 0
      %v313 = vsel %vm281, 1, 0
      %v314 = vsel %vm282, 1, 0
      %v315 = vsel %vm283, 1, 0
      %v316 = vsel %vm284, 1, 0
      %v317 = vsel %vm285, 1, 0
      %v318 = vsel %vm286, 1, 0
      %v319 = vsel %vm287, 1, 0
      %v320 = vsel %vm288, 1, 0
      %v321 = vsel %vm289, 1, 0
      %322 = vrot.lane.b32.xlu0 %v290, 124
      %v323 = vpop.permute.xlu0 %322
      %324 = vrot.lane.b32.xlu0 %v291, 124
      %v325 = vpop.permute.xlu0 %324
      %326 = vrot.lane.b32.xlu0 %v292, 124
      %v327 = vpop.permute.xlu0 %326
      %328 = vrot.lane.b32.xlu0 %v293, 124
      %v329 = vpop.permute.xlu0 %328
      %330 = vrot.lane.b32.xlu0 %v294, 124
      %v331 = vpop.permute.xlu0 %330
      %332 = vrot.lane.b32.xlu0 %v295, 124
      %v333 = vpop.permute.xlu0 %332
      %334 = vrot.lane.b32.xlu0 %v296, 124
      %v335 = vpop.permute.xlu0 %334
      %336 = vrot.lane.b32.xlu0 %v297, 124
      %v337 = vpop.permute.xlu0 %336
      %338 = vrot.lane.b32.xlu0 %v298, 124
      %v339 = vpop.permute.xlu0 %338
      %340 = vrot.lane.b32.xlu0 %v299, 124
      %v341 = vpop.permute.xlu0 %340
      %342 = vrot.lane.b32.xlu0 %v300, 124
      %v343 = vpop.permute.xlu0 %342
      %344 = vrot.lane.b32.xlu0 %v301, 124
      %v345 = vpop.permute.xlu0 %344
      %346 = vrot.lane.b32.xlu0 %v302, 124
      %v347 = vpop.permute.xlu0 %346
      %348 = vrot.lane.b32.xlu0 %v303, 124
      %v349 = vpop.permute.xlu0 %348
      %350 = vrot.lane.b32.xlu0 %v304, 124
      %v351 = vpop.permute.xlu0 %350
      %352 = vrot.lane.b32.xlu0 %v305, 124
      %v353 = vpop.permute.xlu0 %352
      %354 = vrot.lane.b32.xlu0 %v306, 124
      %v355 = vpop.permute.xlu0 %354
      %356 = vrot.lane.b32.xlu0 %v307, 124
      %v357 = vpop.permute.xlu0 %356
      %358 = vrot.lane.b32.xlu0 %v308, 124
      %v359 = vpop.permute.xlu0 %358
      %360 = vrot.lane.b32.xlu0 %v309, 124
      %v361 = vpop.permute.xlu0 %360
      %362 = vrot.lane.b32.xlu0 %v310, 124
      %v363 = vpop.permute.xlu0 %362
      %364 = vrot.lane.b32.xlu0 %v311, 124
      %v365 = vpop.permute.xlu0 %364
      %366 = vrot.lane.b32.xlu0 %v312, 124
      %v367 = vpop.permute.xlu0 %366
      %368 = vrot.lane.b32.xlu0 %v313, 124
      %v369 = vpop.permute.xlu0 %368
      %370 = vrot.lane.b32.xlu0 %v314, 124
      %v371 = vpop.permute.xlu0 %370
      %372 = vrot.lane.b32.xlu0 %v315, 124
      %v373 = vpop.permute.xlu0 %372
      %374 = vrot.lane.b32.xlu0 %v316, 124
      %v375 = vpop.permute.xlu0 %374
      %376 = vrot.lane.b32.xlu0 %v317, 124
      %v377 = vpop.permute.xlu0 %376
      %378 = vrot.lane.b32.xlu0 %v318, 124
      %v379 = vpop.permute.xlu0 %378
      %380 = vrot.lane.b32.xlu0 %v319, 124
      %v381 = vpop.permute.xlu0 %380
      %382 = vrot.lane.b32.xlu0 %v320, 124
      %v383 = vpop.permute.xlu0 %382
      %384 = vrot.lane.b32.xlu0 %v321, 124
      %v385 = vpop.permute.xlu0 %384
      %vm386 = vcmp.ne.s32.totalorder %v323, 0
      %vm387 = vcmp.ne.s32.totalorder %v325, 0
      %vm388 = vcmp.ne.s32.totalorder %v327, 0
      %vm389 = vcmp.ne.s32.totalorder %v329, 0
      %vm390 = vcmp.ne.s32.totalorder %v331, 0
      %vm391 = vcmp.ne.s32.totalorder %v333, 0
      %vm392 = vcmp.ne.s32.totalorder %v335, 0
      %vm393 = vcmp.ne.s32.totalorder %v337, 0
      %vm394 = vcmp.ne.s32.totalorder %v339, 0
      %vm395 = vcmp.ne.s32.totalorder %v341, 0
      %vm396 = vcmp.ne.s32.totalorder %v343, 0
      %vm397 = vcmp.ne.s32.totalorder %v345, 0
      %vm398 = vcmp.ne.s32.totalorder %v347, 0
      %vm399 = vcmp.ne.s32.totalorder %v349, 0
      %vm400 = vcmp.ne.s32.totalorder %v351, 0
      %vm401 = vcmp.ne.s32.totalorder %v353, 0
      %vm402 = vcmp.ne.s32.totalorder %v355, 0
      %vm403 = vcmp.ne.s32.totalorder %v357, 0
      %vm404 = vcmp.ne.s32.totalorder %v359, 0
      %vm405 = vcmp.ne.s32.totalorder %v361, 0
      %vm406 = vcmp.ne.s32.totalorder %v363, 0
      %vm407 = vcmp.ne.s32.totalorder %v365, 0
      %vm408 = vcmp.ne.s32.totalorder %v367, 0
      %vm409 = vcmp.ne.s32.totalorder %v369, 0
      %vm410 = vcmp.ne.s32.totalorder %v371, 0
      %vm411 = vcmp.ne.s32.totalorder %v373, 0
      %vm412 = vcmp.ne.s32.totalorder %v375, 0
      %vm413 = vcmp.ne.s32.totalorder %v377, 0
      %vm414 = vcmp.ne.s32.totalorder %v379, 0
      %vm415 = vcmp.ne.s32.totalorder %v381, 0
      %vm416 = vcmp.ne.s32.totalorder %v383, 0
      %vm417 = vcmp.ne.s32.totalorder %v385, 0
      %vm418 = vmand %vm226, %vm386
      %vm419 = vmand %vm227, %vm387
      %vm420 = vmand %vm228, %vm388
      %vm421 = vmand %vm229, %vm389
      %vm422 = vmand %vm230, %vm390
      %vm423 = vmand %vm231, %vm391
      %vm424 = vmand %vm232, %vm392
      %vm425 = vmand %vm233, %vm393
      %vm426 = vmand %vm234, %vm394
      %vm427 = vmand %vm235, %vm395
      %vm428 = vmand %vm236, %vm396
      %vm429 = vmand %vm237, %vm397
      %vm430 = vmand %vm238, %vm398
      %vm431 = vmand %vm239, %vm399
      %vm432 = vmand %vm240, %vm400
      %vm433 = vmand %vm241, %vm401
      %vm434 = vmand %vm242, %vm402
      %vm435 = vmand %vm243, %vm403
      %vm436 = vmand %vm244, %vm404
      %vm437 = vmand %vm245, %vm405
      %vm438 = vmand %vm246, %vm406
      %vm439 = vmand %vm247, %vm407
      %vm440 = vmand %vm248, %vm408
      %vm441 = vmand %vm249, %vm409
      %vm442 = vmand %vm250, %vm410
      %vm443 = vmand %vm251, %vm411
      %vm444 = vmand %vm252, %vm412
      %vm445 = vmand %vm253, %vm413
      %vm446 = vmand %vm254, %vm414
      %vm447 = vmand %vm255, %vm415
      %vm448 = vmand %vm256, %vm416
      %vm449 = vmand %vm257, %vm417
      %v450 = vsel %vm418, 1, 0
      %v451 = vsel %vm419, 1, 0
      %v452 = vsel %vm420, 1, 0
      %v453 = vsel %vm421, 1, 0
      %v454 = vsel %vm422, 1, 0
      %v455 = vsel %vm423, 1, 0
      %v456 = vsel %vm424, 1, 0
      %v457 = vsel %vm425, 1, 0
      %v458 = vsel %vm426, 1, 0
      %v459 = vsel %vm427, 1, 0
      %v460 = vsel %vm428, 1, 0
      %v461 = vsel %vm429, 1, 0
      %v462 = vsel %vm430, 1, 0
      %v463 = vsel %vm431, 1, 0
      %v464 = vsel %vm432, 1, 0
      %v465 = vsel %vm433, 1, 0
      %v466 = vsel %vm434, 1, 0
      %v467 = vsel %vm435, 1, 0
      %v468 = vsel %vm436, 1, 0
      %v469 = vsel %vm437, 1, 0
      %v470 = vsel %vm438, 1, 0
      %v471 = vsel %vm439, 1, 0
      %v472 = vsel %vm440, 1, 0
      %v473 = vsel %vm441, 1, 0
      %v474 = vsel %vm442, 1, 0
      %v475 = vsel %vm443, 1, 0
      %v476 = vsel %vm444, 1, 0
      %v477 = vsel %vm445, 1, 0
      %v478 = vsel %vm446, 1, 0
      %v479 = vsel %vm447, 1, 0
      %v480 = vsel %vm448, 1, 0
      %v481 = vsel %vm449, 1, 0
      %482 = vset.pattern.permute.xlu0 0
      %483 = vperm.xlu0 %482, %v450
      %v484 = vpop.permute.xlu0 %483
      %485 = vset.pattern.permute.xlu0 0
      %486 = vperm.xlu0 %485, %v451
      %v487 = vpop.permute.xlu0 %486
      %488 = vset.pattern.permute.xlu0 0
      %489 = vperm.xlu0 %488, %v452
      %v490 = vpop.permute.xlu0 %489
      %491 = vset.pattern.permute.xlu0 0
      %492 = vperm.xlu0 %491, %v453
      %v493 = vpop.permute.xlu0 %492
      %494 = vset.pattern.permute.xlu0 0
      %495 = vperm.xlu0 %494, %v454
      %v496 = vpop.permute.xlu0 %495
      %497 = vset.pattern.permute.xlu0 0
      %498 = vperm.xlu0 %497, %v455
      %v499 = vpop.permute.xlu0 %498
      %500 = vset.pattern.permute.xlu0 0
      %501 = vperm.xlu0 %500, %v456
      %v502 = vpop.permute.xlu0 %501
      %503 = vset.pattern.permute.xlu0 0
      %504 = vperm.xlu0 %503, %v457
      %v505 = vpop.permute.xlu0 %504
      %506 = vset.pattern.permute.xlu0 0
      %507 = vperm.xlu0 %506, %v458
      %v508 = vpop.permute.xlu0 %507
      %509 = vset.pattern.permute.xlu0 0
      %510 = vperm.xlu0 %509, %v459
      %v511 = vpop.permute.xlu0 %510
      %512 = vset.pattern.permute.xlu0 0
      %513 = vperm.xlu0 %512, %v460
      %v514 = vpop.permute.xlu0 %513
      %515 = vset.pattern.permute.xlu0 0
      %516 = vperm.xlu0 %515, %v461
      %v517 = vpop.permute.xlu0 %516
      %518 = vset.pattern.permute.xlu0 0
      %519 = vperm.xlu0 %518, %v462
      %v520 = vpop.permute.xlu0 %519
      %521 = vset.pattern.permute.xlu0 0
      %522 = vperm.xlu0 %521, %v463
      %v523 = vpop.permute.xlu0 %522
      %524 = vset.pattern.permute.xlu0 0
      %525 = vperm.xlu0 %524, %v464
      %v526 = vpop.permute.xlu0 %525
      %527 = vset.pattern.permute.xlu0 0
      %528 = vperm.xlu0 %527, %v465
      %v529 = vpop.permute.xlu0 %528
      %530 = vset.pattern.permute.xlu0 0
      %531 = vperm.xlu0 %530, %v466
      %v532 = vpop.permute.xlu0 %531
      %533 = vset.pattern.permute.xlu0 0
      %534 = vperm.xlu0 %533, %v467
      %v535 = vpop.permute.xlu0 %534
      %536 = vset.pattern.permute.xlu0 0
      %537 = vperm.xlu0 %536, %v468
      %v538 = vpop.permute.xlu0 %537
      %539 = vset.pattern.permute.xlu0 0
      %540 = vperm.xlu0 %539, %v469
      %v541 = vpop.permute.xlu0 %540
      %542 = vset.pattern.permute.xlu0 0
      %543 = vperm.xlu0 %542, %v470
      %v544 = vpop.permute.xlu0 %543
      %545 = vset.pattern.permute.xlu0 0
      %546 = vperm.xlu0 %545, %v471
      %v547 = vpop.permute.xlu0 %546
      %548 = vset.pattern.permute.xlu0 0
      %549 = vperm.xlu0 %548, %v472
      %v550 = vpop.permute.xlu0 %549
      %551 = vset.pattern.permute.xlu0 0
      %552 = vperm.xlu0 %551, %v473
      %v553 = vpop.permute.xlu0 %552
      %554 = vset.pattern.permute.xlu0 0
      %555 = vperm.xlu0 %554, %v474
      %v556 = vpop.permute.xlu0 %555
      %557 = vset.pattern.permute.xlu0 0
      %558 = vperm.xlu0 %557, %v475
      %v559 = vpop.permute.xlu0 %558
      %560 = vset.pattern.permute.xlu0 0
      %561 = vperm.xlu0 %560, %v476
      %v562 = vpop.permute.xlu0 %561
      %563 = vset.pattern.permute.xlu0 0
      %564 = vperm.xlu0 %563, %v477
      %v565 = vpop.permute.xlu0 %564
      %566 = vset.pattern.permute.xlu0 0
      %567 = vperm.xlu0 %566, %v478
      %v568 = vpop.permute.xlu0 %567
      %569 = vset.pattern.permute.xlu0 0
      %570 = vperm.xlu0 %569, %v479
      %v571 = vpop.permute.xlu0 %570
      %572 = vset.pattern.permute.xlu0 0
      %573 = vperm.xlu0 %572, %v480
      %v574 = vpop.permute.xlu0 %573
      %575 = vset.pattern.permute.xlu0 0
      %576 = vperm.xlu0 %575, %v481
      %v577 = vpop.permute.xlu0 %576
      %vm578 = vcmp.eq.s32.totalorder %v484, 1
      %vm579 = vcmp.eq.s32.totalorder %v487, 1
      %vm580 = vcmp.eq.s32.totalorder %v490, 1
      %vm581 = vcmp.eq.s32.totalorder %v493, 1
      %vm582 = vcmp.eq.s32.totalorder %v496, 1
      %vm583 = vcmp.eq.s32.totalorder %v499, 1
      %vm584 = vcmp.eq.s32.totalorder %v502, 1
      %vm585 = vcmp.eq.s32.totalorder %v505, 1
      %vm586 = vcmp.eq.s32.totalorder %v508, 1
      %vm587 = vcmp.eq.s32.totalorder %v511, 1
      %vm588 = vcmp.eq.s32.totalorder %v514, 1
      %vm589 = vcmp.eq.s32.totalorder %v517, 1
      %vm590 = vcmp.eq.s32.totalorder %v520, 1
      %vm591 = vcmp.eq.s32.totalorder %v523, 1
      %vm592 = vcmp.eq.s32.totalorder %v526, 1
      %vm593 = vcmp.eq.s32.totalorder %v529, 1
      %vm594 = vcmp.eq.s32.totalorder %v532, 1
      %vm595 = vcmp.eq.s32.totalorder %v535, 1
      %vm596 = vcmp.eq.s32.totalorder %v538, 1
      %vm597 = vcmp.eq.s32.totalorder %v541, 1
      %vm598 = vcmp.eq.s32.totalorder %v544, 1
      %vm599 = vcmp.eq.s32.totalorder %v547, 1
      %vm600 = vcmp.eq.s32.totalorder %v550, 1
      %vm601 = vcmp.eq.s32.totalorder %v553, 1
      %vm602 = vcmp.eq.s32.totalorder %v556, 1
      %vm603 = vcmp.eq.s32.totalorder %v559, 1
      %vm604 = vcmp.eq.s32.totalorder %v562, 1
      %vm605 = vcmp.eq.s32.totalorder %v565, 1
      %vm606 = vcmp.eq.s32.totalorder %v568, 1
      %vm607 = vcmp.eq.s32.totalorder %v571, 1
      %vm608 = vcmp.eq.s32.totalorder %v574, 1
      %vm609 = vcmp.eq.s32.totalorder %v577, 1
      %v610 = vsel %vm578, %v51, -inf
      %v611 = vsel %vm579, %v52, -inf
      %v612 = vsel %vm578, %v53, -inf
      %v613 = vsel %vm579, %v54, -inf
      %v614 = vsel %vm578, %v55, -inf
      %v615 = vsel %vm579, %v56, -inf
      %v616 = vsel %vm578, %v57, -inf
      %v617 = vsel %vm579, %v58, -inf
      %v618 = vsel %vm580, %v51, -inf
      %v619 = vsel %vm581, %v52, -inf
      %v620 = vsel %vm580, %v53, -inf
      %v621 = vsel %vm581, %v54, -inf
      %v622 = vsel %vm580, %v55, -inf
      %v623 = vsel %vm581, %v56, -inf
      %v624 = vsel %vm580, %v57, -inf
      %v625 = vsel %vm581, %v58, -inf
      %v626 = vsel %vm582, %v51, -inf
      %v627 = vsel %vm583, %v52, -inf
      %v628 = vsel %vm582, %v53, -inf
      %v629 = vsel %vm583, %v54, -inf
      %v630 = vsel %vm582, %v55, -inf
      %v631 = vsel %vm583, %v56, -inf
      %v632 = vsel %vm582, %v57, -inf
      %v633 = vsel %vm583, %v58, -inf
      %v634 = vsel %vm584, %v51, -inf
      %v635 = vsel %vm585, %v52, -inf
      %v636 = vsel %vm584, %v53, -inf
      %v637 = vsel %vm585, %v54, -inf
      %v638 = vsel %vm584, %v55, -inf
      %v639 = vsel %vm585, %v56, -inf
      %v640 = vsel %vm584, %v57, -inf
      %v641 = vsel %vm585, %v58, -inf
      %v642 = vsel %vm586, %v51, -inf
      %v643 = vsel %vm587, %v52, -inf
      %v644 = vsel %vm586, %v53, -inf
      %v645 = vsel %vm587, %v54, -inf
      %v646 = vsel %vm586, %v55, -inf
      %v647 = vsel %vm587, %v56, -inf
      %v648 = vsel %vm586, %v57, -inf
      %v649 = vsel %vm587, %v58, -inf
      %v650 = vsel %vm588, %v51, -inf
      %v651 = vsel %vm589, %v52, -inf
      %v652 = vsel %vm588, %v53, -inf
      %v653 = vsel %vm589, %v54, -inf
      %v654 = vsel %vm588, %v55, -inf
      %v655 = vsel %vm589, %v56, -inf
      %v656 = vsel %vm588, %v57, -inf
      %v657 = vsel %vm589, %v58, -inf
      %v658 = vsel %vm590, %v51, -inf
      %v659 = vsel %vm591, %v52, -inf
      %v660 = vsel %vm590, %v53, -inf
      %v661 = vsel %vm591, %v54, -inf
      %v662 = vsel %vm590, %v55, -inf
      %v663 = vsel %vm591, %v56, -inf
      %v664 = vsel %vm590, %v57, -inf
      %v665 = vsel %vm591, %v58, -inf
      %v666 = vsel %vm592, %v51, -inf
      %v667 = vsel %vm593, %v52, -inf
      %v668 = vsel %vm592, %v53, -inf
      %v669 = vsel %vm593, %v54, -inf
      %v670 = vsel %vm592, %v55, -inf
      %v671 = vsel %vm593, %v56, -inf
      %v672 = vsel %vm592, %v57, -inf
      %v673 = vsel %vm593, %v58, -inf
      %v674 = vsel %vm594, %v51, -inf
      %v675 = vsel %vm595, %v52, -inf
      %v676 = vsel %vm594, %v53, -inf
      %v677 = vsel %vm595, %v54, -inf
      %v678 = vsel %vm594, %v55, -inf
      %v679 = vsel %vm595, %v56, -inf
      %v680 = vsel %vm594, %v57, -inf
      %v681 = vsel %vm595, %v58, -inf
      %v682 = vsel %vm596, %v51, -inf
      %v683 = vsel %vm597, %v52, -inf
      %v684 = vsel %vm596, %v53, -inf
      %v685 = vsel %vm597, %v54, -inf
      %v686 = vsel %vm596, %v55, -inf
      %v687 = vsel %vm597, %v56, -inf
      %v688 = vsel %vm596, %v57, -inf
      %v689 = vsel %vm597, %v58, -inf
      %v690 = vsel %vm598, %v51, -inf
      %v691 = vsel %vm599, %v52, -inf
      %v692 = vsel %vm598, %v53, -inf
      %v693 = vsel %vm599, %v54, -inf
      %v694 = vsel %vm598, %v55, -inf
      %v695 = vsel %vm599, %v56, -inf
      %v696 = vsel %vm598, %v57, -inf
      %v697 = vsel %vm599, %v58, -inf
      %v698 = vsel %vm600, %v51, -inf
      %v699 = vsel %vm601, %v52, -inf
      %v700 = vsel %vm600, %v53, -inf
      %v701 = vsel %vm601, %v54, -inf
      %v702 = vsel %vm600, %v55, -inf
      %v703 = vsel %vm601, %v56, -inf
      %v704 = vsel %vm600, %v57, -inf
      %v705 = vsel %vm601, %v58, -inf
      %v706 = vsel %vm602, %v51, -inf
      %v707 = vsel %vm603, %v52, -inf
      %v708 = vsel %vm602, %v53, -inf
      %v709 = vsel %vm603, %v54, -inf
      %v710 = vsel %vm602, %v55, -inf
      %v711 = vsel %vm603, %v56, -inf
      %v712 = vsel %vm602, %v57, -inf
      %v713 = vsel %vm603, %v58, -inf
      %v714 = vsel %vm604, %v51, -inf
      %v715 = vsel %vm605, %v52, -inf
      %v716 = vsel %vm604, %v53, -inf
      %v717 = vsel %vm605, %v54, -inf
      %v718 = vsel %vm604, %v55, -inf
      %v719 = vsel %vm605, %v56, -inf
      %v720 = vsel %vm604, %v57, -inf
      %v721 = vsel %vm605, %v58, -inf
      %v722 = vsel %vm606, %v51, -inf
      %v723 = vsel %vm607, %v52, -inf
      %v724 = vsel %vm606, %v53, -inf
      %v725 = vsel %vm607, %v54, -inf
      %v726 = vsel %vm606, %v55, -inf
      %v727 = vsel %vm607, %v56, -inf
      %v728 = vsel %vm606, %v57, -inf
      %v729 = vsel %vm607, %v58, -inf
      %v730 = vsel %vm608, %v51, -inf
      %v731 = vsel %vm609, %v52, -inf
      %v732 = vsel %vm608, %v53, -inf
      %v733 = vsel %vm609, %v54, -inf
      %v734 = vsel %vm608, %v55, -inf
      %v735 = vsel %vm609, %v56, -inf
      %v736 = vsel %vm608, %v57, -inf
      %v737 = vsel %vm609, %v58, -inf
      %vm738 = vcmask 130048
      %v739 = vsel %vm738, %v610, -inf
      %v740 = vsel %vm738, %v611, -inf
      %v741 = vmax.f32 %v739, %v740
      %v742 = vrot.slane %v741, 4
      %v743 = vmax.f32 %v741, %v742
      %v744 = vrot.slane %v743, 2
      %v745 = vmax.f32 %v743, %v744
      %v746 = vrot.slane %v745, 1
      %v747 = vmax.f32 %v745, %v746
      %v748 = vsel %vm738, %v612, -inf
      %v749 = vsel %vm738, %v613, -inf
      %v750 = vmax.f32 %v748, %v749
      %v751 = vrot.slane %v750, 4
      %v752 = vmax.f32 %v750, %v751
      %v753 = vrot.slane %v752, 2
      %v754 = vmax.f32 %v752, %v753
      %v755 = vrot.slane %v754, 1
      %v756 = vmax.f32 %v754, %v755
      %v757 = vsel %vm738, %v614, -inf
      %v758 = vsel %vm738, %v615, -inf
      %v759 = vmax.f32 %v757, %v758
      %v760 = vrot.slane %v759, 4
      %v761 = vmax.f32 %v759, %v760
      %v762 = vrot.slane %v761, 2
      %v763 = vmax.f32 %v761, %v762
      %v764 = vrot.slane %v763, 1
      %v765 = vmax.f32 %v763, %v764
      %v766 = vsel %vm738, %v616, -inf
      %v767 = vsel %vm738, %v617, -inf
      %v768 = vmax.f32 %v766, %v767
      %v769 = vrot.slane %v768, 4
      %v770 = vmax.f32 %v768, %v769
      %v771 = vrot.slane %v770, 2
      %v772 = vmax.f32 %v770, %v771
      %v773 = vrot.slane %v772, 1
      %v774 = vmax.f32 %v772, %v773
      %v775 = vsel %vm738, %v618, -inf
      %v776 = vsel %vm738, %v619, -inf
      %v777 = vmax.f32 %v775, %v776
      %v778 = vrot.slane %v777, 4
      %v779 = vmax.f32 %v777, %v778
      %v780 = vrot.slane %v779, 2
      %v781 = vmax.f32 %v779, %v780
      %v782 = vrot.slane %v781, 1
      %v783 = vmax.f32 %v781, %v782
      %v784 = vsel %vm738, %v620, -inf
      %v785 = vsel %vm738, %v621, -inf
      %v786 = vmax.f32 %v784, %v785
      %v787 = vrot.slane %v786, 4
      %v788 = vmax.f32 %v786, %v787
      %v789 = vrot.slane %v788, 2
      %v790 = vmax.f32 %v788, %v789
      %v791 = vrot.slane %v790, 1
      %v792 = vmax.f32 %v790, %v791
      %v793 = vsel %vm738, %v622, -inf
      %v794 = vsel %vm738, %v623, -inf
      %v795 = vmax.f32 %v793, %v794
      %v796 = vrot.slane %v795, 4
      %v797 = vmax.f32 %v795, %v796
      %v798 = vrot.slane %v797, 2
      %v799 = vmax.f32 %v797, %v798
      %v800 = vrot.slane %v799, 1
      %v801 = vmax.f32 %v799, %v800
      %v802 = vsel %vm738, %v624, -inf
      %v803 = vsel %vm738, %v625, -inf
      %v804 = vmax.f32 %v802, %v803
      %v805 = vrot.slane %v804, 4
      %v806 = vmax.f32 %v804, %v805
      %v807 = vrot.slane %v806, 2
      %v808 = vmax.f32 %v806, %v807
      %v809 = vrot.slane %v808, 1
      %v810 = vmax.f32 %v808, %v809
      %v811 = vsel %vm738, %v626, -inf
      %v812 = vsel %vm738, %v627, -inf
      %v813 = vmax.f32 %v811, %v812
      %v814 = vrot.slane %v813, 4
      %v815 = vmax.f32 %v813, %v814
      %v816 = vrot.slane %v815, 2
      %v817 = vmax.f32 %v815, %v816
      %v818 = vrot.slane %v817, 1
      %v819 = vmax.f32 %v817, %v818
      %v820 = vsel %vm738, %v628, -inf
      %v821 = vsel %vm738, %v629, -inf
      %v822 = vmax.f32 %v820, %v821
      %v823 = vrot.slane %v822, 4
      %v824 = vmax.f32 %v822, %v823
      %v825 = vrot.slane %v824, 2
      %v826 = vmax.f32 %v824, %v825
      %v827 = vrot.slane %v826, 1
      %v828 = vmax.f32 %v826, %v827
      %v829 = vsel %vm738, %v630, -inf
      %v830 = vsel %vm738, %v631, -inf
      %v831 = vmax.f32 %v829, %v830
      %v832 = vrot.slane %v831, 4
      %v833 = vmax.f32 %v831, %v832
      %v834 = vrot.slane %v833, 2
      %v835 = vmax.f32 %v833, %v834
      %v836 = vrot.slane %v835, 1
      %v837 = vmax.f32 %v835, %v836
      %v838 = vsel %vm738, %v632, -inf
      %v839 = vsel %vm738, %v633, -inf
      %v840 = vmax.f32 %v838, %v839
      %v841 = vrot.slane %v840, 4
      %v842 = vmax.f32 %v840, %v841
      %v843 = vrot.slane %v842, 2
      %v844 = vmax.f32 %v842, %v843
      %v845 = vrot.slane %v844, 1
      %v846 = vmax.f32 %v844, %v845
      %v847 = vsel %vm738, %v634, -inf
      %v848 = vsel %vm738, %v635, -inf
      %v849 = vmax.f32 %v847, %v848
      %v850 = vrot.slane %v849, 4
      %v851 = vmax.f32 %v849, %v850
      %v852 = vrot.slane %v851, 2
      %v853 = vmax.f32 %v851, %v852
      %v854 = vrot.slane %v853, 1
      %v855 = vmax.f32 %v853, %v854
      %v856 = vsel %vm738, %v636, -inf
      %v857 = vsel %vm738, %v637, -inf
      %v858 = vmax.f32 %v856, %v857
      %v859 = vrot.slane %v858, 4
      %v860 = vmax.f32 %v858, %v859
      %v861 = vrot.slane %v860, 2
      %v862 = vmax.f32 %v860, %v861
      %v863 = vrot.slane %v862, 1
      %v864 = vmax.f32 %v862, %v863
      %v865 = vsel %vm738, %v638, -inf
      %v866 = vsel %vm738, %v639, -inf
      %v867 = vmax.f32 %v865, %v866
      %v868 = vrot.slane %v867, 4
      %v869 = vmax.f32 %v867, %v868
      %v870 = vrot.slane %v869, 2
      %v871 = vmax.f32 %v869, %v870
      %v872 = vrot.slane %v871, 1
      %v873 = vmax.f32 %v871, %v872
      %v874 = vsel %vm738, %v640, -inf
      %v875 = vsel %vm738, %v641, -inf
      %v876 = vmax.f32 %v874, %v875
      %v877 = vrot.slane %v876, 4
      %v878 = vmax.f32 %v876, %v877
      %v879 = vrot.slane %v878, 2
      %v880 = vmax.f32 %v878, %v879
      %v881 = vrot.slane %v880, 1
      %v882 = vmax.f32 %v880, %v881
      %v883 = vsel %vm738, %v642, -inf
      %v884 = vsel %vm738, %v643, -inf
      %v885 = vmax.f32 %v883, %v884
      %v886 = vrot.slane %v885, 4
      %v887 = vmax.f32 %v885, %v886
      %v888 = vrot.slane %v887, 2
      %v889 = vmax.f32 %v887, %v888
      %v890 = vrot.slane %v889, 1
      %v891 = vmax.f32 %v889, %v890
      %v892 = vsel %vm738, %v644, -inf
      %v893 = vsel %vm738, %v645, -inf
      %v894 = vmax.f32 %v892, %v893
      %v895 = vrot.slane %v894, 4
      %v896 = vmax.f32 %v894, %v895
      %v897 = vrot.slane %v896, 2
      %v898 = vmax.f32 %v896, %v897
      %v899 = vrot.slane %v898, 1
      %v900 = vmax.f32 %v898, %v899
      %v901 = vsel %vm738, %v646, -inf
      %v902 = vsel %vm738, %v647, -inf
      %v903 = vmax.f32 %v901, %v902
      %v904 = vrot.slane %v903, 4
      %v905 = vmax.f32 %v903, %v904
      %v906 = vrot.slane %v905, 2
      %v907 = vmax.f32 %v905, %v906
      %v908 = vrot.slane %v907, 1
      %v909 = vmax.f32 %v907, %v908
      %v910 = vsel %vm738, %v648, -inf
      %v911 = vsel %vm738, %v649, -inf
      %v912 = vmax.f32 %v910, %v911
      %v913 = vrot.slane %v912, 4
      %v914 = vmax.f32 %v912, %v913
      %v915 = vrot.slane %v914, 2
      %v916 = vmax.f32 %v914, %v915
      %v917 = vrot.slane %v916, 1
      %v918 = vmax.f32 %v916, %v917
      %v919 = vsel %vm738, %v650, -inf
      %v920 = vsel %vm738, %v651, -inf
      %v921 = vmax.f32 %v919, %v920
      %v922 = vrot.slane %v921, 4
      %v923 = vmax.f32 %v921, %v922
      %v924 = vrot.slane %v923, 2
      %v925 = vmax.f32 %v923, %v924
      %v926 = vrot.slane %v925, 1
      %v927 = vmax.f32 %v925, %v926
      %v928 = vsel %vm738, %v652, -inf
      %v929 = vsel %vm738, %v653, -inf
      %v930 = vmax.f32 %v928, %v929
      %v931 = vrot.slane %v930, 4
      %v932 = vmax.f32 %v930, %v931
      %v933 = vrot.slane %v932, 2
      %v934 = vmax.f32 %v932, %v933
      %v935 = vrot.slane %v934, 1
      %v936 = vmax.f32 %v934, %v935
      %v937 = vsel %vm738, %v654, -inf
      %v938 = vsel %vm738, %v655, -inf
      %v939 = vmax.f32 %v937, %v938
      %v940 = vrot.slane %v939, 4
      %v941 = vmax.f32 %v939, %v940
      %v942 = vrot.slane %v941, 2
      %v943 = vmax.f32 %v941, %v942
      %v944 = vrot.slane %v943, 1
      %v945 = vmax.f32 %v943, %v944
      %v946 = vsel %vm738, %v656, -inf
      %v947 = vsel %vm738, %v657, -inf
      %v948 = vmax.f32 %v946, %v947
      %v949 = vrot.slane %v948, 4
      %v950 = vmax.f32 %v948, %v949
      %v951 = vrot.slane %v950, 2
      %v952 = vmax.f32 %v950, %v951
      %v953 = vrot.slane %v952, 1
      %v954 = vmax.f32 %v952, %v953
      %v955 = vsel %vm738, %v658, -inf
      %v956 = vsel %vm738, %v659, -inf
      %v957 = vmax.f32 %v955, %v956
      %v958 = vrot.slane %v957, 4
      %v959 = vmax.f32 %v957, %v958
      %v960 = vrot.slane %v959, 2
      %v961 = vmax.f32 %v959, %v960
      %v962 = vrot.slane %v961, 1
      %v963 = vmax.f32 %v961, %v962
      %v964 = vsel %vm738, %v660, -inf
      %v965 = vsel %vm738, %v661, -inf
      %v966 = vmax.f32 %v964, %v965
      %v967 = vrot.slane %v966, 4
      %v968 = vmax.f32 %v966, %v967
      %v969 = vrot.slane %v968, 2
      %v970 = vmax.f32 %v968, %v969
      %v971 = vrot.slane %v970, 1
      %v972 = vmax.f32 %v970, %v971
      %v973 = vsel %vm738, %v662, -inf
      %v974 = vsel %vm738, %v663, -inf
      %v975 = vmax.f32 %v973, %v974
      %v976 = vrot.slane %v975, 4
      %v977 = vmax.f32 %v975, %v976
      %v978 = vrot.slane %v977, 2
      %v979 = vmax.f32 %v977, %v978
      %v980 = vrot.slane %v979, 1
      %v981 = vmax.f32 %v979, %v980
      %v982 = vsel %vm738, %v664, -inf
      %v983 = vsel %vm738, %v665, -inf
      %v984 = vmax.f32 %v982, %v983
      %v985 = vrot.slane %v984, 4
      %v986 = vmax.f32 %v984, %v985
      %v987 = vrot.slane %v986, 2
      %v988 = vmax.f32 %v986, %v987
      %v989 = vrot.slane %v988, 1
      %v990 = vmax.f32 %v988, %v989
      %v991 = vsel %vm738, %v666, -inf
      %v992 = vsel %vm738, %v667, -inf
      %v993 = vmax.f32 %v991, %v992
      %v994 = vrot.slane %v993, 4
      %v995 = vmax.f32 %v993, %v994
      %v996 = vrot.slane %v995, 2
      %v997 = vmax.f32 %v995, %v996
      %v998 = vrot.slane %v997, 1
      %v999 = vmax.f32 %v997, %v998
      %v1000 = vsel %vm738, %v668, -inf
      %v1001 = vsel %vm738, %v669, -inf
      %v1002 = vmax.f32 %v1000, %v1001
      %v1003 = vrot.slane %v1002, 4
      %v1004 = vmax.f32 %v1002, %v1003
      %v1005 = vrot.slane %v1004, 2
      %v1006 = vmax.f32 %v1004, %v1005
      %v1007 = vrot.slane %v1006, 1
      %v1008 = vmax.f32 %v1006, %v1007
      %v1009 = vsel %vm738, %v670, -inf
      %v1010 = vsel %vm738, %v671, -inf
      %v1011 = vmax.f32 %v1009, %v1010
      %v1012 = vrot.slane %v1011, 4
      %v1013 = vmax.f32 %v1011, %v1012
      %v1014 = vrot.slane %v1013, 2
      %v1015 = vmax.f32 %v1013, %v1014
      %v1016 = vrot.slane %v1015, 1
      %v1017 = vmax.f32 %v1015, %v1016
      %v1018 = vsel %vm738, %v672, -inf
      %v1019 = vsel %vm738, %v673, -inf
      %v1020 = vmax.f32 %v1018, %v1019
      %v1021 = vrot.slane %v1020, 4
      %v1022 = vmax.f32 %v1020, %v1021
      %v1023 = vrot.slane %v1022, 2
      %v1024 = vmax.f32 %v1022, %v1023
      %v1025 = vrot.slane %v1024, 1
      %v1026 = vmax.f32 %v1024, %v1025
      %v1027 = vsel %vm738, %v674, -inf
      %v1028 = vsel %vm738, %v675, -inf
      %v1029 = vmax.f32 %v1027, %v1028
      %v1030 = vrot.slane %v1029, 4
      %v1031 = vmax.f32 %v1029, %v1030
      %v1032 = vrot.slane %v1031, 2
      %v1033 = vmax.f32 %v1031, %v1032
      %v1034 = vrot.slane %v1033, 1
      %v1035 = vmax.f32 %v1033, %v1034
      %v1036 = vsel %vm738, %v676, -inf
      %v1037 = vsel %vm738, %v677, -inf
      %v1038 = vmax.f32 %v1036, %v1037
      %v1039 = vrot.slane %v1038, 4
      %v1040 = vmax.f32 %v1038, %v1039
      %v1041 = vrot.slane %v1040, 2
      %v1042 = vmax.f32 %v1040, %v1041
      %v1043 = vrot.slane %v1042, 1
      %v1044 = vmax.f32 %v1042, %v1043
      %v1045 = vsel %vm738, %v678, -inf
      %v1046 = vsel %vm738, %v679, -inf
      %v1047 = vmax.f32 %v1045, %v1046
      %v1048 = vrot.slane %v1047, 4
      %v1049 = vmax.f32 %v1047, %v1048
      %v1050 = vrot.slane %v1049, 2
      %v1051 = vmax.f32 %v1049, %v1050
      %v1052 = vrot.slane %v1051, 1
      %v1053 = vmax.f32 %v1051, %v1052
      %v1054 = vsel %vm738, %v680, -inf
      %v1055 = vsel %vm738, %v681, -inf
      %v1056 = vmax.f32 %v1054, %v1055
      %v1057 = vrot.slane %v1056, 4
      %v1058 = vmax.f32 %v1056, %v1057
      %v1059 = vrot.slane %v1058, 2
      %v1060 = vmax.f32 %v1058, %v1059
      %v1061 = vrot.slane %v1060, 1
      %v1062 = vmax.f32 %v1060, %v1061
      %v1063 = vsel %vm738, %v682, -inf
      %v1064 = vsel %vm738, %v683, -inf
      %v1065 = vmax.f32 %v1063, %v1064
      %v1066 = vrot.slane %v1065, 4
      %v1067 = vmax.f32 %v1065, %v1066
      %v1068 = vrot.slane %v1067, 2
      %v1069 = vmax.f32 %v1067, %v1068
      %v1070 = vrot.slane %v1069, 1
      %v1071 = vmax.f32 %v1069, %v1070
      %v1072 = vsel %vm738, %v684, -inf
      %v1073 = vsel %vm738, %v685, -inf
      %v1074 = vmax.f32 %v1072, %v1073
      %v1075 = vrot.slane %v1074, 4
      %v1076 = vmax.f32 %v1074, %v1075
      %v1077 = vrot.slane %v1076, 2
      %v1078 = vmax.f32 %v1076, %v1077
      %v1079 = vrot.slane %v1078, 1
      %v1080 = vmax.f32 %v1078, %v1079
      %v1081 = vsel %vm738, %v686, -inf
      %v1082 = vsel %vm738, %v687, -inf
      %v1083 = vmax.f32 %v1081, %v1082
      %v1084 = vrot.slane %v1083, 4
      %v1085 = vmax.f32 %v1083, %v1084
      %v1086 = vrot.slane %v1085, 2
      %v1087 = vmax.f32 %v1085, %v1086
      %v1088 = vrot.slane %v1087, 1
      %v1089 = vmax.f32 %v1087, %v1088
      %v1090 = vsel %vm738, %v688, -inf
      %v1091 = vsel %vm738, %v689, -inf
      %v1092 = vmax.f32 %v1090, %v1091
      %v1093 = vrot.slane %v1092, 4
      %v1094 = vmax.f32 %v1092, %v1093
      %v1095 = vrot.slane %v1094, 2
      %v1096 = vmax.f32 %v1094, %v1095
      %v1097 = vrot.slane %v1096, 1
      %v1098 = vmax.f32 %v1096, %v1097
      %v1099 = vsel %vm738, %v690, -inf
      %v1100 = vsel %vm738, %v691, -inf
      %v1101 = vmax.f32 %v1099, %v1100
      %v1102 = vrot.slane %v1101, 4
      %v1103 = vmax.f32 %v1101, %v1102
      %v1104 = vrot.slane %v1103, 2
      %v1105 = vmax.f32 %v1103, %v1104
      %v1106 = vrot.slane %v1105, 1
      %v1107 = vmax.f32 %v1105, %v1106
      %v1108 = vsel %vm738, %v692, -inf
      %v1109 = vsel %vm738, %v693, -inf
      %v1110 = vmax.f32 %v1108, %v1109
      %v1111 = vrot.slane %v1110, 4
      %v1112 = vmax.f32 %v1110, %v1111
      %v1113 = vrot.slane %v1112, 2
      %v1114 = vmax.f32 %v1112, %v1113
      %v1115 = vrot.slane %v1114, 1
      %v1116 = vmax.f32 %v1114, %v1115
      %v1117 = vsel %vm738, %v694, -inf
      %v1118 = vsel %vm738, %v695, -inf
      %v1119 = vmax.f32 %v1117, %v1118
      %v1120 = vrot.slane %v1119, 4
      %v1121 = vmax.f32 %v1119, %v1120
      %v1122 = vrot.slane %v1121, 2
      %v1123 = vmax.f32 %v1121, %v1122
      %v1124 = vrot.slane %v1123, 1
      %v1125 = vmax.f32 %v1123, %v1124
      %v1126 = vsel %vm738, %v696, -inf
      %v1127 = vsel %vm738, %v697, -inf
      %v1128 = vmax.f32 %v1126, %v1127
      %v1129 = vrot.slane %v1128, 4
      %v1130 = vmax.f32 %v1128, %v1129
      %v1131 = vrot.slane %v1130, 2
      %v1132 = vmax.f32 %v1130, %v1131
      %v1133 = vrot.slane %v1132, 1
      %v1134 = vmax.f32 %v1132, %v1133
      %v1135 = vsel %vm738, %v698, -inf
      %v1136 = vsel %vm738, %v699, -inf
      %v1137 = vmax.f32 %v1135, %v1136
      %v1138 = vrot.slane %v1137, 4
      %v1139 = vmax.f32 %v1137, %v1138
      %v1140 = vrot.slane %v1139, 2
      %v1141 = vmax.f32 %v1139, %v1140
      %v1142 = vrot.slane %v1141, 1
      %v1143 = vmax.f32 %v1141, %v1142
      %v1144 = vsel %vm738, %v700, -inf
      %v1145 = vsel %vm738, %v701, -inf
      %v1146 = vmax.f32 %v1144, %v1145
      %v1147 = vrot.slane %v1146, 4
      %v1148 = vmax.f32 %v1146, %v1147
      %v1149 = vrot.slane %v1148, 2
      %v1150 = vmax.f32 %v1148, %v1149
      %v1151 = vrot.slane %v1150, 1
      %v1152 = vmax.f32 %v1150, %v1151
      %v1153 = vsel %vm738, %v702, -inf
      %v1154 = vsel %vm738, %v703, -inf
      %v1155 = vmax.f32 %v1153, %v1154
      %v1156 = vrot.slane %v1155, 4
      %v1157 = vmax.f32 %v1155, %v1156
      %v1158 = vrot.slane %v1157, 2
      %v1159 = vmax.f32 %v1157, %v1158
      %v1160 = vrot.slane %v1159, 1
      %v1161 = vmax.f32 %v1159, %v1160
      %v1162 = vsel %vm738, %v704, -inf
      %v1163 = vsel %vm738, %v705, -inf
      %v1164 = vmax.f32 %v1162, %v1163
      %v1165 = vrot.slane %v1164, 4
      %v1166 = vmax.f32 %v1164, %v1165
      %v1167 = vrot.slane %v1166, 2
      %v1168 = vmax.f32 %v1166, %v1167
      %v1169 = vrot.slane %v1168, 1
      %v1170 = vmax.f32 %v1168, %v1169
      %v1171 = vsel %vm738, %v706, -inf
      %v1172 = vsel %vm738, %v707, -inf
      %v1173 = vmax.f32 %v1171, %v1172
      %v1174 = vrot.slane %v1173, 4
      %v1175 = vmax.f32 %v1173, %v1174
      %v1176 = vrot.slane %v1175, 2
      %v1177 = vmax.f32 %v1175, %v1176
      %v1178 = vrot.slane %v1177, 1
      %v1179 = vmax.f32 %v1177, %v1178
      %v1180 = vsel %vm738, %v708, -inf
      %v1181 = vsel %vm738, %v709, -inf
      %v1182 = vmax.f32 %v1180, %v1181
      %v1183 = vrot.slane %v1182, 4
      %v1184 = vmax.f32 %v1182, %v1183
      %v1185 = vrot.slane %v1184, 2
      %v1186 = vmax.f32 %v1184, %v1185
      %v1187 = vrot.slane %v1186, 1
      %v1188 = vmax.f32 %v1186, %v1187
      %v1189 = vsel %vm738, %v710, -inf
      %v1190 = vsel %vm738, %v711, -inf
      %v1191 = vmax.f32 %v1189, %v1190
      %v1192 = vrot.slane %v1191, 4
      %v1193 = vmax.f32 %v1191, %v1192
      %v1194 = vrot.slane %v1193, 2
      %v1195 = vmax.f32 %v1193, %v1194
      %v1196 = vrot.slane %v1195, 1
      %v1197 = vmax.f32 %v1195, %v1196
      %v1198 = vsel %vm738, %v712, -inf
      %v1199 = vsel %vm738, %v713, -inf
      %v1200 = vmax.f32 %v1198, %v1199
      %v1201 = vrot.slane %v1200, 4
      %v1202 = vmax.f32 %v1200, %v1201
      %v1203 = vrot.slane %v1202, 2
      %v1204 = vmax.f32 %v1202, %v1203
      %v1205 = vrot.slane %v1204, 1
      %v1206 = vmax.f32 %v1204, %v1205
      %v1207 = vsel %vm738, %v714, -inf
      %v1208 = vsel %vm738, %v715, -inf
      %v1209 = vmax.f32 %v1207, %v1208
      %v1210 = vrot.slane %v1209, 4
      %v1211 = vmax.f32 %v1209, %v1210
      %v1212 = vrot.slane %v1211, 2
      %v1213 = vmax.f32 %v1211, %v1212
      %v1214 = vrot.slane %v1213, 1
      %v1215 = vmax.f32 %v1213, %v1214
      %v1216 = vsel %vm738, %v716, -inf
      %v1217 = vsel %vm738, %v717, -inf
      %v1218 = vmax.f32 %v1216, %v1217
      %v1219 = vrot.slane %v1218, 4
      %v1220 = vmax.f32 %v1218, %v1219
      %v1221 = vrot.slane %v1220, 2
      %v1222 = vmax.f32 %v1220, %v1221
      %v1223 = vrot.slane %v1222, 1
      %v1224 = vmax.f32 %v1222, %v1223
      %v1225 = vsel %vm738, %v718, -inf
      %v1226 = vsel %vm738, %v719, -inf
      %v1227 = vmax.f32 %v1225, %v1226
      %v1228 = vrot.slane %v1227, 4
      %v1229 = vmax.f32 %v1227, %v1228
      %v1230 = vrot.slane %v1229, 2
      %v1231 = vmax.f32 %v1229, %v1230
      %v1232 = vrot.slane %v1231, 1
      %v1233 = vmax.f32 %v1231, %v1232
      %v1234 = vsel %vm738, %v720, -inf
      %v1235 = vsel %vm738, %v721, -inf
      %v1236 = vmax.f32 %v1234, %v1235
      %v1237 = vrot.slane %v1236, 4
      %v1238 = vmax.f32 %v1236, %v1237
      %v1239 = vrot.slane %v1238, 2
      %v1240 = vmax.f32 %v1238, %v1239
      %v1241 = vrot.slane %v1240, 1
      %v1242 = vmax.f32 %v1240, %v1241
      %v1243 = vsel %vm738, %v722, -inf
      %v1244 = vsel %vm738, %v723, -inf
      %v1245 = vmax.f32 %v1243, %v1244
      %v1246 = vrot.slane %v1245, 4
      %v1247 = vmax.f32 %v1245, %v1246
      %v1248 = vrot.slane %v1247, 2
      %v1249 = vmax.f32 %v1247, %v1248
      %v1250 = vrot.slane %v1249, 1
      %v1251 = vmax.f32 %v1249, %v1250
      %v1252 = vsel %vm738, %v724, -inf
      %v1253 = vsel %vm738, %v725, -inf
      %v1254 = vmax.f32 %v1252, %v1253
      %v1255 = vrot.slane %v1254, 4
      %v1256 = vmax.f32 %v1254, %v1255
      %v1257 = vrot.slane %v1256, 2
      %v1258 = vmax.f32 %v1256, %v1257
      %v1259 = vrot.slane %v1258, 1
      %v1260 = vmax.f32 %v1258, %v1259
      %v1261 = vsel %vm738, %v726, -inf
      %v1262 = vsel %vm738, %v727, -inf
      %v1263 = vmax.f32 %v1261, %v1262
      %v1264 = vrot.slane %v1263, 4
      %v1265 = vmax.f32 %v1263, %v1264
      %v1266 = vrot.slane %v1265, 2
      %v1267 = vmax.f32 %v1265, %v1266
      %v1268 = vrot.slane %v1267, 1
      %v1269 = vmax.f32 %v1267, %v1268
      %v1270 = vsel %vm738, %v728, -inf
      %v1271 = vsel %vm738, %v729, -inf
      %v1272 = vmax.f32 %v1270, %v1271
      %v1273 = vrot.slane %v1272, 4
      %v1274 = vmax.f32 %v1272, %v1273
      %v1275 = vrot.slane %v1274, 2
      %v1276 = vmax.f32 %v1274, %v1275
      %v1277 = vrot.slane %v1276, 1
      %v1278 = vmax.f32 %v1276, %v1277
      %v1279 = vsel %vm738, %v730, -inf
      %v1280 = vsel %vm738, %v731, -inf
      %v1281 = vmax.f32 %v1279, %v1280
      %v1282 = vrot.slane %v1281, 4
      %v1283 = vmax.f32 %v1281, %v1282
      %v1284 = vrot.slane %v1283, 2
      %v1285 = vmax.f32 %v1283, %v1284
      %v1286 = vrot.slane %v1285, 1
      %v1287 = vmax.f32 %v1285, %v1286
      %v1288 = vsel %vm738, %v732, -inf
      %v1289 = vsel %vm738, %v733, -inf
      %v1290 = vmax.f32 %v1288, %v1289
      %v1291 = vrot.slane %v1290, 4
      %v1292 = vmax.f32 %v1290, %v1291
      %v1293 = vrot.slane %v1292, 2
      %v1294 = vmax.f32 %v1292, %v1293
      %v1295 = vrot.slane %v1294, 1
      %v1296 = vmax.f32 %v1294, %v1295
      %v1297 = vsel %vm738, %v734, -inf
      %v1298 = vsel %vm738, %v735, -inf
      %v1299 = vmax.f32 %v1297, %v1298
      %v1300 = vrot.slane %v1299, 4
      %v1301 = vmax.f32 %v1299, %v1300
      %v1302 = vrot.slane %v1301, 2
      %v1303 = vmax.f32 %v1301, %v1302
      %v1304 = vrot.slane %v1303, 1
      %v1305 = vmax.f32 %v1303, %v1304
      %v1306 = vsel %vm738, %v736, -inf
      %v1307 = vsel %vm738, %v737, -inf
      %v1308 = vmax.f32 %v1306, %v1307
      %v1309 = vrot.slane %v1308, 4
      %v1310 = vmax.f32 %v1308, %v1309
      %v1311 = vrot.slane %v1310, 2
      %v1312 = vmax.f32 %v1310, %v1311
      %v1313 = vrot.slane %v1312, 1
      %v1314 = vmax.f32 %v1312, %v1313
      %1315 = vrot.lane.b32.xlu0 %v49, 4
      %v1316 = vpop.permute.xlu0 %1315
      %1317 = vrot.lane.b32.xlu0 %v50, 4
      %v1318 = vpop.permute.xlu0 %1317
      %vm1319 = vcmp.le.s32.totalorder %v49, %v1316
      %vm1320 = vcmp.le.s32.totalorder %v50, %v1318
      %1321 = vset.pattern.permute.xlu0 1
      %1322 = vperm.xlu0 %1321, %v450
      %v1323 = vpop.permute.xlu0 %1322
      %1324 = vset.pattern.permute.xlu0 1
      %1325 = vperm.xlu0 %1324, %v451
      %v1326 = vpop.permute.xlu0 %1325
      %1327 = vset.pattern.permute.xlu0 1
      %1328 = vperm.xlu0 %1327, %v452
      %v1329 = vpop.permute.xlu0 %1328
      %1330 = vset.pattern.permute.xlu0 1
      %1331 = vperm.xlu0 %1330, %v453
      %v1332 = vpop.permute.xlu0 %1331
      %1333 = vset.pattern.permute.xlu0 1
      %1334 = vperm.xlu0 %1333, %v454
      %v1335 = vpop.permute.xlu0 %1334
      %1336 = vset.pattern.permute.xlu0 1
      %1337 = vperm.xlu0 %1336, %v455
      %v1338 = vpop.permute.xlu0 %1337
      %1339 = vset.pattern.permute.xlu0 1
      %1340 = vperm.xlu0 %1339, %v456
      %v1341 = vpop.permute.xlu0 %1340
      %1342 = vset.pattern.permute.xlu0 1
      %1343 = vperm.xlu0 %1342, %v457
      %v1344 = vpop.permute.xlu0 %1343
      %1345 = vset.pattern.permute.xlu0 1
      %1346 = vperm.xlu0 %1345, %v458
      %v1347 = vpop.permute.xlu0 %1346
      %1348 = vset.pattern.permute.xlu0 1
      %1349 = vperm.xlu0 %1348, %v459
      %v1350 = vpop.permute.xlu0 %1349
      %1351 = vset.pattern.permute.xlu0 1
      %1352 = vperm.xlu0 %1351, %v460
      %v1353 = vpop.permute.xlu0 %1352
      %1354 = vset.pattern.permute.xlu0 1
      %1355 = vperm.xlu0 %1354, %v461
      %v1356 = vpop.permute.xlu0 %1355
      %1357 = vset.pattern.permute.xlu0 1
      %1358 = vperm.xlu0 %1357, %v462
      %v1359 = vpop.permute.xlu0 %1358
      %1360 = vset.pattern.permute.xlu0 1
      %1361 = vperm.xlu0 %1360, %v463
      %v1362 = vpop.permute.xlu0 %1361
      %1363 = vset.pattern.permute.xlu0 1
      %1364 = vperm.xlu0 %1363, %v464
      %v1365 = vpop.permute.xlu0 %1364
      %1366 = vset.pattern.permute.xlu0 1
      %1367 = vperm.xlu0 %1366, %v465
      %v1368 = vpop.permute.xlu0 %1367
      %1369 = vset.pattern.permute.xlu0 1
      %1370 = vperm.xlu0 %1369, %v466
      %v1371 = vpop.permute.xlu0 %1370
      %1372 = vset.pattern.permute.xlu0 1
      %1373 = vperm.xlu0 %1372, %v467
      %v1374 = vpop.permute.xlu0 %1373
      %1375 = vset.pattern.permute.xlu0 1
      %1376 = vperm.xlu0 %1375, %v468
      %v1377 = vpop.permute.xlu0 %1376
      %1378 = vset.pattern.permute.xlu0 1
      %1379 = vperm.xlu0 %1378, %v469
      %v1380 = vpop.permute.xlu0 %1379
      %1381 = vset.pattern.permute.xlu0 1
      %1382 = vperm.xlu0 %1381, %v470
      %v1383 = vpop.permute.xlu0 %1382
      %1384 = vset.pattern.permute.xlu0 1
      %1385 = vperm.xlu0 %1384, %v471
      %v1386 = vpop.permute.xlu0 %1385
      %1387 = vset.pattern.permute.xlu0 1
      %1388 = vperm.xlu0 %1387, %v472
      %v1389 = vpop.permute.xlu0 %1388
      %1390 = vset.pattern.permute.xlu0 1
      %1391 = vperm.xlu0 %1390, %v473
      %v1392 = vpop.permute.xlu0 %1391
      %1393 = vset.pattern.permute.xlu0 1
      %1394 = vperm.xlu0 %1393, %v474
      %v1395 = vpop.permute.xlu0 %1394
      %1396 = vset.pattern.permute.xlu0 1
      %1397 = vperm.xlu0 %1396, %v475
      %v1398 = vpop.permute.xlu0 %1397
      %1399 = vset.pattern.permute.xlu0 1
      %1400 = vperm.xlu0 %1399, %v476
      %v1401 = vpop.permute.xlu0 %1400
      %1402 = vset.pattern.permute.xlu0 1
      %1403 = vperm.xlu0 %1402, %v477
      %v1404 = vpop.permute.xlu0 %1403
      %1405 = vset.pattern.permute.xlu0 1
      %1406 = vperm.xlu0 %1405, %v478
      %v1407 = vpop.permute.xlu0 %1406
      %1408 = vset.pattern.permute.xlu0 1
      %1409 = vperm.xlu0 %1408, %v479
      %v1410 = vpop.permute.xlu0 %1409
      %1411 = vset.pattern.permute.xlu0 1
      %1412 = vperm.xlu0 %1411, %v480
      %v1413 = vpop.permute.xlu0 %1412
      %1414 = vset.pattern.permute.xlu0 1
      %1415 = vperm.xlu0 %1414, %v481
      %v1416 = vpop.permute.xlu0 %1415
      %vm1417 = vcmp.eq.s32.totalorder %v1323, 1
      %vm1418 = vcmp.eq.s32.totalorder %v1326, 1
      %vm1419 = vcmp.eq.s32.totalorder %v1329, 1
      %vm1420 = vcmp.eq.s32.totalorder %v1332, 1
      %vm1421 = vcmp.eq.s32.totalorder %v1335, 1
      %vm1422 = vcmp.eq.s32.totalorder %v1338, 1
      %vm1423 = vcmp.eq.s32.totalorder %v1341, 1
      %vm1424 = vcmp.eq.s32.totalorder %v1344, 1
      %vm1425 = vcmp.eq.s32.totalorder %v1347, 1
      %vm1426 = vcmp.eq.s32.totalorder %v1350, 1
      %vm1427 = vcmp.eq.s32.totalorder %v1353, 1
      %vm1428 = vcmp.eq.s32.totalorder %v1356, 1
      %vm1429 = vcmp.eq.s32.totalorder %v1359, 1
      %vm1430 = vcmp.eq.s32.totalorder %v1362, 1
      %vm1431 = vcmp.eq.s32.totalorder %v1365, 1
      %vm1432 = vcmp.eq.s32.totalorder %v1368, 1
      %vm1433 = vcmp.eq.s32.totalorder %v1371, 1
      %vm1434 = vcmp.eq.s32.totalorder %v1374, 1
      %vm1435 = vcmp.eq.s32.totalorder %v1377, 1
      %vm1436 = vcmp.eq.s32.totalorder %v1380, 1
      %vm1437 = vcmp.eq.s32.totalorder %v1383, 1
      %vm1438 = vcmp.eq.s32.totalorder %v1386, 1
      %vm1439 = vcmp.eq.s32.totalorder %v1389, 1
      %vm1440 = vcmp.eq.s32.totalorder %v1392, 1
      %vm1441 = vcmp.eq.s32.totalorder %v1395, 1
      %vm1442 = vcmp.eq.s32.totalorder %v1398, 1
      %vm1443 = vcmp.eq.s32.totalorder %v1401, 1
      %vm1444 = vcmp.eq.s32.totalorder %v1404, 1
      %vm1445 = vcmp.eq.s32.totalorder %v1407, 1
      %vm1446 = vcmp.eq.s32.totalorder %v1410, 1
      %vm1447 = vcmp.eq.s32.totalorder %v1413, 1
      %vm1448 = vcmp.eq.s32.totalorder %v1416, 1
      %v1449 = vsel %vm1417, %v51, -inf
      %v1450 = vsel %vm1418, %v52, -inf
      %v1451 = vsel %vm1417, %v53, -inf
      %v1452 = vsel %vm1418, %v54, -inf
      %v1453 = vsel %vm1417, %v55, -inf
      %v1454 = vsel %vm1418, %v56, -inf
      %v1455 = vsel %vm1417, %v57, -inf
      %v1456 = vsel %vm1418, %v58, -inf
      %v1457 = vsel %vm1419, %v51, -inf
      %v1458 = vsel %vm1420, %v52, -inf
      %v1459 = vsel %vm1419, %v53, -inf
      %v1460 = vsel %vm1420, %v54, -inf
      %v1461 = vsel %vm1419, %v55, -inf
      %v1462 = vsel %vm1420, %v56, -inf
      %v1463 = vsel %vm1419, %v57, -inf
      %v1464 = vsel %vm1420, %v58, -inf
      %v1465 = vsel %vm1421, %v51, -inf
      %v1466 = vsel %vm1422, %v52, -inf
      %v1467 = vsel %vm1421, %v53, -inf
      %v1468 = vsel %vm1422, %v54, -inf
      %v1469 = vsel %vm1421, %v55, -inf
      %v1470 = vsel %vm1422, %v56, -inf
      %v1471 = vsel %vm1421, %v57, -inf
      %v1472 = vsel %vm1422, %v58, -inf
      %v1473 = vsel %vm1423, %v51, -inf
      %v1474 = vsel %vm1424, %v52, -inf
      %v1475 = vsel %vm1423, %v53, -inf
      %v1476 = vsel %vm1424, %v54, -inf
      %v1477 = vsel %vm1423, %v55, -inf
      %v1478 = vsel %vm1424, %v56, -inf
      %v1479 = vsel %vm1423, %v57, -inf
      %v1480 = vsel %vm1424, %v58, -inf
      %v1481 = vsel %vm1425, %v51, -inf
      %v1482 = vsel %vm1426, %v52, -inf
      %v1483 = vsel %vm1425, %v53, -inf
      %v1484 = vsel %vm1426, %v54, -inf
      %v1485 = vsel %vm1425, %v55, -inf
      %v1486 = vsel %vm1426, %v56, -inf
      %v1487 = vsel %vm1425, %v57, -inf
      %v1488 = vsel %vm1426, %v58, -inf
      %v1489 = vsel %vm1427, %v51, -inf
      %v1490 = vsel %vm1428, %v52, -inf
      %v1491 = vsel %vm1427, %v53, -inf
      %v1492 = vsel %vm1428, %v54, -inf
      %v1493 = vsel %vm1427, %v55, -inf
      %v1494 = vsel %vm1428, %v56, -inf
      %v1495 = vsel %vm1427, %v57, -inf
      %v1496 = vsel %vm1428, %v58, -inf
      %v1497 = vsel %vm1429, %v51, -inf
      %v1498 = vsel %vm1430, %v52, -inf
      %v1499 = vsel %vm1429, %v53, -inf
      %v1500 = vsel %vm1430, %v54, -inf
      %v1501 = vsel %vm1429, %v55, -inf
      %v1502 = vsel %vm1430, %v56, -inf
      %v1503 = vsel %vm1429, %v57, -inf
      %v1504 = vsel %vm1430, %v58, -inf
      %v1505 = vsel %vm1431, %v51, -inf
      %v1506 = vsel %vm1432, %v52, -inf
      %v1507 = vsel %vm1431, %v53, -inf
      %v1508 = vsel %vm1432, %v54, -inf
      %v1509 = vsel %vm1431, %v55, -inf
      %v1510 = vsel %vm1432, %v56, -inf
      %v1511 = vsel %vm1431, %v57, -inf
      %v1512 = vsel %vm1432, %v58, -inf
      %v1513 = vsel %vm1433, %v51, -inf
      %v1514 = vsel %vm1434, %v52, -inf
      %v1515 = vsel %vm1433, %v53, -inf
      %v1516 = vsel %vm1434, %v54, -inf
      %v1517 = vsel %vm1433, %v55, -inf
      %v1518 = vsel %vm1434, %v56, -inf
      %v1519 = vsel %vm1433, %v57, -inf
      %v1520 = vsel %vm1434, %v58, -inf
      %v1521 = vsel %vm1435, %v51, -inf
      %v1522 = vsel %vm1436, %v52, -inf
      %v1523 = vsel %vm1435, %v53, -inf
      %v1524 = vsel %vm1436, %v54, -inf
      %v1525 = vsel %vm1435, %v55, -inf
      %v1526 = vsel %vm1436, %v56, -inf
      %v1527 = vsel %vm1435, %v57, -inf
      %v1528 = vsel %vm1436, %v58, -inf
      %v1529 = vsel %vm1437, %v51, -inf
      %v1530 = vsel %vm1438, %v52, -inf
      %v1531 = vsel %vm1437, %v53, -inf
      %v1532 = vsel %vm1438, %v54, -inf
      %v1533 = vsel %vm1437, %v55, -inf
      %v1534 = vsel %vm1438, %v56, -inf
      %v1535 = vsel %vm1437, %v57, -inf
      %v1536 = vsel %vm1438, %v58, -inf
      %v1537 = vsel %vm1439, %v51, -inf
      %v1538 = vsel %vm1440, %v52, -inf
      %v1539 = vsel %vm1439, %v53, -inf
      %v1540 = vsel %vm1440, %v54, -inf
      %v1541 = vsel %vm1439, %v55, -inf
      %v1542 = vsel %vm1440, %v56, -inf
      %v1543 = vsel %vm1439, %v57, -inf
      %v1544 = vsel %vm1440, %v58, -inf
      %v1545 = vsel %vm1441, %v51, -inf
      %v1546 = vsel %vm1442, %v52, -inf
      %v1547 = vsel %vm1441, %v53, -inf
      %v1548 = vsel %vm1442, %v54, -inf
      %v1549 = vsel %vm1441, %v55, -inf
      %v1550 = vsel %vm1442, %v56, -inf
      %v1551 = vsel %vm1441, %v57, -inf
      %v1552 = vsel %vm1442, %v58, -inf
      %v1553 = vsel %vm1443, %v51, -inf
      %v1554 = vsel %vm1444, %v52, -inf
      %v1555 = vsel %vm1443, %v53, -inf
      %v1556 = vsel %vm1444, %v54, -inf
      %v1557 = vsel %vm1443, %v55, -inf
      %v1558 = vsel %vm1444, %v56, -inf
      %v1559 = vsel %vm1443, %v57, -inf
      %v1560 = vsel %vm1444, %v58, -inf
      %v1561 = vsel %vm1445, %v51, -inf
      %v1562 = vsel %vm1446, %v52, -inf
      %v1563 = vsel %vm1445, %v53, -inf
      %v1564 = vsel %vm1446, %v54, -inf
      %v1565 = vsel %vm1445, %v55, -inf
      %v1566 = vsel %vm1446, %v56, -inf
      %v1567 = vsel %vm1445, %v57, -inf
      %v1568 = vsel %vm1446, %v58, -inf
      %v1569 = vsel %vm1447, %v51, -inf
      %v1570 = vsel %vm1448, %v52, -inf
      %v1571 = vsel %vm1447, %v53, -inf
      %v1572 = vsel %vm1448, %v54, -inf
      %v1573 = vsel %vm1447, %v55, -inf
      %v1574 = vsel %vm1448, %v56, -inf
      %v1575 = vsel %vm1447, %v57, -inf
      %v1576 = vsel %vm1448, %v58, -inf
      %v1577 = vsel %vm738, %v1449, -inf
      %v1578 = vsel %vm738, %v1450, -inf
      %v1579 = vmax.f32 %v1577, %v1578
      %v1580 = vrot.slane %v1579, 4
      %v1581 = vmax.f32 %v1579, %v1580
      %v1582 = vrot.slane %v1581, 2
      %v1583 = vmax.f32 %v1581, %v1582
      %v1584 = vrot.slane %v1583, 1
      %v1585 = vmax.f32 %v1583, %v1584
      %v1586 = vsel %vm738, %v1451, -inf
      %v1587 = vsel %vm738, %v1452, -inf
      %v1588 = vmax.f32 %v1586, %v1587
      %v1589 = vrot.slane %v1588, 4
      %v1590 = vmax.f32 %v1588, %v1589
      %v1591 = vrot.slane %v1590, 2
      %v1592 = vmax.f32 %v1590, %v1591
      %v1593 = vrot.slane %v1592, 1
      %v1594 = vmax.f32 %v1592, %v1593
      %v1595 = vsel %vm738, %v1453, -inf
      %v1596 = vsel %vm738, %v1454, -inf
      %v1597 = vmax.f32 %v1595, %v1596
      %v1598 = vrot.slane %v1597, 4
      %v1599 = vmax.f32 %v1597, %v1598
      %v1600 = vrot.slane %v1599, 2
      %v1601 = vmax.f32 %v1599, %v1600
      %v1602 = vrot.slane %v1601, 1
      %v1603 = vmax.f32 %v1601, %v1602
      %v1604 = vsel %vm738, %v1455, -inf
      %v1605 = vsel %vm738, %v1456, -inf
      %v1606 = vmax.f32 %v1604, %v1605
      %v1607 = vrot.slane %v1606, 4
      %v1608 = vmax.f32 %v1606, %v1607
      %v1609 = vrot.slane %v1608, 2
      %v1610 = vmax.f32 %v1608, %v1609
      %v1611 = vrot.slane %v1610, 1
      %v1612 = vmax.f32 %v1610, %v1611
      %v1613 = vsel %vm738, %v1457, -inf
      %v1614 = vsel %vm738, %v1458, -inf
      %v1615 = vmax.f32 %v1613, %v1614
      %v1616 = vrot.slane %v1615, 4
      %v1617 = vmax.f32 %v1615, %v1616
      %v1618 = vrot.slane %v1617, 2
      %v1619 = vmax.f32 %v1617, %v1618
      %v1620 = vrot.slane %v1619, 1
      %v1621 = vmax.f32 %v1619, %v1620
      %v1622 = vsel %vm738, %v1459, -inf
      %v1623 = vsel %vm738, %v1460, -inf
      %v1624 = vmax.f32 %v1622, %v1623
      %v1625 = vrot.slane %v1624, 4
      %v1626 = vmax.f32 %v1624, %v1625
      %v1627 = vrot.slane %v1626, 2
      %v1628 = vmax.f32 %v1626, %v1627
      %v1629 = vrot.slane %v1628, 1
      %v1630 = vmax.f32 %v1628, %v1629
      %v1631 = vsel %vm738, %v1461, -inf
      %v1632 = vsel %vm738, %v1462, -inf
      %v1633 = vmax.f32 %v1631, %v1632
      %v1634 = vrot.slane %v1633, 4
      %v1635 = vmax.f32 %v1633, %v1634
      %v1636 = vrot.slane %v1635, 2
      %v1637 = vmax.f32 %v1635, %v1636
      %v1638 = vrot.slane %v1637, 1
      %v1639 = vmax.f32 %v1637, %v1638
      %v1640 = vsel %vm738, %v1463, -inf
      %v1641 = vsel %vm738, %v1464, -inf
      %v1642 = vmax.f32 %v1640, %v1641
      %v1643 = vrot.slane %v1642, 4
      %v1644 = vmax.f32 %v1642, %v1643
      %v1645 = vrot.slane %v1644, 2
      %v1646 = vmax.f32 %v1644, %v1645
      %v1647 = vrot.slane %v1646, 1
      %v1648 = vmax.f32 %v1646, %v1647
      %v1649 = vsel %vm738, %v1465, -inf
      %v1650 = vsel %vm738, %v1466, -inf
      %v1651 = vmax.f32 %v1649, %v1650
      %v1652 = vrot.slane %v1651, 4
      %v1653 = vmax.f32 %v1651, %v1652
      %v1654 = vrot.slane %v1653, 2
      %v1655 = vmax.f32 %v1653, %v1654
      %v1656 = vrot.slane %v1655, 1
      %v1657 = vmax.f32 %v1655, %v1656
      %v1658 = vsel %vm738, %v1467, -inf
      %v1659 = vsel %vm738, %v1468, -inf
      %v1660 = vmax.f32 %v1658, %v1659
      %v1661 = vrot.slane %v1660, 4
      %v1662 = vmax.f32 %v1660, %v1661
      %v1663 = vrot.slane %v1662, 2
      %v1664 = vmax.f32 %v1662, %v1663
      %v1665 = vrot.slane %v1664, 1
      %v1666 = vmax.f32 %v1664, %v1665
      %v1667 = vsel %vm738, %v1469, -inf
      %v1668 = vsel %vm738, %v1470, -inf
      %v1669 = vmax.f32 %v1667, %v1668
      %v1670 = vrot.slane %v1669, 4
      %v1671 = vmax.f32 %v1669, %v1670
      %v1672 = vrot.slane %v1671, 2
      %v1673 = vmax.f32 %v1671, %v1672
      %v1674 = vrot.slane %v1673, 1
      %v1675 = vmax.f32 %v1673, %v1674
      %v1676 = vsel %vm738, %v1471, -inf
      %v1677 = vsel %vm738, %v1472, -inf
      %v1678 = vmax.f32 %v1676, %v1677
      %v1679 = vrot.slane %v1678, 4
      %v1680 = vmax.f32 %v1678, %v1679
      %v1681 = vrot.slane %v1680, 2
      %v1682 = vmax.f32 %v1680, %v1681
      %v1683 = vrot.slane %v1682, 1
      %v1684 = vmax.f32 %v1682, %v1683
      %v1685 = vsel %vm738, %v1473, -inf
      %v1686 = vsel %vm738, %v1474, -inf
      %v1687 = vmax.f32 %v1685, %v1686
      %v1688 = vrot.slane %v1687, 4
      %v1689 = vmax.f32 %v1687, %v1688
      %v1690 = vrot.slane %v1689, 2
      %v1691 = vmax.f32 %v1689, %v1690
      %v1692 = vrot.slane %v1691, 1
      %v1693 = vmax.f32 %v1691, %v1692
      %v1694 = vsel %vm738, %v1475, -inf
      %v1695 = vsel %vm738, %v1476, -inf
      %v1696 = vmax.f32 %v1694, %v1695
      %v1697 = vrot.slane %v1696, 4
      %v1698 = vmax.f32 %v1696, %v1697
      %v1699 = vrot.slane %v1698, 2
      %v1700 = vmax.f32 %v1698, %v1699
      %v1701 = vrot.slane %v1700, 1
      %v1702 = vmax.f32 %v1700, %v1701
      %v1703 = vsel %vm738, %v1477, -inf
      %v1704 = vsel %vm738, %v1478, -inf
      %v1705 = vmax.f32 %v1703, %v1704
      %v1706 = vrot.slane %v1705, 4
      %v1707 = vmax.f32 %v1705, %v1706
      %v1708 = vrot.slane %v1707, 2
      %v1709 = vmax.f32 %v1707, %v1708
      %v1710 = vrot.slane %v1709, 1
      %v1711 = vmax.f32 %v1709, %v1710
      %v1712 = vsel %vm738, %v1479, -inf
      %v1713 = vsel %vm738, %v1480, -inf
      %v1714 = vmax.f32 %v1712, %v1713
      %v1715 = vrot.slane %v1714, 4
      %v1716 = vmax.f32 %v1714, %v1715
      %v1717 = vrot.slane %v1716, 2
      %v1718 = vmax.f32 %v1716, %v1717
      %v1719 = vrot.slane %v1718, 1
      %v1720 = vmax.f32 %v1718, %v1719
      %v1721 = vsel %vm738, %v1481, -inf
      %v1722 = vsel %vm738, %v1482, -inf
      %v1723 = vmax.f32 %v1721, %v1722
      %v1724 = vrot.slane %v1723, 4
      %v1725 = vmax.f32 %v1723, %v1724
      %v1726 = vrot.slane %v1725, 2
      %v1727 = vmax.f32 %v1725, %v1726
      %v1728 = vrot.slane %v1727, 1
      %v1729 = vmax.f32 %v1727, %v1728
      %v1730 = vsel %vm738, %v1483, -inf
      %v1731 = vsel %vm738, %v1484, -inf
      %v1732 = vmax.f32 %v1730, %v1731
      %v1733 = vrot.slane %v1732, 4
      %v1734 = vmax.f32 %v1732, %v1733
      %v1735 = vrot.slane %v1734, 2
      %v1736 = vmax.f32 %v1734, %v1735
      %v1737 = vrot.slane %v1736, 1
      %v1738 = vmax.f32 %v1736, %v1737
      %v1739 = vsel %vm738, %v1485, -inf
      %v1740 = vsel %vm738, %v1486, -inf
      %v1741 = vmax.f32 %v1739, %v1740
      %v1742 = vrot.slane %v1741, 4
      %v1743 = vmax.f32 %v1741, %v1742
      %v1744 = vrot.slane %v1743, 2
      %v1745 = vmax.f32 %v1743, %v1744
      %v1746 = vrot.slane %v1745, 1
      %v1747 = vmax.f32 %v1745, %v1746
      %v1748 = vsel %vm738, %v1487, -inf
      %v1749 = vsel %vm738, %v1488, -inf
      %v1750 = vmax.f32 %v1748, %v1749
      %v1751 = vrot.slane %v1750, 4
      %v1752 = vmax.f32 %v1750, %v1751
      %v1753 = vrot.slane %v1752, 2
      %v1754 = vmax.f32 %v1752, %v1753
      %v1755 = vrot.slane %v1754, 1
      %v1756 = vmax.f32 %v1754, %v1755
      %v1757 = vsel %vm738, %v1489, -inf
      %v1758 = vsel %vm738, %v1490, -inf
      %v1759 = vmax.f32 %v1757, %v1758
      %v1760 = vrot.slane %v1759, 4
      %v1761 = vmax.f32 %v1759, %v1760
      %v1762 = vrot.slane %v1761, 2
      %v1763 = vmax.f32 %v1761, %v1762
      %v1764 = vrot.slane %v1763, 1
      %v1765 = vmax.f32 %v1763, %v1764
      %v1766 = vsel %vm738, %v1491, -inf
      %v1767 = vsel %vm738, %v1492, -inf
      %v1768 = vmax.f32 %v1766, %v1767
      %v1769 = vrot.slane %v1768, 4
      %v1770 = vmax.f32 %v1768, %v1769
      %v1771 = vrot.slane %v1770, 2
      %v1772 = vmax.f32 %v1770, %v1771
      %v1773 = vrot.slane %v1772, 1
      %v1774 = vmax.f32 %v1772, %v1773
      %v1775 = vsel %vm738, %v1493, -inf
      %v1776 = vsel %vm738, %v1494, -inf
      %v1777 = vmax.f32 %v1775, %v1776
      %v1778 = vrot.slane %v1777, 4
      %v1779 = vmax.f32 %v1777, %v1778
      %v1780 = vrot.slane %v1779, 2
      %v1781 = vmax.f32 %v1779, %v1780
      %v1782 = vrot.slane %v1781, 1
      %v1783 = vmax.f32 %v1781, %v1782
      %v1784 = vsel %vm738, %v1495, -inf
      %v1785 = vsel %vm738, %v1496, -inf
      %v1786 = vmax.f32 %v1784, %v1785
      %v1787 = vrot.slane %v1786, 4
      %v1788 = vmax.f32 %v1786, %v1787
      %v1789 = vrot.slane %v1788, 2
      %v1790 = vmax.f32 %v1788, %v1789
      %v1791 = vrot.slane %v1790, 1
      %v1792 = vmax.f32 %v1790, %v1791
      %v1793 = vsel %vm738, %v1497, -inf
      %v1794 = vsel %vm738, %v1498, -inf
      %v1795 = vmax.f32 %v1793, %v1794
      %v1796 = vrot.slane %v1795, 4
      %v1797 = vmax.f32 %v1795, %v1796
      %v1798 = vrot.slane %v1797, 2
      %v1799 = vmax.f32 %v1797, %v1798
      %v1800 = vrot.slane %v1799, 1
      %v1801 = vmax.f32 %v1799, %v1800
      %v1802 = vsel %vm738, %v1499, -inf
      %v1803 = vsel %vm738, %v1500, -inf
      %v1804 = vmax.f32 %v1802, %v1803
      %v1805 = vrot.slane %v1804, 4
      %v1806 = vmax.f32 %v1804, %v1805
      %v1807 = vrot.slane %v1806, 2
      %v1808 = vmax.f32 %v1806, %v1807
      %v1809 = vrot.slane %v1808, 1
      %v1810 = vmax.f32 %v1808, %v1809
      %v1811 = vsel %vm738, %v1501, -inf
      %v1812 = vsel %vm738, %v1502, -inf
      %v1813 = vmax.f32 %v1811, %v1812
      %v1814 = vrot.slane %v1813, 4
      %v1815 = vmax.f32 %v1813, %v1814
      %v1816 = vrot.slane %v1815, 2
      %v1817 = vmax.f32 %v1815, %v1816
      %v1818 = vrot.slane %v1817, 1
      %v1819 = vmax.f32 %v1817, %v1818
      %v1820 = vsel %vm738, %v1503, -inf
      %v1821 = vsel %vm738, %v1504, -inf
      %v1822 = vmax.f32 %v1820, %v1821
      %v1823 = vrot.slane %v1822, 4
      %v1824 = vmax.f32 %v1822, %v1823
      %v1825 = vrot.slane %v1824, 2
      %v1826 = vmax.f32 %v1824, %v1825
      %v1827 = vrot.slane %v1826, 1
      %v1828 = vmax.f32 %v1826, %v1827
      %v1829 = vsel %vm738, %v1505, -inf
      %v1830 = vsel %vm738, %v1506, -inf
      %v1831 = vmax.f32 %v1829, %v1830
      %v1832 = vrot.slane %v1831, 4
      %v1833 = vmax.f32 %v1831, %v1832
      %v1834 = vrot.slane %v1833, 2
      %v1835 = vmax.f32 %v1833, %v1834
      %v1836 = vrot.slane %v1835, 1
      %v1837 = vmax.f32 %v1835, %v1836
      %v1838 = vsel %vm738, %v1507, -inf
      %v1839 = vsel %vm738, %v1508, -inf
      %v1840 = vmax.f32 %v1838, %v1839
      %v1841 = vrot.slane %v1840, 4
      %v1842 = vmax.f32 %v1840, %v1841
      %v1843 = vrot.slane %v1842, 2
      %v1844 = vmax.f32 %v1842, %v1843
      %v1845 = vrot.slane %v1844, 1
      %v1846 = vmax.f32 %v1844, %v1845
      %v1847 = vsel %vm738, %v1509, -inf
      %v1848 = vsel %vm738, %v1510, -inf
      %v1849 = vmax.f32 %v1847, %v1848
      %v1850 = vrot.slane %v1849, 4
      %v1851 = vmax.f32 %v1849, %v1850
      %v1852 = vrot.slane %v1851, 2
      %v1853 = vmax.f32 %v1851, %v1852
      %v1854 = vrot.slane %v1853, 1
      %v1855 = vmax.f32 %v1853, %v1854
      %v1856 = vsel %vm738, %v1511, -inf
      %v1857 = vsel %vm738, %v1512, -inf
      %v1858 = vmax.f32 %v1856, %v1857
      %v1859 = vrot.slane %v1858, 4
      %v1860 = vmax.f32 %v1858, %v1859
      %v1861 = vrot.slane %v1860, 2
      %v1862 = vmax.f32 %v1860, %v1861
      %v1863 = vrot.slane %v1862, 1
      %v1864 = vmax.f32 %v1862, %v1863
      %v1865 = vsel %vm738, %v1513, -inf
      %v1866 = vsel %vm738, %v1514, -inf
      %v1867 = vmax.f32 %v1865, %v1866
      %v1868 = vrot.slane %v1867, 4
      %v1869 = vmax.f32 %v1867, %v1868
      %v1870 = vrot.slane %v1869, 2
      %v1871 = vmax.f32 %v1869, %v1870
      %v1872 = vrot.slane %v1871, 1
      %v1873 = vmax.f32 %v1871, %v1872
      %v1874 = vsel %vm738, %v1515, -inf
      %v1875 = vsel %vm738, %v1516, -inf
      %v1876 = vmax.f32 %v1874, %v1875
      %v1877 = vrot.slane %v1876, 4
      %v1878 = vmax.f32 %v1876, %v1877
      %v1879 = vrot.slane %v1878, 2
      %v1880 = vmax.f32 %v1878, %v1879
      %v1881 = vrot.slane %v1880, 1
      %v1882 = vmax.f32 %v1880, %v1881
      %v1883 = vsel %vm738, %v1517, -inf
      %v1884 = vsel %vm738, %v1518, -inf
      %v1885 = vmax.f32 %v1883, %v1884
      %v1886 = vrot.slane %v1885, 4
      %v1887 = vmax.f32 %v1885, %v1886
      %v1888 = vrot.slane %v1887, 2
      %v1889 = vmax.f32 %v1887, %v1888
      %v1890 = vrot.slane %v1889, 1
      %v1891 = vmax.f32 %v1889, %v1890
      %v1892 = vsel %vm738, %v1519, -inf
      %v1893 = vsel %vm738, %v1520, -inf
      %v1894 = vmax.f32 %v1892, %v1893
      %v1895 = vrot.slane %v1894, 4
      %v1896 = vmax.f32 %v1894, %v1895
      %v1897 = vrot.slane %v1896, 2
      %v1898 = vmax.f32 %v1896, %v1897
      %v1899 = vrot.slane %v1898, 1
      %v1900 = vmax.f32 %v1898, %v1899
      %v1901 = vsel %vm738, %v1521, -inf
      %v1902 = vsel %vm738, %v1522, -inf
      %v1903 = vmax.f32 %v1901, %v1902
      %v1904 = vrot.slane %v1903, 4
      %v1905 = vmax.f32 %v1903, %v1904
      %v1906 = vrot.slane %v1905, 2
      %v1907 = vmax.f32 %v1905, %v1906
      %v1908 = vrot.slane %v1907, 1
      %v1909 = vmax.f32 %v1907, %v1908
      %v1910 = vsel %vm738, %v1523, -inf
      %v1911 = vsel %vm738, %v1524, -inf
      %v1912 = vmax.f32 %v1910, %v1911
      %v1913 = vrot.slane %v1912, 4
      %v1914 = vmax.f32 %v1912, %v1913
      %v1915 = vrot.slane %v1914, 2
      %v1916 = vmax.f32 %v1914, %v1915
      %v1917 = vrot.slane %v1916, 1
      %v1918 = vmax.f32 %v1916, %v1917
      %v1919 = vsel %vm738, %v1525, -inf
      %v1920 = vsel %vm738, %v1526, -inf
      %v1921 = vmax.f32 %v1919, %v1920
      %v1922 = vrot.slane %v1921, 4
      %v1923 = vmax.f32 %v1921, %v1922
      %v1924 = vrot.slane %v1923, 2
      %v1925 = vmax.f32 %v1923, %v1924
      %v1926 = vrot.slane %v1925, 1
      %v1927 = vmax.f32 %v1925, %v1926
      %v1928 = vsel %vm738, %v1527, -inf
      %v1929 = vsel %vm738, %v1528, -inf
      %v1930 = vmax.f32 %v1928, %v1929
      %v1931 = vrot.slane %v1930, 4
      %v1932 = vmax.f32 %v1930, %v1931
      %v1933 = vrot.slane %v1932, 2
      %v1934 = vmax.f32 %v1932, %v1933
      %v1935 = vrot.slane %v1934, 1
      %v1936 = vmax.f32 %v1934, %v1935
      %v1937 = vsel %vm738, %v1529, -inf
      %v1938 = vsel %vm738, %v1530, -inf
      %v1939 = vmax.f32 %v1937, %v1938
      %v1940 = vrot.slane %v1939, 4
      %v1941 = vmax.f32 %v1939, %v1940
      %v1942 = vrot.slane %v1941, 2
      %v1943 = vmax.f32 %v1941, %v1942
      %v1944 = vrot.slane %v1943, 1
      %v1945 = vmax.f32 %v1943, %v1944
      %v1946 = vsel %vm738, %v1531, -inf
      %v1947 = vsel %vm738, %v1532, -inf
      %v1948 = vmax.f32 %v1946, %v1947
      %v1949 = vrot.slane %v1948, 4
      %v1950 = vmax.f32 %v1948, %v1949
      %v1951 = vrot.slane %v1950, 2
      %v1952 = vmax.f32 %v1950, %v1951
      %v1953 = vrot.slane %v1952, 1
      %v1954 = vmax.f32 %v1952, %v1953
      %v1955 = vsel %vm738, %v1533, -inf
      %v1956 = vsel %vm738, %v1534, -inf
      %v1957 = vmax.f32 %v1955, %v1956
      %v1958 = vrot.slane %v1957, 4
      %v1959 = vmax.f32 %v1957, %v1958
      %v1960 = vrot.slane %v1959, 2
      %v1961 = vmax.f32 %v1959, %v1960
      %v1962 = vrot.slane %v1961, 1
      %v1963 = vmax.f32 %v1961, %v1962
      %v1964 = vsel %vm738, %v1535, -inf
      %v1965 = vsel %vm738, %v1536, -inf
      %v1966 = vmax.f32 %v1964, %v1965
      %v1967 = vrot.slane %v1966, 4
      %v1968 = vmax.f32 %v1966, %v1967
      %v1969 = vrot.slane %v1968, 2
      %v1970 = vmax.f32 %v1968, %v1969
      %v1971 = vrot.slane %v1970, 1
      %v1972 = vmax.f32 %v1970, %v1971
      %v1973 = vsel %vm738, %v1537, -inf
      %v1974 = vsel %vm738, %v1538, -inf
      %v1975 = vmax.f32 %v1973, %v1974
      %v1976 = vrot.slane %v1975, 4
      %v1977 = vmax.f32 %v1975, %v1976
      %v1978 = vrot.slane %v1977, 2
      %v1979 = vmax.f32 %v1977, %v1978
      %v1980 = vrot.slane %v1979, 1
      %v1981 = vmax.f32 %v1979, %v1980
      %v1982 = vsel %vm738, %v1539, -inf
      %v1983 = vsel %vm738, %v1540, -inf
      %v1984 = vmax.f32 %v1982, %v1983
      %v1985 = vrot.slane %v1984, 4
      %v1986 = vmax.f32 %v1984, %v1985
      %v1987 = vrot.slane %v1986, 2
      %v1988 = vmax.f32 %v1986, %v1987
      %v1989 = vrot.slane %v1988, 1
      %v1990 = vmax.f32 %v1988, %v1989
      %v1991 = vsel %vm738, %v1541, -inf
      %v1992 = vsel %vm738, %v1542, -inf
      %v1993 = vmax.f32 %v1991, %v1992
      %v1994 = vrot.slane %v1993, 4
      %v1995 = vmax.f32 %v1993, %v1994
      %v1996 = vrot.slane %v1995, 2
      %v1997 = vmax.f32 %v1995, %v1996
      %v1998 = vrot.slane %v1997, 1
      %v1999 = vmax.f32 %v1997, %v1998
      %v2000 = vsel %vm738, %v1543, -inf
      %v2001 = vsel %vm738, %v1544, -inf
      %v2002 = vmax.f32 %v2000, %v2001
      %v2003 = vrot.slane %v2002, 4
      %v2004 = vmax.f32 %v2002, %v2003
      %v2005 = vrot.slane %v2004, 2
      %v2006 = vmax.f32 %v2004, %v2005
      %v2007 = vrot.slane %v2006, 1
      %v2008 = vmax.f32 %v2006, %v2007
      %v2009 = vsel %vm738, %v1545, -inf
      %v2010 = vsel %vm738, %v1546, -inf
      %v2011 = vmax.f32 %v2009, %v2010
      %v2012 = vrot.slane %v2011, 4
      %v2013 = vmax.f32 %v2011, %v2012
      %v2014 = vrot.slane %v2013, 2
      %v2015 = vmax.f32 %v2013, %v2014
      %v2016 = vrot.slane %v2015, 1
      %v2017 = vmax.f32 %v2015, %v2016
      %v2018 = vsel %vm738, %v1547, -inf
      %v2019 = vsel %vm738, %v1548, -inf
      %v2020 = vmax.f32 %v2018, %v2019
      %v2021 = vrot.slane %v2020, 4
      %v2022 = vmax.f32 %v2020, %v2021
      %v2023 = vrot.slane %v2022, 2
      %v2024 = vmax.f32 %v2022, %v2023
      %v2025 = vrot.slane %v2024, 1
      %v2026 = vmax.f32 %v2024, %v2025
      %v2027 = vsel %vm738, %v1549, -inf
      %v2028 = vsel %vm738, %v1550, -inf
      %v2029 = vmax.f32 %v2027, %v2028
      %v2030 = vrot.slane %v2029, 4
      %v2031 = vmax.f32 %v2029, %v2030
      %v2032 = vrot.slane %v2031, 2
      %v2033 = vmax.f32 %v2031, %v2032
      %v2034 = vrot.slane %v2033, 1
      %v2035 = vmax.f32 %v2033, %v2034
      %v2036 = vsel %vm738, %v1551, -inf
      %v2037 = vsel %vm738, %v1552, -inf
      %v2038 = vmax.f32 %v2036, %v2037
      %v2039 = vrot.slane %v2038, 4
      %v2040 = vmax.f32 %v2038, %v2039
      %v2041 = vrot.slane %v2040, 2
      %v2042 = vmax.f32 %v2040, %v2041
      %v2043 = vrot.slane %v2042, 1
      %v2044 = vmax.f32 %v2042, %v2043
      %v2045 = vsel %vm738, %v1553, -inf
      %v2046 = vsel %vm738, %v1554, -inf
      %v2047 = vmax.f32 %v2045, %v2046
      %v2048 = vrot.slane %v2047, 4
      %v2049 = vmax.f32 %v2047, %v2048
      %v2050 = vrot.slane %v2049, 2
      %v2051 = vmax.f32 %v2049, %v2050
      %v2052 = vrot.slane %v2051, 1
      %v2053 = vmax.f32 %v2051, %v2052
      %v2054 = vsel %vm738, %v1555, -inf
      %v2055 = vsel %vm738, %v1556, -inf
      %v2056 = vmax.f32 %v2054, %v2055
      %v2057 = vrot.slane %v2056, 4
      %v2058 = vmax.f32 %v2056, %v2057
      %v2059 = vrot.slane %v2058, 2
      %v2060 = vmax.f32 %v2058, %v2059
      %v2061 = vrot.slane %v2060, 1
      %v2062 = vmax.f32 %v2060, %v2061
      %v2063 = vsel %vm738, %v1557, -inf
      %v2064 = vsel %vm738, %v1558, -inf
      %v2065 = vmax.f32 %v2063, %v2064
      %v2066 = vrot.slane %v2065, 4
      %v2067 = vmax.f32 %v2065, %v2066
      %v2068 = vrot.slane %v2067, 2
      %v2069 = vmax.f32 %v2067, %v2068
      %v2070 = vrot.slane %v2069, 1
      %v2071 = vmax.f32 %v2069, %v2070
      %v2072 = vsel %vm738, %v1559, -inf
      %v2073 = vsel %vm738, %v1560, -inf
      %v2074 = vmax.f32 %v2072, %v2073
      %v2075 = vrot.slane %v2074, 4
      %v2076 = vmax.f32 %v2074, %v2075
      %v2077 = vrot.slane %v2076, 2
      %v2078 = vmax.f32 %v2076, %v2077
      %v2079 = vrot.slane %v2078, 1
      %v2080 = vmax.f32 %v2078, %v2079
      %v2081 = vsel %vm738, %v1561, -inf
      %v2082 = vsel %vm738, %v1562, -inf
      %v2083 = vmax.f32 %v2081, %v2082
      %v2084 = vrot.slane %v2083, 4
      %v2085 = vmax.f32 %v2083, %v2084
      %v2086 = vrot.slane %v2085, 2
      %v2087 = vmax.f32 %v2085, %v2086
      %v2088 = vrot.slane %v2087, 1
      %v2089 = vmax.f32 %v2087, %v2088
      %v2090 = vsel %vm738, %v1563, -inf
      %v2091 = vsel %vm738, %v1564, -inf
      %v2092 = vmax.f32 %v2090, %v2091
      %v2093 = vrot.slane %v2092, 4
      %v2094 = vmax.f32 %v2092, %v2093
      %v2095 = vrot.slane %v2094, 2
      %v2096 = vmax.f32 %v2094, %v2095
      %v2097 = vrot.slane %v2096, 1
      %v2098 = vmax.f32 %v2096, %v2097
      %v2099 = vsel %vm738, %v1565, -inf
      %v2100 = vsel %vm738, %v1566, -inf
      %v2101 = vmax.f32 %v2099, %v2100
      %v2102 = vrot.slane %v2101, 4
      %v2103 = vmax.f32 %v2101, %v2102
      %v2104 = vrot.slane %v2103, 2
      %v2105 = vmax.f32 %v2103, %v2104
      %v2106 = vrot.slane %v2105, 1
      %v2107 = vmax.f32 %v2105, %v2106
      %v2108 = vsel %vm738, %v1567, -inf
      %v2109 = vsel %vm738, %v1568, -inf
      %v2110 = vmax.f32 %v2108, %v2109
      %v2111 = vrot.slane %v2110, 4
      %v2112 = vmax.f32 %v2110, %v2111
      %v2113 = vrot.slane %v2112, 2
      %v2114 = vmax.f32 %v2112, %v2113
      %v2115 = vrot.slane %v2114, 1
      %v2116 = vmax.f32 %v2114, %v2115
      %v2117 = vsel %vm738, %v1569, -inf
      %v2118 = vsel %vm738, %v1570, -inf
      %v2119 = vmax.f32 %v2117, %v2118
      %v2120 = vrot.slane %v2119, 4
      %v2121 = vmax.f32 %v2119, %v2120
      %v2122 = vrot.slane %v2121, 2
      %v2123 = vmax.f32 %v2121, %v2122
      %v2124 = vrot.slane %v2123, 1
      %v2125 = vmax.f32 %v2123, %v2124
      %v2126 = vsel %vm738, %v1571, -inf
      %v2127 = vsel %vm738, %v1572, -inf
      %v2128 = vmax.f32 %v2126, %v2127
      %v2129 = vrot.slane %v2128, 4
      %v2130 = vmax.f32 %v2128, %v2129
      %v2131 = vrot.slane %v2130, 2
      %v2132 = vmax.f32 %v2130, %v2131
      %v2133 = vrot.slane %v2132, 1
      %v2134 = vmax.f32 %v2132, %v2133
      %v2135 = vsel %vm738, %v1573, -inf
      %v2136 = vsel %vm738, %v1574, -inf
      %v2137 = vmax.f32 %v2135, %v2136
      %v2138 = vrot.slane %v2137, 4
      %v2139 = vmax.f32 %v2137, %v2138
      %v2140 = vrot.slane %v2139, 2
      %v2141 = vmax.f32 %v2139, %v2140
      %v2142 = vrot.slane %v2141, 1
      %v2143 = vmax.f32 %v2141, %v2142
      %v2144 = vsel %vm738, %v1575, -inf
      %v2145 = vsel %vm738, %v1576, -inf
      %v2146 = vmax.f32 %v2144, %v2145
      %v2147 = vrot.slane %v2146, 4
      %v2148 = vmax.f32 %v2146, %v2147
      %v2149 = vrot.slane %v2148, 2
      %v2150 = vmax.f32 %v2148, %v2149
      %v2151 = vrot.slane %v2150, 1
      %v2152 = vmax.f32 %v2150, %v2151
      %2153 = vset.pattern.permute.xlu0 2
      %2154 = vperm.xlu0 %2153, %v450
      %v2155 = vpop.permute.xlu0 %2154
      %2156 = vset.pattern.permute.xlu0 2
      %2157 = vperm.xlu0 %2156, %v451
      %v2158 = vpop.permute.xlu0 %2157
      %2159 = vset.pattern.permute.xlu0 2
      %2160 = vperm.xlu0 %2159, %v452
      %v2161 = vpop.permute.xlu0 %2160
      %2162 = vset.pattern.permute.xlu0 2
      %2163 = vperm.xlu0 %2162, %v453
      %v2164 = vpop.permute.xlu0 %2163
      %2165 = vset.pattern.permute.xlu0 2
      %2166 = vperm.xlu0 %2165, %v454
      %v2167 = vpop.permute.xlu0 %2166
      %2168 = vset.pattern.permute.xlu0 2
      %2169 = vperm.xlu0 %2168, %v455
      %v2170 = vpop.permute.xlu0 %2169
      %2171 = vset.pattern.permute.xlu0 2
      %2172 = vperm.xlu0 %2171, %v456
      %v2173 = vpop.permute.xlu0 %2172
      %2174 = vset.pattern.permute.xlu0 2
      %2175 = vperm.xlu0 %2174, %v457
      %v2176 = vpop.permute.xlu0 %2175
      %2177 = vset.pattern.permute.xlu0 2
      %2178 = vperm.xlu0 %2177, %v458
      %v2179 = vpop.permute.xlu0 %2178
      %2180 = vset.pattern.permute.xlu0 2
      %2181 = vperm.xlu0 %2180, %v459
      %v2182 = vpop.permute.xlu0 %2181
      %2183 = vset.pattern.permute.xlu0 2
      %2184 = vperm.xlu0 %2183, %v460
      %v2185 = vpop.permute.xlu0 %2184
      %2186 = vset.pattern.permute.xlu0 2
      %2187 = vperm.xlu0 %2186, %v461
      %v2188 = vpop.permute.xlu0 %2187
      %2189 = vset.pattern.permute.xlu0 2
      %2190 = vperm.xlu0 %2189, %v462
      %v2191 = vpop.permute.xlu0 %2190
      %2192 = vset.pattern.permute.xlu0 2
      %2193 = vperm.xlu0 %2192, %v463
      %v2194 = vpop.permute.xlu0 %2193
      %2195 = vset.pattern.permute.xlu0 2
      %2196 = vperm.xlu0 %2195, %v464
      %v2197 = vpop.permute.xlu0 %2196
      %2198 = vset.pattern.permute.xlu0 2
      %2199 = vperm.xlu0 %2198, %v465
      %v2200 = vpop.permute.xlu0 %2199
      %2201 = vset.pattern.permute.xlu0 2
      %2202 = vperm.xlu0 %2201, %v466
      %v2203 = vpop.permute.xlu0 %2202
      %2204 = vset.pattern.permute.xlu0 2
      %2205 = vperm.xlu0 %2204, %v467
      %v2206 = vpop.permute.xlu0 %2205
      %2207 = vset.pattern.permute.xlu0 2
      %2208 = vperm.xlu0 %2207, %v468
      %v2209 = vpop.permute.xlu0 %2208
      %2210 = vset.pattern.permute.xlu0 2
      %2211 = vperm.xlu0 %2210, %v469
      %v2212 = vpop.permute.xlu0 %2211
      %2213 = vset.pattern.permute.xlu0 2
      %2214 = vperm.xlu0 %2213, %v470
      %v2215 = vpop.permute.xlu0 %2214
      %2216 = vset.pattern.permute.xlu0 2
      %2217 = vperm.xlu0 %2216, %v471
      %v2218 = vpop.permute.xlu0 %2217
      %2219 = vset.pattern.permute.xlu0 2
      %2220 = vperm.xlu0 %2219, %v472
      %v2221 = vpop.permute.xlu0 %2220
      %2222 = vset.pattern.permute.xlu0 2
      %2223 = vperm.xlu0 %2222, %v473
      %v2224 = vpop.permute.xlu0 %2223
      %2225 = vset.pattern.permute.xlu0 2
      %2226 = vperm.xlu0 %2225, %v474
      %v2227 = vpop.permute.xlu0 %2226
      %2228 = vset.pattern.permute.xlu0 2
      %2229 = vperm.xlu0 %2228, %v475
      %v2230 = vpop.permute.xlu0 %2229
      %2231 = vset.pattern.permute.xlu0 2
      %2232 = vperm.xlu0 %2231, %v476
      %v2233 = vpop.permute.xlu0 %2232
      %2234 = vset.pattern.permute.xlu0 2
      %2235 = vperm.xlu0 %2234, %v477
      %v2236 = vpop.permute.xlu0 %2235
      %2237 = vset.pattern.permute.xlu0 2
      %2238 = vperm.xlu0 %2237, %v478
      %v2239 = vpop.permute.xlu0 %2238
      %2240 = vset.pattern.permute.xlu0 2
      %2241 = vperm.xlu0 %2240, %v479
      %v2242 = vpop.permute.xlu0 %2241
      %2243 = vset.pattern.permute.xlu0 2
      %2244 = vperm.xlu0 %2243, %v480
      %v2245 = vpop.permute.xlu0 %2244
      %2246 = vset.pattern.permute.xlu0 2
      %2247 = vperm.xlu0 %2246, %v481
      %v2248 = vpop.permute.xlu0 %2247
      %vm2249 = vcmp.eq.s32.totalorder %v2155, 1
      %vm2250 = vcmp.eq.s32.totalorder %v2158, 1
      %vm2251 = vcmp.eq.s32.totalorder %v2161, 1
      %vm2252 = vcmp.eq.s32.totalorder %v2164, 1
      %vm2253 = vcmp.eq.s32.totalorder %v2167, 1
      %vm2254 = vcmp.eq.s32.totalorder %v2170, 1
      %vm2255 = vcmp.eq.s32.totalorder %v2173, 1
      %vm2256 = vcmp.eq.s32.totalorder %v2176, 1
      %vm2257 = vcmp.eq.s32.totalorder %v2179, 1
      %vm2258 = vcmp.eq.s32.totalorder %v2182, 1
      %vm2259 = vcmp.eq.s32.totalorder %v2185, 1
      %vm2260 = vcmp.eq.s32.totalorder %v2188, 1
      %vm2261 = vcmp.eq.s32.totalorder %v2191, 1
      %vm2262 = vcmp.eq.s32.totalorder %v2194, 1
      %vm2263 = vcmp.eq.s32.totalorder %v2197, 1
      %vm2264 = vcmp.eq.s32.totalorder %v2200, 1
      %vm2265 = vcmp.eq.s32.totalorder %v2203, 1
      %vm2266 = vcmp.eq.s32.totalorder %v2206, 1
      %vm2267 = vcmp.eq.s32.totalorder %v2209, 1
      %vm2268 = vcmp.eq.s32.totalorder %v2212, 1
      %vm2269 = vcmp.eq.s32.totalorder %v2215, 1
      %vm2270 = vcmp.eq.s32.totalorder %v2218, 1
      %vm2271 = vcmp.eq.s32.totalorder %v2221, 1
      %vm2272 = vcmp.eq.s32.totalorder %v2224, 1
      %vm2273 = vcmp.eq.s32.totalorder %v2227, 1
      %vm2274 = vcmp.eq.s32.totalorder %v2230, 1
      %vm2275 = vcmp.eq.s32.totalorder %v2233, 1
      %vm2276 = vcmp.eq.s32.totalorder %v2236, 1
      %vm2277 = vcmp.eq.s32.totalorder %v2239, 1
      %vm2278 = vcmp.eq.s32.totalorder %v2242, 1
      %vm2279 = vcmp.eq.s32.totalorder %v2245, 1
      %vm2280 = vcmp.eq.s32.totalorder %v2248, 1
      %v2281 = vsel %vm2249, %v51, -inf
      %v2282 = vsel %vm2250, %v52, -inf
      %v2283 = vsel %vm2249, %v53, -inf
      %v2284 = vsel %vm2250, %v54, -inf
      %v2285 = vsel %vm2249, %v55, -inf
      %v2286 = vsel %vm2250, %v56, -inf
      %v2287 = vsel %vm2249, %v57, -inf
      %v2288 = vsel %vm2250, %v58, -inf
      %v2289 = vsel %vm2251, %v51, -inf
      %v2290 = vsel %vm2252, %v52, -inf
      %v2291 = vsel %vm2251, %v53, -inf
      %v2292 = vsel %vm2252, %v54, -inf
      %v2293 = vsel %vm2251, %v55, -inf
      %v2294 = vsel %vm2252, %v56, -inf
      %v2295 = vsel %vm2251, %v57, -inf
      %v2296 = vsel %vm2252, %v58, -inf
      %v2297 = vsel %vm2253, %v51, -inf
      %v2298 = vsel %vm2254, %v52, -inf
      %v2299 = vsel %vm2253, %v53, -inf
      %v2300 = vsel %vm2254, %v54, -inf
      %v2301 = vsel %vm2253, %v55, -inf
      %v2302 = vsel %vm2254, %v56, -inf
      %v2303 = vsel %vm2253, %v57, -inf
      %v2304 = vsel %vm2254, %v58, -inf
      %v2305 = vsel %vm2255, %v51, -inf
      %v2306 = vsel %vm2256, %v52, -inf
      %v2307 = vsel %vm2255, %v53, -inf
      %v2308 = vsel %vm2256, %v54, -inf
      %v2309 = vsel %vm2255, %v55, -inf
      %v2310 = vsel %vm2256, %v56, -inf
      %v2311 = vsel %vm2255, %v57, -inf
      %v2312 = vsel %vm2256, %v58, -inf
      %v2313 = vsel %vm2257, %v51, -inf
      %v2314 = vsel %vm2258, %v52, -inf
      %v2315 = vsel %vm2257, %v53, -inf
      %v2316 = vsel %vm2258, %v54, -inf
      %v2317 = vsel %vm2257, %v55, -inf
      %v2318 = vsel %vm2258, %v56, -inf
      %v2319 = vsel %vm2257, %v57, -inf
      %v2320 = vsel %vm2258, %v58, -inf
      %v2321 = vsel %vm2259, %v51, -inf
      %v2322 = vsel %vm2260, %v52, -inf
      %v2323 = vsel %vm2259, %v53, -inf
      %v2324 = vsel %vm2260, %v54, -inf
      %v2325 = vsel %vm2259, %v55, -inf
      %v2326 = vsel %vm2260, %v56, -inf
      %v2327 = vsel %vm2259, %v57, -inf
      %v2328 = vsel %vm2260, %v58, -inf
      %v2329 = vsel %vm2261, %v51, -inf
      %v2330 = vsel %vm2262, %v52, -inf
      %v2331 = vsel %vm2261, %v53, -inf
      %v2332 = vsel %vm2262, %v54, -inf
      %v2333 = vsel %vm2261, %v55, -inf
      %v2334 = vsel %vm2262, %v56, -inf
      %v2335 = vsel %vm2261, %v57, -inf
      %v2336 = vsel %vm2262, %v58, -inf
      %v2337 = vsel %vm2263, %v51, -inf
      %v2338 = vsel %vm2264, %v52, -inf
      %v2339 = vsel %vm2263, %v53, -inf
      %v2340 = vsel %vm2264, %v54, -inf
      %v2341 = vsel %vm2263, %v55, -inf
      %v2342 = vsel %vm2264, %v56, -inf
      %v2343 = vsel %vm2263, %v57, -inf
      %v2344 = vsel %vm2264, %v58, -inf
      %v2345 = vsel %vm2265, %v51, -inf
      %v2346 = vsel %vm2266, %v52, -inf
      %v2347 = vsel %vm2265, %v53, -inf
      %v2348 = vsel %vm2266, %v54, -inf
      %v2349 = vsel %vm2265, %v55, -inf
      %v2350 = vsel %vm2266, %v56, -inf
      %v2351 = vsel %vm2265, %v57, -inf
      %v2352 = vsel %vm2266, %v58, -inf
      %v2353 = vsel %vm2267, %v51, -inf
      %v2354 = vsel %vm2268, %v52, -inf
      %v2355 = vsel %vm2267, %v53, -inf
      %v2356 = vsel %vm2268, %v54, -inf
      %v2357 = vsel %vm2267, %v55, -inf
      %v2358 = vsel %vm2268, %v56, -inf
      %v2359 = vsel %vm2267, %v57, -inf
      %v2360 = vsel %vm2268, %v58, -inf
      %v2361 = vsel %vm2269, %v51, -inf
      %v2362 = vsel %vm2270, %v52, -inf
      %v2363 = vsel %vm2269, %v53, -inf
      %v2364 = vsel %vm2270, %v54, -inf
      %v2365 = vsel %vm2269, %v55, -inf
      %v2366 = vsel %vm2270, %v56, -inf
      %v2367 = vsel %vm2269, %v57, -inf
      %v2368 = vsel %vm2270, %v58, -inf
      %v2369 = vsel %vm2271, %v51, -inf
      %v2370 = vsel %vm2272, %v52, -inf
      %v2371 = vsel %vm2271, %v53, -inf
      %v2372 = vsel %vm2272, %v54, -inf
      %v2373 = vsel %vm2271, %v55, -inf
      %v2374 = vsel %vm2272, %v56, -inf
      %v2375 = vsel %vm2271, %v57, -inf
      %v2376 = vsel %vm2272, %v58, -inf
      %v2377 = vsel %vm2273, %v51, -inf
      %v2378 = vsel %vm2274, %v52, -inf
      %v2379 = vsel %vm2273, %v53, -inf
      %v2380 = vsel %vm2274, %v54, -inf
      %v2381 = vsel %vm2273, %v55, -inf
      %v2382 = vsel %vm2274, %v56, -inf
      %v2383 = vsel %vm2273, %v57, -inf
      %v2384 = vsel %vm2274, %v58, -inf
      %v2385 = vsel %vm2275, %v51, -inf
      %v2386 = vsel %vm2276, %v52, -inf
      %v2387 = vsel %vm2275, %v53, -inf
      %v2388 = vsel %vm2276, %v54, -inf
      %v2389 = vsel %vm2275, %v55, -inf
      %v2390 = vsel %vm2276, %v56, -inf
      %v2391 = vsel %vm2275, %v57, -inf
      %v2392 = vsel %vm2276, %v58, -inf
      %v2393 = vsel %vm2277, %v51, -inf
      %v2394 = vsel %vm2278, %v52, -inf
      %v2395 = vsel %vm2277, %v53, -inf
      %v2396 = vsel %vm2278, %v54, -inf
      %v2397 = vsel %vm2277, %v55, -inf
      %v2398 = vsel %vm2278, %v56, -inf
      %v2399 = vsel %vm2277, %v57, -inf
      %v2400 = vsel %vm2278, %v58, -inf
      %v2401 = vsel %vm2279, %v51, -inf
      %v2402 = vsel %vm2280, %v52, -inf
      %v2403 = vsel %vm2279, %v53, -inf
      %v2404 = vsel %vm2280, %v54, -inf
      %v2405 = vsel %vm2279, %v55, -inf
      %v2406 = vsel %vm2280, %v56, -inf
      %v2407 = vsel %vm2279, %v57, -inf
      %v2408 = vsel %vm2280, %v58, -inf
      %v2409 = vsel %vm738, %v2281, -inf
      %v2410 = vsel %vm738, %v2282, -inf
      %v2411 = vmax.f32 %v2409, %v2410
      %v2412 = vrot.slane %v2411, 4
      %v2413 = vmax.f32 %v2411, %v2412
      %v2414 = vrot.slane %v2413, 2
      %v2415 = vmax.f32 %v2413, %v2414
      %v2416 = vrot.slane %v2415, 1
      %v2417 = vmax.f32 %v2415, %v2416
      %v2418 = vsel %vm738, %v2283, -inf
      %v2419 = vsel %vm738, %v2284, -inf
      %v2420 = vmax.f32 %v2418, %v2419
      %v2421 = vrot.slane %v2420, 4
      %v2422 = vmax.f32 %v2420, %v2421
      %v2423 = vrot.slane %v2422, 2
      %v2424 = vmax.f32 %v2422, %v2423
      %v2425 = vrot.slane %v2424, 1
      %v2426 = vmax.f32 %v2424, %v2425
      %v2427 = vsel %vm738, %v2285, -inf
      %v2428 = vsel %vm738, %v2286, -inf
      %v2429 = vmax.f32 %v2427, %v2428
      %v2430 = vrot.slane %v2429, 4
      %v2431 = vmax.f32 %v2429, %v2430
      %v2432 = vrot.slane %v2431, 2
      %v2433 = vmax.f32 %v2431, %v2432
      %v2434 = vrot.slane %v2433, 1
      %v2435 = vmax.f32 %v2433, %v2434
      %v2436 = vsel %vm738, %v2287, -inf
      %v2437 = vsel %vm738, %v2288, -inf
      %v2438 = vmax.f32 %v2436, %v2437
      %v2439 = vrot.slane %v2438, 4
      %v2440 = vmax.f32 %v2438, %v2439
      %v2441 = vrot.slane %v2440, 2
      %v2442 = vmax.f32 %v2440, %v2441
      %v2443 = vrot.slane %v2442, 1
      %v2444 = vmax.f32 %v2442, %v2443
      %v2445 = vsel %vm738, %v2289, -inf
      %v2446 = vsel %vm738, %v2290, -inf
      %v2447 = vmax.f32 %v2445, %v2446
      %v2448 = vrot.slane %v2447, 4
      %v2449 = vmax.f32 %v2447, %v2448
      %v2450 = vrot.slane %v2449, 2
      %v2451 = vmax.f32 %v2449, %v2450
      %v2452 = vrot.slane %v2451, 1
      %v2453 = vmax.f32 %v2451, %v2452
      %v2454 = vsel %vm738, %v2291, -inf
      %v2455 = vsel %vm738, %v2292, -inf
      %v2456 = vmax.f32 %v2454, %v2455
      %v2457 = vrot.slane %v2456, 4
      %v2458 = vmax.f32 %v2456, %v2457
      %v2459 = vrot.slane %v2458, 2
      %v2460 = vmax.f32 %v2458, %v2459
      %v2461 = vrot.slane %v2460, 1
      %v2462 = vmax.f32 %v2460, %v2461
      %v2463 = vsel %vm738, %v2293, -inf
      %v2464 = vsel %vm738, %v2294, -inf
      %v2465 = vmax.f32 %v2463, %v2464
      %v2466 = vrot.slane %v2465, 4
      %v2467 = vmax.f32 %v2465, %v2466
      %v2468 = vrot.slane %v2467, 2
      %v2469 = vmax.f32 %v2467, %v2468
      %v2470 = vrot.slane %v2469, 1
      %v2471 = vmax.f32 %v2469, %v2470
      %v2472 = vsel %vm738, %v2295, -inf
      %v2473 = vsel %vm738, %v2296, -inf
      %v2474 = vmax.f32 %v2472, %v2473
      %v2475 = vrot.slane %v2474, 4
      %v2476 = vmax.f32 %v2474, %v2475
      %v2477 = vrot.slane %v2476, 2
      %v2478 = vmax.f32 %v2476, %v2477
      %v2479 = vrot.slane %v2478, 1
      %v2480 = vmax.f32 %v2478, %v2479
      %v2481 = vsel %vm738, %v2297, -inf
      %v2482 = vsel %vm738, %v2298, -inf
      %v2483 = vmax.f32 %v2481, %v2482
      %v2484 = vrot.slane %v2483, 4
      %v2485 = vmax.f32 %v2483, %v2484
      %v2486 = vrot.slane %v2485, 2
      %v2487 = vmax.f32 %v2485, %v2486
      %v2488 = vrot.slane %v2487, 1
      %v2489 = vmax.f32 %v2487, %v2488
      %v2490 = vsel %vm738, %v2299, -inf
      %v2491 = vsel %vm738, %v2300, -inf
      %v2492 = vmax.f32 %v2490, %v2491
      %v2493 = vrot.slane %v2492, 4
      %v2494 = vmax.f32 %v2492, %v2493
      %v2495 = vrot.slane %v2494, 2
      %v2496 = vmax.f32 %v2494, %v2495
      %v2497 = vrot.slane %v2496, 1
      %v2498 = vmax.f32 %v2496, %v2497
      %v2499 = vsel %vm738, %v2301, -inf
      %v2500 = vsel %vm738, %v2302, -inf
      %v2501 = vmax.f32 %v2499, %v2500
      %v2502 = vrot.slane %v2501, 4
      %v2503 = vmax.f32 %v2501, %v2502
      %v2504 = vrot.slane %v2503, 2
      %v2505 = vmax.f32 %v2503, %v2504
      %v2506 = vrot.slane %v2505, 1
      %v2507 = vmax.f32 %v2505, %v2506
      %v2508 = vsel %vm738, %v2303, -inf
      %v2509 = vsel %vm738, %v2304, -inf
      %v2510 = vmax.f32 %v2508, %v2509
      %v2511 = vrot.slane %v2510, 4
      %v2512 = vmax.f32 %v2510, %v2511
      %v2513 = vrot.slane %v2512, 2
      %v2514 = vmax.f32 %v2512, %v2513
      %v2515 = vrot.slane %v2514, 1
      %v2516 = vmax.f32 %v2514, %v2515
      %v2517 = vsel %vm738, %v2305, -inf
      %v2518 = vsel %vm738, %v2306, -inf
      %v2519 = vmax.f32 %v2517, %v2518
      %v2520 = vrot.slane %v2519, 4
      %v2521 = vmax.f32 %v2519, %v2520
      %v2522 = vrot.slane %v2521, 2
      %v2523 = vmax.f32 %v2521, %v2522
      %v2524 = vrot.slane %v2523, 1
      %v2525 = vmax.f32 %v2523, %v2524
      %v2526 = vsel %vm738, %v2307, -inf
      %v2527 = vsel %vm738, %v2308, -inf
      %v2528 = vmax.f32 %v2526, %v2527
      %v2529 = vrot.slane %v2528, 4
      %v2530 = vmax.f32 %v2528, %v2529
      %v2531 = vrot.slane %v2530, 2
      %v2532 = vmax.f32 %v2530, %v2531
      %v2533 = vrot.slane %v2532, 1
      %v2534 = vmax.f32 %v2532, %v2533
      %v2535 = vsel %vm738, %v2309, -inf
      %v2536 = vsel %vm738, %v2310, -inf
      %v2537 = vmax.f32 %v2535, %v2536
      %v2538 = vrot.slane %v2537, 4
      %v2539 = vmax.f32 %v2537, %v2538
      %v2540 = vrot.slane %v2539, 2
      %v2541 = vmax.f32 %v2539, %v2540
      %v2542 = vrot.slane %v2541, 1
      %v2543 = vmax.f32 %v2541, %v2542
      %v2544 = vsel %vm738, %v2311, -inf
      %v2545 = vsel %vm738, %v2312, -inf
      %v2546 = vmax.f32 %v2544, %v2545
      %v2547 = vrot.slane %v2546, 4
      %v2548 = vmax.f32 %v2546, %v2547
      %v2549 = vrot.slane %v2548, 2
      %v2550 = vmax.f32 %v2548, %v2549
      %v2551 = vrot.slane %v2550, 1
      %v2552 = vmax.f32 %v2550, %v2551
      %v2553 = vsel %vm738, %v2313, -inf
      %v2554 = vsel %vm738, %v2314, -inf
      %v2555 = vmax.f32 %v2553, %v2554
      %v2556 = vrot.slane %v2555, 4
      %v2557 = vmax.f32 %v2555, %v2556
      %v2558 = vrot.slane %v2557, 2
      %v2559 = vmax.f32 %v2557, %v2558
      %v2560 = vrot.slane %v2559, 1
      %v2561 = vmax.f32 %v2559, %v2560
      %v2562 = vsel %vm738, %v2315, -inf
      %v2563 = vsel %vm738, %v2316, -inf
      %v2564 = vmax.f32 %v2562, %v2563
      %v2565 = vrot.slane %v2564, 4
      %v2566 = vmax.f32 %v2564, %v2565
      %v2567 = vrot.slane %v2566, 2
      %v2568 = vmax.f32 %v2566, %v2567
      %v2569 = vrot.slane %v2568, 1
      %v2570 = vmax.f32 %v2568, %v2569
      %v2571 = vsel %vm738, %v2317, -inf
      %v2572 = vsel %vm738, %v2318, -inf
      %v2573 = vmax.f32 %v2571, %v2572
      %v2574 = vrot.slane %v2573, 4
      %v2575 = vmax.f32 %v2573, %v2574
      %v2576 = vrot.slane %v2575, 2
      %v2577 = vmax.f32 %v2575, %v2576
      %v2578 = vrot.slane %v2577, 1
      %v2579 = vmax.f32 %v2577, %v2578
      %v2580 = vsel %vm738, %v2319, -inf
      %v2581 = vsel %vm738, %v2320, -inf
      %v2582 = vmax.f32 %v2580, %v2581
      %v2583 = vrot.slane %v2582, 4
      %v2584 = vmax.f32 %v2582, %v2583
      %v2585 = vrot.slane %v2584, 2
      %v2586 = vmax.f32 %v2584, %v2585
      %v2587 = vrot.slane %v2586, 1
      %v2588 = vmax.f32 %v2586, %v2587
      %v2589 = vsel %vm738, %v2321, -inf
      %v2590 = vsel %vm738, %v2322, -inf
      %v2591 = vmax.f32 %v2589, %v2590
      %v2592 = vrot.slane %v2591, 4
      %v2593 = vmax.f32 %v2591, %v2592
      %v2594 = vrot.slane %v2593, 2
      %v2595 = vmax.f32 %v2593, %v2594
      %v2596 = vrot.slane %v2595, 1
      %v2597 = vmax.f32 %v2595, %v2596
      %v2598 = vsel %vm738, %v2323, -inf
      %v2599 = vsel %vm738, %v2324, -inf
      %v2600 = vmax.f32 %v2598, %v2599
      %v2601 = vrot.slane %v2600, 4
      %v2602 = vmax.f32 %v2600, %v2601
      %v2603 = vrot.slane %v2602, 2
      %v2604 = vmax.f32 %v2602, %v2603
      %v2605 = vrot.slane %v2604, 1
      %v2606 = vmax.f32 %v2604, %v2605
      %v2607 = vsel %vm738, %v2325, -inf
      %v2608 = vsel %vm738, %v2326, -inf
      %v2609 = vmax.f32 %v2607, %v2608
      %v2610 = vrot.slane %v2609, 4
      %v2611 = vmax.f32 %v2609, %v2610
      %v2612 = vrot.slane %v2611, 2
      %v2613 = vmax.f32 %v2611, %v2612
      %v2614 = vrot.slane %v2613, 1
      %v2615 = vmax.f32 %v2613, %v2614
      %v2616 = vsel %vm738, %v2327, -inf
      %v2617 = vsel %vm738, %v2328, -inf
      %v2618 = vmax.f32 %v2616, %v2617
      %v2619 = vrot.slane %v2618, 4
      %v2620 = vmax.f32 %v2618, %v2619
      %v2621 = vrot.slane %v2620, 2
      %v2622 = vmax.f32 %v2620, %v2621
      %v2623 = vrot.slane %v2622, 1
      %v2624 = vmax.f32 %v2622, %v2623
      %v2625 = vsel %vm738, %v2329, -inf
      %v2626 = vsel %vm738, %v2330, -inf
      %v2627 = vmax.f32 %v2625, %v2626
      %v2628 = vrot.slane %v2627, 4
      %v2629 = vmax.f32 %v2627, %v2628
      %v2630 = vrot.slane %v2629, 2
      %v2631 = vmax.f32 %v2629, %v2630
      %v2632 = vrot.slane %v2631, 1
      %v2633 = vmax.f32 %v2631, %v2632
      %v2634 = vsel %vm738, %v2331, -inf
      %v2635 = vsel %vm738, %v2332, -inf
      %v2636 = vmax.f32 %v2634, %v2635
      %v2637 = vrot.slane %v2636, 4
      %v2638 = vmax.f32 %v2636, %v2637
      %v2639 = vrot.slane %v2638, 2
      %v2640 = vmax.f32 %v2638, %v2639
      %v2641 = vrot.slane %v2640, 1
      %v2642 = vmax.f32 %v2640, %v2641
      %v2643 = vsel %vm738, %v2333, -inf
      %v2644 = vsel %vm738, %v2334, -inf
      %v2645 = vmax.f32 %v2643, %v2644
      %v2646 = vrot.slane %v2645, 4
      %v2647 = vmax.f32 %v2645, %v2646
      %v2648 = vrot.slane %v2647, 2
      %v2649 = vmax.f32 %v2647, %v2648
      %v2650 = vrot.slane %v2649, 1
      %v2651 = vmax.f32 %v2649, %v2650
      %v2652 = vsel %vm738, %v2335, -inf
      %v2653 = vsel %vm738, %v2336, -inf
      %v2654 = vmax.f32 %v2652, %v2653
      %v2655 = vrot.slane %v2654, 4
      %v2656 = vmax.f32 %v2654, %v2655
      %v2657 = vrot.slane %v2656, 2
      %v2658 = vmax.f32 %v2656, %v2657
      %v2659 = vrot.slane %v2658, 1
      %v2660 = vmax.f32 %v2658, %v2659
      %v2661 = vsel %vm738, %v2337, -inf
      %v2662 = vsel %vm738, %v2338, -inf
      %v2663 = vmax.f32 %v2661, %v2662
      %v2664 = vrot.slane %v2663, 4
      %v2665 = vmax.f32 %v2663, %v2664
      %v2666 = vrot.slane %v2665, 2
      %v2667 = vmax.f32 %v2665, %v2666
      %v2668 = vrot.slane %v2667, 1
      %v2669 = vmax.f32 %v2667, %v2668
      %v2670 = vsel %vm738, %v2339, -inf
      %v2671 = vsel %vm738, %v2340, -inf
      %v2672 = vmax.f32 %v2670, %v2671
      %v2673 = vrot.slane %v2672, 4
      %v2674 = vmax.f32 %v2672, %v2673
      %v2675 = vrot.slane %v2674, 2
      %v2676 = vmax.f32 %v2674, %v2675
      %v2677 = vrot.slane %v2676, 1
      %v2678 = vmax.f32 %v2676, %v2677
      %v2679 = vsel %vm738, %v2341, -inf
      %v2680 = vsel %vm738, %v2342, -inf
      %v2681 = vmax.f32 %v2679, %v2680
      %v2682 = vrot.slane %v2681, 4
      %v2683 = vmax.f32 %v2681, %v2682
      %v2684 = vrot.slane %v2683, 2
      %v2685 = vmax.f32 %v2683, %v2684
      %v2686 = vrot.slane %v2685, 1
      %v2687 = vmax.f32 %v2685, %v2686
      %v2688 = vsel %vm738, %v2343, -inf
      %v2689 = vsel %vm738, %v2344, -inf
      %v2690 = vmax.f32 %v2688, %v2689
      %v2691 = vrot.slane %v2690, 4
      %v2692 = vmax.f32 %v2690, %v2691
      %v2693 = vrot.slane %v2692, 2
      %v2694 = vmax.f32 %v2692, %v2693
      %v2695 = vrot.slane %v2694, 1
      %v2696 = vmax.f32 %v2694, %v2695
      %v2697 = vsel %vm738, %v2345, -inf
      %v2698 = vsel %vm738, %v2346, -inf
      %v2699 = vmax.f32 %v2697, %v2698
      %v2700 = vrot.slane %v2699, 4
      %v2701 = vmax.f32 %v2699, %v2700
      %v2702 = vrot.slane %v2701, 2
      %v2703 = vmax.f32 %v2701, %v2702
      %v2704 = vrot.slane %v2703, 1
      %v2705 = vmax.f32 %v2703, %v2704
      %v2706 = vsel %vm738, %v2347, -inf
      %v2707 = vsel %vm738, %v2348, -inf
      %v2708 = vmax.f32 %v2706, %v2707
      %v2709 = vrot.slane %v2708, 4
      %v2710 = vmax.f32 %v2708, %v2709
      %v2711 = vrot.slane %v2710, 2
      %v2712 = vmax.f32 %v2710, %v2711
      %v2713 = vrot.slane %v2712, 1
      %v2714 = vmax.f32 %v2712, %v2713
      %v2715 = vsel %vm738, %v2349, -inf
      %v2716 = vsel %vm738, %v2350, -inf
      %v2717 = vmax.f32 %v2715, %v2716
      %v2718 = vrot.slane %v2717, 4
      %v2719 = vmax.f32 %v2717, %v2718
      %v2720 = vrot.slane %v2719, 2
      %v2721 = vmax.f32 %v2719, %v2720
      %v2722 = vrot.slane %v2721, 1
      %v2723 = vmax.f32 %v2721, %v2722
      %v2724 = vsel %vm738, %v2351, -inf
      %v2725 = vsel %vm738, %v2352, -inf
      %v2726 = vmax.f32 %v2724, %v2725
      %v2727 = vrot.slane %v2726, 4
      %v2728 = vmax.f32 %v2726, %v2727
      %v2729 = vrot.slane %v2728, 2
      %v2730 = vmax.f32 %v2728, %v2729
      %v2731 = vrot.slane %v2730, 1
      %v2732 = vmax.f32 %v2730, %v2731
      %v2733 = vsel %vm738, %v2353, -inf
      %v2734 = vsel %vm738, %v2354, -inf
      %v2735 = vmax.f32 %v2733, %v2734
      %v2736 = vrot.slane %v2735, 4
      %v2737 = vmax.f32 %v2735, %v2736
      %v2738 = vrot.slane %v2737, 2
      %v2739 = vmax.f32 %v2737, %v2738
      %v2740 = vrot.slane %v2739, 1
      %v2741 = vmax.f32 %v2739, %v2740
      %v2742 = vsel %vm738, %v2355, -inf
      %v2743 = vsel %vm738, %v2356, -inf
      %v2744 = vmax.f32 %v2742, %v2743
      %v2745 = vrot.slane %v2744, 4
      %v2746 = vmax.f32 %v2744, %v2745
      %v2747 = vrot.slane %v2746, 2
      %v2748 = vmax.f32 %v2746, %v2747
      %v2749 = vrot.slane %v2748, 1
      %v2750 = vmax.f32 %v2748, %v2749
      %v2751 = vsel %vm738, %v2357, -inf
      %v2752 = vsel %vm738, %v2358, -inf
      %v2753 = vmax.f32 %v2751, %v2752
      %v2754 = vrot.slane %v2753, 4
      %v2755 = vmax.f32 %v2753, %v2754
      %v2756 = vrot.slane %v2755, 2
      %v2757 = vmax.f32 %v2755, %v2756
      %v2758 = vrot.slane %v2757, 1
      %v2759 = vmax.f32 %v2757, %v2758
      %v2760 = vsel %vm738, %v2359, -inf
      %v2761 = vsel %vm738, %v2360, -inf
      %v2762 = vmax.f32 %v2760, %v2761
      %v2763 = vrot.slane %v2762, 4
      %v2764 = vmax.f32 %v2762, %v2763
      %v2765 = vrot.slane %v2764, 2
      %v2766 = vmax.f32 %v2764, %v2765
      %v2767 = vrot.slane %v2766, 1
      %v2768 = vmax.f32 %v2766, %v2767
      %v2769 = vsel %vm738, %v2361, -inf
      %v2770 = vsel %vm738, %v2362, -inf
      %v2771 = vmax.f32 %v2769, %v2770
      %v2772 = vrot.slane %v2771, 4
      %v2773 = vmax.f32 %v2771, %v2772
      %v2774 = vrot.slane %v2773, 2
      %v2775 = vmax.f32 %v2773, %v2774
      %v2776 = vrot.slane %v2775, 1
      %v2777 = vmax.f32 %v2775, %v2776
      %v2778 = vsel %vm738, %v2363, -inf
      %v2779 = vsel %vm738, %v2364, -inf
      %v2780 = vmax.f32 %v2778, %v2779
      %v2781 = vrot.slane %v2780, 4
      %v2782 = vmax.f32 %v2780, %v2781
      %v2783 = vrot.slane %v2782, 2
      %v2784 = vmax.f32 %v2782, %v2783
      %v2785 = vrot.slane %v2784, 1
      %v2786 = vmax.f32 %v2784, %v2785
      %v2787 = vsel %vm738, %v2365, -inf
      %v2788 = vsel %vm738, %v2366, -inf
      %v2789 = vmax.f32 %v2787, %v2788
      %v2790 = vrot.slane %v2789, 4
      %v2791 = vmax.f32 %v2789, %v2790
      %v2792 = vrot.slane %v2791, 2
      %v2793 = vmax.f32 %v2791, %v2792
      %v2794 = vrot.slane %v2793, 1
      %v2795 = vmax.f32 %v2793, %v2794
      %v2796 = vsel %vm738, %v2367, -inf
      %v2797 = vsel %vm738, %v2368, -inf
      %v2798 = vmax.f32 %v2796, %v2797
      %v2799 = vrot.slane %v2798, 4
      %v2800 = vmax.f32 %v2798, %v2799
      %v2801 = vrot.slane %v2800, 2
      %v2802 = vmax.f32 %v2800, %v2801
      %v2803 = vrot.slane %v2802, 1
      %v2804 = vmax.f32 %v2802, %v2803
      %v2805 = vsel %vm738, %v2369, -inf
      %v2806 = vsel %vm738, %v2370, -inf
      %v2807 = vmax.f32 %v2805, %v2806
      %v2808 = vrot.slane %v2807, 4
      %v2809 = vmax.f32 %v2807, %v2808
      %v2810 = vrot.slane %v2809, 2
      %v2811 = vmax.f32 %v2809, %v2810
      %v2812 = vrot.slane %v2811, 1
      %v2813 = vmax.f32 %v2811, %v2812
      %v2814 = vsel %vm738, %v2371, -inf
      %v2815 = vsel %vm738, %v2372, -inf
      %v2816 = vmax.f32 %v2814, %v2815
      %v2817 = vrot.slane %v2816, 4
      %v2818 = vmax.f32 %v2816, %v2817
      %v2819 = vrot.slane %v2818, 2
      %v2820 = vmax.f32 %v2818, %v2819
      %v2821 = vrot.slane %v2820, 1
      %v2822 = vmax.f32 %v2820, %v2821
      %v2823 = vsel %vm738, %v2373, -inf
      %v2824 = vsel %vm738, %v2374, -inf
      %v2825 = vmax.f32 %v2823, %v2824
      %v2826 = vrot.slane %v2825, 4
      %v2827 = vmax.f32 %v2825, %v2826
      %v2828 = vrot.slane %v2827, 2
      %v2829 = vmax.f32 %v2827, %v2828
      %v2830 = vrot.slane %v2829, 1
      %v2831 = vmax.f32 %v2829, %v2830
      %v2832 = vsel %vm738, %v2375, -inf
      %v2833 = vsel %vm738, %v2376, -inf
      %v2834 = vmax.f32 %v2832, %v2833
      %v2835 = vrot.slane %v2834, 4
      %v2836 = vmax.f32 %v2834, %v2835
      %v2837 = vrot.slane %v2836, 2
      %v2838 = vmax.f32 %v2836, %v2837
      %v2839 = vrot.slane %v2838, 1
      %v2840 = vmax.f32 %v2838, %v2839
      %v2841 = vsel %vm738, %v2377, -inf
      %v2842 = vsel %vm738, %v2378, -inf
      %v2843 = vmax.f32 %v2841, %v2842
      %v2844 = vrot.slane %v2843, 4
      %v2845 = vmax.f32 %v2843, %v2844
      %v2846 = vrot.slane %v2845, 2
      %v2847 = vmax.f32 %v2845, %v2846
      %v2848 = vrot.slane %v2847, 1
      %v2849 = vmax.f32 %v2847, %v2848
      %v2850 = vsel %vm738, %v2379, -inf
      %v2851 = vsel %vm738, %v2380, -inf
      %v2852 = vmax.f32 %v2850, %v2851
      %v2853 = vrot.slane %v2852, 4
      %v2854 = vmax.f32 %v2852, %v2853
      %v2855 = vrot.slane %v2854, 2
      %v2856 = vmax.f32 %v2854, %v2855
      %v2857 = vrot.slane %v2856, 1
      %v2858 = vmax.f32 %v2856, %v2857
      %v2859 = vsel %vm738, %v2381, -inf
      %v2860 = vsel %vm738, %v2382, -inf
      %v2861 = vmax.f32 %v2859, %v2860
      %v2862 = vrot.slane %v2861, 4
      %v2863 = vmax.f32 %v2861, %v2862
      %v2864 = vrot.slane %v2863, 2
      %v2865 = vmax.f32 %v2863, %v2864
      %v2866 = vrot.slane %v2865, 1
      %v2867 = vmax.f32 %v2865, %v2866
      %v2868 = vsel %vm738, %v2383, -inf
      %v2869 = vsel %vm738, %v2384, -inf
      %v2870 = vmax.f32 %v2868, %v2869
      %v2871 = vrot.slane %v2870, 4
      %v2872 = vmax.f32 %v2870, %v2871
      %v2873 = vrot.slane %v2872, 2
      %v2874 = vmax.f32 %v2872, %v2873
      %v2875 = vrot.slane %v2874, 1
      %v2876 = vmax.f32 %v2874, %v2875
      %v2877 = vsel %vm738, %v2385, -inf
      %v2878 = vsel %vm738, %v2386, -inf
      %v2879 = vmax.f32 %v2877, %v2878
      %v2880 = vrot.slane %v2879, 4
      %v2881 = vmax.f32 %v2879, %v2880
      %v2882 = vrot.slane %v2881, 2
      %v2883 = vmax.f32 %v2881, %v2882
      %v2884 = vrot.slane %v2883, 1
      %v2885 = vmax.f32 %v2883, %v2884
      %v2886 = vsel %vm738, %v2387, -inf
      %v2887 = vsel %vm738, %v2388, -inf
      %v2888 = vmax.f32 %v2886, %v2887
      %v2889 = vrot.slane %v2888, 4
      %v2890 = vmax.f32 %v2888, %v2889
      %v2891 = vrot.slane %v2890, 2
      %v2892 = vmax.f32 %v2890, %v2891
      %v2893 = vrot.slane %v2892, 1
      %v2894 = vmax.f32 %v2892, %v2893
      %v2895 = vsel %vm738, %v2389, -inf
      %v2896 = vsel %vm738, %v2390, -inf
      %v2897 = vmax.f32 %v2895, %v2896
      %v2898 = vrot.slane %v2897, 4
      %v2899 = vmax.f32 %v2897, %v2898
      %v2900 = vrot.slane %v2899, 2
      %v2901 = vmax.f32 %v2899, %v2900
      %v2902 = vrot.slane %v2901, 1
      %v2903 = vmax.f32 %v2901, %v2902
      %v2904 = vsel %vm738, %v2391, -inf
      %v2905 = vsel %vm738, %v2392, -inf
      %v2906 = vmax.f32 %v2904, %v2905
      %v2907 = vrot.slane %v2906, 4
      %v2908 = vmax.f32 %v2906, %v2907
      %v2909 = vrot.slane %v2908, 2
      %v2910 = vmax.f32 %v2908, %v2909
      %v2911 = vrot.slane %v2910, 1
      %v2912 = vmax.f32 %v2910, %v2911
      %v2913 = vsel %vm738, %v2393, -inf
      %v2914 = vsel %vm738, %v2394, -inf
      %v2915 = vmax.f32 %v2913, %v2914
      %v2916 = vrot.slane %v2915, 4
      %v2917 = vmax.f32 %v2915, %v2916
      %v2918 = vrot.slane %v2917, 2
      %v2919 = vmax.f32 %v2917, %v2918
      %v2920 = vrot.slane %v2919, 1
      %v2921 = vmax.f32 %v2919, %v2920
      %v2922 = vsel %vm738, %v2395, -inf
      %v2923 = vsel %vm738, %v2396, -inf
      %v2924 = vmax.f32 %v2922, %v2923
      %v2925 = vrot.slane %v2924, 4
      %v2926 = vmax.f32 %v2924, %v2925
      %v2927 = vrot.slane %v2926, 2
      %v2928 = vmax.f32 %v2926, %v2927
      %v2929 = vrot.slane %v2928, 1
      %v2930 = vmax.f32 %v2928, %v2929
      %v2931 = vsel %vm738, %v2397, -inf
      %v2932 = vsel %vm738, %v2398, -inf
      %v2933 = vmax.f32 %v2931, %v2932
      %v2934 = vrot.slane %v2933, 4
      %v2935 = vmax.f32 %v2933, %v2934
      %v2936 = vrot.slane %v2935, 2
      %v2937 = vmax.f32 %v2935, %v2936
      %v2938 = vrot.slane %v2937, 1
      %v2939 = vmax.f32 %v2937, %v2938
      %v2940 = vsel %vm738, %v2399, -inf
      %v2941 = vsel %vm738, %v2400, -inf
      %v2942 = vmax.f32 %v2940, %v2941
      %v2943 = vrot.slane %v2942, 4
      %v2944 = vmax.f32 %v2942, %v2943
      %v2945 = vrot.slane %v2944, 2
      %v2946 = vmax.f32 %v2944, %v2945
      %v2947 = vrot.slane %v2946, 1
      %v2948 = vmax.f32 %v2946, %v2947
      %v2949 = vsel %vm738, %v2401, -inf
      %v2950 = vsel %vm738, %v2402, -inf
      %v2951 = vmax.f32 %v2949, %v2950
      %v2952 = vrot.slane %v2951, 4
      %v2953 = vmax.f32 %v2951, %v2952
      %v2954 = vrot.slane %v2953, 2
      %v2955 = vmax.f32 %v2953, %v2954
      %v2956 = vrot.slane %v2955, 1
      %v2957 = vmax.f32 %v2955, %v2956
      %v2958 = vsel %vm738, %v2403, -inf
      %v2959 = vsel %vm738, %v2404, -inf
      %v2960 = vmax.f32 %v2958, %v2959
      %v2961 = vrot.slane %v2960, 4
      %v2962 = vmax.f32 %v2960, %v2961
      %v2963 = vrot.slane %v2962, 2
      %v2964 = vmax.f32 %v2962, %v2963
      %v2965 = vrot.slane %v2964, 1
      %v2966 = vmax.f32 %v2964, %v2965
      %v2967 = vsel %vm738, %v2405, -inf
      %v2968 = vsel %vm738, %v2406, -inf
      %v2969 = vmax.f32 %v2967, %v2968
      %v2970 = vrot.slane %v2969, 4
      %v2971 = vmax.f32 %v2969, %v2970
      %v2972 = vrot.slane %v2971, 2
      %v2973 = vmax.f32 %v2971, %v2972
      %v2974 = vrot.slane %v2973, 1
      %v2975 = vmax.f32 %v2973, %v2974
      %v2976 = vsel %vm738, %v2407, -inf
      %v2977 = vsel %vm738, %v2408, -inf
      %v2978 = vmax.f32 %v2976, %v2977
      %v2979 = vrot.slane %v2978, 4
      %v2980 = vmax.f32 %v2978, %v2979
      %v2981 = vrot.slane %v2980, 2
      %v2982 = vmax.f32 %v2980, %v2981
      %v2983 = vrot.slane %v2982, 1
      %v2984 = vmax.f32 %v2982, %v2983
      %2985 = vset.pattern.permute.xlu0 3
      %2986 = vperm.xlu0 %2985, %v450
      %v2987 = vpop.permute.xlu0 %2986
      %2988 = vset.pattern.permute.xlu0 3
      %2989 = vperm.xlu0 %2988, %v451
      %v2990 = vpop.permute.xlu0 %2989
      %2991 = vset.pattern.permute.xlu0 3
      %2992 = vperm.xlu0 %2991, %v452
      %v2993 = vpop.permute.xlu0 %2992
      %2994 = vset.pattern.permute.xlu0 3
      %2995 = vperm.xlu0 %2994, %v453
      %v2996 = vpop.permute.xlu0 %2995
      %2997 = vset.pattern.permute.xlu0 3
      %2998 = vperm.xlu0 %2997, %v454
      %v2999 = vpop.permute.xlu0 %2998
      %3000 = vset.pattern.permute.xlu0 3
      %3001 = vperm.xlu0 %3000, %v455
      %v3002 = vpop.permute.xlu0 %3001
      %3003 = vset.pattern.permute.xlu0 3
      %3004 = vperm.xlu0 %3003, %v456
      %v3005 = vpop.permute.xlu0 %3004
      %3006 = vset.pattern.permute.xlu0 3
      %3007 = vperm.xlu0 %3006, %v457
      %v3008 = vpop.permute.xlu0 %3007
      %3009 = vset.pattern.permute.xlu0 3
      %3010 = vperm.xlu0 %3009, %v458
      %v3011 = vpop.permute.xlu0 %3010
      %3012 = vset.pattern.permute.xlu0 3
      %3013 = vperm.xlu0 %3012, %v459
      %v3014 = vpop.permute.xlu0 %3013
      %3015 = vset.pattern.permute.xlu0 3
      %3016 = vperm.xlu0 %3015, %v460
      %v3017 = vpop.permute.xlu0 %3016
      %3018 = vset.pattern.permute.xlu0 3
      %3019 = vperm.xlu0 %3018, %v461
      %v3020 = vpop.permute.xlu0 %3019
      %3021 = vset.pattern.permute.xlu0 3
      %3022 = vperm.xlu0 %3021, %v462
      %v3023 = vpop.permute.xlu0 %3022
      %3024 = vset.pattern.permute.xlu0 3
      %3025 = vperm.xlu0 %3024, %v463
      %v3026 = vpop.permute.xlu0 %3025
      %3027 = vset.pattern.permute.xlu0 3
      %3028 = vperm.xlu0 %3027, %v464
      %v3029 = vpop.permute.xlu0 %3028
      %3030 = vset.pattern.permute.xlu0 3
      %3031 = vperm.xlu0 %3030, %v465
      %v3032 = vpop.permute.xlu0 %3031
      %3033 = vset.pattern.permute.xlu0 3
      %3034 = vperm.xlu0 %3033, %v466
      %v3035 = vpop.permute.xlu0 %3034
      %3036 = vset.pattern.permute.xlu0 3
      %3037 = vperm.xlu0 %3036, %v467
      %v3038 = vpop.permute.xlu0 %3037
      %3039 = vset.pattern.permute.xlu0 3
      %3040 = vperm.xlu0 %3039, %v468
      %v3041 = vpop.permute.xlu0 %3040
      %3042 = vset.pattern.permute.xlu0 3
      %3043 = vperm.xlu0 %3042, %v469
      %v3044 = vpop.permute.xlu0 %3043
      %3045 = vset.pattern.permute.xlu0 3
      %3046 = vperm.xlu0 %3045, %v470
      %v3047 = vpop.permute.xlu0 %3046
      %3048 = vset.pattern.permute.xlu0 3
      %3049 = vperm.xlu0 %3048, %v471
      %v3050 = vpop.permute.xlu0 %3049
      %3051 = vset.pattern.permute.xlu0 3
      %3052 = vperm.xlu0 %3051, %v472
      %v3053 = vpop.permute.xlu0 %3052
      %3054 = vset.pattern.permute.xlu0 3
      %3055 = vperm.xlu0 %3054, %v473
      %v3056 = vpop.permute.xlu0 %3055
      %3057 = vset.pattern.permute.xlu0 3
      %3058 = vperm.xlu0 %3057, %v474
      %v3059 = vpop.permute.xlu0 %3058
      %3060 = vset.pattern.permute.xlu0 3
      %3061 = vperm.xlu0 %3060, %v475
      %v3062 = vpop.permute.xlu0 %3061
      %3063 = vset.pattern.permute.xlu0 3
      %3064 = vperm.xlu0 %3063, %v476
      %v3065 = vpop.permute.xlu0 %3064
      %3066 = vset.pattern.permute.xlu0 3
      %3067 = vperm.xlu0 %3066, %v477
      %v3068 = vpop.permute.xlu0 %3067
      %3069 = vset.pattern.permute.xlu0 3
      %3070 = vperm.xlu0 %3069, %v478
      %v3071 = vpop.permute.xlu0 %3070
      %3072 = vset.pattern.permute.xlu0 3
      %3073 = vperm.xlu0 %3072, %v479
      %v3074 = vpop.permute.xlu0 %3073
      %3075 = vset.pattern.permute.xlu0 3
      %3076 = vperm.xlu0 %3075, %v480
      %v3077 = vpop.permute.xlu0 %3076
      %3078 = vset.pattern.permute.xlu0 3
      %3079 = vperm.xlu0 %3078, %v481
      %v3080 = vpop.permute.xlu0 %3079
      %vm3081 = vcmp.eq.s32.totalorder %v2987, 1
      %vm3082 = vcmp.eq.s32.totalorder %v2990, 1
      %vm3083 = vcmp.eq.s32.totalorder %v2993, 1
      %vm3084 = vcmp.eq.s32.totalorder %v2996, 1
      %vm3085 = vcmp.eq.s32.totalorder %v2999, 1
      %vm3086 = vcmp.eq.s32.totalorder %v3002, 1
      %vm3087 = vcmp.eq.s32.totalorder %v3005, 1
      %vm3088 = vcmp.eq.s32.totalorder %v3008, 1
      %vm3089 = vcmp.eq.s32.totalorder %v3011, 1
      %vm3090 = vcmp.eq.s32.totalorder %v3014, 1
      %vm3091 = vcmp.eq.s32.totalorder %v3017, 1
      %vm3092 = vcmp.eq.s32.totalorder %v3020, 1
      %vm3093 = vcmp.eq.s32.totalorder %v3023, 1
      %vm3094 = vcmp.eq.s32.totalorder %v3026, 1
      %vm3095 = vcmp.eq.s32.totalorder %v3029, 1
      %vm3096 = vcmp.eq.s32.totalorder %v3032, 1
      %vm3097 = vcmp.eq.s32.totalorder %v3035, 1
      %vm3098 = vcmp.eq.s32.totalorder %v3038, 1
      %vm3099 = vcmp.eq.s32.totalorder %v3041, 1
      %vm3100 = vcmp.eq.s32.totalorder %v3044, 1
      %vm3101 = vcmp.eq.s32.totalorder %v3047, 1
      %vm3102 = vcmp.eq.s32.totalorder %v3050, 1
      %vm3103 = vcmp.eq.s32.totalorder %v3053, 1
      %vm3104 = vcmp.eq.s32.totalorder %v3056, 1
      %vm3105 = vcmp.eq.s32.totalorder %v3059, 1
      %vm3106 = vcmp.eq.s32.totalorder %v3062, 1
      %vm3107 = vcmp.eq.s32.totalorder %v3065, 1
      %vm3108 = vcmp.eq.s32.totalorder %v3068, 1
      %vm3109 = vcmp.eq.s32.totalorder %v3071, 1
      %vm3110 = vcmp.eq.s32.totalorder %v3074, 1
      %vm3111 = vcmp.eq.s32.totalorder %v3077, 1
      %vm3112 = vcmp.eq.s32.totalorder %v3080, 1
      %v3113 = vsel %vm3081, %v51, -inf
      %v3114 = vsel %vm3082, %v52, -inf
      %v3115 = vsel %vm3081, %v53, -inf
      %v3116 = vsel %vm3082, %v54, -inf
      %v3117 = vsel %vm3081, %v55, -inf
      %v3118 = vsel %vm3082, %v56, -inf
      %v3119 = vsel %vm3081, %v57, -inf
      %v3120 = vsel %vm3082, %v58, -inf
      %v3121 = vsel %vm3083, %v51, -inf
      %v3122 = vsel %vm3084, %v52, -inf
      %v3123 = vsel %vm3083, %v53, -inf
      %v3124 = vsel %vm3084, %v54, -inf
      %v3125 = vsel %vm3083, %v55, -inf
      %v3126 = vsel %vm3084, %v56, -inf
      %v3127 = vsel %vm3083, %v57, -inf
      %v3128 = vsel %vm3084, %v58, -inf
      %v3129 = vsel %vm3085, %v51, -inf
      %v3130 = vsel %vm3086, %v52, -inf
      %v3131 = vsel %vm3085, %v53, -inf
      %v3132 = vsel %vm3086, %v54, -inf
      %v3133 = vsel %vm3085, %v55, -inf
      %v3134 = vsel %vm3086, %v56, -inf
      %v3135 = vsel %vm3085, %v57, -inf
      %v3136 = vsel %vm3086, %v58, -inf
      %v3137 = vsel %vm3087, %v51, -inf
      %v3138 = vsel %vm3088, %v52, -inf
      %v3139 = vsel %vm3087, %v53, -inf
      %v3140 = vsel %vm3088, %v54, -inf
      %v3141 = vsel %vm3087, %v55, -inf
      %v3142 = vsel %vm3088, %v56, -inf
      %v3143 = vsel %vm3087, %v57, -inf
      %v3144 = vsel %vm3088, %v58, -inf
      %v3145 = vsel %vm3089, %v51, -inf
      %v3146 = vsel %vm3090, %v52, -inf
      %v3147 = vsel %vm3089, %v53, -inf
      %v3148 = vsel %vm3090, %v54, -inf
      %v3149 = vsel %vm3089, %v55, -inf
      %v3150 = vsel %vm3090, %v56, -inf
      %v3151 = vsel %vm3089, %v57, -inf
      %v3152 = vsel %vm3090, %v58, -inf
      %v3153 = vsel %vm3091, %v51, -inf
      %v3154 = vsel %vm3092, %v52, -inf
      %v3155 = vsel %vm3091, %v53, -inf
      %v3156 = vsel %vm3092, %v54, -inf
      %v3157 = vsel %vm3091, %v55, -inf
      %v3158 = vsel %vm3092, %v56, -inf
      %v3159 = vsel %vm3091, %v57, -inf
      %v3160 = vsel %vm3092, %v58, -inf
      %v3161 = vsel %vm3093, %v51, -inf
      %v3162 = vsel %vm3094, %v52, -inf
      %v3163 = vsel %vm3093, %v53, -inf
      %v3164 = vsel %vm3094, %v54, -inf
      %v3165 = vsel %vm3093, %v55, -inf
      %v3166 = vsel %vm3094, %v56, -inf
      %v3167 = vsel %vm3093, %v57, -inf
      %v3168 = vsel %vm3094, %v58, -inf
      %v3169 = vsel %vm3095, %v51, -inf
      %v3170 = vsel %vm3096, %v52, -inf
      %v3171 = vsel %vm3095, %v53, -inf
      %v3172 = vsel %vm3096, %v54, -inf
      %v3173 = vsel %vm3095, %v55, -inf
      %v3174 = vsel %vm3096, %v56, -inf
      %v3175 = vsel %vm3095, %v57, -inf
      %v3176 = vsel %vm3096, %v58, -inf
      %v3177 = vsel %vm3097, %v51, -inf
      %v3178 = vsel %vm3098, %v52, -inf
      %v3179 = vsel %vm3097, %v53, -inf
      %v3180 = vsel %vm3098, %v54, -inf
      %v3181 = vsel %vm3097, %v55, -inf
      %v3182 = vsel %vm3098, %v56, -inf
      %v3183 = vsel %vm3097, %v57, -inf
      %v3184 = vsel %vm3098, %v58, -inf
      %v3185 = vsel %vm3099, %v51, -inf
      %v3186 = vsel %vm3100, %v52, -inf
      %v3187 = vsel %vm3099, %v53, -inf
      %v3188 = vsel %vm3100, %v54, -inf
      %v3189 = vsel %vm3099, %v55, -inf
      %v3190 = vsel %vm3100, %v56, -inf
      %v3191 = vsel %vm3099, %v57, -inf
      %v3192 = vsel %vm3100, %v58, -inf
      %v3193 = vsel %vm3101, %v51, -inf
      %v3194 = vsel %vm3102, %v52, -inf
      %v3195 = vsel %vm3101, %v53, -inf
      %v3196 = vsel %vm3102, %v54, -inf
      %v3197 = vsel %vm3101, %v55, -inf
      %v3198 = vsel %vm3102, %v56, -inf
      %v3199 = vsel %vm3101, %v57, -inf
      %v3200 = vsel %vm3102, %v58, -inf
      %v3201 = vsel %vm3103, %v51, -inf
      %v3202 = vsel %vm3104, %v52, -inf
      %v3203 = vsel %vm3103, %v53, -inf
      %v3204 = vsel %vm3104, %v54, -inf
      %v3205 = vsel %vm3103, %v55, -inf
      %v3206 = vsel %vm3104, %v56, -inf
      %v3207 = vsel %vm3103, %v57, -inf
      %v3208 = vsel %vm3104, %v58, -inf
      %v3209 = vsel %vm3105, %v51, -inf
      %v3210 = vsel %vm3106, %v52, -inf
      %v3211 = vsel %vm3105, %v53, -inf
      %v3212 = vsel %vm3106, %v54, -inf
      %v3213 = vsel %vm3105, %v55, -inf
      %v3214 = vsel %vm3106, %v56, -inf
      %v3215 = vsel %vm3105, %v57, -inf
      %v3216 = vsel %vm3106, %v58, -inf
      %v3217 = vsel %vm3107, %v51, -inf
      %v3218 = vsel %vm3108, %v52, -inf
      %v3219 = vsel %vm3107, %v53, -inf
      %v3220 = vsel %vm3108, %v54, -inf
      %v3221 = vsel %vm3107, %v55, -inf
      %v3222 = vsel %vm3108, %v56, -inf
      %v3223 = vsel %vm3107, %v57, -inf
      %v3224 = vsel %vm3108, %v58, -inf
      %v3225 = vsel %vm3109, %v51, -inf
      %v3226 = vsel %vm3110, %v52, -inf
      %v3227 = vsel %vm3109, %v53, -inf
      %v3228 = vsel %vm3110, %v54, -inf
      %v3229 = vsel %vm3109, %v55, -inf
      %v3230 = vsel %vm3110, %v56, -inf
      %v3231 = vsel %vm3109, %v57, -inf
      %v3232 = vsel %vm3110, %v58, -inf
      %v3233 = vsel %vm3111, %v51, -inf
      %v3234 = vsel %vm3112, %v52, -inf
      %v3235 = vsel %vm3111, %v53, -inf
      %v3236 = vsel %vm3112, %v54, -inf
      %v3237 = vsel %vm3111, %v55, -inf
      %v3238 = vsel %vm3112, %v56, -inf
      %v3239 = vsel %vm3111, %v57, -inf
      %v3240 = vsel %vm3112, %v58, -inf
      %v3241 = vsel %vm738, %v3113, -inf
      %v3242 = vsel %vm738, %v3114, -inf
      %v3243 = vmax.f32 %v3241, %v3242
      %v3244 = vrot.slane %v3243, 4
      %v3245 = vmax.f32 %v3243, %v3244
      %v3246 = vrot.slane %v3245, 2
      %v3247 = vmax.f32 %v3245, %v3246
      %v3248 = vrot.slane %v3247, 1
      %v3249 = vmax.f32 %v3247, %v3248
      %v3250 = vsel %vm738, %v3115, -inf
      %v3251 = vsel %vm738, %v3116, -inf
      %v3252 = vmax.f32 %v3250, %v3251
      %v3253 = vrot.slane %v3252, 4
      %v3254 = vmax.f32 %v3252, %v3253
      %v3255 = vrot.slane %v3254, 2
      %v3256 = vmax.f32 %v3254, %v3255
      %v3257 = vrot.slane %v3256, 1
      %v3258 = vmax.f32 %v3256, %v3257
      %v3259 = vsel %vm738, %v3117, -inf
      %v3260 = vsel %vm738, %v3118, -inf
      %v3261 = vmax.f32 %v3259, %v3260
      %v3262 = vrot.slane %v3261, 4
      %v3263 = vmax.f32 %v3261, %v3262
      %v3264 = vrot.slane %v3263, 2
      %v3265 = vmax.f32 %v3263, %v3264
      %v3266 = vrot.slane %v3265, 1
      %v3267 = vmax.f32 %v3265, %v3266
      %v3268 = vsel %vm738, %v3119, -inf
      %v3269 = vsel %vm738, %v3120, -inf
      %v3270 = vmax.f32 %v3268, %v3269
      %v3271 = vrot.slane %v3270, 4
      %v3272 = vmax.f32 %v3270, %v3271
      %v3273 = vrot.slane %v3272, 2
      %v3274 = vmax.f32 %v3272, %v3273
      %v3275 = vrot.slane %v3274, 1
      %v3276 = vmax.f32 %v3274, %v3275
      %v3277 = vsel %vm738, %v3121, -inf
      %v3278 = vsel %vm738, %v3122, -inf
      %v3279 = vmax.f32 %v3277, %v3278
      %v3280 = vrot.slane %v3279, 4
      %v3281 = vmax.f32 %v3279, %v3280
      %v3282 = vrot.slane %v3281, 2
      %v3283 = vmax.f32 %v3281, %v3282
      %v3284 = vrot.slane %v3283, 1
      %v3285 = vmax.f32 %v3283, %v3284
      %v3286 = vsel %vm738, %v3123, -inf
      %v3287 = vsel %vm738, %v3124, -inf
      %v3288 = vmax.f32 %v3286, %v3287
      %v3289 = vrot.slane %v3288, 4
      %v3290 = vmax.f32 %v3288, %v3289
      %v3291 = vrot.slane %v3290, 2
      %v3292 = vmax.f32 %v3290, %v3291
      %v3293 = vrot.slane %v3292, 1
      %v3294 = vmax.f32 %v3292, %v3293
      %v3295 = vsel %vm738, %v3125, -inf
      %v3296 = vsel %vm738, %v3126, -inf
      %v3297 = vmax.f32 %v3295, %v3296
      %v3298 = vrot.slane %v3297, 4
      %v3299 = vmax.f32 %v3297, %v3298
      %v3300 = vrot.slane %v3299, 2
      %v3301 = vmax.f32 %v3299, %v3300
      %v3302 = vrot.slane %v3301, 1
      %v3303 = vmax.f32 %v3301, %v3302
      %v3304 = vsel %vm738, %v3127, -inf
      %v3305 = vsel %vm738, %v3128, -inf
      %v3306 = vmax.f32 %v3304, %v3305
      %v3307 = vrot.slane %v3306, 4
      %v3308 = vmax.f32 %v3306, %v3307
      %v3309 = vrot.slane %v3308, 2
      %v3310 = vmax.f32 %v3308, %v3309
      %v3311 = vrot.slane %v3310, 1
      %v3312 = vmax.f32 %v3310, %v3311
      %v3313 = vsel %vm738, %v3129, -inf
      %v3314 = vsel %vm738, %v3130, -inf
      %v3315 = vmax.f32 %v3313, %v3314
      %v3316 = vrot.slane %v3315, 4
      %v3317 = vmax.f32 %v3315, %v3316
      %v3318 = vrot.slane %v3317, 2
      %v3319 = vmax.f32 %v3317, %v3318
      %v3320 = vrot.slane %v3319, 1
      %v3321 = vmax.f32 %v3319, %v3320
      %v3322 = vsel %vm738, %v3131, -inf
      %v3323 = vsel %vm738, %v3132, -inf
      %v3324 = vmax.f32 %v3322, %v3323
      %v3325 = vrot.slane %v3324, 4
      %v3326 = vmax.f32 %v3324, %v3325
      %v3327 = vrot.slane %v3326, 2
      %v3328 = vmax.f32 %v3326, %v3327
      %v3329 = vrot.slane %v3328, 1
      %v3330 = vmax.f32 %v3328, %v3329
      %v3331 = vsel %vm738, %v3133, -inf
      %v3332 = vsel %vm738, %v3134, -inf
      %v3333 = vmax.f32 %v3331, %v3332
      %v3334 = vrot.slane %v3333, 4
      %v3335 = vmax.f32 %v3333, %v3334
      %v3336 = vrot.slane %v3335, 2
      %v3337 = vmax.f32 %v3335, %v3336
      %v3338 = vrot.slane %v3337, 1
      %v3339 = vmax.f32 %v3337, %v3338
      %v3340 = vsel %vm738, %v3135, -inf
      %v3341 = vsel %vm738, %v3136, -inf
      %v3342 = vmax.f32 %v3340, %v3341
      %v3343 = vrot.slane %v3342, 4
      %v3344 = vmax.f32 %v3342, %v3343
      %v3345 = vrot.slane %v3344, 2
      %v3346 = vmax.f32 %v3344, %v3345
      %v3347 = vrot.slane %v3346, 1
      %v3348 = vmax.f32 %v3346, %v3347
      %v3349 = vsel %vm738, %v3137, -inf
      %v3350 = vsel %vm738, %v3138, -inf
      %v3351 = vmax.f32 %v3349, %v3350
      %v3352 = vrot.slane %v3351, 4
      %v3353 = vmax.f32 %v3351, %v3352
      %v3354 = vrot.slane %v3353, 2
      %v3355 = vmax.f32 %v3353, %v3354
      %v3356 = vrot.slane %v3355, 1
      %v3357 = vmax.f32 %v3355, %v3356
      %v3358 = vsel %vm738, %v3139, -inf
      %v3359 = vsel %vm738, %v3140, -inf
      %v3360 = vmax.f32 %v3358, %v3359
      %v3361 = vrot.slane %v3360, 4
      %v3362 = vmax.f32 %v3360, %v3361
      %v3363 = vrot.slane %v3362, 2
      %v3364 = vmax.f32 %v3362, %v3363
      %v3365 = vrot.slane %v3364, 1
      %v3366 = vmax.f32 %v3364, %v3365
      %v3367 = vsel %vm738, %v3141, -inf
      %v3368 = vsel %vm738, %v3142, -inf
      %v3369 = vmax.f32 %v3367, %v3368
      %v3370 = vrot.slane %v3369, 4
      %v3371 = vmax.f32 %v3369, %v3370
      %v3372 = vrot.slane %v3371, 2
      %v3373 = vmax.f32 %v3371, %v3372
      %v3374 = vrot.slane %v3373, 1
      %v3375 = vmax.f32 %v3373, %v3374
      %v3376 = vsel %vm738, %v3143, -inf
      %v3377 = vsel %vm738, %v3144, -inf
      %v3378 = vmax.f32 %v3376, %v3377
      %v3379 = vrot.slane %v3378, 4
      %v3380 = vmax.f32 %v3378, %v3379
      %v3381 = vrot.slane %v3380, 2
      %v3382 = vmax.f32 %v3380, %v3381
      %v3383 = vrot.slane %v3382, 1
      %v3384 = vmax.f32 %v3382, %v3383
      %v3385 = vsel %vm738, %v3145, -inf
      %v3386 = vsel %vm738, %v3146, -inf
      %v3387 = vmax.f32 %v3385, %v3386
      %v3388 = vrot.slane %v3387, 4
      %v3389 = vmax.f32 %v3387, %v3388
      %v3390 = vrot.slane %v3389, 2
      %v3391 = vmax.f32 %v3389, %v3390
      %v3392 = vrot.slane %v3391, 1
      %v3393 = vmax.f32 %v3391, %v3392
      %v3394 = vsel %vm738, %v3147, -inf
      %v3395 = vsel %vm738, %v3148, -inf
      %v3396 = vmax.f32 %v3394, %v3395
      %v3397 = vrot.slane %v3396, 4
      %v3398 = vmax.f32 %v3396, %v3397
      %v3399 = vrot.slane %v3398, 2
      %v3400 = vmax.f32 %v3398, %v3399
      %v3401 = vrot.slane %v3400, 1
      %v3402 = vmax.f32 %v3400, %v3401
      %v3403 = vsel %vm738, %v3149, -inf
      %v3404 = vsel %vm738, %v3150, -inf
      %v3405 = vmax.f32 %v3403, %v3404
      %v3406 = vrot.slane %v3405, 4
      %v3407 = vmax.f32 %v3405, %v3406
      %v3408 = vrot.slane %v3407, 2
      %v3409 = vmax.f32 %v3407, %v3408
      %v3410 = vrot.slane %v3409, 1
      %v3411 = vmax.f32 %v3409, %v3410
      %v3412 = vsel %vm738, %v3151, -inf
      %v3413 = vsel %vm738, %v3152, -inf
      %v3414 = vmax.f32 %v3412, %v3413
      %v3415 = vrot.slane %v3414, 4
      %v3416 = vmax.f32 %v3414, %v3415
      %v3417 = vrot.slane %v3416, 2
      %v3418 = vmax.f32 %v3416, %v3417
      %v3419 = vrot.slane %v3418, 1
      %v3420 = vmax.f32 %v3418, %v3419
      %v3421 = vsel %vm738, %v3153, -inf
      %v3422 = vsel %vm738, %v3154, -inf
      %v3423 = vmax.f32 %v3421, %v3422
      %v3424 = vrot.slane %v3423, 4
      %v3425 = vmax.f32 %v3423, %v3424
      %v3426 = vrot.slane %v3425, 2
      %v3427 = vmax.f32 %v3425, %v3426
      %v3428 = vrot.slane %v3427, 1
      %v3429 = vmax.f32 %v3427, %v3428
      %v3430 = vsel %vm738, %v3155, -inf
      %v3431 = vsel %vm738, %v3156, -inf
      %v3432 = vmax.f32 %v3430, %v3431
      %v3433 = vrot.slane %v3432, 4
      %v3434 = vmax.f32 %v3432, %v3433
      %v3435 = vrot.slane %v3434, 2
      %v3436 = vmax.f32 %v3434, %v3435
      %v3437 = vrot.slane %v3436, 1
      %v3438 = vmax.f32 %v3436, %v3437
      %v3439 = vsel %vm738, %v3157, -inf
      %v3440 = vsel %vm738, %v3158, -inf
      %v3441 = vmax.f32 %v3439, %v3440
      %v3442 = vrot.slane %v3441, 4
      %v3443 = vmax.f32 %v3441, %v3442
      %v3444 = vrot.slane %v3443, 2
      %v3445 = vmax.f32 %v3443, %v3444
      %v3446 = vrot.slane %v3445, 1
      %v3447 = vmax.f32 %v3445, %v3446
      %v3448 = vsel %vm738, %v3159, -inf
      %v3449 = vsel %vm738, %v3160, -inf
      %v3450 = vmax.f32 %v3448, %v3449
      %v3451 = vrot.slane %v3450, 4
      %v3452 = vmax.f32 %v3450, %v3451
      %v3453 = vrot.slane %v3452, 2
      %v3454 = vmax.f32 %v3452, %v3453
      %v3455 = vrot.slane %v3454, 1
      %v3456 = vmax.f32 %v3454, %v3455
      %v3457 = vsel %vm738, %v3161, -inf
      %v3458 = vsel %vm738, %v3162, -inf
      %v3459 = vmax.f32 %v3457, %v3458
      %v3460 = vrot.slane %v3459, 4
      %v3461 = vmax.f32 %v3459, %v3460
      %v3462 = vrot.slane %v3461, 2
      %v3463 = vmax.f32 %v3461, %v3462
      %v3464 = vrot.slane %v3463, 1
      %v3465 = vmax.f32 %v3463, %v3464
      %v3466 = vsel %vm738, %v3163, -inf
      %v3467 = vsel %vm738, %v3164, -inf
      %v3468 = vmax.f32 %v3466, %v3467
      %v3469 = vrot.slane %v3468, 4
      %v3470 = vmax.f32 %v3468, %v3469
      %v3471 = vrot.slane %v3470, 2
      %v3472 = vmax.f32 %v3470, %v3471
      %v3473 = vrot.slane %v3472, 1
      %v3474 = vmax.f32 %v3472, %v3473
      %v3475 = vsel %vm738, %v3165, -inf
      %v3476 = vsel %vm738, %v3166, -inf
      %v3477 = vmax.f32 %v3475, %v3476
      %v3478 = vrot.slane %v3477, 4
      %v3479 = vmax.f32 %v3477, %v3478
      %v3480 = vrot.slane %v3479, 2
      %v3481 = vmax.f32 %v3479, %v3480
      %v3482 = vrot.slane %v3481, 1
      %v3483 = vmax.f32 %v3481, %v3482
      %v3484 = vsel %vm738, %v3167, -inf
      %v3485 = vsel %vm738, %v3168, -inf
      %v3486 = vmax.f32 %v3484, %v3485
      %v3487 = vrot.slane %v3486, 4
      %v3488 = vmax.f32 %v3486, %v3487
      %v3489 = vrot.slane %v3488, 2
      %v3490 = vmax.f32 %v3488, %v3489
      %v3491 = vrot.slane %v3490, 1
      %v3492 = vmax.f32 %v3490, %v3491
      %v3493 = vsel %vm738, %v3169, -inf
      %v3494 = vsel %vm738, %v3170, -inf
      %v3495 = vmax.f32 %v3493, %v3494
      %v3496 = vrot.slane %v3495, 4
      %v3497 = vmax.f32 %v3495, %v3496
      %v3498 = vrot.slane %v3497, 2
      %v3499 = vmax.f32 %v3497, %v3498
      %v3500 = vrot.slane %v3499, 1
      %v3501 = vmax.f32 %v3499, %v3500
      %v3502 = vsel %vm738, %v3171, -inf
      %v3503 = vsel %vm738, %v3172, -inf
      %v3504 = vmax.f32 %v3502, %v3503
      %v3505 = vrot.slane %v3504, 4
      %v3506 = vmax.f32 %v3504, %v3505
      %v3507 = vrot.slane %v3506, 2
      %v3508 = vmax.f32 %v3506, %v3507
      %v3509 = vrot.slane %v3508, 1
      %v3510 = vmax.f32 %v3508, %v3509
      %v3511 = vsel %vm738, %v3173, -inf
      %v3512 = vsel %vm738, %v3174, -inf
      %v3513 = vmax.f32 %v3511, %v3512
      %v3514 = vrot.slane %v3513, 4
      %v3515 = vmax.f32 %v3513, %v3514
      %v3516 = vrot.slane %v3515, 2
      %v3517 = vmax.f32 %v3515, %v3516
      %v3518 = vrot.slane %v3517, 1
      %v3519 = vmax.f32 %v3517, %v3518
      %v3520 = vsel %vm738, %v3175, -inf
      %v3521 = vsel %vm738, %v3176, -inf
      %v3522 = vmax.f32 %v3520, %v3521
      %v3523 = vrot.slane %v3522, 4
      %v3524 = vmax.f32 %v3522, %v3523
      %v3525 = vrot.slane %v3524, 2
      %v3526 = vmax.f32 %v3524, %v3525
      %v3527 = vrot.slane %v3526, 1
      %v3528 = vmax.f32 %v3526, %v3527
      %v3529 = vsel %vm738, %v3177, -inf
      %v3530 = vsel %vm738, %v3178, -inf
      %v3531 = vmax.f32 %v3529, %v3530
      %v3532 = vrot.slane %v3531, 4
      %v3533 = vmax.f32 %v3531, %v3532
      %v3534 = vrot.slane %v3533, 2
      %v3535 = vmax.f32 %v3533, %v3534
      %v3536 = vrot.slane %v3535, 1
      %v3537 = vmax.f32 %v3535, %v3536
      %v3538 = vsel %vm738, %v3179, -inf
      %v3539 = vsel %vm738, %v3180, -inf
      %v3540 = vmax.f32 %v3538, %v3539
      %v3541 = vrot.slane %v3540, 4
      %v3542 = vmax.f32 %v3540, %v3541
      %v3543 = vrot.slane %v3542, 2
      %v3544 = vmax.f32 %v3542, %v3543
      %v3545 = vrot.slane %v3544, 1
      %v3546 = vmax.f32 %v3544, %v3545
      %v3547 = vsel %vm738, %v3181, -inf
      %v3548 = vsel %vm738, %v3182, -inf
      %v3549 = vmax.f32 %v3547, %v3548
      %v3550 = vrot.slane %v3549, 4
      %v3551 = vmax.f32 %v3549, %v3550
      %v3552 = vrot.slane %v3551, 2
      %v3553 = vmax.f32 %v3551, %v3552
      %v3554 = vrot.slane %v3553, 1
      %v3555 = vmax.f32 %v3553, %v3554
      %v3556 = vsel %vm738, %v3183, -inf
      %v3557 = vsel %vm738, %v3184, -inf
      %v3558 = vmax.f32 %v3556, %v3557
      %v3559 = vrot.slane %v3558, 4
      %v3560 = vmax.f32 %v3558, %v3559
      %v3561 = vrot.slane %v3560, 2
      %v3562 = vmax.f32 %v3560, %v3561
      %v3563 = vrot.slane %v3562, 1
      %v3564 = vmax.f32 %v3562, %v3563
      %v3565 = vsel %vm738, %v3185, -inf
      %v3566 = vsel %vm738, %v3186, -inf
      %v3567 = vmax.f32 %v3565, %v3566
      %v3568 = vrot.slane %v3567, 4
      %v3569 = vmax.f32 %v3567, %v3568
      %v3570 = vrot.slane %v3569, 2
      %v3571 = vmax.f32 %v3569, %v3570
      %v3572 = vrot.slane %v3571, 1
      %v3573 = vmax.f32 %v3571, %v3572
      %v3574 = vsel %vm738, %v3187, -inf
      %v3575 = vsel %vm738, %v3188, -inf
      %v3576 = vmax.f32 %v3574, %v3575
      %v3577 = vrot.slane %v3576, 4
      %v3578 = vmax.f32 %v3576, %v3577
      %v3579 = vrot.slane %v3578, 2
      %v3580 = vmax.f32 %v3578, %v3579
      %v3581 = vrot.slane %v3580, 1
      %v3582 = vmax.f32 %v3580, %v3581
      %v3583 = vsel %vm738, %v3189, -inf
      %v3584 = vsel %vm738, %v3190, -inf
      %v3585 = vmax.f32 %v3583, %v3584
      %v3586 = vrot.slane %v3585, 4
      %v3587 = vmax.f32 %v3585, %v3586
      %v3588 = vrot.slane %v3587, 2
      %v3589 = vmax.f32 %v3587, %v3588
      %v3590 = vrot.slane %v3589, 1
      %v3591 = vmax.f32 %v3589, %v3590
      %v3592 = vsel %vm738, %v3191, -inf
      %v3593 = vsel %vm738, %v3192, -inf
      %v3594 = vmax.f32 %v3592, %v3593
      %v3595 = vrot.slane %v3594, 4
      %v3596 = vmax.f32 %v3594, %v3595
      %v3597 = vrot.slane %v3596, 2
      %v3598 = vmax.f32 %v3596, %v3597
      %v3599 = vrot.slane %v3598, 1
      %v3600 = vmax.f32 %v3598, %v3599
      %v3601 = vsel %vm738, %v3193, -inf
      %v3602 = vsel %vm738, %v3194, -inf
      %v3603 = vmax.f32 %v3601, %v3602
      %v3604 = vrot.slane %v3603, 4
      %v3605 = vmax.f32 %v3603, %v3604
      %v3606 = vrot.slane %v3605, 2
      %v3607 = vmax.f32 %v3605, %v3606
      %v3608 = vrot.slane %v3607, 1
      %v3609 = vmax.f32 %v3607, %v3608
      %v3610 = vsel %vm738, %v3195, -inf
      %v3611 = vsel %vm738, %v3196, -inf
      %v3612 = vmax.f32 %v3610, %v3611
      %v3613 = vrot.slane %v3612, 4
      %v3614 = vmax.f32 %v3612, %v3613
      %v3615 = vrot.slane %v3614, 2
      %v3616 = vmax.f32 %v3614, %v3615
      %v3617 = vrot.slane %v3616, 1
      %v3618 = vmax.f32 %v3616, %v3617
      %v3619 = vsel %vm738, %v3197, -inf
      %v3620 = vsel %vm738, %v3198, -inf
      %v3621 = vmax.f32 %v3619, %v3620
      %v3622 = vrot.slane %v3621, 4
      %v3623 = vmax.f32 %v3621, %v3622
      %v3624 = vrot.slane %v3623, 2
      %v3625 = vmax.f32 %v3623, %v3624
      %v3626 = vrot.slane %v3625, 1
      %v3627 = vmax.f32 %v3625, %v3626
      %v3628 = vsel %vm738, %v3199, -inf
      %v3629 = vsel %vm738, %v3200, -inf
      %v3630 = vmax.f32 %v3628, %v3629
      %v3631 = vrot.slane %v3630, 4
      %v3632 = vmax.f32 %v3630, %v3631
      %v3633 = vrot.slane %v3632, 2
      %v3634 = vmax.f32 %v3632, %v3633
      %v3635 = vrot.slane %v3634, 1
      %v3636 = vmax.f32 %v3634, %v3635
      %v3637 = vsel %vm738, %v3201, -inf
      %v3638 = vsel %vm738, %v3202, -inf
      %v3639 = vmax.f32 %v3637, %v3638
      %v3640 = vrot.slane %v3639, 4
      %v3641 = vmax.f32 %v3639, %v3640
      %v3642 = vrot.slane %v3641, 2
      %v3643 = vmax.f32 %v3641, %v3642
      %v3644 = vrot.slane %v3643, 1
      %v3645 = vmax.f32 %v3643, %v3644
      %v3646 = vsel %vm738, %v3203, -inf
      %v3647 = vsel %vm738, %v3204, -inf
      %v3648 = vmax.f32 %v3646, %v3647
      %v3649 = vrot.slane %v3648, 4
      %v3650 = vmax.f32 %v3648, %v3649
      %v3651 = vrot.slane %v3650, 2
      %v3652 = vmax.f32 %v3650, %v3651
      %v3653 = vrot.slane %v3652, 1
      %v3654 = vmax.f32 %v3652, %v3653
      %v3655 = vsel %vm738, %v3205, -inf
      %v3656 = vsel %vm738, %v3206, -inf
      %v3657 = vmax.f32 %v3655, %v3656
      %v3658 = vrot.slane %v3657, 4
      %v3659 = vmax.f32 %v3657, %v3658
      %v3660 = vrot.slane %v3659, 2
      %v3661 = vmax.f32 %v3659, %v3660
      %v3662 = vrot.slane %v3661, 1
      %v3663 = vmax.f32 %v3661, %v3662
      %v3664 = vsel %vm738, %v3207, -inf
      %v3665 = vsel %vm738, %v3208, -inf
      %v3666 = vmax.f32 %v3664, %v3665
      %v3667 = vrot.slane %v3666, 4
      %v3668 = vmax.f32 %v3666, %v3667
      %v3669 = vrot.slane %v3668, 2
      %v3670 = vmax.f32 %v3668, %v3669
      %v3671 = vrot.slane %v3670, 1
      %v3672 = vmax.f32 %v3670, %v3671
      %v3673 = vsel %vm738, %v3209, -inf
      %v3674 = vsel %vm738, %v3210, -inf
      %v3675 = vmax.f32 %v3673, %v3674
      %v3676 = vrot.slane %v3675, 4
      %v3677 = vmax.f32 %v3675, %v3676
      %v3678 = vrot.slane %v3677, 2
      %v3679 = vmax.f32 %v3677, %v3678
      %v3680 = vrot.slane %v3679, 1
      %v3681 = vmax.f32 %v3679, %v3680
      %v3682 = vsel %vm738, %v3211, -inf
      %v3683 = vsel %vm738, %v3212, -inf
      %v3684 = vmax.f32 %v3682, %v3683
      %v3685 = vrot.slane %v3684, 4
      %v3686 = vmax.f32 %v3684, %v3685
      %v3687 = vrot.slane %v3686, 2
      %v3688 = vmax.f32 %v3686, %v3687
      %v3689 = vrot.slane %v3688, 1
      %v3690 = vmax.f32 %v3688, %v3689
      %v3691 = vsel %vm738, %v3213, -inf
      %v3692 = vsel %vm738, %v3214, -inf
      %v3693 = vmax.f32 %v3691, %v3692
      %v3694 = vrot.slane %v3693, 4
      %v3695 = vmax.f32 %v3693, %v3694
      %v3696 = vrot.slane %v3695, 2
      %v3697 = vmax.f32 %v3695, %v3696
      %v3698 = vrot.slane %v3697, 1
      %v3699 = vmax.f32 %v3697, %v3698
      %v3700 = vsel %vm738, %v3215, -inf
      %v3701 = vsel %vm738, %v3216, -inf
      %v3702 = vmax.f32 %v3700, %v3701
      %v3703 = vrot.slane %v3702, 4
      %v3704 = vmax.f32 %v3702, %v3703
      %v3705 = vrot.slane %v3704, 2
      %v3706 = vmax.f32 %v3704, %v3705
      %v3707 = vrot.slane %v3706, 1
      %v3708 = vmax.f32 %v3706, %v3707
      %v3709 = vsel %vm738, %v3217, -inf
      %v3710 = vsel %vm738, %v3218, -inf
      %v3711 = vmax.f32 %v3709, %v3710
      %v3712 = vrot.slane %v3711, 4
      %v3713 = vmax.f32 %v3711, %v3712
      %v3714 = vrot.slane %v3713, 2
      %v3715 = vmax.f32 %v3713, %v3714
      %v3716 = vrot.slane %v3715, 1
      %v3717 = vmax.f32 %v3715, %v3716
      %v3718 = vsel %vm738, %v3219, -inf
      %v3719 = vsel %vm738, %v3220, -inf
      %v3720 = vmax.f32 %v3718, %v3719
      %v3721 = vrot.slane %v3720, 4
      %v3722 = vmax.f32 %v3720, %v3721
      %v3723 = vrot.slane %v3722, 2
      %v3724 = vmax.f32 %v3722, %v3723
      %v3725 = vrot.slane %v3724, 1
      %v3726 = vmax.f32 %v3724, %v3725
      %v3727 = vsel %vm738, %v3221, -inf
      %v3728 = vsel %vm738, %v3222, -inf
      %v3729 = vmax.f32 %v3727, %v3728
      %v3730 = vrot.slane %v3729, 4
      %v3731 = vmax.f32 %v3729, %v3730
      %v3732 = vrot.slane %v3731, 2
      %v3733 = vmax.f32 %v3731, %v3732
      %v3734 = vrot.slane %v3733, 1
      %v3735 = vmax.f32 %v3733, %v3734
      %v3736 = vsel %vm738, %v3223, -inf
      %v3737 = vsel %vm738, %v3224, -inf
      %v3738 = vmax.f32 %v3736, %v3737
      %v3739 = vrot.slane %v3738, 4
      %v3740 = vmax.f32 %v3738, %v3739
      %v3741 = vrot.slane %v3740, 2
      %v3742 = vmax.f32 %v3740, %v3741
      %v3743 = vrot.slane %v3742, 1
      %v3744 = vmax.f32 %v3742, %v3743
      %v3745 = vsel %vm738, %v3225, -inf
      %v3746 = vsel %vm738, %v3226, -inf
      %v3747 = vmax.f32 %v3745, %v3746
      %v3748 = vrot.slane %v3747, 4
      %v3749 = vmax.f32 %v3747, %v3748
      %v3750 = vrot.slane %v3749, 2
      %v3751 = vmax.f32 %v3749, %v3750
      %v3752 = vrot.slane %v3751, 1
      %v3753 = vmax.f32 %v3751, %v3752
      %v3754 = vsel %vm738, %v3227, -inf
      %v3755 = vsel %vm738, %v3228, -inf
      %v3756 = vmax.f32 %v3754, %v3755
      %v3757 = vrot.slane %v3756, 4
      %v3758 = vmax.f32 %v3756, %v3757
      %v3759 = vrot.slane %v3758, 2
      %v3760 = vmax.f32 %v3758, %v3759
      %v3761 = vrot.slane %v3760, 1
      %v3762 = vmax.f32 %v3760, %v3761
      %v3763 = vsel %vm738, %v3229, -inf
      %v3764 = vsel %vm738, %v3230, -inf
      %v3765 = vmax.f32 %v3763, %v3764
      %v3766 = vrot.slane %v3765, 4
      %v3767 = vmax.f32 %v3765, %v3766
      %v3768 = vrot.slane %v3767, 2
      %v3769 = vmax.f32 %v3767, %v3768
      %v3770 = vrot.slane %v3769, 1
      %v3771 = vmax.f32 %v3769, %v3770
      %v3772 = vsel %vm738, %v3231, -inf
      %v3773 = vsel %vm738, %v3232, -inf
      %v3774 = vmax.f32 %v3772, %v3773
      %v3775 = vrot.slane %v3774, 4
      %v3776 = vmax.f32 %v3774, %v3775
      %v3777 = vrot.slane %v3776, 2
      %v3778 = vmax.f32 %v3776, %v3777
      %v3779 = vrot.slane %v3778, 1
      %v3780 = vmax.f32 %v3778, %v3779
      %v3781 = vsel %vm738, %v3233, -inf
      %v3782 = vsel %vm738, %v3234, -inf
      %v3783 = vmax.f32 %v3781, %v3782
      %v3784 = vrot.slane %v3783, 4
      %v3785 = vmax.f32 %v3783, %v3784
      %v3786 = vrot.slane %v3785, 2
      %v3787 = vmax.f32 %v3785, %v3786
      %v3788 = vrot.slane %v3787, 1
      %v3789 = vmax.f32 %v3787, %v3788
      %v3790 = vsel %vm738, %v3235, -inf
      %v3791 = vsel %vm738, %v3236, -inf
      %v3792 = vmax.f32 %v3790, %v3791
      %v3793 = vrot.slane %v3792, 4
      %v3794 = vmax.f32 %v3792, %v3793
      %v3795 = vrot.slane %v3794, 2
      %v3796 = vmax.f32 %v3794, %v3795
      %v3797 = vrot.slane %v3796, 1
      %v3798 = vmax.f32 %v3796, %v3797
      %v3799 = vsel %vm738, %v3237, -inf
      %v3800 = vsel %vm738, %v3238, -inf
      %v3801 = vmax.f32 %v3799, %v3800
      %v3802 = vrot.slane %v3801, 4
      %v3803 = vmax.f32 %v3801, %v3802
      %v3804 = vrot.slane %v3803, 2
      %v3805 = vmax.f32 %v3803, %v3804
      %v3806 = vrot.slane %v3805, 1
      %v3807 = vmax.f32 %v3805, %v3806
      %v3808 = vsel %vm738, %v3239, -inf
      %v3809 = vsel %vm738, %v3240, -inf
      %v3810 = vmax.f32 %v3808, %v3809
      %v3811 = vrot.slane %v3810, 4
      %v3812 = vmax.f32 %v3810, %v3811
      %v3813 = vrot.slane %v3812, 2
      %v3814 = vmax.f32 %v3812, %v3813
      %v3815 = vrot.slane %v3814, 1
      %v3816 = vmax.f32 %v3814, %v3815
      %3817 = vset.pattern.permute.xlu0 8
      %3818 = vperm.xlu0 %3817, %v87
      %v3819 = vpop.permute.xlu0 %3818
      %v3820 = vlaneseq
      %v3821 = vshrl.u32 %v3820, 7
      %v3822 = vsub.s32 0, %v3821
      %v3823 = vrot.slane %v3819, %v3822
      %3824 = vset.pattern.permute.xlu0 8
      %3825 = vperm.xlu0 %3824, %v101
      %v3826 = vpop.permute.xlu0 %3825
      %v3827 = vlaneseq
      %v3828 = vshrl.u32 %v3827, 7
      %v3829 = vsub.s32 0, %v3828
      %v3830 = vrot.slane %v3826, %v3829
      %3831 = vset.pattern.permute.xlu0 8
      %3832 = vperm.xlu0 %3831, %v109
      %v3833 = vpop.permute.xlu0 %3832
      %v3834 = vlaneseq
      %v3835 = vshrl.u32 %v3834, 7
      %v3836 = vsub.s32 0, %v3835
      %v3837 = vrot.slane %v3833, %v3836
      %3838 = vset.pattern.permute.xlu0 8
      %3839 = vperm.xlu0 %3838, %v111
      %v3840 = vpop.permute.xlu0 %3839
      %v3841 = vlaneseq
      %v3842 = vshrl.u32 %v3841, 7
      %v3843 = vsub.s32 0, %v3842
      %v3844 = vrot.slane %v3840, %v3843
      %3845 = vset.pattern.permute.xlu0 8
      %3846 = vperm.xlu0 %3845, %v94
      %v3847 = vpop.permute.xlu0 %3846
      %v3848 = vlaneseq
      %v3849 = vshrl.u32 %v3848, 7
      %v3850 = vsub.s32 0, %v3849
      %v3851 = vrot.slane %v3847, %v3850
      %3852 = vset.pattern.permute.xlu0 8
      %3853 = vperm.xlu0 %3852, %v108
      %v3854 = vpop.permute.xlu0 %3853
      %v3855 = vlaneseq
      %v3856 = vshrl.u32 %v3855, 7
      %v3857 = vsub.s32 0, %v3856
      %v3858 = vrot.slane %v3854, %v3857
      %3859 = vset.pattern.permute.xlu0 8
      %3860 = vperm.xlu0 %3859, %v110
      %v3861 = vpop.permute.xlu0 %3860
      %v3862 = vlaneseq
      %v3863 = vshrl.u32 %v3862, 7
      %v3864 = vsub.s32 0, %v3863
      %v3865 = vrot.slane %v3861, %v3864
      %3866 = vset.pattern.permute.xlu0 8
      %3867 = vperm.xlu0 %3866, %v112
      %v3868 = vpop.permute.xlu0 %3867
      %v3869 = vlaneseq
      %v3870 = vshrl.u32 %v3869, 7
      %v3871 = vsub.s32 0, %v3870
      %v3872 = vrot.slane %v3868, %v3871
      %3873 = vset.pattern.permute.xlu0 8
      %3874 = vperm.xlu0 %3873, %v136
      %v3875 = vpop.permute.xlu0 %3874
      %v3876 = vlaneseq
      %v3877 = vshrl.u32 %v3876, 7
      %v3878 = vsub.s32 0, %v3877
      %v3879 = vrot.slane %v3875, %v3878
      %3880 = vset.pattern.permute.xlu0 8
      %3881 = vperm.xlu0 %3880, %v150
      %v3882 = vpop.permute.xlu0 %3881
      %v3883 = vlaneseq
      %v3884 = vshrl.u32 %v3883, 7
      %v3885 = vsub.s32 0, %v3884
      %v3886 = vrot.slane %v3882, %v3885
      %3887 = vset.pattern.permute.xlu0 8
      %3888 = vperm.xlu0 %3887, %v158
      %v3889 = vpop.permute.xlu0 %3888
      %v3890 = vlaneseq
      %v3891 = vshrl.u32 %v3890, 7
      %v3892 = vsub.s32 0, %v3891
      %v3893 = vrot.slane %v3889, %v3892
      %3894 = vset.pattern.permute.xlu0 8
      %3895 = vperm.xlu0 %3894, %v160
      %v3896 = vpop.permute.xlu0 %3895
      %v3897 = vlaneseq
      %v3898 = vshrl.u32 %v3897, 7
      %v3899 = vsub.s32 0, %v3898
      %v3900 = vrot.slane %v3896, %v3899
      %3901 = vset.pattern.permute.xlu0 8
      %3902 = vperm.xlu0 %3901, %v143
      %v3903 = vpop.permute.xlu0 %3902
      %v3904 = vlaneseq
      %v3905 = vshrl.u32 %v3904, 7
      %v3906 = vsub.s32 0, %v3905
      %v3907 = vrot.slane %v3903, %v3906
      %3908 = vset.pattern.permute.xlu0 8
      %3909 = vperm.xlu0 %3908, %v157
      %v3910 = vpop.permute.xlu0 %3909
      %v3911 = vlaneseq
      %v3912 = vshrl.u32 %v3911, 7
      %v3913 = vsub.s32 0, %v3912
      %v3914 = vrot.slane %v3910, %v3913
      %3915 = vset.pattern.permute.xlu0 8
      %3916 = vperm.xlu0 %3915, %v159
      %v3917 = vpop.permute.xlu0 %3916
      %v3918 = vlaneseq
      %v3919 = vshrl.u32 %v3918, 7
      %v3920 = vsub.s32 0, %v3919
      %v3921 = vrot.slane %v3917, %v3920
      %3922 = vset.pattern.permute.xlu0 8
      %3923 = vperm.xlu0 %3922, %v161
      %v3924 = vpop.permute.xlu0 %3923
      %v3925 = vlaneseq
      %v3926 = vshrl.u32 %v3925, 7
      %v3927 = vsub.s32 0, %v3926
      %v3928 = vrot.slane %v3924, %v3927
      %vm3929 = vcmp.ge.s32.totalorder %v63, %v3823
      %vm3930 = vcmp.ge.s32.totalorder %v63, %v3830
      %vm3931 = vcmp.ge.s32.totalorder %v63, %v3837
      %vm3932 = vcmp.ge.s32.totalorder %v63, %v3844
      %vm3933 = vcmp.ge.s32.totalorder %v63, %v3851
      %vm3934 = vcmp.ge.s32.totalorder %v63, %v3858
      %vm3935 = vcmp.ge.s32.totalorder %v63, %v3865
      %vm3936 = vcmp.ge.s32.totalorder %v63, %v3872
      %vm3937 = vcmp.ge.s32.totalorder %v63, %v3879
      %vm3938 = vcmp.ge.s32.totalorder %v63, %v3886
      %vm3939 = vcmp.ge.s32.totalorder %v63, %v3893
      %vm3940 = vcmp.ge.s32.totalorder %v63, %v3900
      %vm3941 = vcmp.ge.s32.totalorder %v63, %v3907
      %vm3942 = vcmp.ge.s32.totalorder %v63, %v3914
      %vm3943 = vcmp.ge.s32.totalorder %v63, %v3921
      %vm3944 = vcmp.ge.s32.totalorder %v63, %v3928
      %3945 = vset.pattern.permute.xlu0 12
      %3946 = vperm.xlu0 %3945, %v87
      %v3947 = vpop.permute.xlu0 %3946
      %v3948 = vlaneseq
      %v3949 = vshrl.u32 %v3948, 7
      %v3950 = vsub.s32 0, %v3949
      %v3951 = vrot.slane %v3947, %v3950
      %3952 = vset.pattern.permute.xlu0 12
      %3953 = vperm.xlu0 %3952, %v101
      %v3954 = vpop.permute.xlu0 %3953
      %v3955 = vlaneseq
      %v3956 = vshrl.u32 %v3955, 7
      %v3957 = vsub.s32 0, %v3956
      %v3958 = vrot.slane %v3954, %v3957
      %3959 = vset.pattern.permute.xlu0 12
      %3960 = vperm.xlu0 %3959, %v109
      %v3961 = vpop.permute.xlu0 %3960
      %v3962 = vlaneseq
      %v3963 = vshrl.u32 %v3962, 7
      %v3964 = vsub.s32 0, %v3963
      %v3965 = vrot.slane %v3961, %v3964
      %3966 = vset.pattern.permute.xlu0 12
      %3967 = vperm.xlu0 %3966, %v111
      %v3968 = vpop.permute.xlu0 %3967
      %v3969 = vlaneseq
      %v3970 = vshrl.u32 %v3969, 7
      %v3971 = vsub.s32 0, %v3970
      %v3972 = vrot.slane %v3968, %v3971
      %3973 = vset.pattern.permute.xlu0 12
      %3974 = vperm.xlu0 %3973, %v94
      %v3975 = vpop.permute.xlu0 %3974
      %v3976 = vlaneseq
      %v3977 = vshrl.u32 %v3976, 7
      %v3978 = vsub.s32 0, %v3977
      %v3979 = vrot.slane %v3975, %v3978
      %3980 = vset.pattern.permute.xlu0 12
      %3981 = vperm.xlu0 %3980, %v108
      %v3982 = vpop.permute.xlu0 %3981
      %v3983 = vlaneseq
      %v3984 = vshrl.u32 %v3983, 7
      %v3985 = vsub.s32 0, %v3984
      %v3986 = vrot.slane %v3982, %v3985
      %3987 = vset.pattern.permute.xlu0 12
      %3988 = vperm.xlu0 %3987, %v110
      %v3989 = vpop.permute.xlu0 %3988
      %v3990 = vlaneseq
      %v3991 = vshrl.u32 %v3990, 7
      %v3992 = vsub.s32 0, %v3991
      %v3993 = vrot.slane %v3989, %v3992
      %3994 = vset.pattern.permute.xlu0 12
      %3995 = vperm.xlu0 %3994, %v112
      %v3996 = vpop.permute.xlu0 %3995
      %v3997 = vlaneseq
      %v3998 = vshrl.u32 %v3997, 7
      %v3999 = vsub.s32 0, %v3998
      %v4000 = vrot.slane %v3996, %v3999
      %4001 = vset.pattern.permute.xlu0 12
      %4002 = vperm.xlu0 %4001, %v136
      %v4003 = vpop.permute.xlu0 %4002
      %v4004 = vlaneseq
      %v4005 = vshrl.u32 %v4004, 7
      %v4006 = vsub.s32 0, %v4005
      %v4007 = vrot.slane %v4003, %v4006
      %4008 = vset.pattern.permute.xlu0 12
      %4009 = vperm.xlu0 %4008, %v150
      %v4010 = vpop.permute.xlu0 %4009
      %v4011 = vlaneseq
      %v4012 = vshrl.u32 %v4011, 7
      %v4013 = vsub.s32 0, %v4012
      %v4014 = vrot.slane %v4010, %v4013
      %4015 = vset.pattern.permute.xlu0 12
      %4016 = vperm.xlu0 %4015, %v158
      %v4017 = vpop.permute.xlu0 %4016
      %v4018 = vlaneseq
      %v4019 = vshrl.u32 %v4018, 7
      %v4020 = vsub.s32 0, %v4019
      %v4021 = vrot.slane %v4017, %v4020
      %4022 = vset.pattern.permute.xlu0 12
      %4023 = vperm.xlu0 %4022, %v160
      %v4024 = vpop.permute.xlu0 %4023
      %v4025 = vlaneseq
      %v4026 = vshrl.u32 %v4025, 7
      %v4027 = vsub.s32 0, %v4026
      %v4028 = vrot.slane %v4024, %v4027
      %4029 = vset.pattern.permute.xlu0 12
      %4030 = vperm.xlu0 %4029, %v143
      %v4031 = vpop.permute.xlu0 %4030
      %v4032 = vlaneseq
      %v4033 = vshrl.u32 %v4032, 7
      %v4034 = vsub.s32 0, %v4033
      %v4035 = vrot.slane %v4031, %v4034
      %4036 = vset.pattern.permute.xlu0 12
      %4037 = vperm.xlu0 %4036, %v157
      %v4038 = vpop.permute.xlu0 %4037
      %v4039 = vlaneseq
      %v4040 = vshrl.u32 %v4039, 7
      %v4041 = vsub.s32 0, %v4040
      %v4042 = vrot.slane %v4038, %v4041
      %4043 = vset.pattern.permute.xlu0 12
      %4044 = vperm.xlu0 %4043, %v159
      %v4045 = vpop.permute.xlu0 %4044
      %v4046 = vlaneseq
      %v4047 = vshrl.u32 %v4046, 7
      %v4048 = vsub.s32 0, %v4047
      %v4049 = vrot.slane %v4045, %v4048
      %4050 = vset.pattern.permute.xlu0 12
      %4051 = vperm.xlu0 %4050, %v161
      %v4052 = vpop.permute.xlu0 %4051
      %v4053 = vlaneseq
      %v4054 = vshrl.u32 %v4053, 7
      %v4055 = vsub.s32 0, %v4054
      %v4056 = vrot.slane %v4052, %v4055
      %vm4057 = vcmp.lt.s32.totalorder %v63, %v3951
      %vm4058 = vcmp.lt.s32.totalorder %v63, %v3958
      %vm4059 = vcmp.lt.s32.totalorder %v63, %v3965
      %vm4060 = vcmp.lt.s32.totalorder %v63, %v3972
      %vm4061 = vcmp.lt.s32.totalorder %v63, %v3979
      %vm4062 = vcmp.lt.s32.totalorder %v63, %v3986
      %vm4063 = vcmp.lt.s32.totalorder %v63, %v3993
      %vm4064 = vcmp.lt.s32.totalorder %v63, %v4000
      %vm4065 = vcmp.lt.s32.totalorder %v63, %v4007
      %vm4066 = vcmp.lt.s32.totalorder %v63, %v4014
      %vm4067 = vcmp.lt.s32.totalorder %v63, %v4021
      %vm4068 = vcmp.lt.s32.totalorder %v63, %v4028
      %vm4069 = vcmp.lt.s32.totalorder %v63, %v4035
      %vm4070 = vcmp.lt.s32.totalorder %v63, %v4042
      %vm4071 = vcmp.lt.s32.totalorder %v63, %v4049
      %vm4072 = vcmp.lt.s32.totalorder %v63, %v4056
      %vm4073 = vmand %vm3929, %vm4057
      %vm4074 = vmand %vm3930, %vm4058
      %vm4075 = vmand %vm3931, %vm4059
      %vm4076 = vmand %vm3932, %vm4060
      %vm4077 = vmand %vm3933, %vm4061
      %vm4078 = vmand %vm3934, %vm4062
      %vm4079 = vmand %vm3935, %vm4063
      %vm4080 = vmand %vm3936, %vm4064
      %vm4081 = vmand %vm3937, %vm4065
      %vm4082 = vmand %vm3938, %vm4066
      %vm4083 = vmand %vm3939, %vm4067
      %vm4084 = vmand %vm3940, %vm4068
      %vm4085 = vmand %vm3941, %vm4069
      %vm4086 = vmand %vm3942, %vm4070
      %vm4087 = vmand %vm3943, %vm4071
      %vm4088 = vmand %vm3944, %vm4072
      %4089 = vset.pattern.permute.xlu0 9
      %4090 = vperm.xlu0 %4089, %v87
      %v4091 = vpop.permute.xlu0 %4090
      %v4092 = vlaneseq
      %v4093 = vshrl.u32 %v4092, 7
      %v4094 = vsub.s32 0, %v4093
      %v4095 = vrot.slane %v4091, %v4094
      %4096 = vset.pattern.permute.xlu0 9
      %4097 = vperm.xlu0 %4096, %v101
      %v4098 = vpop.permute.xlu0 %4097
      %v4099 = vlaneseq
      %v4100 = vshrl.u32 %v4099, 7
      %v4101 = vsub.s32 0, %v4100
      %v4102 = vrot.slane %v4098, %v4101
      %4103 = vset.pattern.permute.xlu0 9
      %4104 = vperm.xlu0 %4103, %v109
      %v4105 = vpop.permute.xlu0 %4104
      %v4106 = vlaneseq
      %v4107 = vshrl.u32 %v4106, 7
      %v4108 = vsub.s32 0, %v4107
      %v4109 = vrot.slane %v4105, %v4108
      %4110 = vset.pattern.permute.xlu0 9
      %4111 = vperm.xlu0 %4110, %v111
      %v4112 = vpop.permute.xlu0 %4111
      %v4113 = vlaneseq
      %v4114 = vshrl.u32 %v4113, 7
      %v4115 = vsub.s32 0, %v4114
      %v4116 = vrot.slane %v4112, %v4115
      %4117 = vset.pattern.permute.xlu0 9
      %4118 = vperm.xlu0 %4117, %v94
      %v4119 = vpop.permute.xlu0 %4118
      %v4120 = vlaneseq
      %v4121 = vshrl.u32 %v4120, 7
      %v4122 = vsub.s32 0, %v4121
      %v4123 = vrot.slane %v4119, %v4122
      %4124 = vset.pattern.permute.xlu0 9
      %4125 = vperm.xlu0 %4124, %v108
      %v4126 = vpop.permute.xlu0 %4125
      %v4127 = vlaneseq
      %v4128 = vshrl.u32 %v4127, 7
      %v4129 = vsub.s32 0, %v4128
      %v4130 = vrot.slane %v4126, %v4129
      %4131 = vset.pattern.permute.xlu0 9
      %4132 = vperm.xlu0 %4131, %v110
      %v4133 = vpop.permute.xlu0 %4132
      %v4134 = vlaneseq
      %v4135 = vshrl.u32 %v4134, 7
      %v4136 = vsub.s32 0, %v4135
      %v4137 = vrot.slane %v4133, %v4136
      %4138 = vset.pattern.permute.xlu0 9
      %4139 = vperm.xlu0 %4138, %v112
      %v4140 = vpop.permute.xlu0 %4139
      %v4141 = vlaneseq
      %v4142 = vshrl.u32 %v4141, 7
      %v4143 = vsub.s32 0, %v4142
      %v4144 = vrot.slane %v4140, %v4143
      %4145 = vset.pattern.permute.xlu0 9
      %4146 = vperm.xlu0 %4145, %v136
      %v4147 = vpop.permute.xlu0 %4146
      %v4148 = vlaneseq
      %v4149 = vshrl.u32 %v4148, 7
      %v4150 = vsub.s32 0, %v4149
      %v4151 = vrot.slane %v4147, %v4150
      %4152 = vset.pattern.permute.xlu0 9
      %4153 = vperm.xlu0 %4152, %v150
      %v4154 = vpop.permute.xlu0 %4153
      %v4155 = vlaneseq
      %v4156 = vshrl.u32 %v4155, 7
      %v4157 = vsub.s32 0, %v4156
      %v4158 = vrot.slane %v4154, %v4157
      %4159 = vset.pattern.permute.xlu0 9
      %4160 = vperm.xlu0 %4159, %v158
      %v4161 = vpop.permute.xlu0 %4160
      %v4162 = vlaneseq
      %v4163 = vshrl.u32 %v4162, 7
      %v4164 = vsub.s32 0, %v4163
      %v4165 = vrot.slane %v4161, %v4164
      %4166 = vset.pattern.permute.xlu0 9
      %4167 = vperm.xlu0 %4166, %v160
      %v4168 = vpop.permute.xlu0 %4167
      %v4169 = vlaneseq
      %v4170 = vshrl.u32 %v4169, 7
      %v4171 = vsub.s32 0, %v4170
      %v4172 = vrot.slane %v4168, %v4171
      %4173 = vset.pattern.permute.xlu0 9
      %4174 = vperm.xlu0 %4173, %v143
      %v4175 = vpop.permute.xlu0 %4174
      %v4176 = vlaneseq
      %v4177 = vshrl.u32 %v4176, 7
      %v4178 = vsub.s32 0, %v4177
      %v4179 = vrot.slane %v4175, %v4178
      %4180 = vset.pattern.permute.xlu0 9
      %4181 = vperm.xlu0 %4180, %v157
      %v4182 = vpop.permute.xlu0 %4181
      %v4183 = vlaneseq
      %v4184 = vshrl.u32 %v4183, 7
      %v4185 = vsub.s32 0, %v4184
      %v4186 = vrot.slane %v4182, %v4185
      %4187 = vset.pattern.permute.xlu0 9
      %4188 = vperm.xlu0 %4187, %v159
      %v4189 = vpop.permute.xlu0 %4188
      %v4190 = vlaneseq
      %v4191 = vshrl.u32 %v4190, 7
      %v4192 = vsub.s32 0, %v4191
      %v4193 = vrot.slane %v4189, %v4192
      %4194 = vset.pattern.permute.xlu0 9
      %4195 = vperm.xlu0 %4194, %v161
      %v4196 = vpop.permute.xlu0 %4195
      %v4197 = vlaneseq
      %v4198 = vshrl.u32 %v4197, 7
      %v4199 = vsub.s32 0, %v4198
      %v4200 = vrot.slane %v4196, %v4199
      %vm4201 = vcmp.ge.s32.totalorder %v63, %v4095
      %vm4202 = vcmp.ge.s32.totalorder %v63, %v4102
      %vm4203 = vcmp.ge.s32.totalorder %v63, %v4109
      %vm4204 = vcmp.ge.s32.totalorder %v63, %v4116
      %vm4205 = vcmp.ge.s32.totalorder %v63, %v4123
      %vm4206 = vcmp.ge.s32.totalorder %v63, %v4130
      %vm4207 = vcmp.ge.s32.totalorder %v63, %v4137
      %vm4208 = vcmp.ge.s32.totalorder %v63, %v4144
      %vm4209 = vcmp.ge.s32.totalorder %v63, %v4151
      %vm4210 = vcmp.ge.s32.totalorder %v63, %v4158
      %vm4211 = vcmp.ge.s32.totalorder %v63, %v4165
      %vm4212 = vcmp.ge.s32.totalorder %v63, %v4172
      %vm4213 = vcmp.ge.s32.totalorder %v63, %v4179
      %vm4214 = vcmp.ge.s32.totalorder %v63, %v4186
      %vm4215 = vcmp.ge.s32.totalorder %v63, %v4193
      %vm4216 = vcmp.ge.s32.totalorder %v63, %v4200
      %4217 = vset.pattern.permute.xlu0 13
      %4218 = vperm.xlu0 %4217, %v87
      %v4219 = vpop.permute.xlu0 %4218
      %v4220 = vlaneseq
      %v4221 = vshrl.u32 %v4220, 7
      %v4222 = vsub.s32 0, %v4221
      %v4223 = vrot.slane %v4219, %v4222
      %4224 = vset.pattern.permute.xlu0 13
      %4225 = vperm.xlu0 %4224, %v101
      %v4226 = vpop.permute.xlu0 %4225
      %v4227 = vlaneseq
      %v4228 = vshrl.u32 %v4227, 7
      %v4229 = vsub.s32 0, %v4228
      %v4230 = vrot.slane %v4226, %v4229
      %4231 = vset.pattern.permute.xlu0 13
      %4232 = vperm.xlu0 %4231, %v109
      %v4233 = vpop.permute.xlu0 %4232
      %v4234 = vlaneseq
      %v4235 = vshrl.u32 %v4234, 7
      %v4236 = vsub.s32 0, %v4235
      %v4237 = vrot.slane %v4233, %v4236
      %4238 = vset.pattern.permute.xlu0 13
      %4239 = vperm.xlu0 %4238, %v111
      %v4240 = vpop.permute.xlu0 %4239
      %v4241 = vlaneseq
      %v4242 = vshrl.u32 %v4241, 7
      %v4243 = vsub.s32 0, %v4242
      %v4244 = vrot.slane %v4240, %v4243
      %4245 = vset.pattern.permute.xlu0 13
      %4246 = vperm.xlu0 %4245, %v94
      %v4247 = vpop.permute.xlu0 %4246
      %v4248 = vlaneseq
      %v4249 = vshrl.u32 %v4248, 7
      %v4250 = vsub.s32 0, %v4249
      %v4251 = vrot.slane %v4247, %v4250
      %4252 = vset.pattern.permute.xlu0 13
      %4253 = vperm.xlu0 %4252, %v108
      %v4254 = vpop.permute.xlu0 %4253
      %v4255 = vlaneseq
      %v4256 = vshrl.u32 %v4255, 7
      %v4257 = vsub.s32 0, %v4256
      %v4258 = vrot.slane %v4254, %v4257
      %4259 = vset.pattern.permute.xlu0 13
      %4260 = vperm.xlu0 %4259, %v110
      %v4261 = vpop.permute.xlu0 %4260
      %v4262 = vlaneseq
      %v4263 = vshrl.u32 %v4262, 7
      %v4264 = vsub.s32 0, %v4263
      %v4265 = vrot.slane %v4261, %v4264
      %4266 = vset.pattern.permute.xlu0 13
      %4267 = vperm.xlu0 %4266, %v112
      %v4268 = vpop.permute.xlu0 %4267
      %v4269 = vlaneseq
      %v4270 = vshrl.u32 %v4269, 7
      %v4271 = vsub.s32 0, %v4270
      %v4272 = vrot.slane %v4268, %v4271
      %4273 = vset.pattern.permute.xlu0 13
      %4274 = vperm.xlu0 %4273, %v136
      %v4275 = vpop.permute.xlu0 %4274
      %v4276 = vlaneseq
      %v4277 = vshrl.u32 %v4276, 7
      %v4278 = vsub.s32 0, %v4277
      %v4279 = vrot.slane %v4275, %v4278
      %4280 = vset.pattern.permute.xlu0 13
      %4281 = vperm.xlu0 %4280, %v150
      %v4282 = vpop.permute.xlu0 %4281
      %v4283 = vlaneseq
      %v4284 = vshrl.u32 %v4283, 7
      %v4285 = vsub.s32 0, %v4284
      %v4286 = vrot.slane %v4282, %v4285
      %4287 = vset.pattern.permute.xlu0 13
      %4288 = vperm.xlu0 %4287, %v158
      %v4289 = vpop.permute.xlu0 %4288
      %v4290 = vlaneseq
      %v4291 = vshrl.u32 %v4290, 7
      %v4292 = vsub.s32 0, %v4291
      %v4293 = vrot.slane %v4289, %v4292
      %4294 = vset.pattern.permute.xlu0 13
      %4295 = vperm.xlu0 %4294, %v160
      %v4296 = vpop.permute.xlu0 %4295
      %v4297 = vlaneseq
      %v4298 = vshrl.u32 %v4297, 7
      %v4299 = vsub.s32 0, %v4298
      %v4300 = vrot.slane %v4296, %v4299
      %4301 = vset.pattern.permute.xlu0 13
      %4302 = vperm.xlu0 %4301, %v143
      %v4303 = vpop.permute.xlu0 %4302
      %v4304 = vlaneseq
      %v4305 = vshrl.u32 %v4304, 7
      %v4306 = vsub.s32 0, %v4305
      %v4307 = vrot.slane %v4303, %v4306
      %4308 = vset.pattern.permute.xlu0 13
      %4309 = vperm.xlu0 %4308, %v157
      %v4310 = vpop.permute.xlu0 %4309
      %v4311 = vlaneseq
      %v4312 = vshrl.u32 %v4311, 7
      %v4313 = vsub.s32 0, %v4312
      %v4314 = vrot.slane %v4310, %v4313
      %4315 = vset.pattern.permute.xlu0 13
      %4316 = vperm.xlu0 %4315, %v159
      %v4317 = vpop.permute.xlu0 %4316
      %v4318 = vlaneseq
      %v4319 = vshrl.u32 %v4318, 7
      %v4320 = vsub.s32 0, %v4319
      %v4321 = vrot.slane %v4317, %v4320
      %4322 = vset.pattern.permute.xlu0 13
      %4323 = vperm.xlu0 %4322, %v161
      %v4324 = vpop.permute.xlu0 %4323
      %v4325 = vlaneseq
      %v4326 = vshrl.u32 %v4325, 7
      %v4327 = vsub.s32 0, %v4326
      %v4328 = vrot.slane %v4324, %v4327
      %vm4329 = vcmp.lt.s32.totalorder %v63, %v4223
      %vm4330 = vcmp.lt.s32.totalorder %v63, %v4230
      %vm4331 = vcmp.lt.s32.totalorder %v63, %v4237
      %vm4332 = vcmp.lt.s32.totalorder %v63, %v4244
      %vm4333 = vcmp.lt.s32.totalorder %v63, %v4251
      %vm4334 = vcmp.lt.s32.totalorder %v63, %v4258
      %vm4335 = vcmp.lt.s32.totalorder %v63, %v4265
      %vm4336 = vcmp.lt.s32.totalorder %v63, %v4272
      %vm4337 = vcmp.lt.s32.totalorder %v63, %v4279
      %vm4338 = vcmp.lt.s32.totalorder %v63, %v4286
      %vm4339 = vcmp.lt.s32.totalorder %v63, %v4293
      %vm4340 = vcmp.lt.s32.totalorder %v63, %v4300
      %vm4341 = vcmp.lt.s32.totalorder %v63, %v4307
      %vm4342 = vcmp.lt.s32.totalorder %v63, %v4314
      %vm4343 = vcmp.lt.s32.totalorder %v63, %v4321
      %vm4344 = vcmp.lt.s32.totalorder %v63, %v4328
      %vm4345 = vmand %vm4201, %vm4329
      %vm4346 = vmand %vm4202, %vm4330
      %vm4347 = vmand %vm4203, %vm4331
      %vm4348 = vmand %vm4204, %vm4332
      %vm4349 = vmand %vm4205, %vm4333
      %vm4350 = vmand %vm4206, %vm4334
      %vm4351 = vmand %vm4207, %vm4335
      %vm4352 = vmand %vm4208, %vm4336
      %vm4353 = vmand %vm4209, %vm4337
      %vm4354 = vmand %vm4210, %vm4338
      %vm4355 = vmand %vm4211, %vm4339
      %vm4356 = vmand %vm4212, %vm4340
      %vm4357 = vmand %vm4213, %vm4341
      %vm4358 = vmand %vm4214, %vm4342
      %vm4359 = vmand %vm4215, %vm4343
      %vm4360 = vmand %vm4216, %vm4344
      %4361 = vset.pattern.permute.xlu0 10
      %4362 = vperm.xlu0 %4361, %v87
      %v4363 = vpop.permute.xlu0 %4362
      %v4364 = vlaneseq
      %v4365 = vshrl.u32 %v4364, 7
      %v4366 = vsub.s32 0, %v4365
      %v4367 = vrot.slane %v4363, %v4366
      %4368 = vset.pattern.permute.xlu0 10
      %4369 = vperm.xlu0 %4368, %v101
      %v4370 = vpop.permute.xlu0 %4369
      %v4371 = vlaneseq
      %v4372 = vshrl.u32 %v4371, 7
      %v4373 = vsub.s32 0, %v4372
      %v4374 = vrot.slane %v4370, %v4373
      %4375 = vset.pattern.permute.xlu0 10
      %4376 = vperm.xlu0 %4375, %v109
      %v4377 = vpop.permute.xlu0 %4376
      %v4378 = vlaneseq
      %v4379 = vshrl.u32 %v4378, 7
      %v4380 = vsub.s32 0, %v4379
      %v4381 = vrot.slane %v4377, %v4380
      %4382 = vset.pattern.permute.xlu0 10
      %4383 = vperm.xlu0 %4382, %v111
      %v4384 = vpop.permute.xlu0 %4383
      %v4385 = vlaneseq
      %v4386 = vshrl.u32 %v4385, 7
      %v4387 = vsub.s32 0, %v4386
      %v4388 = vrot.slane %v4384, %v4387
      %4389 = vset.pattern.permute.xlu0 10
      %4390 = vperm.xlu0 %4389, %v94
      %v4391 = vpop.permute.xlu0 %4390
      %v4392 = vlaneseq
      %v4393 = vshrl.u32 %v4392, 7
      %v4394 = vsub.s32 0, %v4393
      %v4395 = vrot.slane %v4391, %v4394
      %4396 = vset.pattern.permute.xlu0 10
      %4397 = vperm.xlu0 %4396, %v108
      %v4398 = vpop.permute.xlu0 %4397
      %v4399 = vlaneseq
      %v4400 = vshrl.u32 %v4399, 7
      %v4401 = vsub.s32 0, %v4400
      %v4402 = vrot.slane %v4398, %v4401
      %4403 = vset.pattern.permute.xlu0 10
      %4404 = vperm.xlu0 %4403, %v110
      %v4405 = vpop.permute.xlu0 %4404
      %v4406 = vlaneseq
      %v4407 = vshrl.u32 %v4406, 7
      %v4408 = vsub.s32 0, %v4407
      %v4409 = vrot.slane %v4405, %v4408
      %4410 = vset.pattern.permute.xlu0 10
      %4411 = vperm.xlu0 %4410, %v112
      %v4412 = vpop.permute.xlu0 %4411
      %v4413 = vlaneseq
      %v4414 = vshrl.u32 %v4413, 7
      %v4415 = vsub.s32 0, %v4414
      %v4416 = vrot.slane %v4412, %v4415
      %4417 = vset.pattern.permute.xlu0 10
      %4418 = vperm.xlu0 %4417, %v136
      %v4419 = vpop.permute.xlu0 %4418
      %v4420 = vlaneseq
      %v4421 = vshrl.u32 %v4420, 7
      %v4422 = vsub.s32 0, %v4421
      %v4423 = vrot.slane %v4419, %v4422
      %4424 = vset.pattern.permute.xlu0 10
      %4425 = vperm.xlu0 %4424, %v150
      %v4426 = vpop.permute.xlu0 %4425
      %v4427 = vlaneseq
      %v4428 = vshrl.u32 %v4427, 7
      %v4429 = vsub.s32 0, %v4428
      %v4430 = vrot.slane %v4426, %v4429
      %4431 = vset.pattern.permute.xlu0 10
      %4432 = vperm.xlu0 %4431, %v158
      %v4433 = vpop.permute.xlu0 %4432
      %v4434 = vlaneseq
      %v4435 = vshrl.u32 %v4434, 7
      %v4436 = vsub.s32 0, %v4435
      %v4437 = vrot.slane %v4433, %v4436
      %4438 = vset.pattern.permute.xlu0 10
      %4439 = vperm.xlu0 %4438, %v160
      %v4440 = vpop.permute.xlu0 %4439
      %v4441 = vlaneseq
      %v4442 = vshrl.u32 %v4441, 7
      %v4443 = vsub.s32 0, %v4442
      %v4444 = vrot.slane %v4440, %v4443
      %4445 = vset.pattern.permute.xlu0 10
      %4446 = vperm.xlu0 %4445, %v143
      %v4447 = vpop.permute.xlu0 %4446
      %v4448 = vlaneseq
      %v4449 = vshrl.u32 %v4448, 7
      %v4450 = vsub.s32 0, %v4449
      %v4451 = vrot.slane %v4447, %v4450
      %4452 = vset.pattern.permute.xlu0 10
      %4453 = vperm.xlu0 %4452, %v157
      %v4454 = vpop.permute.xlu0 %4453
      %v4455 = vlaneseq
      %v4456 = vshrl.u32 %v4455, 7
      %v4457 = vsub.s32 0, %v4456
      %v4458 = vrot.slane %v4454, %v4457
      %4459 = vset.pattern.permute.xlu0 10
      %4460 = vperm.xlu0 %4459, %v159
      %v4461 = vpop.permute.xlu0 %4460
      %v4462 = vlaneseq
      %v4463 = vshrl.u32 %v4462, 7
      %v4464 = vsub.s32 0, %v4463
      %v4465 = vrot.slane %v4461, %v4464
      %4466 = vset.pattern.permute.xlu0 10
      %4467 = vperm.xlu0 %4466, %v161
      %v4468 = vpop.permute.xlu0 %4467
      %v4469 = vlaneseq
      %v4470 = vshrl.u32 %v4469, 7
      %v4471 = vsub.s32 0, %v4470
      %v4472 = vrot.slane %v4468, %v4471
      %vm4473 = vcmp.ge.s32.totalorder %v63, %v4367
      %vm4474 = vcmp.ge.s32.totalorder %v63, %v4374
      %vm4475 = vcmp.ge.s32.totalorder %v63, %v4381
      %vm4476 = vcmp.ge.s32.totalorder %v63, %v4388
      %vm4477 = vcmp.ge.s32.totalorder %v63, %v4395
      %vm4478 = vcmp.ge.s32.totalorder %v63, %v4402
      %vm4479 = vcmp.ge.s32.totalorder %v63, %v4409
      %vm4480 = vcmp.ge.s32.totalorder %v63, %v4416
      %vm4481 = vcmp.ge.s32.totalorder %v63, %v4423
      %vm4482 = vcmp.ge.s32.totalorder %v63, %v4430
      %vm4483 = vcmp.ge.s32.totalorder %v63, %v4437
      %vm4484 = vcmp.ge.s32.totalorder %v63, %v4444
      %vm4485 = vcmp.ge.s32.totalorder %v63, %v4451
      %vm4486 = vcmp.ge.s32.totalorder %v63, %v4458
      %vm4487 = vcmp.ge.s32.totalorder %v63, %v4465
      %vm4488 = vcmp.ge.s32.totalorder %v63, %v4472
      %4489 = vset.pattern.permute.xlu0 14
      %4490 = vperm.xlu0 %4489, %v87
      %v4491 = vpop.permute.xlu0 %4490
      %v4492 = vlaneseq
      %v4493 = vshrl.u32 %v4492, 7
      %v4494 = vsub.s32 0, %v4493
      %v4495 = vrot.slane %v4491, %v4494
      %4496 = vset.pattern.permute.xlu0 14
      %4497 = vperm.xlu0 %4496, %v101
      %v4498 = vpop.permute.xlu0 %4497
      %v4499 = vlaneseq
      %v4500 = vshrl.u32 %v4499, 7
      %v4501 = vsub.s32 0, %v4500
      %v4502 = vrot.slane %v4498, %v4501
      %4503 = vset.pattern.permute.xlu0 14
      %4504 = vperm.xlu0 %4503, %v109
      %v4505 = vpop.permute.xlu0 %4504
      %v4506 = vlaneseq
      %v4507 = vshrl.u32 %v4506, 7
      %v4508 = vsub.s32 0, %v4507
      %v4509 = vrot.slane %v4505, %v4508
      %4510 = vset.pattern.permute.xlu0 14
      %4511 = vperm.xlu0 %4510, %v111
      %v4512 = vpop.permute.xlu0 %4511
      %v4513 = vlaneseq
      %v4514 = vshrl.u32 %v4513, 7
      %v4515 = vsub.s32 0, %v4514
      %v4516 = vrot.slane %v4512, %v4515
      %4517 = vset.pattern.permute.xlu0 14
      %4518 = vperm.xlu0 %4517, %v94
      %v4519 = vpop.permute.xlu0 %4518
      %v4520 = vlaneseq
      %v4521 = vshrl.u32 %v4520, 7
      %v4522 = vsub.s32 0, %v4521
      %v4523 = vrot.slane %v4519, %v4522
      %4524 = vset.pattern.permute.xlu0 14
      %4525 = vperm.xlu0 %4524, %v108
      %v4526 = vpop.permute.xlu0 %4525
      %v4527 = vlaneseq
      %v4528 = vshrl.u32 %v4527, 7
      %v4529 = vsub.s32 0, %v4528
      %v4530 = vrot.slane %v4526, %v4529
      %4531 = vset.pattern.permute.xlu0 14
      %4532 = vperm.xlu0 %4531, %v110
      %v4533 = vpop.permute.xlu0 %4532
      %v4534 = vlaneseq
      %v4535 = vshrl.u32 %v4534, 7
      %v4536 = vsub.s32 0, %v4535
      %v4537 = vrot.slane %v4533, %v4536
      %4538 = vset.pattern.permute.xlu0 14
      %4539 = vperm.xlu0 %4538, %v112
      %v4540 = vpop.permute.xlu0 %4539
      %v4541 = vlaneseq
      %v4542 = vshrl.u32 %v4541, 7
      %v4543 = vsub.s32 0, %v4542
      %v4544 = vrot.slane %v4540, %v4543
      %4545 = vset.pattern.permute.xlu0 14
      %4546 = vperm.xlu0 %4545, %v136
      %v4547 = vpop.permute.xlu0 %4546
      %v4548 = vlaneseq
      %v4549 = vshrl.u32 %v4548, 7
      %v4550 = vsub.s32 0, %v4549
      %v4551 = vrot.slane %v4547, %v4550
      %4552 = vset.pattern.permute.xlu0 14
      %4553 = vperm.xlu0 %4552, %v150
      %v4554 = vpop.permute.xlu0 %4553
      %v4555 = vlaneseq
      %v4556 = vshrl.u32 %v4555, 7
      %v4557 = vsub.s32 0, %v4556
      %v4558 = vrot.slane %v4554, %v4557
      %4559 = vset.pattern.permute.xlu0 14
      %4560 = vperm.xlu0 %4559, %v158
      %v4561 = vpop.permute.xlu0 %4560
      %v4562 = vlaneseq
      %v4563 = vshrl.u32 %v4562, 7
      %v4564 = vsub.s32 0, %v4563
      %v4565 = vrot.slane %v4561, %v4564
      %4566 = vset.pattern.permute.xlu0 14
      %4567 = vperm.xlu0 %4566, %v160
      %v4568 = vpop.permute.xlu0 %4567
      %v4569 = vlaneseq
      %v4570 = vshrl.u32 %v4569, 7
      %v4571 = vsub.s32 0, %v4570
      %v4572 = vrot.slane %v4568, %v4571
      %4573 = vset.pattern.permute.xlu0 14
      %4574 = vperm.xlu0 %4573, %v143
      %v4575 = vpop.permute.xlu0 %4574
      %v4576 = vlaneseq
      %v4577 = vshrl.u32 %v4576, 7
      %v4578 = vsub.s32 0, %v4577
      %v4579 = vrot.slane %v4575, %v4578
      %4580 = vset.pattern.permute.xlu0 14
      %4581 = vperm.xlu0 %4580, %v157
      %v4582 = vpop.permute.xlu0 %4581
      %v4583 = vlaneseq
      %v4584 = vshrl.u32 %v4583, 7
      %v4585 = vsub.s32 0, %v4584
      %v4586 = vrot.slane %v4582, %v4585
      %4587 = vset.pattern.permute.xlu0 14
      %4588 = vperm.xlu0 %4587, %v159
      %v4589 = vpop.permute.xlu0 %4588
      %v4590 = vlaneseq
      %v4591 = vshrl.u32 %v4590, 7
      %v4592 = vsub.s32 0, %v4591
      %v4593 = vrot.slane %v4589, %v4592
      %4594 = vset.pattern.permute.xlu0 14
      %4595 = vperm.xlu0 %4594, %v161
      %v4596 = vpop.permute.xlu0 %4595
      %v4597 = vlaneseq
      %v4598 = vshrl.u32 %v4597, 7
      %v4599 = vsub.s32 0, %v4598
      %v4600 = vrot.slane %v4596, %v4599
      %vm4601 = vcmp.lt.s32.totalorder %v63, %v4495
      %vm4602 = vcmp.lt.s32.totalorder %v63, %v4502
      %vm4603 = vcmp.lt.s32.totalorder %v63, %v4509
      %vm4604 = vcmp.lt.s32.totalorder %v63, %v4516
      %vm4605 = vcmp.lt.s32.totalorder %v63, %v4523
      %vm4606 = vcmp.lt.s32.totalorder %v63, %v4530
      %vm4607 = vcmp.lt.s32.totalorder %v63, %v4537
      %vm4608 = vcmp.lt.s32.totalorder %v63, %v4544
      %vm4609 = vcmp.lt.s32.totalorder %v63, %v4551
      %vm4610 = vcmp.lt.s32.totalorder %v63, %v4558
      %vm4611 = vcmp.lt.s32.totalorder %v63, %v4565
      %vm4612 = vcmp.lt.s32.totalorder %v63, %v4572
      %vm4613 = vcmp.lt.s32.totalorder %v63, %v4579
      %vm4614 = vcmp.lt.s32.totalorder %v63, %v4586
      %vm4615 = vcmp.lt.s32.totalorder %v63, %v4593
      %vm4616 = vcmp.lt.s32.totalorder %v63, %v4600
      %vm4617 = vmand %vm4473, %vm4601
      %vm4618 = vmand %vm4474, %vm4602
      %vm4619 = vmand %vm4475, %vm4603
      %vm4620 = vmand %vm4476, %vm4604
      %vm4621 = vmand %vm4477, %vm4605
      %vm4622 = vmand %vm4478, %vm4606
      %vm4623 = vmand %vm4479, %vm4607
      %vm4624 = vmand %vm4480, %vm4608
      %vm4625 = vmand %vm4481, %vm4609
      %vm4626 = vmand %vm4482, %vm4610
      %vm4627 = vmand %vm4483, %vm4611
      %vm4628 = vmand %vm4484, %vm4612
      %vm4629 = vmand %vm4485, %vm4613
      %vm4630 = vmand %vm4486, %vm4614
      %vm4631 = vmand %vm4487, %vm4615
      %vm4632 = vmand %vm4488, %vm4616
      %4633 = vset.pattern.permute.xlu0 11
      %4634 = vperm.xlu0 %4633, %v87
      %v4635 = vpop.permute.xlu0 %4634
      %v4636 = vlaneseq
      %v4637 = vshrl.u32 %v4636, 7
      %v4638 = vsub.s32 0, %v4637
      %v4639 = vrot.slane %v4635, %v4638
      %4640 = vset.pattern.permute.xlu0 11
      %4641 = vperm.xlu0 %4640, %v101
      %v4642 = vpop.permute.xlu0 %4641
      %v4643 = vlaneseq
      %v4644 = vshrl.u32 %v4643, 7
      %v4645 = vsub.s32 0, %v4644
      %v4646 = vrot.slane %v4642, %v4645
      %4647 = vset.pattern.permute.xlu0 11
      %4648 = vperm.xlu0 %4647, %v109
      %v4649 = vpop.permute.xlu0 %4648
      %v4650 = vlaneseq
      %v4651 = vshrl.u32 %v4650, 7
      %v4652 = vsub.s32 0, %v4651
      %v4653 = vrot.slane %v4649, %v4652
      %4654 = vset.pattern.permute.xlu0 11
      %4655 = vperm.xlu0 %4654, %v111
      %v4656 = vpop.permute.xlu0 %4655
      %v4657 = vlaneseq
      %v4658 = vshrl.u32 %v4657, 7
      %v4659 = vsub.s32 0, %v4658
      %v4660 = vrot.slane %v4656, %v4659
      %4661 = vset.pattern.permute.xlu0 11
      %4662 = vperm.xlu0 %4661, %v94
      %v4663 = vpop.permute.xlu0 %4662
      %v4664 = vlaneseq
      %v4665 = vshrl.u32 %v4664, 7
      %v4666 = vsub.s32 0, %v4665
      %v4667 = vrot.slane %v4663, %v4666
      %4668 = vset.pattern.permute.xlu0 11
      %4669 = vperm.xlu0 %4668, %v108
      %v4670 = vpop.permute.xlu0 %4669
      %v4671 = vlaneseq
      %v4672 = vshrl.u32 %v4671, 7
      %v4673 = vsub.s32 0, %v4672
      %v4674 = vrot.slane %v4670, %v4673
      %4675 = vset.pattern.permute.xlu0 11
      %4676 = vperm.xlu0 %4675, %v110
      %v4677 = vpop.permute.xlu0 %4676
      %v4678 = vlaneseq
      %v4679 = vshrl.u32 %v4678, 7
      %v4680 = vsub.s32 0, %v4679
      %v4681 = vrot.slane %v4677, %v4680
      %4682 = vset.pattern.permute.xlu0 11
      %4683 = vperm.xlu0 %4682, %v112
      %v4684 = vpop.permute.xlu0 %4683
      %v4685 = vlaneseq
      %v4686 = vshrl.u32 %v4685, 7
      %v4687 = vsub.s32 0, %v4686
      %v4688 = vrot.slane %v4684, %v4687
      %4689 = vset.pattern.permute.xlu0 11
      %4690 = vperm.xlu0 %4689, %v136
      %v4691 = vpop.permute.xlu0 %4690
      %v4692 = vlaneseq
      %v4693 = vshrl.u32 %v4692, 7
      %v4694 = vsub.s32 0, %v4693
      %v4695 = vrot.slane %v4691, %v4694
      %4696 = vset.pattern.permute.xlu0 11
      %4697 = vperm.xlu0 %4696, %v150
      %v4698 = vpop.permute.xlu0 %4697
      %v4699 = vlaneseq
      %v4700 = vshrl.u32 %v4699, 7
      %v4701 = vsub.s32 0, %v4700
      %v4702 = vrot.slane %v4698, %v4701
      %4703 = vset.pattern.permute.xlu0 11
      %4704 = vperm.xlu0 %4703, %v158
      %v4705 = vpop.permute.xlu0 %4704
      %v4706 = vlaneseq
      %v4707 = vshrl.u32 %v4706, 7
      %v4708 = vsub.s32 0, %v4707
      %v4709 = vrot.slane %v4705, %v4708
      %4710 = vset.pattern.permute.xlu0 11
      %4711 = vperm.xlu0 %4710, %v160
      %v4712 = vpop.permute.xlu0 %4711
      %v4713 = vlaneseq
      %v4714 = vshrl.u32 %v4713, 7
      %v4715 = vsub.s32 0, %v4714
      %v4716 = vrot.slane %v4712, %v4715
      %4717 = vset.pattern.permute.xlu0 11
      %4718 = vperm.xlu0 %4717, %v143
      %v4719 = vpop.permute.xlu0 %4718
      %v4720 = vlaneseq
      %v4721 = vshrl.u32 %v4720, 7
      %v4722 = vsub.s32 0, %v4721
      %v4723 = vrot.slane %v4719, %v4722
      %4724 = vset.pattern.permute.xlu0 11
      %4725 = vperm.xlu0 %4724, %v157
      %v4726 = vpop.permute.xlu0 %4725
      %v4727 = vlaneseq
      %v4728 = vshrl.u32 %v4727, 7
      %v4729 = vsub.s32 0, %v4728
      %v4730 = vrot.slane %v4726, %v4729
      %4731 = vset.pattern.permute.xlu0 11
      %4732 = vperm.xlu0 %4731, %v159
      %v4733 = vpop.permute.xlu0 %4732
      %v4734 = vlaneseq
      %v4735 = vshrl.u32 %v4734, 7
      %v4736 = vsub.s32 0, %v4735
      %v4737 = vrot.slane %v4733, %v4736
      %4738 = vset.pattern.permute.xlu0 11
      %4739 = vperm.xlu0 %4738, %v161
      %v4740 = vpop.permute.xlu0 %4739
      %v4741 = vlaneseq
      %v4742 = vshrl.u32 %v4741, 7
      %v4743 = vsub.s32 0, %v4742
      %v4744 = vrot.slane %v4740, %v4743
      %vm4745 = vcmp.ge.s32.totalorder %v63, %v4639
      %vm4746 = vcmp.ge.s32.totalorder %v63, %v4646
      %vm4747 = vcmp.ge.s32.totalorder %v63, %v4653
      %vm4748 = vcmp.ge.s32.totalorder %v63, %v4660
      %vm4749 = vcmp.ge.s32.totalorder %v63, %v4667
      %vm4750 = vcmp.ge.s32.totalorder %v63, %v4674
      %vm4751 = vcmp.ge.s32.totalorder %v63, %v4681
      %vm4752 = vcmp.ge.s32.totalorder %v63, %v4688
      %vm4753 = vcmp.ge.s32.totalorder %v63, %v4695
      %vm4754 = vcmp.ge.s32.totalorder %v63, %v4702
      %vm4755 = vcmp.ge.s32.totalorder %v63, %v4709
      %vm4756 = vcmp.ge.s32.totalorder %v63, %v4716
      %vm4757 = vcmp.ge.s32.totalorder %v63, %v4723
      %vm4758 = vcmp.ge.s32.totalorder %v63, %v4730
      %vm4759 = vcmp.ge.s32.totalorder %v63, %v4737
      %vm4760 = vcmp.ge.s32.totalorder %v63, %v4744
      %4761 = vset.pattern.permute.xlu0 15
      %4762 = vperm.xlu0 %4761, %v87
      %v4763 = vpop.permute.xlu0 %4762
      %v4764 = vlaneseq
      %v4765 = vshrl.u32 %v4764, 7
      %v4766 = vsub.s32 0, %v4765
      %v4767 = vrot.slane %v4763, %v4766
      %4768 = vset.pattern.permute.xlu0 15
      %4769 = vperm.xlu0 %4768, %v101
      %v4770 = vpop.permute.xlu0 %4769
      %v4771 = vlaneseq
      %v4772 = vshrl.u32 %v4771, 7
      %v4773 = vsub.s32 0, %v4772
      %v4774 = vrot.slane %v4770, %v4773
      %4775 = vset.pattern.permute.xlu0 15
      %4776 = vperm.xlu0 %4775, %v109
      %v4777 = vpop.permute.xlu0 %4776
      %v4778 = vlaneseq
      %v4779 = vshrl.u32 %v4778, 7
      %v4780 = vsub.s32 0, %v4779
      %v4781 = vrot.slane %v4777, %v4780
      %4782 = vset.pattern.permute.xlu0 15
      %4783 = vperm.xlu0 %4782, %v111
      %v4784 = vpop.permute.xlu0 %4783
      %v4785 = vlaneseq
      %v4786 = vshrl.u32 %v4785, 7
      %v4787 = vsub.s32 0, %v4786
      %v4788 = vrot.slane %v4784, %v4787
      %4789 = vset.pattern.permute.xlu0 15
      %4790 = vperm.xlu0 %4789, %v94
      %v4791 = vpop.permute.xlu0 %4790
      %v4792 = vlaneseq
      %v4793 = vshrl.u32 %v4792, 7
      %v4794 = vsub.s32 0, %v4793
      %v4795 = vrot.slane %v4791, %v4794
      %4796 = vset.pattern.permute.xlu0 15
      %4797 = vperm.xlu0 %4796, %v108
      %v4798 = vpop.permute.xlu0 %4797
      %v4799 = vlaneseq
      %v4800 = vshrl.u32 %v4799, 7
      %v4801 = vsub.s32 0, %v4800
      %v4802 = vrot.slane %v4798, %v4801
      %4803 = vset.pattern.permute.xlu0 15
      %4804 = vperm.xlu0 %4803, %v110
      %v4805 = vpop.permute.xlu0 %4804
      %v4806 = vlaneseq
      %v4807 = vshrl.u32 %v4806, 7
      %v4808 = vsub.s32 0, %v4807
      %v4809 = vrot.slane %v4805, %v4808
      %4810 = vset.pattern.permute.xlu0 15
      %4811 = vperm.xlu0 %4810, %v112
      %v4812 = vpop.permute.xlu0 %4811
      %v4813 = vlaneseq
      %v4814 = vshrl.u32 %v4813, 7
      %v4815 = vsub.s32 0, %v4814
      %v4816 = vrot.slane %v4812, %v4815
      %4817 = vset.pattern.permute.xlu0 15
      %4818 = vperm.xlu0 %4817, %v136
      %v4819 = vpop.permute.xlu0 %4818
      %v4820 = vlaneseq
      %v4821 = vshrl.u32 %v4820, 7
      %v4822 = vsub.s32 0, %v4821
      %v4823 = vrot.slane %v4819, %v4822
      %4824 = vset.pattern.permute.xlu0 15
      %4825 = vperm.xlu0 %4824, %v150
      %v4826 = vpop.permute.xlu0 %4825
      %v4827 = vlaneseq
      %v4828 = vshrl.u32 %v4827, 7
      %v4829 = vsub.s32 0, %v4828
      %v4830 = vrot.slane %v4826, %v4829
      %4831 = vset.pattern.permute.xlu0 15
      %4832 = vperm.xlu0 %4831, %v158
      %v4833 = vpop.permute.xlu0 %4832
      %v4834 = vlaneseq
      %v4835 = vshrl.u32 %v4834, 7
      %v4836 = vsub.s32 0, %v4835
      %v4837 = vrot.slane %v4833, %v4836
      %4838 = vset.pattern.permute.xlu0 15
      %4839 = vperm.xlu0 %4838, %v160
      %v4840 = vpop.permute.xlu0 %4839
      %v4841 = vlaneseq
      %v4842 = vshrl.u32 %v4841, 7
      %v4843 = vsub.s32 0, %v4842
      %v4844 = vrot.slane %v4840, %v4843
      %4845 = vset.pattern.permute.xlu0 15
      %4846 = vperm.xlu0 %4845, %v143
      %v4847 = vpop.permute.xlu0 %4846
      %v4848 = vlaneseq
      %v4849 = vshrl.u32 %v4848, 7
      %v4850 = vsub.s32 0, %v4849
      %v4851 = vrot.slane %v4847, %v4850
      %4852 = vset.pattern.permute.xlu0 15
      %4853 = vperm.xlu0 %4852, %v157
      %v4854 = vpop.permute.xlu0 %4853
      %v4855 = vlaneseq
      %v4856 = vshrl.u32 %v4855, 7
      %v4857 = vsub.s32 0, %v4856
      %v4858 = vrot.slane %v4854, %v4857
      %4859 = vset.pattern.permute.xlu0 15
      %4860 = vperm.xlu0 %4859, %v159
      %v4861 = vpop.permute.xlu0 %4860
      %v4862 = vlaneseq
      %v4863 = vshrl.u32 %v4862, 7
      %v4864 = vsub.s32 0, %v4863
      %v4865 = vrot.slane %v4861, %v4864
      %4866 = vset.pattern.permute.xlu0 15
      %4867 = vperm.xlu0 %4866, %v161
      %v4868 = vpop.permute.xlu0 %4867
      %v4869 = vlaneseq
      %v4870 = vshrl.u32 %v4869, 7
      %v4871 = vsub.s32 0, %v4870
      %v4872 = vrot.slane %v4868, %v4871
      %vm4873 = vcmp.lt.s32.totalorder %v63, %v4767
      %vm4874 = vcmp.lt.s32.totalorder %v63, %v4774
      %vm4875 = vcmp.lt.s32.totalorder %v63, %v4781
      %vm4876 = vcmp.lt.s32.totalorder %v63, %v4788
      %vm4877 = vcmp.lt.s32.totalorder %v63, %v4795
      %vm4878 = vcmp.lt.s32.totalorder %v63, %v4802
      %vm4879 = vcmp.lt.s32.totalorder %v63, %v4809
      %vm4880 = vcmp.lt.s32.totalorder %v63, %v4816
      %vm4881 = vcmp.lt.s32.totalorder %v63, %v4823
      %vm4882 = vcmp.lt.s32.totalorder %v63, %v4830
      %vm4883 = vcmp.lt.s32.totalorder %v63, %v4837
      %vm4884 = vcmp.lt.s32.totalorder %v63, %v4844
      %vm4885 = vcmp.lt.s32.totalorder %v63, %v4851
      %vm4886 = vcmp.lt.s32.totalorder %v63, %v4858
      %vm4887 = vcmp.lt.s32.totalorder %v63, %v4865
      %vm4888 = vcmp.lt.s32.totalorder %v63, %v4872
      %vm4889 = vmand %vm4745, %vm4873
      %vm4890 = vmand %vm4746, %vm4874
      %vm4891 = vmand %vm4747, %vm4875
      %vm4892 = vmand %vm4748, %vm4876
      %vm4893 = vmand %vm4749, %vm4877
      %vm4894 = vmand %vm4750, %vm4878
      %vm4895 = vmand %vm4751, %vm4879
      %vm4896 = vmand %vm4752, %vm4880
      %vm4897 = vmand %vm4753, %vm4881
      %vm4898 = vmand %vm4754, %vm4882
      %vm4899 = vmand %vm4755, %vm4883
      %vm4900 = vmand %vm4756, %vm4884
      %vm4901 = vmand %vm4757, %vm4885
      %vm4902 = vmand %vm4758, %vm4886
      %vm4903 = vmand %vm4759, %vm4887
      %vm4904 = vmand %vm4760, %vm4888
      %v4905 = vsel %vm4073, 1, 0
      %v4906 = vsel %vm4074, 1, 0
      %v4907 = vsel %vm4075, 1, 0
      %v4908 = vsel %vm4076, 1, 0
      %v4909 = vsel %vm4077, 1, 0
      %v4910 = vsel %vm4078, 1, 0
      %v4911 = vsel %vm4079, 1, 0
      %v4912 = vsel %vm4080, 1, 0
      %v4913 = vsel %vm4081, 1, 0
      %v4914 = vsel %vm4082, 1, 0
      %v4915 = vsel %vm4083, 1, 0
      %v4916 = vsel %vm4084, 1, 0
      %v4917 = vsel %vm4085, 1, 0
      %v4918 = vsel %vm4086, 1, 0
      %v4919 = vsel %vm4087, 1, 0
      %v4920 = vsel %vm4088, 1, 0
      %vm4921 = vcmp.eq.s32.totalorder %v4905, 1
      %vm4922 = vcmp.eq.s32.totalorder %v4906, 1
      %vm4923 = vcmp.eq.s32.totalorder %v4907, 1
      %vm4924 = vcmp.eq.s32.totalorder %v4908, 1
      %vm4925 = vcmp.eq.s32.totalorder %v4909, 1
      %vm4926 = vcmp.eq.s32.totalorder %v4910, 1
      %vm4927 = vcmp.eq.s32.totalorder %v4911, 1
      %vm4928 = vcmp.eq.s32.totalorder %v4912, 1
      %vm4929 = vcmp.eq.s32.totalorder %v4913, 1
      %vm4930 = vcmp.eq.s32.totalorder %v4914, 1
      %vm4931 = vcmp.eq.s32.totalorder %v4915, 1
      %vm4932 = vcmp.eq.s32.totalorder %v4916, 1
      %vm4933 = vcmp.eq.s32.totalorder %v4917, 1
      %vm4934 = vcmp.eq.s32.totalorder %v4918, 1
      %vm4935 = vcmp.eq.s32.totalorder %v4919, 1
      %vm4936 = vcmp.eq.s32.totalorder %v4920, 1
      %vm5001 = vcmask 1041409
      %v5002 = vsel %vm5001, %v756, %v747
      %vm5003 = vcmask 1042434
      %v5004 = vsel %vm5003, %v765, %v5002
      %vm5005 = vcmask 1043459
      %v5006 = vsel %vm5005, %v774, %v5004
      %v5007 = vsel %vm5001, %v792, %v783
      %v5008 = vsel %vm5003, %v801, %v5007
      %v5009 = vsel %vm5005, %v810, %v5008
      %v5010 = vsel %vm5001, %v828, %v819
      %v5011 = vsel %vm5003, %v837, %v5010
      %v5012 = vsel %vm5005, %v846, %v5011
      %v5013 = vsel %vm5001, %v864, %v855
      %v5014 = vsel %vm5003, %v873, %v5013
      %v5015 = vsel %vm5005, %v882, %v5014
      %v5016 = vsel %vm5001, %v900, %v891
      %v5017 = vsel %vm5003, %v909, %v5016
      %v5018 = vsel %vm5005, %v918, %v5017
      %v5019 = vsel %vm5001, %v936, %v927
      %v5020 = vsel %vm5003, %v945, %v5019
      %v5021 = vsel %vm5005, %v954, %v5020
      %v5022 = vsel %vm5001, %v972, %v963
      %v5023 = vsel %vm5003, %v981, %v5022
      %v5024 = vsel %vm5005, %v990, %v5023
      %v5025 = vsel %vm5001, %v1008, %v999
      %v5026 = vsel %vm5003, %v1017, %v5025
      %v5027 = vsel %vm5005, %v1026, %v5026
      %v5028 = vsel %vm5001, %v1044, %v1035
      %v5029 = vsel %vm5003, %v1053, %v5028
      %v5030 = vsel %vm5005, %v1062, %v5029
      %v5031 = vsel %vm5001, %v1080, %v1071
      %v5032 = vsel %vm5003, %v1089, %v5031
      %v5033 = vsel %vm5005, %v1098, %v5032
      %v5034 = vsel %vm5001, %v1116, %v1107
      %v5035 = vsel %vm5003, %v1125, %v5034
      %v5036 = vsel %vm5005, %v1134, %v5035
      %v5037 = vsel %vm5001, %v1152, %v1143
      %v5038 = vsel %vm5003, %v1161, %v5037
      %v5039 = vsel %vm5005, %v1170, %v5038
      %v5040 = vsel %vm5001, %v1188, %v1179
      %v5041 = vsel %vm5003, %v1197, %v5040
      %v5042 = vsel %vm5005, %v1206, %v5041
      %v5043 = vsel %vm5001, %v1224, %v1215
      %v5044 = vsel %vm5003, %v1233, %v5043
      %v5045 = vsel %vm5005, %v1242, %v5044
      %v5046 = vsel %vm5001, %v1260, %v1251
      %v5047 = vsel %vm5003, %v1269, %v5046
      %v5048 = vsel %vm5005, %v1278, %v5047
      %v5049 = vsel %vm5001, %v1296, %v1287
      %v5050 = vsel %vm5003, %v1305, %v5049
      %v5051 = vsel %vm5005, %v1314, %v5050
      %v5068 = vsel %vm4921, %v5006, -inf
      %v5069 = vsel %vm4922, %v5009, -inf
      %v5070 = vsel %vm4923, %v5012, -inf
      %v5071 = vsel %vm4924, %v5015, -inf
      %v5072 = vsel %vm4925, %v5018, -inf
      %v5073 = vsel %vm4926, %v5021, -inf
      %v5074 = vsel %vm4927, %v5024, -inf
      %v5075 = vsel %vm4928, %v5027, -inf
      %v5076 = vsel %vm4929, %v5030, -inf
      %v5077 = vsel %vm4930, %v5033, -inf
      %v5078 = vsel %vm4931, %v5036, -inf
      %v5079 = vsel %vm4932, %v5039, -inf
      %v5080 = vsel %vm4933, %v5042, -inf
      %v5081 = vsel %vm4934, %v5045, -inf
      %v5082 = vsel %vm4935, %v5048, -inf
      %v5083 = vsel %vm4936, %v5051, -inf
      %vm5084 = vcmask 125952
      %v5085 = vsel %vm5084, %v5068, -inf
      %5086 = vmax.xlane.f32.xlu0 %v5085
      %v5087 = vpop.xlane.xlu0 %5086
      %v5088 = vsel %vm5084, %v5069, -inf
      %5089 = vmax.xlane.f32.xlu0 %v5088
      %v5090 = vpop.xlane.xlu0 %5089
      %v5091 = vsel %vm5084, %v5070, -inf
      %5092 = vmax.xlane.f32.xlu0 %v5091
      %v5093 = vpop.xlane.xlu0 %5092
      %v5094 = vsel %vm5084, %v5071, -inf
      %5095 = vmax.xlane.f32.xlu0 %v5094
      %v5096 = vpop.xlane.xlu0 %5095
      %v5097 = vsel %vm5084, %v5072, -inf
      %5098 = vmax.xlane.f32.xlu0 %v5097
      %v5099 = vpop.xlane.xlu0 %5098
      %v5100 = vsel %vm5084, %v5073, -inf
      %5101 = vmax.xlane.f32.xlu0 %v5100
      %v5102 = vpop.xlane.xlu0 %5101
      %v5103 = vsel %vm5084, %v5074, -inf
      %5104 = vmax.xlane.f32.xlu0 %v5103
      %v5105 = vpop.xlane.xlu0 %5104
      %v5106 = vsel %vm5084, %v5075, -inf
      %5107 = vmax.xlane.f32.xlu0 %v5106
      %v5108 = vpop.xlane.xlu0 %5107
      %v5109 = vsel %vm5084, %v5076, -inf
      %5110 = vmax.xlane.f32.xlu0 %v5109
      %v5111 = vpop.xlane.xlu0 %5110
      %v5112 = vsel %vm5084, %v5077, -inf
      %5113 = vmax.xlane.f32.xlu0 %v5112
      %v5114 = vpop.xlane.xlu0 %5113
      %v5115 = vsel %vm5084, %v5078, -inf
      %5116 = vmax.xlane.f32.xlu0 %v5115
      %v5117 = vpop.xlane.xlu0 %5116
      %v5118 = vsel %vm5084, %v5079, -inf
      %5119 = vmax.xlane.f32.xlu0 %v5118
      %v5120 = vpop.xlane.xlu0 %5119
      %v5121 = vsel %vm5084, %v5080, -inf
      %5122 = vmax.xlane.f32.xlu0 %v5121
      %v5123 = vpop.xlane.xlu0 %5122
      %v5124 = vsel %vm5084, %v5081, -inf
      %5125 = vmax.xlane.f32.xlu0 %v5124
      %v5126 = vpop.xlane.xlu0 %5125
      %v5127 = vsel %vm5084, %v5082, -inf
      %5128 = vmax.xlane.f32.xlu0 %v5127
      %v5129 = vpop.xlane.xlu0 %5128
      %v5130 = vsel %vm5084, %v5083, -inf
      %5131 = vmax.xlane.f32.xlu0 %v5130
      %v5132 = vpop.xlane.xlu0 %5131
      %v5133 = vsel %vm1319, 1, 0
      %v5134 = vsel %vm1320, 1, 0
      %5135 = vrot.lane.b32.xlu0 %v5133, 120
      %v5136 = vpop.permute.xlu0 %5135
      %5137 = vrot.lane.b32.xlu0 %v5134, 120
      %v5138 = vpop.permute.xlu0 %5137
      %vm5139 = vcmp.ne.s32.totalorder %v5136, 0
      %vm5140 = vcmp.ne.s32.totalorder %v5138, 0
      %vm5141 = vmor %vm1319, %vm5139
      %vm5142 = vmor %vm1320, %vm5140
      %v5143 = vsel %vm5141, 1, 0
      %v5144 = vsel %vm5142, 1, 0
      %5145 = vset.pattern.permute.xlu0 4
      %5146 = vperm.xlu0 %5145, %v5143
      %v5147 = vpop.permute.xlu0 %5146
      %5148 = vset.pattern.permute.xlu0 4
      %5149 = vperm.xlu0 %5148, %v5144
      %v5150 = vpop.permute.xlu0 %5149
      %vm5151 = vcmp.eq.s32.totalorder %v5147, 1
      %vm5152 = vcmp.eq.s32.totalorder %v5150, 1
      %v5169 = vlaneseq
      %v5170 = vshrl.u32 %v5169, 7
      %v5171 = vsub.s32 %v63, %v5170
      %v5172 = vrot.slane %v5087, %v5171
      %v5173 = vlaneseq
      %v5174 = vshrl.u32 %v5173, 7
      %v5175 = vsub.s32 %v63, %v5174
      %v5176 = vrot.slane %v5090, %v5175
      %v5177 = vlaneseq
      %v5178 = vshrl.u32 %v5177, 7
      %v5179 = vsub.s32 %v63, %v5178
      %v5180 = vrot.slane %v5093, %v5179
      %v5181 = vlaneseq
      %v5182 = vshrl.u32 %v5181, 7
      %v5183 = vsub.s32 %v63, %v5182
      %v5184 = vrot.slane %v5096, %v5183
      %v5185 = vlaneseq
      %v5186 = vshrl.u32 %v5185, 7
      %v5187 = vsub.s32 %v63, %v5186
      %v5188 = vrot.slane %v5099, %v5187
      %v5189 = vlaneseq
      %v5190 = vshrl.u32 %v5189, 7
      %v5191 = vsub.s32 %v63, %v5190
      %v5192 = vrot.slane %v5102, %v5191
      %v5193 = vlaneseq
      %v5194 = vshrl.u32 %v5193, 7
      %v5195 = vsub.s32 %v63, %v5194
      %v5196 = vrot.slane %v5105, %v5195
      %v5197 = vlaneseq
      %v5198 = vshrl.u32 %v5197, 7
      %v5199 = vsub.s32 %v63, %v5198
      %v5200 = vrot.slane %v5108, %v5199
      %v5201 = vlaneseq
      %v5202 = vshrl.u32 %v5201, 7
      %v5203 = vsub.s32 %v63, %v5202
      %v5204 = vrot.slane %v5111, %v5203
      %v5205 = vlaneseq
      %v5206 = vshrl.u32 %v5205, 7
      %v5207 = vsub.s32 %v63, %v5206
      %v5208 = vrot.slane %v5114, %v5207
      %v5209 = vlaneseq
      %v5210 = vshrl.u32 %v5209, 7
      %v5211 = vsub.s32 %v63, %v5210
      %v5212 = vrot.slane %v5117, %v5211
      %v5213 = vlaneseq
      %v5214 = vshrl.u32 %v5213, 7
      %v5215 = vsub.s32 %v63, %v5214
      %v5216 = vrot.slane %v5120, %v5215
      %v5217 = vlaneseq
      %v5218 = vshrl.u32 %v5217, 7
      %v5219 = vsub.s32 %v63, %v5218
      %v5220 = vrot.slane %v5123, %v5219
      %v5221 = vlaneseq
      %v5222 = vshrl.u32 %v5221, 7
      %v5223 = vsub.s32 %v63, %v5222
      %v5224 = vrot.slane %v5126, %v5223
      %v5225 = vlaneseq
      %v5226 = vshrl.u32 %v5225, 7
      %v5227 = vsub.s32 %v63, %v5226
      %v5228 = vrot.slane %v5129, %v5227
      %v5229 = vlaneseq
      %v5230 = vshrl.u32 %v5229, 7
      %v5231 = vsub.s32 %v63, %v5230
      %v5232 = vrot.slane %v5132, %v5231
      %v5233 = vsel %vm5001, %v5176, %v5172
      %v5234 = vsel %vm5003, %v5180, %v5233
      %v5235 = vsel %vm5005, %v5184, %v5234
      %vm5236 = vcmask 1044484
      %v5237 = vsel %vm5236, %v5188, %v5235
      %vm5238 = vcmask 1045509
      %v5239 = vsel %vm5238, %v5192, %v5237
      %vm5240 = vcmask 1046534
      %v5241 = vsel %vm5240, %v5196, %v5239
      %vm5242 = vcmask 1047559
      %v5243 = vsel %vm5242, %v5200, %v5241
      %v5244 = vsel %vm5001, %v5208, %v5204
      %v5245 = vsel %vm5003, %v5212, %v5244
      %v5246 = vsel %vm5005, %v5216, %v5245
      %v5247 = vsel %vm5236, %v5220, %v5246
      %v5248 = vsel %vm5238, %v5224, %v5247
      %v5249 = vsel %vm5240, %v5228, %v5248
      %v5250 = vsel %vm5242, %v5232, %v5249
      %v5253 = vsel %vm5151, 0.0, %v5243
      %v5254 = vsel %vm5152, 0.0, %v5250
      %v5255 = vsel %vm4345, 1, 0
      %v5256 = vsel %vm4346, 1, 0
      %v5257 = vsel %vm4347, 1, 0
      %v5258 = vsel %vm4348, 1, 0
      %v5259 = vsel %vm4349, 1, 0
      %v5260 = vsel %vm4350, 1, 0
      %v5261 = vsel %vm4351, 1, 0
      %v5262 = vsel %vm4352, 1, 0
      %v5263 = vsel %vm4353, 1, 0
      %v5264 = vsel %vm4354, 1, 0
      %v5265 = vsel %vm4355, 1, 0
      %v5266 = vsel %vm4356, 1, 0
      %v5267 = vsel %vm4357, 1, 0
      %v5268 = vsel %vm4358, 1, 0
      %v5269 = vsel %vm4359, 1, 0
      %v5270 = vsel %vm4360, 1, 0
      %vm5271 = vcmp.eq.s32.totalorder %v5255, 1
      %vm5272 = vcmp.eq.s32.totalorder %v5256, 1
      %vm5273 = vcmp.eq.s32.totalorder %v5257, 1
      %vm5274 = vcmp.eq.s32.totalorder %v5258, 1
      %vm5275 = vcmp.eq.s32.totalorder %v5259, 1
      %vm5276 = vcmp.eq.s32.totalorder %v5260, 1
      %vm5277 = vcmp.eq.s32.totalorder %v5261, 1
      %vm5278 = vcmp.eq.s32.totalorder %v5262, 1
      %vm5279 = vcmp.eq.s32.totalorder %v5263, 1
      %vm5280 = vcmp.eq.s32.totalorder %v5264, 1
      %vm5281 = vcmp.eq.s32.totalorder %v5265, 1
      %vm5282 = vcmp.eq.s32.totalorder %v5266, 1
      %vm5283 = vcmp.eq.s32.totalorder %v5267, 1
      %vm5284 = vcmp.eq.s32.totalorder %v5268, 1
      %vm5285 = vcmp.eq.s32.totalorder %v5269, 1
      %vm5286 = vcmp.eq.s32.totalorder %v5270, 1
      %v5287 = vsel %vm5271, %v5006, -inf
      %v5288 = vsel %vm5272, %v5009, -inf
      %v5289 = vsel %vm5273, %v5012, -inf
      %v5290 = vsel %vm5274, %v5015, -inf
      %v5291 = vsel %vm5275, %v5018, -inf
      %v5292 = vsel %vm5276, %v5021, -inf
      %v5293 = vsel %vm5277, %v5024, -inf
      %v5294 = vsel %vm5278, %v5027, -inf
      %v5295 = vsel %vm5279, %v5030, -inf
      %v5296 = vsel %vm5280, %v5033, -inf
      %v5297 = vsel %vm5281, %v5036, -inf
      %v5298 = vsel %vm5282, %v5039, -inf
      %v5299 = vsel %vm5283, %v5042, -inf
      %v5300 = vsel %vm5284, %v5045, -inf
      %v5301 = vsel %vm5285, %v5048, -inf
      %v5302 = vsel %vm5286, %v5051, -inf
      %v5303 = vsel %vm5084, %v5287, -inf
      %5304 = vmax.xlane.f32.xlu0 %v5303
      %v5305 = vpop.xlane.xlu0 %5304
      %v5306 = vsel %vm5084, %v5288, -inf
      %5307 = vmax.xlane.f32.xlu0 %v5306
      %v5308 = vpop.xlane.xlu0 %5307
      %v5309 = vsel %vm5084, %v5289, -inf
      %5310 = vmax.xlane.f32.xlu0 %v5309
      %v5311 = vpop.xlane.xlu0 %5310
      %v5312 = vsel %vm5084, %v5290, -inf
      %5313 = vmax.xlane.f32.xlu0 %v5312
      %v5314 = vpop.xlane.xlu0 %5313
      %v5315 = vsel %vm5084, %v5291, -inf
      %5316 = vmax.xlane.f32.xlu0 %v5315
      %v5317 = vpop.xlane.xlu0 %5316
      %v5318 = vsel %vm5084, %v5292, -inf
      %5319 = vmax.xlane.f32.xlu0 %v5318
      %v5320 = vpop.xlane.xlu0 %5319
      %v5321 = vsel %vm5084, %v5293, -inf
      %5322 = vmax.xlane.f32.xlu0 %v5321
      %v5323 = vpop.xlane.xlu0 %5322
      %v5324 = vsel %vm5084, %v5294, -inf
      %5325 = vmax.xlane.f32.xlu0 %v5324
      %v5326 = vpop.xlane.xlu0 %5325
      %v5327 = vsel %vm5084, %v5295, -inf
      %5328 = vmax.xlane.f32.xlu0 %v5327
      %v5329 = vpop.xlane.xlu0 %5328
      %v5330 = vsel %vm5084, %v5296, -inf
      %5331 = vmax.xlane.f32.xlu0 %v5330
      %v5332 = vpop.xlane.xlu0 %5331
      %v5333 = vsel %vm5084, %v5297, -inf
      %5334 = vmax.xlane.f32.xlu0 %v5333
      %v5335 = vpop.xlane.xlu0 %5334
      %v5336 = vsel %vm5084, %v5298, -inf
      %5337 = vmax.xlane.f32.xlu0 %v5336
      %v5338 = vpop.xlane.xlu0 %5337
      %v5339 = vsel %vm5084, %v5299, -inf
      %5340 = vmax.xlane.f32.xlu0 %v5339
      %v5341 = vpop.xlane.xlu0 %5340
      %v5342 = vsel %vm5084, %v5300, -inf
      %5343 = vmax.xlane.f32.xlu0 %v5342
      %v5344 = vpop.xlane.xlu0 %5343
      %v5345 = vsel %vm5084, %v5301, -inf
      %5346 = vmax.xlane.f32.xlu0 %v5345
      %v5347 = vpop.xlane.xlu0 %5346
      %v5348 = vsel %vm5084, %v5302, -inf
      %5349 = vmax.xlane.f32.xlu0 %v5348
      %v5350 = vpop.xlane.xlu0 %5349
      %5351 = vrot.lane.b32.xlu0 %v5133, 119
      %v5352 = vpop.permute.xlu0 %5351
      %5353 = vrot.lane.b32.xlu0 %v5134, 119
      %v5354 = vpop.permute.xlu0 %5353
      %vm5355 = vcmp.ne.s32.totalorder %v5352, 0
      %vm5356 = vcmp.ne.s32.totalorder %v5354, 0
      %vm5357 = vmor %vm1319, %vm5355
      %vm5358 = vmor %vm1320, %vm5356
      %v5359 = vsel %vm5357, 1, 0
      %v5360 = vsel %vm5358, 1, 0
      %5361 = vset.pattern.permute.xlu0 4
      %5362 = vperm.xlu0 %5361, %v5359
      %v5363 = vpop.permute.xlu0 %5362
      %5364 = vset.pattern.permute.xlu0 4
      %5365 = vperm.xlu0 %5364, %v5360
      %v5366 = vpop.permute.xlu0 %5365
      %vm5367 = vcmp.eq.s32.totalorder %v5363, 1
      %vm5368 = vcmp.eq.s32.totalorder %v5366, 1
      %v5385 = vlaneseq
      %v5386 = vshrl.u32 %v5385, 7
      %v5387 = vsub.s32 %v63, %v5386
      %v5388 = vrot.slane %v5305, %v5387
      %v5389 = vlaneseq
      %v5390 = vshrl.u32 %v5389, 7
      %v5391 = vsub.s32 %v63, %v5390
      %v5392 = vrot.slane %v5308, %v5391
      %v5393 = vlaneseq
      %v5394 = vshrl.u32 %v5393, 7
      %v5395 = vsub.s32 %v63, %v5394
      %v5396 = vrot.slane %v5311, %v5395
      %v5397 = vlaneseq
      %v5398 = vshrl.u32 %v5397, 7
      %v5399 = vsub.s32 %v63, %v5398
      %v5400 = vrot.slane %v5314, %v5399
      %v5401 = vlaneseq
      %v5402 = vshrl.u32 %v5401, 7
      %v5403 = vsub.s32 %v63, %v5402
      %v5404 = vrot.slane %v5317, %v5403
      %v5405 = vlaneseq
      %v5406 = vshrl.u32 %v5405, 7
      %v5407 = vsub.s32 %v63, %v5406
      %v5408 = vrot.slane %v5320, %v5407
      %v5409 = vlaneseq
      %v5410 = vshrl.u32 %v5409, 7
      %v5411 = vsub.s32 %v63, %v5410
      %v5412 = vrot.slane %v5323, %v5411
      %v5413 = vlaneseq
      %v5414 = vshrl.u32 %v5413, 7
      %v5415 = vsub.s32 %v63, %v5414
      %v5416 = vrot.slane %v5326, %v5415
      %v5417 = vlaneseq
      %v5418 = vshrl.u32 %v5417, 7
      %v5419 = vsub.s32 %v63, %v5418
      %v5420 = vrot.slane %v5329, %v5419
      %v5421 = vlaneseq
      %v5422 = vshrl.u32 %v5421, 7
      %v5423 = vsub.s32 %v63, %v5422
      %v5424 = vrot.slane %v5332, %v5423
      %v5425 = vlaneseq
      %v5426 = vshrl.u32 %v5425, 7
      %v5427 = vsub.s32 %v63, %v5426
      %v5428 = vrot.slane %v5335, %v5427
      %v5429 = vlaneseq
      %v5430 = vshrl.u32 %v5429, 7
      %v5431 = vsub.s32 %v63, %v5430
      %v5432 = vrot.slane %v5338, %v5431
      %v5433 = vlaneseq
      %v5434 = vshrl.u32 %v5433, 7
      %v5435 = vsub.s32 %v63, %v5434
      %v5436 = vrot.slane %v5341, %v5435
      %v5437 = vlaneseq
      %v5438 = vshrl.u32 %v5437, 7
      %v5439 = vsub.s32 %v63, %v5438
      %v5440 = vrot.slane %v5344, %v5439
      %v5441 = vlaneseq
      %v5442 = vshrl.u32 %v5441, 7
      %v5443 = vsub.s32 %v63, %v5442
      %v5444 = vrot.slane %v5347, %v5443
      %v5445 = vlaneseq
      %v5446 = vshrl.u32 %v5445, 7
      %v5447 = vsub.s32 %v63, %v5446
      %v5448 = vrot.slane %v5350, %v5447
      %v5449 = vsel %vm5001, %v5392, %v5388
      %v5450 = vsel %vm5003, %v5396, %v5449
      %v5451 = vsel %vm5005, %v5400, %v5450
      %v5452 = vsel %vm5236, %v5404, %v5451
      %v5453 = vsel %vm5238, %v5408, %v5452
      %v5454 = vsel %vm5240, %v5412, %v5453
      %v5455 = vsel %vm5242, %v5416, %v5454
      %v5456 = vsel %vm5001, %v5424, %v5420
      %v5457 = vsel %vm5003, %v5428, %v5456
      %v5458 = vsel %vm5005, %v5432, %v5457
      %v5459 = vsel %vm5236, %v5436, %v5458
      %v5460 = vsel %vm5238, %v5440, %v5459
      %v5461 = vsel %vm5240, %v5444, %v5460
      %v5462 = vsel %vm5242, %v5448, %v5461
      %v5465 = vsel %vm5367, 0.0, %v5455
      %v5466 = vsel %vm5368, 0.0, %v5462
      %v5467 = vsel %vm4617, 1, 0
      %v5468 = vsel %vm4618, 1, 0
      %v5469 = vsel %vm4619, 1, 0
      %v5470 = vsel %vm4620, 1, 0
      %v5471 = vsel %vm4621, 1, 0
      %v5472 = vsel %vm4622, 1, 0
      %v5473 = vsel %vm4623, 1, 0
      %v5474 = vsel %vm4624, 1, 0
      %v5475 = vsel %vm4625, 1, 0
      %v5476 = vsel %vm4626, 1, 0
      %v5477 = vsel %vm4627, 1, 0
      %v5478 = vsel %vm4628, 1, 0
      %v5479 = vsel %vm4629, 1, 0
      %v5480 = vsel %vm4630, 1, 0
      %v5481 = vsel %vm4631, 1, 0
      %v5482 = vsel %vm4632, 1, 0
      %vm5483 = vcmp.eq.s32.totalorder %v5467, 1
      %vm5484 = vcmp.eq.s32.totalorder %v5468, 1
      %vm5485 = vcmp.eq.s32.totalorder %v5469, 1
      %vm5486 = vcmp.eq.s32.totalorder %v5470, 1
      %vm5487 = vcmp.eq.s32.totalorder %v5471, 1
      %vm5488 = vcmp.eq.s32.totalorder %v5472, 1
      %vm5489 = vcmp.eq.s32.totalorder %v5473, 1
      %vm5490 = vcmp.eq.s32.totalorder %v5474, 1
      %vm5491 = vcmp.eq.s32.totalorder %v5475, 1
      %vm5492 = vcmp.eq.s32.totalorder %v5476, 1
      %vm5493 = vcmp.eq.s32.totalorder %v5477, 1
      %vm5494 = vcmp.eq.s32.totalorder %v5478, 1
      %vm5495 = vcmp.eq.s32.totalorder %v5479, 1
      %vm5496 = vcmp.eq.s32.totalorder %v5480, 1
      %vm5497 = vcmp.eq.s32.totalorder %v5481, 1
      %vm5498 = vcmp.eq.s32.totalorder %v5482, 1
      %v5499 = vsel %vm5483, %v5006, -inf
      %v5500 = vsel %vm5484, %v5009, -inf
      %v5501 = vsel %vm5485, %v5012, -inf
      %v5502 = vsel %vm5486, %v5015, -inf
      %v5503 = vsel %vm5487, %v5018, -inf
      %v5504 = vsel %vm5488, %v5021, -inf
      %v5505 = vsel %vm5489, %v5024, -inf
      %v5506 = vsel %vm5490, %v5027, -inf
      %v5507 = vsel %vm5491, %v5030, -inf
      %v5508 = vsel %vm5492, %v5033, -inf
      %v5509 = vsel %vm5493, %v5036, -inf
      %v5510 = vsel %vm5494, %v5039, -inf
      %v5511 = vsel %vm5495, %v5042, -inf
      %v5512 = vsel %vm5496, %v5045, -inf
      %v5513 = vsel %vm5497, %v5048, -inf
      %v5514 = vsel %vm5498, %v5051, -inf
      %v5515 = vsel %vm5084, %v5499, -inf
      %5516 = vmax.xlane.f32.xlu0 %v5515
      %v5517 = vpop.xlane.xlu0 %5516
      %v5518 = vsel %vm5084, %v5500, -inf
      %5519 = vmax.xlane.f32.xlu0 %v5518
      %v5520 = vpop.xlane.xlu0 %5519
      %v5521 = vsel %vm5084, %v5501, -inf
      %5522 = vmax.xlane.f32.xlu0 %v5521
      %v5523 = vpop.xlane.xlu0 %5522
      %v5524 = vsel %vm5084, %v5502, -inf
      %5525 = vmax.xlane.f32.xlu0 %v5524
      %v5526 = vpop.xlane.xlu0 %5525
      %v5527 = vsel %vm5084, %v5503, -inf
      %5528 = vmax.xlane.f32.xlu0 %v5527
      %v5529 = vpop.xlane.xlu0 %5528
      %v5530 = vsel %vm5084, %v5504, -inf
      %5531 = vmax.xlane.f32.xlu0 %v5530
      %v5532 = vpop.xlane.xlu0 %5531
      %v5533 = vsel %vm5084, %v5505, -inf
      %5534 = vmax.xlane.f32.xlu0 %v5533
      %v5535 = vpop.xlane.xlu0 %5534
      %v5536 = vsel %vm5084, %v5506, -inf
      %5537 = vmax.xlane.f32.xlu0 %v5536
      %v5538 = vpop.xlane.xlu0 %5537
      %v5539 = vsel %vm5084, %v5507, -inf
      %5540 = vmax.xlane.f32.xlu0 %v5539
      %v5541 = vpop.xlane.xlu0 %5540
      %v5542 = vsel %vm5084, %v5508, -inf
      %5543 = vmax.xlane.f32.xlu0 %v5542
      %v5544 = vpop.xlane.xlu0 %5543
      %v5545 = vsel %vm5084, %v5509, -inf
      %5546 = vmax.xlane.f32.xlu0 %v5545
      %v5547 = vpop.xlane.xlu0 %5546
      %v5548 = vsel %vm5084, %v5510, -inf
      %5549 = vmax.xlane.f32.xlu0 %v5548
      %v5550 = vpop.xlane.xlu0 %5549
      %v5551 = vsel %vm5084, %v5511, -inf
      %5552 = vmax.xlane.f32.xlu0 %v5551
      %v5553 = vpop.xlane.xlu0 %5552
      %v5554 = vsel %vm5084, %v5512, -inf
      %5555 = vmax.xlane.f32.xlu0 %v5554
      %v5556 = vpop.xlane.xlu0 %5555
      %v5557 = vsel %vm5084, %v5513, -inf
      %5558 = vmax.xlane.f32.xlu0 %v5557
      %v5559 = vpop.xlane.xlu0 %5558
      %v5560 = vsel %vm5084, %v5514, -inf
      %5561 = vmax.xlane.f32.xlu0 %v5560
      %v5562 = vpop.xlane.xlu0 %5561
      %5563 = vrot.lane.b32.xlu0 %v5133, 118
      %v5564 = vpop.permute.xlu0 %5563
      %5565 = vrot.lane.b32.xlu0 %v5134, 118
      %v5566 = vpop.permute.xlu0 %5565
      %vm5567 = vcmp.ne.s32.totalorder %v5564, 0
      %vm5568 = vcmp.ne.s32.totalorder %v5566, 0
      %vm5569 = vmor %vm1319, %vm5567
      %vm5570 = vmor %vm1320, %vm5568
      %v5571 = vsel %vm5569, 1, 0
      %v5572 = vsel %vm5570, 1, 0
      %5573 = vset.pattern.permute.xlu0 4
      %5574 = vperm.xlu0 %5573, %v5571
      %v5575 = vpop.permute.xlu0 %5574
      %5576 = vset.pattern.permute.xlu0 4
      %5577 = vperm.xlu0 %5576, %v5572
      %v5578 = vpop.permute.xlu0 %5577
      %vm5579 = vcmp.eq.s32.totalorder %v5575, 1
      %vm5580 = vcmp.eq.s32.totalorder %v5578, 1
      %v5597 = vlaneseq
      %v5598 = vshrl.u32 %v5597, 7
      %v5599 = vsub.s32 %v63, %v5598
      %v5600 = vrot.slane %v5517, %v5599
      %v5601 = vlaneseq
      %v5602 = vshrl.u32 %v5601, 7
      %v5603 = vsub.s32 %v63, %v5602
      %v5604 = vrot.slane %v5520, %v5603
      %v5605 = vlaneseq
      %v5606 = vshrl.u32 %v5605, 7
      %v5607 = vsub.s32 %v63, %v5606
      %v5608 = vrot.slane %v5523, %v5607
      %v5609 = vlaneseq
      %v5610 = vshrl.u32 %v5609, 7
      %v5611 = vsub.s32 %v63, %v5610
      %v5612 = vrot.slane %v5526, %v5611
      %v5613 = vlaneseq
      %v5614 = vshrl.u32 %v5613, 7
      %v5615 = vsub.s32 %v63, %v5614
      %v5616 = vrot.slane %v5529, %v5615
      %v5617 = vlaneseq
      %v5618 = vshrl.u32 %v5617, 7
      %v5619 = vsub.s32 %v63, %v5618
      %v5620 = vrot.slane %v5532, %v5619
      %v5621 = vlaneseq
      %v5622 = vshrl.u32 %v5621, 7
      %v5623 = vsub.s32 %v63, %v5622
      %v5624 = vrot.slane %v5535, %v5623
      %v5625 = vlaneseq
      %v5626 = vshrl.u32 %v5625, 7
      %v5627 = vsub.s32 %v63, %v5626
      %v5628 = vrot.slane %v5538, %v5627
      %v5629 = vlaneseq
      %v5630 = vshrl.u32 %v5629, 7
      %v5631 = vsub.s32 %v63, %v5630
      %v5632 = vrot.slane %v5541, %v5631
      %v5633 = vlaneseq
      %v5634 = vshrl.u32 %v5633, 7
      %v5635 = vsub.s32 %v63, %v5634
      %v5636 = vrot.slane %v5544, %v5635
      %v5637 = vlaneseq
      %v5638 = vshrl.u32 %v5637, 7
      %v5639 = vsub.s32 %v63, %v5638
      %v5640 = vrot.slane %v5547, %v5639
      %v5641 = vlaneseq
      %v5642 = vshrl.u32 %v5641, 7
      %v5643 = vsub.s32 %v63, %v5642
      %v5644 = vrot.slane %v5550, %v5643
      %v5645 = vlaneseq
      %v5646 = vshrl.u32 %v5645, 7
      %v5647 = vsub.s32 %v63, %v5646
      %v5648 = vrot.slane %v5553, %v5647
      %v5649 = vlaneseq
      %v5650 = vshrl.u32 %v5649, 7
      %v5651 = vsub.s32 %v63, %v5650
      %v5652 = vrot.slane %v5556, %v5651
      %v5653 = vlaneseq
      %v5654 = vshrl.u32 %v5653, 7
      %v5655 = vsub.s32 %v63, %v5654
      %v5656 = vrot.slane %v5559, %v5655
      %v5657 = vlaneseq
      %v5658 = vshrl.u32 %v5657, 7
      %v5659 = vsub.s32 %v63, %v5658
      %v5660 = vrot.slane %v5562, %v5659
      %v5661 = vsel %vm5001, %v5604, %v5600
      %v5662 = vsel %vm5003, %v5608, %v5661
      %v5663 = vsel %vm5005, %v5612, %v5662
      %v5664 = vsel %vm5236, %v5616, %v5663
      %v5665 = vsel %vm5238, %v5620, %v5664
      %v5666 = vsel %vm5240, %v5624, %v5665
      %v5667 = vsel %vm5242, %v5628, %v5666
      %v5668 = vsel %vm5001, %v5636, %v5632
      %v5669 = vsel %vm5003, %v5640, %v5668
      %v5670 = vsel %vm5005, %v5644, %v5669
      %v5671 = vsel %vm5236, %v5648, %v5670
      %v5672 = vsel %vm5238, %v5652, %v5671
      %v5673 = vsel %vm5240, %v5656, %v5672
      %v5674 = vsel %vm5242, %v5660, %v5673
      %v5677 = vsel %vm5579, 0.0, %v5667
      %v5678 = vsel %vm5580, 0.0, %v5674
      %v5679 = vsel %vm4889, 1, 0
      %v5680 = vsel %vm4890, 1, 0
      %v5681 = vsel %vm4891, 1, 0
      %v5682 = vsel %vm4892, 1, 0
      %v5683 = vsel %vm4893, 1, 0
      %v5684 = vsel %vm4894, 1, 0
      %v5685 = vsel %vm4895, 1, 0
      %v5686 = vsel %vm4896, 1, 0
      %v5687 = vsel %vm4897, 1, 0
      %v5688 = vsel %vm4898, 1, 0
      %v5689 = vsel %vm4899, 1, 0
      %v5690 = vsel %vm4900, 1, 0
      %v5691 = vsel %vm4901, 1, 0
      %v5692 = vsel %vm4902, 1, 0
      %v5693 = vsel %vm4903, 1, 0
      %v5694 = vsel %vm4904, 1, 0
      %vm5695 = vcmp.eq.s32.totalorder %v5679, 1
      %vm5696 = vcmp.eq.s32.totalorder %v5680, 1
      %vm5697 = vcmp.eq.s32.totalorder %v5681, 1
      %vm5698 = vcmp.eq.s32.totalorder %v5682, 1
      %vm5699 = vcmp.eq.s32.totalorder %v5683, 1
      %vm5700 = vcmp.eq.s32.totalorder %v5684, 1
      %vm5701 = vcmp.eq.s32.totalorder %v5685, 1
      %vm5702 = vcmp.eq.s32.totalorder %v5686, 1
      %vm5703 = vcmp.eq.s32.totalorder %v5687, 1
      %vm5704 = vcmp.eq.s32.totalorder %v5688, 1
      %vm5705 = vcmp.eq.s32.totalorder %v5689, 1
      %vm5706 = vcmp.eq.s32.totalorder %v5690, 1
      %vm5707 = vcmp.eq.s32.totalorder %v5691, 1
      %vm5708 = vcmp.eq.s32.totalorder %v5692, 1
      %vm5709 = vcmp.eq.s32.totalorder %v5693, 1
      %vm5710 = vcmp.eq.s32.totalorder %v5694, 1
      %v5711 = vsel %vm5695, %v5006, -inf
      %v5712 = vsel %vm5696, %v5009, -inf
      %v5713 = vsel %vm5697, %v5012, -inf
      %v5714 = vsel %vm5698, %v5015, -inf
      %v5715 = vsel %vm5699, %v5018, -inf
      %v5716 = vsel %vm5700, %v5021, -inf
      %v5717 = vsel %vm5701, %v5024, -inf
      %v5718 = vsel %vm5702, %v5027, -inf
      %v5719 = vsel %vm5703, %v5030, -inf
      %v5720 = vsel %vm5704, %v5033, -inf
      %v5721 = vsel %vm5705, %v5036, -inf
      %v5722 = vsel %vm5706, %v5039, -inf
      %v5723 = vsel %vm5707, %v5042, -inf
      %v5724 = vsel %vm5708, %v5045, -inf
      %v5725 = vsel %vm5709, %v5048, -inf
      %v5726 = vsel %vm5710, %v5051, -inf
      %v5727 = vsel %vm5084, %v5711, -inf
      %5728 = vmax.xlane.f32.xlu0 %v5727
      %v5729 = vpop.xlane.xlu0 %5728
      %v5730 = vsel %vm5084, %v5712, -inf
      %5731 = vmax.xlane.f32.xlu0 %v5730
      %v5732 = vpop.xlane.xlu0 %5731
      %v5733 = vsel %vm5084, %v5713, -inf
      %5734 = vmax.xlane.f32.xlu0 %v5733
      %v5735 = vpop.xlane.xlu0 %5734
      %v5736 = vsel %vm5084, %v5714, -inf
      %5737 = vmax.xlane.f32.xlu0 %v5736
      %v5738 = vpop.xlane.xlu0 %5737
      %v5739 = vsel %vm5084, %v5715, -inf
      %5740 = vmax.xlane.f32.xlu0 %v5739
      %v5741 = vpop.xlane.xlu0 %5740
      %v5742 = vsel %vm5084, %v5716, -inf
      %5743 = vmax.xlane.f32.xlu0 %v5742
      %v5744 = vpop.xlane.xlu0 %5743
      %v5745 = vsel %vm5084, %v5717, -inf
      %5746 = vmax.xlane.f32.xlu0 %v5745
      %v5747 = vpop.xlane.xlu0 %5746
      %v5748 = vsel %vm5084, %v5718, -inf
      %5749 = vmax.xlane.f32.xlu0 %v5748
      %v5750 = vpop.xlane.xlu0 %5749
      %v5751 = vsel %vm5084, %v5719, -inf
      %5752 = vmax.xlane.f32.xlu0 %v5751
      %v5753 = vpop.xlane.xlu0 %5752
      %v5754 = vsel %vm5084, %v5720, -inf
      %5755 = vmax.xlane.f32.xlu0 %v5754
      %v5756 = vpop.xlane.xlu0 %5755
      %v5757 = vsel %vm5084, %v5721, -inf
      %5758 = vmax.xlane.f32.xlu0 %v5757
      %v5759 = vpop.xlane.xlu0 %5758
      %v5760 = vsel %vm5084, %v5722, -inf
      %5761 = vmax.xlane.f32.xlu0 %v5760
      %v5762 = vpop.xlane.xlu0 %5761
      %v5763 = vsel %vm5084, %v5723, -inf
      %5764 = vmax.xlane.f32.xlu0 %v5763
      %v5765 = vpop.xlane.xlu0 %5764
      %v5766 = vsel %vm5084, %v5724, -inf
      %5767 = vmax.xlane.f32.xlu0 %v5766
      %v5768 = vpop.xlane.xlu0 %5767
      %v5769 = vsel %vm5084, %v5725, -inf
      %5770 = vmax.xlane.f32.xlu0 %v5769
      %v5771 = vpop.xlane.xlu0 %5770
      %v5772 = vsel %vm5084, %v5726, -inf
      %5773 = vmax.xlane.f32.xlu0 %v5772
      %v5774 = vpop.xlane.xlu0 %5773
      %5775 = vrot.lane.b32.xlu0 %v5133, 117
      %v5776 = vpop.permute.xlu0 %5775
      %5777 = vrot.lane.b32.xlu0 %v5134, 117
      %v5778 = vpop.permute.xlu0 %5777
      %vm5779 = vcmp.ne.s32.totalorder %v5776, 0
      %vm5780 = vcmp.ne.s32.totalorder %v5778, 0
      %vm5781 = vmor %vm1319, %vm5779
      %vm5782 = vmor %vm1320, %vm5780
      %v5783 = vsel %vm5781, 1, 0
      %v5784 = vsel %vm5782, 1, 0
      %5785 = vset.pattern.permute.xlu0 4
      %5786 = vperm.xlu0 %5785, %v5783
      %v5787 = vpop.permute.xlu0 %5786
      %5788 = vset.pattern.permute.xlu0 4
      %5789 = vperm.xlu0 %5788, %v5784
      %v5790 = vpop.permute.xlu0 %5789
      %vm5791 = vcmp.eq.s32.totalorder %v5787, 1
      %vm5792 = vcmp.eq.s32.totalorder %v5790, 1
      %v5809 = vlaneseq
      %v5810 = vshrl.u32 %v5809, 7
      %v5811 = vsub.s32 %v63, %v5810
      %v5812 = vrot.slane %v5729, %v5811
      %v5813 = vlaneseq
      %v5814 = vshrl.u32 %v5813, 7
      %v5815 = vsub.s32 %v63, %v5814
      %v5816 = vrot.slane %v5732, %v5815
      %v5817 = vlaneseq
      %v5818 = vshrl.u32 %v5817, 7
      %v5819 = vsub.s32 %v63, %v5818
      %v5820 = vrot.slane %v5735, %v5819
      %v5821 = vlaneseq
      %v5822 = vshrl.u32 %v5821, 7
      %v5823 = vsub.s32 %v63, %v5822
      %v5824 = vrot.slane %v5738, %v5823
      %v5825 = vlaneseq
      %v5826 = vshrl.u32 %v5825, 7
      %v5827 = vsub.s32 %v63, %v5826
      %v5828 = vrot.slane %v5741, %v5827
      %v5829 = vlaneseq
      %v5830 = vshrl.u32 %v5829, 7
      %v5831 = vsub.s32 %v63, %v5830
      %v5832 = vrot.slane %v5744, %v5831
      %v5833 = vlaneseq
      %v5834 = vshrl.u32 %v5833, 7
      %v5835 = vsub.s32 %v63, %v5834
      %v5836 = vrot.slane %v5747, %v5835
      %v5837 = vlaneseq
      %v5838 = vshrl.u32 %v5837, 7
      %v5839 = vsub.s32 %v63, %v5838
      %v5840 = vrot.slane %v5750, %v5839
      %v5841 = vlaneseq
      %v5842 = vshrl.u32 %v5841, 7
      %v5843 = vsub.s32 %v63, %v5842
      %v5844 = vrot.slane %v5753, %v5843
      %v5845 = vlaneseq
      %v5846 = vshrl.u32 %v5845, 7
      %v5847 = vsub.s32 %v63, %v5846
      %v5848 = vrot.slane %v5756, %v5847
      %v5849 = vlaneseq
      %v5850 = vshrl.u32 %v5849, 7
      %v5851 = vsub.s32 %v63, %v5850
      %v5852 = vrot.slane %v5759, %v5851
      %v5853 = vlaneseq
      %v5854 = vshrl.u32 %v5853, 7
      %v5855 = vsub.s32 %v63, %v5854
      %v5856 = vrot.slane %v5762, %v5855
      %v5857 = vlaneseq
      %v5858 = vshrl.u32 %v5857, 7
      %v5859 = vsub.s32 %v63, %v5858
      %v5860 = vrot.slane %v5765, %v5859
      %v5861 = vlaneseq
      %v5862 = vshrl.u32 %v5861, 7
      %v5863 = vsub.s32 %v63, %v5862
      %v5864 = vrot.slane %v5768, %v5863
      %v5865 = vlaneseq
      %v5866 = vshrl.u32 %v5865, 7
      %v5867 = vsub.s32 %v63, %v5866
      %v5868 = vrot.slane %v5771, %v5867
      %v5869 = vlaneseq
      %v5870 = vshrl.u32 %v5869, 7
      %v5871 = vsub.s32 %v63, %v5870
      %v5872 = vrot.slane %v5774, %v5871
      %v5873 = vsel %vm5001, %v5816, %v5812
      %v5874 = vsel %vm5003, %v5820, %v5873
      %v5875 = vsel %vm5005, %v5824, %v5874
      %v5876 = vsel %vm5236, %v5828, %v5875
      %v5877 = vsel %vm5238, %v5832, %v5876
      %v5878 = vsel %vm5240, %v5836, %v5877
      %v5879 = vsel %vm5242, %v5840, %v5878
      %v5880 = vsel %vm5001, %v5848, %v5844
      %v5881 = vsel %vm5003, %v5852, %v5880
      %v5882 = vsel %vm5005, %v5856, %v5881
      %v5883 = vsel %vm5236, %v5860, %v5882
      %v5884 = vsel %vm5238, %v5864, %v5883
      %v5885 = vsel %vm5240, %v5868, %v5884
      %v5886 = vsel %vm5242, %v5872, %v5885
      %v5889 = vsel %vm5791, 0.0, %v5879
      %v5890 = vsel %vm5792, 0.0, %v5886
      %v5955 = vsel %vm5001, %v1594, %v1585
      %v5956 = vsel %vm5003, %v1603, %v5955
      %v5957 = vsel %vm5005, %v1612, %v5956
      %v5958 = vsel %vm5001, %v1630, %v1621
      %v5959 = vsel %vm5003, %v1639, %v5958
      %v5960 = vsel %vm5005, %v1648, %v5959
      %v5961 = vsel %vm5001, %v1666, %v1657
      %v5962 = vsel %vm5003, %v1675, %v5961
      %v5963 = vsel %vm5005, %v1684, %v5962
      %v5964 = vsel %vm5001, %v1702, %v1693
      %v5965 = vsel %vm5003, %v1711, %v5964
      %v5966 = vsel %vm5005, %v1720, %v5965
      %v5967 = vsel %vm5001, %v1738, %v1729
      %v5968 = vsel %vm5003, %v1747, %v5967
      %v5969 = vsel %vm5005, %v1756, %v5968
      %v5970 = vsel %vm5001, %v1774, %v1765
      %v5971 = vsel %vm5003, %v1783, %v5970
      %v5972 = vsel %vm5005, %v1792, %v5971
      %v5973 = vsel %vm5001, %v1810, %v1801
      %v5974 = vsel %vm5003, %v1819, %v5973
      %v5975 = vsel %vm5005, %v1828, %v5974
      %v5976 = vsel %vm5001, %v1846, %v1837
      %v5977 = vsel %vm5003, %v1855, %v5976
      %v5978 = vsel %vm5005, %v1864, %v5977
      %v5979 = vsel %vm5001, %v1882, %v1873
      %v5980 = vsel %vm5003, %v1891, %v5979
      %v5981 = vsel %vm5005, %v1900, %v5980
      %v5982 = vsel %vm5001, %v1918, %v1909
      %v5983 = vsel %vm5003, %v1927, %v5982
      %v5984 = vsel %vm5005, %v1936, %v5983
      %v5985 = vsel %vm5001, %v1954, %v1945
      %v5986 = vsel %vm5003, %v1963, %v5985
      %v5987 = vsel %vm5005, %v1972, %v5986
      %v5988 = vsel %vm5001, %v1990, %v1981
      %v5989 = vsel %vm5003, %v1999, %v5988
      %v5990 = vsel %vm5005, %v2008, %v5989
      %v5991 = vsel %vm5001, %v2026, %v2017
      %v5992 = vsel %vm5003, %v2035, %v5991
      %v5993 = vsel %vm5005, %v2044, %v5992
      %v5994 = vsel %vm5001, %v2062, %v2053
      %v5995 = vsel %vm5003, %v2071, %v5994
      %v5996 = vsel %vm5005, %v2080, %v5995
      %v5997 = vsel %vm5001, %v2098, %v2089
      %v5998 = vsel %vm5003, %v2107, %v5997
      %v5999 = vsel %vm5005, %v2116, %v5998
      %v6000 = vsel %vm5001, %v2134, %v2125
      %v6001 = vsel %vm5003, %v2143, %v6000
      %v6002 = vsel %vm5005, %v2152, %v6001
      %v6019 = vsel %vm4921, %v5957, -inf
      %v6020 = vsel %vm4922, %v5960, -inf
      %v6021 = vsel %vm4923, %v5963, -inf
      %v6022 = vsel %vm4924, %v5966, -inf
      %v6023 = vsel %vm4925, %v5969, -inf
      %v6024 = vsel %vm4926, %v5972, -inf
      %v6025 = vsel %vm4927, %v5975, -inf
      %v6026 = vsel %vm4928, %v5978, -inf
      %v6027 = vsel %vm4929, %v5981, -inf
      %v6028 = vsel %vm4930, %v5984, -inf
      %v6029 = vsel %vm4931, %v5987, -inf
      %v6030 = vsel %vm4932, %v5990, -inf
      %v6031 = vsel %vm4933, %v5993, -inf
      %v6032 = vsel %vm4934, %v5996, -inf
      %v6033 = vsel %vm4935, %v5999, -inf
      %v6034 = vsel %vm4936, %v6002, -inf
      %v6035 = vsel %vm5084, %v6019, -inf
      %6036 = vmax.xlane.f32.xlu0 %v6035
      %v6037 = vpop.xlane.xlu0 %6036
      %v6038 = vsel %vm5084, %v6020, -inf
      %6039 = vmax.xlane.f32.xlu0 %v6038
      %v6040 = vpop.xlane.xlu0 %6039
      %v6041 = vsel %vm5084, %v6021, -inf
      %6042 = vmax.xlane.f32.xlu0 %v6041
      %v6043 = vpop.xlane.xlu0 %6042
      %v6044 = vsel %vm5084, %v6022, -inf
      %6045 = vmax.xlane.f32.xlu0 %v6044
      %v6046 = vpop.xlane.xlu0 %6045
      %v6047 = vsel %vm5084, %v6023, -inf
      %6048 = vmax.xlane.f32.xlu0 %v6047
      %v6049 = vpop.xlane.xlu0 %6048
      %v6050 = vsel %vm5084, %v6024, -inf
      %6051 = vmax.xlane.f32.xlu0 %v6050
      %v6052 = vpop.xlane.xlu0 %6051
      %v6053 = vsel %vm5084, %v6025, -inf
      %6054 = vmax.xlane.f32.xlu0 %v6053
      %v6055 = vpop.xlane.xlu0 %6054
      %v6056 = vsel %vm5084, %v6026, -inf
      %6057 = vmax.xlane.f32.xlu0 %v6056
      %v6058 = vpop.xlane.xlu0 %6057
      %v6059 = vsel %vm5084, %v6027, -inf
      %6060 = vmax.xlane.f32.xlu0 %v6059
      %v6061 = vpop.xlane.xlu0 %6060
      %v6062 = vsel %vm5084, %v6028, -inf
      %6063 = vmax.xlane.f32.xlu0 %v6062
      %v6064 = vpop.xlane.xlu0 %6063
      %v6065 = vsel %vm5084, %v6029, -inf
      %6066 = vmax.xlane.f32.xlu0 %v6065
      %v6067 = vpop.xlane.xlu0 %6066
      %v6068 = vsel %vm5084, %v6030, -inf
      %6069 = vmax.xlane.f32.xlu0 %v6068
      %v6070 = vpop.xlane.xlu0 %6069
      %v6071 = vsel %vm5084, %v6031, -inf
      %6072 = vmax.xlane.f32.xlu0 %v6071
      %v6073 = vpop.xlane.xlu0 %6072
      %v6074 = vsel %vm5084, %v6032, -inf
      %6075 = vmax.xlane.f32.xlu0 %v6074
      %v6076 = vpop.xlane.xlu0 %6075
      %v6077 = vsel %vm5084, %v6033, -inf
      %6078 = vmax.xlane.f32.xlu0 %v6077
      %v6079 = vpop.xlane.xlu0 %6078
      %v6080 = vsel %vm5084, %v6034, -inf
      %6081 = vmax.xlane.f32.xlu0 %v6080
      %v6082 = vpop.xlane.xlu0 %6081
      %6083 = vrot.lane.b32.xlu0 %v5133, 121
      %v6084 = vpop.permute.xlu0 %6083
      %6085 = vrot.lane.b32.xlu0 %v5134, 121
      %v6086 = vpop.permute.xlu0 %6085
      %vm6087 = vcmp.ne.s32.totalorder %v6084, 0
      %vm6088 = vcmp.ne.s32.totalorder %v6086, 0
      %vm6089 = vmor %vm1319, %vm6087
      %vm6090 = vmor %vm1320, %vm6088
      %v6091 = vsel %vm6089, 1, 0
      %v6092 = vsel %vm6090, 1, 0
      %6093 = vset.pattern.permute.xlu0 5
      %6094 = vperm.xlu0 %6093, %v6091
      %v6095 = vpop.permute.xlu0 %6094
      %6096 = vset.pattern.permute.xlu0 5
      %6097 = vperm.xlu0 %6096, %v6092
      %v6098 = vpop.permute.xlu0 %6097
      %vm6099 = vcmp.eq.s32.totalorder %v6095, 1
      %vm6100 = vcmp.eq.s32.totalorder %v6098, 1
      %v6117 = vlaneseq
      %v6118 = vshrl.u32 %v6117, 7
      %v6119 = vsub.s32 %v63, %v6118
      %v6120 = vrot.slane %v6037, %v6119
      %v6121 = vlaneseq
      %v6122 = vshrl.u32 %v6121, 7
      %v6123 = vsub.s32 %v63, %v6122
      %v6124 = vrot.slane %v6040, %v6123
      %v6125 = vlaneseq
      %v6126 = vshrl.u32 %v6125, 7
      %v6127 = vsub.s32 %v63, %v6126
      %v6128 = vrot.slane %v6043, %v6127
      %v6129 = vlaneseq
      %v6130 = vshrl.u32 %v6129, 7
      %v6131 = vsub.s32 %v63, %v6130
      %v6132 = vrot.slane %v6046, %v6131
      %v6133 = vlaneseq
      %v6134 = vshrl.u32 %v6133, 7
      %v6135 = vsub.s32 %v63, %v6134
      %v6136 = vrot.slane %v6049, %v6135
      %v6137 = vlaneseq
      %v6138 = vshrl.u32 %v6137, 7
      %v6139 = vsub.s32 %v63, %v6138
      %v6140 = vrot.slane %v6052, %v6139
      %v6141 = vlaneseq
      %v6142 = vshrl.u32 %v6141, 7
      %v6143 = vsub.s32 %v63, %v6142
      %v6144 = vrot.slane %v6055, %v6143
      %v6145 = vlaneseq
      %v6146 = vshrl.u32 %v6145, 7
      %v6147 = vsub.s32 %v63, %v6146
      %v6148 = vrot.slane %v6058, %v6147
      %v6149 = vlaneseq
      %v6150 = vshrl.u32 %v6149, 7
      %v6151 = vsub.s32 %v63, %v6150
      %v6152 = vrot.slane %v6061, %v6151
      %v6153 = vlaneseq
      %v6154 = vshrl.u32 %v6153, 7
      %v6155 = vsub.s32 %v63, %v6154
      %v6156 = vrot.slane %v6064, %v6155
      %v6157 = vlaneseq
      %v6158 = vshrl.u32 %v6157, 7
      %v6159 = vsub.s32 %v63, %v6158
      %v6160 = vrot.slane %v6067, %v6159
      %v6161 = vlaneseq
      %v6162 = vshrl.u32 %v6161, 7
      %v6163 = vsub.s32 %v63, %v6162
      %v6164 = vrot.slane %v6070, %v6163
      %v6165 = vlaneseq
      %v6166 = vshrl.u32 %v6165, 7
      %v6167 = vsub.s32 %v63, %v6166
      %v6168 = vrot.slane %v6073, %v6167
      %v6169 = vlaneseq
      %v6170 = vshrl.u32 %v6169, 7
      %v6171 = vsub.s32 %v63, %v6170
      %v6172 = vrot.slane %v6076, %v6171
      %v6173 = vlaneseq
      %v6174 = vshrl.u32 %v6173, 7
      %v6175 = vsub.s32 %v63, %v6174
      %v6176 = vrot.slane %v6079, %v6175
      %v6177 = vlaneseq
      %v6178 = vshrl.u32 %v6177, 7
      %v6179 = vsub.s32 %v63, %v6178
      %v6180 = vrot.slane %v6082, %v6179
      %v6181 = vsel %vm5001, %v6124, %v6120
      %v6182 = vsel %vm5003, %v6128, %v6181
      %v6183 = vsel %vm5005, %v6132, %v6182
      %v6184 = vsel %vm5236, %v6136, %v6183
      %v6185 = vsel %vm5238, %v6140, %v6184
      %v6186 = vsel %vm5240, %v6144, %v6185
      %v6187 = vsel %vm5242, %v6148, %v6186
      %v6188 = vsel %vm5001, %v6156, %v6152
      %v6189 = vsel %vm5003, %v6160, %v6188
      %v6190 = vsel %vm5005, %v6164, %v6189
      %v6191 = vsel %vm5236, %v6168, %v6190
      %v6192 = vsel %vm5238, %v6172, %v6191
      %v6193 = vsel %vm5240, %v6176, %v6192
      %v6194 = vsel %vm5242, %v6180, %v6193
      %v6197 = vsel %vm6099, 0.0, %v6187
      %v6198 = vsel %vm6100, 0.0, %v6194
      %v6199 = vsel %vm5271, %v5957, -inf
      %v6200 = vsel %vm5272, %v5960, -inf
      %v6201 = vsel %vm5273, %v5963, -inf
      %v6202 = vsel %vm5274, %v5966, -inf
      %v6203 = vsel %vm5275, %v5969, -inf
      %v6204 = vsel %vm5276, %v5972, -inf
      %v6205 = vsel %vm5277, %v5975, -inf
      %v6206 = vsel %vm5278, %v5978, -inf
      %v6207 = vsel %vm5279, %v5981, -inf
      %v6208 = vsel %vm5280, %v5984, -inf
      %v6209 = vsel %vm5281, %v5987, -inf
      %v6210 = vsel %vm5282, %v5990, -inf
      %v6211 = vsel %vm5283, %v5993, -inf
      %v6212 = vsel %vm5284, %v5996, -inf
      %v6213 = vsel %vm5285, %v5999, -inf
      %v6214 = vsel %vm5286, %v6002, -inf
      %v6215 = vsel %vm5084, %v6199, -inf
      %6216 = vmax.xlane.f32.xlu0 %v6215
      %v6217 = vpop.xlane.xlu0 %6216
      %v6218 = vsel %vm5084, %v6200, -inf
      %6219 = vmax.xlane.f32.xlu0 %v6218
      %v6220 = vpop.xlane.xlu0 %6219
      %v6221 = vsel %vm5084, %v6201, -inf
      %6222 = vmax.xlane.f32.xlu0 %v6221
      %v6223 = vpop.xlane.xlu0 %6222
      %v6224 = vsel %vm5084, %v6202, -inf
      %6225 = vmax.xlane.f32.xlu0 %v6224
      %v6226 = vpop.xlane.xlu0 %6225
      %v6227 = vsel %vm5084, %v6203, -inf
      %6228 = vmax.xlane.f32.xlu0 %v6227
      %v6229 = vpop.xlane.xlu0 %6228
      %v6230 = vsel %vm5084, %v6204, -inf
      %6231 = vmax.xlane.f32.xlu0 %v6230
      %v6232 = vpop.xlane.xlu0 %6231
      %v6233 = vsel %vm5084, %v6205, -inf
      %6234 = vmax.xlane.f32.xlu0 %v6233
      %v6235 = vpop.xlane.xlu0 %6234
      %v6236 = vsel %vm5084, %v6206, -inf
      %6237 = vmax.xlane.f32.xlu0 %v6236
      %v6238 = vpop.xlane.xlu0 %6237
      %v6239 = vsel %vm5084, %v6207, -inf
      %6240 = vmax.xlane.f32.xlu0 %v6239
      %v6241 = vpop.xlane.xlu0 %6240
      %v6242 = vsel %vm5084, %v6208, -inf
      %6243 = vmax.xlane.f32.xlu0 %v6242
      %v6244 = vpop.xlane.xlu0 %6243
      %v6245 = vsel %vm5084, %v6209, -inf
      %6246 = vmax.xlane.f32.xlu0 %v6245
      %v6247 = vpop.xlane.xlu0 %6246
      %v6248 = vsel %vm5084, %v6210, -inf
      %6249 = vmax.xlane.f32.xlu0 %v6248
      %v6250 = vpop.xlane.xlu0 %6249
      %v6251 = vsel %vm5084, %v6211, -inf
      %6252 = vmax.xlane.f32.xlu0 %v6251
      %v6253 = vpop.xlane.xlu0 %6252
      %v6254 = vsel %vm5084, %v6212, -inf
      %6255 = vmax.xlane.f32.xlu0 %v6254
      %v6256 = vpop.xlane.xlu0 %6255
      %v6257 = vsel %vm5084, %v6213, -inf
      %6258 = vmax.xlane.f32.xlu0 %v6257
      %v6259 = vpop.xlane.xlu0 %6258
      %v6260 = vsel %vm5084, %v6214, -inf
      %6261 = vmax.xlane.f32.xlu0 %v6260
      %v6262 = vpop.xlane.xlu0 %6261
      %6263 = vset.pattern.permute.xlu0 5
      %6264 = vperm.xlu0 %6263, %v5143
      %v6265 = vpop.permute.xlu0 %6264
      %6266 = vset.pattern.permute.xlu0 5
      %6267 = vperm.xlu0 %6266, %v5144
      %v6268 = vpop.permute.xlu0 %6267
      %vm6269 = vcmp.eq.s32.totalorder %v6265, 1
      %vm6270 = vcmp.eq.s32.totalorder %v6268, 1
      %v6287 = vlaneseq
      %v6288 = vshrl.u32 %v6287, 7
      %v6289 = vsub.s32 %v63, %v6288
      %v6290 = vrot.slane %v6217, %v6289
      %v6291 = vlaneseq
      %v6292 = vshrl.u32 %v6291, 7
      %v6293 = vsub.s32 %v63, %v6292
      %v6294 = vrot.slane %v6220, %v6293
      %v6295 = vlaneseq
      %v6296 = vshrl.u32 %v6295, 7
      %v6297 = vsub.s32 %v63, %v6296
      %v6298 = vrot.slane %v6223, %v6297
      %v6299 = vlaneseq
      %v6300 = vshrl.u32 %v6299, 7
      %v6301 = vsub.s32 %v63, %v6300
      %v6302 = vrot.slane %v6226, %v6301
      %v6303 = vlaneseq
      %v6304 = vshrl.u32 %v6303, 7
      %v6305 = vsub.s32 %v63, %v6304
      %v6306 = vrot.slane %v6229, %v6305
      %v6307 = vlaneseq
      %v6308 = vshrl.u32 %v6307, 7
      %v6309 = vsub.s32 %v63, %v6308
      %v6310 = vrot.slane %v6232, %v6309
      %v6311 = vlaneseq
      %v6312 = vshrl.u32 %v6311, 7
      %v6313 = vsub.s32 %v63, %v6312
      %v6314 = vrot.slane %v6235, %v6313
      %v6315 = vlaneseq
      %v6316 = vshrl.u32 %v6315, 7
      %v6317 = vsub.s32 %v63, %v6316
      %v6318 = vrot.slane %v6238, %v6317
      %v6319 = vlaneseq
      %v6320 = vshrl.u32 %v6319, 7
      %v6321 = vsub.s32 %v63, %v6320
      %v6322 = vrot.slane %v6241, %v6321
      %v6323 = vlaneseq
      %v6324 = vshrl.u32 %v6323, 7
      %v6325 = vsub.s32 %v63, %v6324
      %v6326 = vrot.slane %v6244, %v6325
      %v6327 = vlaneseq
      %v6328 = vshrl.u32 %v6327, 7
      %v6329 = vsub.s32 %v63, %v6328
      %v6330 = vrot.slane %v6247, %v6329
      %v6331 = vlaneseq
      %v6332 = vshrl.u32 %v6331, 7
      %v6333 = vsub.s32 %v63, %v6332
      %v6334 = vrot.slane %v6250, %v6333
      %v6335 = vlaneseq
      %v6336 = vshrl.u32 %v6335, 7
      %v6337 = vsub.s32 %v63, %v6336
      %v6338 = vrot.slane %v6253, %v6337
      %v6339 = vlaneseq
      %v6340 = vshrl.u32 %v6339, 7
      %v6341 = vsub.s32 %v63, %v6340
      %v6342 = vrot.slane %v6256, %v6341
      %v6343 = vlaneseq
      %v6344 = vshrl.u32 %v6343, 7
      %v6345 = vsub.s32 %v63, %v6344
      %v6346 = vrot.slane %v6259, %v6345
      %v6347 = vlaneseq
      %v6348 = vshrl.u32 %v6347, 7
      %v6349 = vsub.s32 %v63, %v6348
      %v6350 = vrot.slane %v6262, %v6349
      %v6351 = vsel %vm5001, %v6294, %v6290
      %v6352 = vsel %vm5003, %v6298, %v6351
      %v6353 = vsel %vm5005, %v6302, %v6352
      %v6354 = vsel %vm5236, %v6306, %v6353
      %v6355 = vsel %vm5238, %v6310, %v6354
      %v6356 = vsel %vm5240, %v6314, %v6355
      %v6357 = vsel %vm5242, %v6318, %v6356
      %v6358 = vsel %vm5001, %v6326, %v6322
      %v6359 = vsel %vm5003, %v6330, %v6358
      %v6360 = vsel %vm5005, %v6334, %v6359
      %v6361 = vsel %vm5236, %v6338, %v6360
      %v6362 = vsel %vm5238, %v6342, %v6361
      %v6363 = vsel %vm5240, %v6346, %v6362
      %v6364 = vsel %vm5242, %v6350, %v6363
      %v6367 = vsel %vm6269, 0.0, %v6357
      %v6368 = vsel %vm6270, 0.0, %v6364
      %v6369 = vsel %vm5483, %v5957, -inf
      %v6370 = vsel %vm5484, %v5960, -inf
      %v6371 = vsel %vm5485, %v5963, -inf
      %v6372 = vsel %vm5486, %v5966, -inf
      %v6373 = vsel %vm5487, %v5969, -inf
      %v6374 = vsel %vm5488, %v5972, -inf
      %v6375 = vsel %vm5489, %v5975, -inf
      %v6376 = vsel %vm5490, %v5978, -inf
      %v6377 = vsel %vm5491, %v5981, -inf
      %v6378 = vsel %vm5492, %v5984, -inf
      %v6379 = vsel %vm5493, %v5987, -inf
      %v6380 = vsel %vm5494, %v5990, -inf
      %v6381 = vsel %vm5495, %v5993, -inf
      %v6382 = vsel %vm5496, %v5996, -inf
      %v6383 = vsel %vm5497, %v5999, -inf
      %v6384 = vsel %vm5498, %v6002, -inf
      %v6385 = vsel %vm5084, %v6369, -inf
      %6386 = vmax.xlane.f32.xlu0 %v6385
      %v6387 = vpop.xlane.xlu0 %6386
      %v6388 = vsel %vm5084, %v6370, -inf
      %6389 = vmax.xlane.f32.xlu0 %v6388
      %v6390 = vpop.xlane.xlu0 %6389
      %v6391 = vsel %vm5084, %v6371, -inf
      %6392 = vmax.xlane.f32.xlu0 %v6391
      %v6393 = vpop.xlane.xlu0 %6392
      %v6394 = vsel %vm5084, %v6372, -inf
      %6395 = vmax.xlane.f32.xlu0 %v6394
      %v6396 = vpop.xlane.xlu0 %6395
      %v6397 = vsel %vm5084, %v6373, -inf
      %6398 = vmax.xlane.f32.xlu0 %v6397
      %v6399 = vpop.xlane.xlu0 %6398
      %v6400 = vsel %vm5084, %v6374, -inf
      %6401 = vmax.xlane.f32.xlu0 %v6400
      %v6402 = vpop.xlane.xlu0 %6401
      %v6403 = vsel %vm5084, %v6375, -inf
      %6404 = vmax.xlane.f32.xlu0 %v6403
      %v6405 = vpop.xlane.xlu0 %6404
      %v6406 = vsel %vm5084, %v6376, -inf
      %6407 = vmax.xlane.f32.xlu0 %v6406
      %v6408 = vpop.xlane.xlu0 %6407
      %v6409 = vsel %vm5084, %v6377, -inf
      %6410 = vmax.xlane.f32.xlu0 %v6409
      %v6411 = vpop.xlane.xlu0 %6410
      %v6412 = vsel %vm5084, %v6378, -inf
      %6413 = vmax.xlane.f32.xlu0 %v6412
      %v6414 = vpop.xlane.xlu0 %6413
      %v6415 = vsel %vm5084, %v6379, -inf
      %6416 = vmax.xlane.f32.xlu0 %v6415
      %v6417 = vpop.xlane.xlu0 %6416
      %v6418 = vsel %vm5084, %v6380, -inf
      %6419 = vmax.xlane.f32.xlu0 %v6418
      %v6420 = vpop.xlane.xlu0 %6419
      %v6421 = vsel %vm5084, %v6381, -inf
      %6422 = vmax.xlane.f32.xlu0 %v6421
      %v6423 = vpop.xlane.xlu0 %6422
      %v6424 = vsel %vm5084, %v6382, -inf
      %6425 = vmax.xlane.f32.xlu0 %v6424
      %v6426 = vpop.xlane.xlu0 %6425
      %v6427 = vsel %vm5084, %v6383, -inf
      %6428 = vmax.xlane.f32.xlu0 %v6427
      %v6429 = vpop.xlane.xlu0 %6428
      %v6430 = vsel %vm5084, %v6384, -inf
      %6431 = vmax.xlane.f32.xlu0 %v6430
      %v6432 = vpop.xlane.xlu0 %6431
      %6433 = vset.pattern.permute.xlu0 5
      %6434 = vperm.xlu0 %6433, %v5359
      %v6435 = vpop.permute.xlu0 %6434
      %6436 = vset.pattern.permute.xlu0 5
      %6437 = vperm.xlu0 %6436, %v5360
      %v6438 = vpop.permute.xlu0 %6437
      %vm6439 = vcmp.eq.s32.totalorder %v6435, 1
      %vm6440 = vcmp.eq.s32.totalorder %v6438, 1
      %v6457 = vlaneseq
      %v6458 = vshrl.u32 %v6457, 7
      %v6459 = vsub.s32 %v63, %v6458
      %v6460 = vrot.slane %v6387, %v6459
      %v6461 = vlaneseq
      %v6462 = vshrl.u32 %v6461, 7
      %v6463 = vsub.s32 %v63, %v6462
      %v6464 = vrot.slane %v6390, %v6463
      %v6465 = vlaneseq
      %v6466 = vshrl.u32 %v6465, 7
      %v6467 = vsub.s32 %v63, %v6466
      %v6468 = vrot.slane %v6393, %v6467
      %v6469 = vlaneseq
      %v6470 = vshrl.u32 %v6469, 7
      %v6471 = vsub.s32 %v63, %v6470
      %v6472 = vrot.slane %v6396, %v6471
      %v6473 = vlaneseq
      %v6474 = vshrl.u32 %v6473, 7
      %v6475 = vsub.s32 %v63, %v6474
      %v6476 = vrot.slane %v6399, %v6475
      %v6477 = vlaneseq
      %v6478 = vshrl.u32 %v6477, 7
      %v6479 = vsub.s32 %v63, %v6478
      %v6480 = vrot.slane %v6402, %v6479
      %v6481 = vlaneseq
      %v6482 = vshrl.u32 %v6481, 7
      %v6483 = vsub.s32 %v63, %v6482
      %v6484 = vrot.slane %v6405, %v6483
      %v6485 = vlaneseq
      %v6486 = vshrl.u32 %v6485, 7
      %v6487 = vsub.s32 %v63, %v6486
      %v6488 = vrot.slane %v6408, %v6487
      %v6489 = vlaneseq
      %v6490 = vshrl.u32 %v6489, 7
      %v6491 = vsub.s32 %v63, %v6490
      %v6492 = vrot.slane %v6411, %v6491
      %v6493 = vlaneseq
      %v6494 = vshrl.u32 %v6493, 7
      %v6495 = vsub.s32 %v63, %v6494
      %v6496 = vrot.slane %v6414, %v6495
      %v6497 = vlaneseq
      %v6498 = vshrl.u32 %v6497, 7
      %v6499 = vsub.s32 %v63, %v6498
      %v6500 = vrot.slane %v6417, %v6499
      %v6501 = vlaneseq
      %v6502 = vshrl.u32 %v6501, 7
      %v6503 = vsub.s32 %v63, %v6502
      %v6504 = vrot.slane %v6420, %v6503
      %v6505 = vlaneseq
      %v6506 = vshrl.u32 %v6505, 7
      %v6507 = vsub.s32 %v63, %v6506
      %v6508 = vrot.slane %v6423, %v6507
      %v6509 = vlaneseq
      %v6510 = vshrl.u32 %v6509, 7
      %v6511 = vsub.s32 %v63, %v6510
      %v6512 = vrot.slane %v6426, %v6511
      %v6513 = vlaneseq
      %v6514 = vshrl.u32 %v6513, 7
      %v6515 = vsub.s32 %v63, %v6514
      %v6516 = vrot.slane %v6429, %v6515
      %v6517 = vlaneseq
      %v6518 = vshrl.u32 %v6517, 7
      %v6519 = vsub.s32 %v63, %v6518
      %v6520 = vrot.slane %v6432, %v6519
      %v6521 = vsel %vm5001, %v6464, %v6460
      %v6522 = vsel %vm5003, %v6468, %v6521
      %v6523 = vsel %vm5005, %v6472, %v6522
      %v6524 = vsel %vm5236, %v6476, %v6523
      %v6525 = vsel %vm5238, %v6480, %v6524
      %v6526 = vsel %vm5240, %v6484, %v6525
      %v6527 = vsel %vm5242, %v6488, %v6526
      %v6528 = vsel %vm5001, %v6496, %v6492
      %v6529 = vsel %vm5003, %v6500, %v6528
      %v6530 = vsel %vm5005, %v6504, %v6529
      %v6531 = vsel %vm5236, %v6508, %v6530
      %v6532 = vsel %vm5238, %v6512, %v6531
      %v6533 = vsel %vm5240, %v6516, %v6532
      %v6534 = vsel %vm5242, %v6520, %v6533
      %v6537 = vsel %vm6439, 0.0, %v6527
      %v6538 = vsel %vm6440, 0.0, %v6534
      %v6539 = vsel %vm5695, %v5957, -inf
      %v6540 = vsel %vm5696, %v5960, -inf
      %v6541 = vsel %vm5697, %v5963, -inf
      %v6542 = vsel %vm5698, %v5966, -inf
      %v6543 = vsel %vm5699, %v5969, -inf
      %v6544 = vsel %vm5700, %v5972, -inf
      %v6545 = vsel %vm5701, %v5975, -inf
      %v6546 = vsel %vm5702, %v5978, -inf
      %v6547 = vsel %vm5703, %v5981, -inf
      %v6548 = vsel %vm5704, %v5984, -inf
      %v6549 = vsel %vm5705, %v5987, -inf
      %v6550 = vsel %vm5706, %v5990, -inf
      %v6551 = vsel %vm5707, %v5993, -inf
      %v6552 = vsel %vm5708, %v5996, -inf
      %v6553 = vsel %vm5709, %v5999, -inf
      %v6554 = vsel %vm5710, %v6002, -inf
      %v6555 = vsel %vm5084, %v6539, -inf
      %6556 = vmax.xlane.f32.xlu0 %v6555
      %v6557 = vpop.xlane.xlu0 %6556
      %v6558 = vsel %vm5084, %v6540, -inf
      %6559 = vmax.xlane.f32.xlu0 %v6558
      %v6560 = vpop.xlane.xlu0 %6559
      %v6561 = vsel %vm5084, %v6541, -inf
      %6562 = vmax.xlane.f32.xlu0 %v6561
      %v6563 = vpop.xlane.xlu0 %6562
      %v6564 = vsel %vm5084, %v6542, -inf
      %6565 = vmax.xlane.f32.xlu0 %v6564
      %v6566 = vpop.xlane.xlu0 %6565
      %v6567 = vsel %vm5084, %v6543, -inf
      %6568 = vmax.xlane.f32.xlu0 %v6567
      %v6569 = vpop.xlane.xlu0 %6568
      %v6570 = vsel %vm5084, %v6544, -inf
      %6571 = vmax.xlane.f32.xlu0 %v6570
      %v6572 = vpop.xlane.xlu0 %6571
      %v6573 = vsel %vm5084, %v6545, -inf
      %6574 = vmax.xlane.f32.xlu0 %v6573
      %v6575 = vpop.xlane.xlu0 %6574
      %v6576 = vsel %vm5084, %v6546, -inf
      %6577 = vmax.xlane.f32.xlu0 %v6576
      %v6578 = vpop.xlane.xlu0 %6577
      %v6579 = vsel %vm5084, %v6547, -inf
      %6580 = vmax.xlane.f32.xlu0 %v6579
      %v6581 = vpop.xlane.xlu0 %6580
      %v6582 = vsel %vm5084, %v6548, -inf
      %6583 = vmax.xlane.f32.xlu0 %v6582
      %v6584 = vpop.xlane.xlu0 %6583
      %v6585 = vsel %vm5084, %v6549, -inf
      %6586 = vmax.xlane.f32.xlu0 %v6585
      %v6587 = vpop.xlane.xlu0 %6586
      %v6588 = vsel %vm5084, %v6550, -inf
      %6589 = vmax.xlane.f32.xlu0 %v6588
      %v6590 = vpop.xlane.xlu0 %6589
      %v6591 = vsel %vm5084, %v6551, -inf
      %6592 = vmax.xlane.f32.xlu0 %v6591
      %v6593 = vpop.xlane.xlu0 %6592
      %v6594 = vsel %vm5084, %v6552, -inf
      %6595 = vmax.xlane.f32.xlu0 %v6594
      %v6596 = vpop.xlane.xlu0 %6595
      %v6597 = vsel %vm5084, %v6553, -inf
      %6598 = vmax.xlane.f32.xlu0 %v6597
      %v6599 = vpop.xlane.xlu0 %6598
      %v6600 = vsel %vm5084, %v6554, -inf
      %6601 = vmax.xlane.f32.xlu0 %v6600
      %v6602 = vpop.xlane.xlu0 %6601
      %6603 = vset.pattern.permute.xlu0 5
      %6604 = vperm.xlu0 %6603, %v5571
      %v6605 = vpop.permute.xlu0 %6604
      %6606 = vset.pattern.permute.xlu0 5
      %6607 = vperm.xlu0 %6606, %v5572
      %v6608 = vpop.permute.xlu0 %6607
      %vm6609 = vcmp.eq.s32.totalorder %v6605, 1
      %vm6610 = vcmp.eq.s32.totalorder %v6608, 1
      %v6627 = vlaneseq
      %v6628 = vshrl.u32 %v6627, 7
      %v6629 = vsub.s32 %v63, %v6628
      %v6630 = vrot.slane %v6557, %v6629
      %v6631 = vlaneseq
      %v6632 = vshrl.u32 %v6631, 7
      %v6633 = vsub.s32 %v63, %v6632
      %v6634 = vrot.slane %v6560, %v6633
      %v6635 = vlaneseq
      %v6636 = vshrl.u32 %v6635, 7
      %v6637 = vsub.s32 %v63, %v6636
      %v6638 = vrot.slane %v6563, %v6637
      %v6639 = vlaneseq
      %v6640 = vshrl.u32 %v6639, 7
      %v6641 = vsub.s32 %v63, %v6640
      %v6642 = vrot.slane %v6566, %v6641
      %v6643 = vlaneseq
      %v6644 = vshrl.u32 %v6643, 7
      %v6645 = vsub.s32 %v63, %v6644
      %v6646 = vrot.slane %v6569, %v6645
      %v6647 = vlaneseq
      %v6648 = vshrl.u32 %v6647, 7
      %v6649 = vsub.s32 %v63, %v6648
      %v6650 = vrot.slane %v6572, %v6649
      %v6651 = vlaneseq
      %v6652 = vshrl.u32 %v6651, 7
      %v6653 = vsub.s32 %v63, %v6652
      %v6654 = vrot.slane %v6575, %v6653
      %v6655 = vlaneseq
      %v6656 = vshrl.u32 %v6655, 7
      %v6657 = vsub.s32 %v63, %v6656
      %v6658 = vrot.slane %v6578, %v6657
      %v6659 = vlaneseq
      %v6660 = vshrl.u32 %v6659, 7
      %v6661 = vsub.s32 %v63, %v6660
      %v6662 = vrot.slane %v6581, %v6661
      %v6663 = vlaneseq
      %v6664 = vshrl.u32 %v6663, 7
      %v6665 = vsub.s32 %v63, %v6664
      %v6666 = vrot.slane %v6584, %v6665
      %v6667 = vlaneseq
      %v6668 = vshrl.u32 %v6667, 7
      %v6669 = vsub.s32 %v63, %v6668
      %v6670 = vrot.slane %v6587, %v6669
      %v6671 = vlaneseq
      %v6672 = vshrl.u32 %v6671, 7
      %v6673 = vsub.s32 %v63, %v6672
      %v6674 = vrot.slane %v6590, %v6673
      %v6675 = vlaneseq
      %v6676 = vshrl.u32 %v6675, 7
      %v6677 = vsub.s32 %v63, %v6676
      %v6678 = vrot.slane %v6593, %v6677
      %v6679 = vlaneseq
      %v6680 = vshrl.u32 %v6679, 7
      %v6681 = vsub.s32 %v63, %v6680
      %v6682 = vrot.slane %v6596, %v6681
      %v6683 = vlaneseq
      %v6684 = vshrl.u32 %v6683, 7
      %v6685 = vsub.s32 %v63, %v6684
      %v6686 = vrot.slane %v6599, %v6685
      %v6687 = vlaneseq
      %v6688 = vshrl.u32 %v6687, 7
      %v6689 = vsub.s32 %v63, %v6688
      %v6690 = vrot.slane %v6602, %v6689
      %v6691 = vsel %vm5001, %v6634, %v6630
      %v6692 = vsel %vm5003, %v6638, %v6691
      %v6693 = vsel %vm5005, %v6642, %v6692
      %v6694 = vsel %vm5236, %v6646, %v6693
      %v6695 = vsel %vm5238, %v6650, %v6694
      %v6696 = vsel %vm5240, %v6654, %v6695
      %v6697 = vsel %vm5242, %v6658, %v6696
      %v6698 = vsel %vm5001, %v6666, %v6662
      %v6699 = vsel %vm5003, %v6670, %v6698
      %v6700 = vsel %vm5005, %v6674, %v6699
      %v6701 = vsel %vm5236, %v6678, %v6700
      %v6702 = vsel %vm5238, %v6682, %v6701
      %v6703 = vsel %vm5240, %v6686, %v6702
      %v6704 = vsel %vm5242, %v6690, %v6703
      %v6707 = vsel %vm6609, 0.0, %v6697
      %v6708 = vsel %vm6610, 0.0, %v6704
      %v6773 = vsel %vm5001, %v2426, %v2417
      %v6774 = vsel %vm5003, %v2435, %v6773
      %v6775 = vsel %vm5005, %v2444, %v6774
      %v6776 = vsel %vm5001, %v2462, %v2453
      %v6777 = vsel %vm5003, %v2471, %v6776
      %v6778 = vsel %vm5005, %v2480, %v6777
      %v6779 = vsel %vm5001, %v2498, %v2489
      %v6780 = vsel %vm5003, %v2507, %v6779
      %v6781 = vsel %vm5005, %v2516, %v6780
      %v6782 = vsel %vm5001, %v2534, %v2525
      %v6783 = vsel %vm5003, %v2543, %v6782
      %v6784 = vsel %vm5005, %v2552, %v6783
      %v6785 = vsel %vm5001, %v2570, %v2561
      %v6786 = vsel %vm5003, %v2579, %v6785
      %v6787 = vsel %vm5005, %v2588, %v6786
      %v6788 = vsel %vm5001, %v2606, %v2597
      %v6789 = vsel %vm5003, %v2615, %v6788
      %v6790 = vsel %vm5005, %v2624, %v6789
      %v6791 = vsel %vm5001, %v2642, %v2633
      %v6792 = vsel %vm5003, %v2651, %v6791
      %v6793 = vsel %vm5005, %v2660, %v6792
      %v6794 = vsel %vm5001, %v2678, %v2669
      %v6795 = vsel %vm5003, %v2687, %v6794
      %v6796 = vsel %vm5005, %v2696, %v6795
      %v6797 = vsel %vm5001, %v2714, %v2705
      %v6798 = vsel %vm5003, %v2723, %v6797
      %v6799 = vsel %vm5005, %v2732, %v6798
      %v6800 = vsel %vm5001, %v2750, %v2741
      %v6801 = vsel %vm5003, %v2759, %v6800
      %v6802 = vsel %vm5005, %v2768, %v6801
      %v6803 = vsel %vm5001, %v2786, %v2777
      %v6804 = vsel %vm5003, %v2795, %v6803
      %v6805 = vsel %vm5005, %v2804, %v6804
      %v6806 = vsel %vm5001, %v2822, %v2813
      %v6807 = vsel %vm5003, %v2831, %v6806
      %v6808 = vsel %vm5005, %v2840, %v6807
      %v6809 = vsel %vm5001, %v2858, %v2849
      %v6810 = vsel %vm5003, %v2867, %v6809
      %v6811 = vsel %vm5005, %v2876, %v6810
      %v6812 = vsel %vm5001, %v2894, %v2885
      %v6813 = vsel %vm5003, %v2903, %v6812
      %v6814 = vsel %vm5005, %v2912, %v6813
      %v6815 = vsel %vm5001, %v2930, %v2921
      %v6816 = vsel %vm5003, %v2939, %v6815
      %v6817 = vsel %vm5005, %v2948, %v6816
      %v6818 = vsel %vm5001, %v2966, %v2957
      %v6819 = vsel %vm5003, %v2975, %v6818
      %v6820 = vsel %vm5005, %v2984, %v6819
      %v6837 = vsel %vm4921, %v6775, -inf
      %v6838 = vsel %vm4922, %v6778, -inf
      %v6839 = vsel %vm4923, %v6781, -inf
      %v6840 = vsel %vm4924, %v6784, -inf
      %v6841 = vsel %vm4925, %v6787, -inf
      %v6842 = vsel %vm4926, %v6790, -inf
      %v6843 = vsel %vm4927, %v6793, -inf
      %v6844 = vsel %vm4928, %v6796, -inf
      %v6845 = vsel %vm4929, %v6799, -inf
      %v6846 = vsel %vm4930, %v6802, -inf
      %v6847 = vsel %vm4931, %v6805, -inf
      %v6848 = vsel %vm4932, %v6808, -inf
      %v6849 = vsel %vm4933, %v6811, -inf
      %v6850 = vsel %vm4934, %v6814, -inf
      %v6851 = vsel %vm4935, %v6817, -inf
      %v6852 = vsel %vm4936, %v6820, -inf
      %v6853 = vsel %vm5084, %v6837, -inf
      %6854 = vmax.xlane.f32.xlu0 %v6853
      %v6855 = vpop.xlane.xlu0 %6854
      %v6856 = vsel %vm5084, %v6838, -inf
      %6857 = vmax.xlane.f32.xlu0 %v6856
      %v6858 = vpop.xlane.xlu0 %6857
      %v6859 = vsel %vm5084, %v6839, -inf
      %6860 = vmax.xlane.f32.xlu0 %v6859
      %v6861 = vpop.xlane.xlu0 %6860
      %v6862 = vsel %vm5084, %v6840, -inf
      %6863 = vmax.xlane.f32.xlu0 %v6862
      %v6864 = vpop.xlane.xlu0 %6863
      %v6865 = vsel %vm5084, %v6841, -inf
      %6866 = vmax.xlane.f32.xlu0 %v6865
      %v6867 = vpop.xlane.xlu0 %6866
      %v6868 = vsel %vm5084, %v6842, -inf
      %6869 = vmax.xlane.f32.xlu0 %v6868
      %v6870 = vpop.xlane.xlu0 %6869
      %v6871 = vsel %vm5084, %v6843, -inf
      %6872 = vmax.xlane.f32.xlu0 %v6871
      %v6873 = vpop.xlane.xlu0 %6872
      %v6874 = vsel %vm5084, %v6844, -inf
      %6875 = vmax.xlane.f32.xlu0 %v6874
      %v6876 = vpop.xlane.xlu0 %6875
      %v6877 = vsel %vm5084, %v6845, -inf
      %6878 = vmax.xlane.f32.xlu0 %v6877
      %v6879 = vpop.xlane.xlu0 %6878
      %v6880 = vsel %vm5084, %v6846, -inf
      %6881 = vmax.xlane.f32.xlu0 %v6880
      %v6882 = vpop.xlane.xlu0 %6881
      %v6883 = vsel %vm5084, %v6847, -inf
      %6884 = vmax.xlane.f32.xlu0 %v6883
      %v6885 = vpop.xlane.xlu0 %6884
      %v6886 = vsel %vm5084, %v6848, -inf
      %6887 = vmax.xlane.f32.xlu0 %v6886
      %v6888 = vpop.xlane.xlu0 %6887
      %v6889 = vsel %vm5084, %v6849, -inf
      %6890 = vmax.xlane.f32.xlu0 %v6889
      %v6891 = vpop.xlane.xlu0 %6890
      %v6892 = vsel %vm5084, %v6850, -inf
      %6893 = vmax.xlane.f32.xlu0 %v6892
      %v6894 = vpop.xlane.xlu0 %6893
      %v6895 = vsel %vm5084, %v6851, -inf
      %6896 = vmax.xlane.f32.xlu0 %v6895
      %v6897 = vpop.xlane.xlu0 %6896
      %v6898 = vsel %vm5084, %v6852, -inf
      %6899 = vmax.xlane.f32.xlu0 %v6898
      %v6900 = vpop.xlane.xlu0 %6899
      %6901 = vrot.lane.b32.xlu0 %v5133, 122
      %v6902 = vpop.permute.xlu0 %6901
      %6903 = vrot.lane.b32.xlu0 %v5134, 122
      %v6904 = vpop.permute.xlu0 %6903
      %vm6905 = vcmp.ne.s32.totalorder %v6902, 0
      %vm6906 = vcmp.ne.s32.totalorder %v6904, 0
      %vm6907 = vmor %vm1319, %vm6905
      %vm6908 = vmor %vm1320, %vm6906
      %v6909 = vsel %vm6907, 1, 0
      %v6910 = vsel %vm6908, 1, 0
      %6911 = vset.pattern.permute.xlu0 6
      %6912 = vperm.xlu0 %6911, %v6909
      %v6913 = vpop.permute.xlu0 %6912
      %6914 = vset.pattern.permute.xlu0 6
      %6915 = vperm.xlu0 %6914, %v6910
      %v6916 = vpop.permute.xlu0 %6915
      %vm6917 = vcmp.eq.s32.totalorder %v6913, 1
      %vm6918 = vcmp.eq.s32.totalorder %v6916, 1
      %v6935 = vlaneseq
      %v6936 = vshrl.u32 %v6935, 7
      %v6937 = vsub.s32 %v63, %v6936
      %v6938 = vrot.slane %v6855, %v6937
      %v6939 = vlaneseq
      %v6940 = vshrl.u32 %v6939, 7
      %v6941 = vsub.s32 %v63, %v6940
      %v6942 = vrot.slane %v6858, %v6941
      %v6943 = vlaneseq
      %v6944 = vshrl.u32 %v6943, 7
      %v6945 = vsub.s32 %v63, %v6944
      %v6946 = vrot.slane %v6861, %v6945
      %v6947 = vlaneseq
      %v6948 = vshrl.u32 %v6947, 7
      %v6949 = vsub.s32 %v63, %v6948
      %v6950 = vrot.slane %v6864, %v6949
      %v6951 = vlaneseq
      %v6952 = vshrl.u32 %v6951, 7
      %v6953 = vsub.s32 %v63, %v6952
      %v6954 = vrot.slane %v6867, %v6953
      %v6955 = vlaneseq
      %v6956 = vshrl.u32 %v6955, 7
      %v6957 = vsub.s32 %v63, %v6956
      %v6958 = vrot.slane %v6870, %v6957
      %v6959 = vlaneseq
      %v6960 = vshrl.u32 %v6959, 7
      %v6961 = vsub.s32 %v63, %v6960
      %v6962 = vrot.slane %v6873, %v6961
      %v6963 = vlaneseq
      %v6964 = vshrl.u32 %v6963, 7
      %v6965 = vsub.s32 %v63, %v6964
      %v6966 = vrot.slane %v6876, %v6965
      %v6967 = vlaneseq
      %v6968 = vshrl.u32 %v6967, 7
      %v6969 = vsub.s32 %v63, %v6968
      %v6970 = vrot.slane %v6879, %v6969
      %v6971 = vlaneseq
      %v6972 = vshrl.u32 %v6971, 7
      %v6973 = vsub.s32 %v63, %v6972
      %v6974 = vrot.slane %v6882, %v6973
      %v6975 = vlaneseq
      %v6976 = vshrl.u32 %v6975, 7
      %v6977 = vsub.s32 %v63, %v6976
      %v6978 = vrot.slane %v6885, %v6977
      %v6979 = vlaneseq
      %v6980 = vshrl.u32 %v6979, 7
      %v6981 = vsub.s32 %v63, %v6980
      %v6982 = vrot.slane %v6888, %v6981
      %v6983 = vlaneseq
      %v6984 = vshrl.u32 %v6983, 7
      %v6985 = vsub.s32 %v63, %v6984
      %v6986 = vrot.slane %v6891, %v6985
      %v6987 = vlaneseq
      %v6988 = vshrl.u32 %v6987, 7
      %v6989 = vsub.s32 %v63, %v6988
      %v6990 = vrot.slane %v6894, %v6989
      %v6991 = vlaneseq
      %v6992 = vshrl.u32 %v6991, 7
      %v6993 = vsub.s32 %v63, %v6992
      %v6994 = vrot.slane %v6897, %v6993
      %v6995 = vlaneseq
      %v6996 = vshrl.u32 %v6995, 7
      %v6997 = vsub.s32 %v63, %v6996
      %v6998 = vrot.slane %v6900, %v6997
      %v6999 = vsel %vm5001, %v6942, %v6938
      %v7000 = vsel %vm5003, %v6946, %v6999
      %v7001 = vsel %vm5005, %v6950, %v7000
      %v7002 = vsel %vm5236, %v6954, %v7001
      %v7003 = vsel %vm5238, %v6958, %v7002
      %v7004 = vsel %vm5240, %v6962, %v7003
      %v7005 = vsel %vm5242, %v6966, %v7004
      %v7006 = vsel %vm5001, %v6974, %v6970
      %v7007 = vsel %vm5003, %v6978, %v7006
      %v7008 = vsel %vm5005, %v6982, %v7007
      %v7009 = vsel %vm5236, %v6986, %v7008
      %v7010 = vsel %vm5238, %v6990, %v7009
      %v7011 = vsel %vm5240, %v6994, %v7010
      %v7012 = vsel %vm5242, %v6998, %v7011
      %v7015 = vsel %vm6917, 0.0, %v7005
      %v7016 = vsel %vm6918, 0.0, %v7012
      %v7017 = vsel %vm5271, %v6775, -inf
      %v7018 = vsel %vm5272, %v6778, -inf
      %v7019 = vsel %vm5273, %v6781, -inf
      %v7020 = vsel %vm5274, %v6784, -inf
      %v7021 = vsel %vm5275, %v6787, -inf
      %v7022 = vsel %vm5276, %v6790, -inf
      %v7023 = vsel %vm5277, %v6793, -inf
      %v7024 = vsel %vm5278, %v6796, -inf
      %v7025 = vsel %vm5279, %v6799, -inf
      %v7026 = vsel %vm5280, %v6802, -inf
      %v7027 = vsel %vm5281, %v6805, -inf
      %v7028 = vsel %vm5282, %v6808, -inf
      %v7029 = vsel %vm5283, %v6811, -inf
      %v7030 = vsel %vm5284, %v6814, -inf
      %v7031 = vsel %vm5285, %v6817, -inf
      %v7032 = vsel %vm5286, %v6820, -inf
      %v7033 = vsel %vm5084, %v7017, -inf
      %7034 = vmax.xlane.f32.xlu0 %v7033
      %v7035 = vpop.xlane.xlu0 %7034
      %v7036 = vsel %vm5084, %v7018, -inf
      %7037 = vmax.xlane.f32.xlu0 %v7036
      %v7038 = vpop.xlane.xlu0 %7037
      %v7039 = vsel %vm5084, %v7019, -inf
      %7040 = vmax.xlane.f32.xlu0 %v7039
      %v7041 = vpop.xlane.xlu0 %7040
      %v7042 = vsel %vm5084, %v7020, -inf
      %7043 = vmax.xlane.f32.xlu0 %v7042
      %v7044 = vpop.xlane.xlu0 %7043
      %v7045 = vsel %vm5084, %v7021, -inf
      %7046 = vmax.xlane.f32.xlu0 %v7045
      %v7047 = vpop.xlane.xlu0 %7046
      %v7048 = vsel %vm5084, %v7022, -inf
      %7049 = vmax.xlane.f32.xlu0 %v7048
      %v7050 = vpop.xlane.xlu0 %7049
      %v7051 = vsel %vm5084, %v7023, -inf
      %7052 = vmax.xlane.f32.xlu0 %v7051
      %v7053 = vpop.xlane.xlu0 %7052
      %v7054 = vsel %vm5084, %v7024, -inf
      %7055 = vmax.xlane.f32.xlu0 %v7054
      %v7056 = vpop.xlane.xlu0 %7055
      %v7057 = vsel %vm5084, %v7025, -inf
      %7058 = vmax.xlane.f32.xlu0 %v7057
      %v7059 = vpop.xlane.xlu0 %7058
      %v7060 = vsel %vm5084, %v7026, -inf
      %7061 = vmax.xlane.f32.xlu0 %v7060
      %v7062 = vpop.xlane.xlu0 %7061
      %v7063 = vsel %vm5084, %v7027, -inf
      %7064 = vmax.xlane.f32.xlu0 %v7063
      %v7065 = vpop.xlane.xlu0 %7064
      %v7066 = vsel %vm5084, %v7028, -inf
      %7067 = vmax.xlane.f32.xlu0 %v7066
      %v7068 = vpop.xlane.xlu0 %7067
      %v7069 = vsel %vm5084, %v7029, -inf
      %7070 = vmax.xlane.f32.xlu0 %v7069
      %v7071 = vpop.xlane.xlu0 %7070
      %v7072 = vsel %vm5084, %v7030, -inf
      %7073 = vmax.xlane.f32.xlu0 %v7072
      %v7074 = vpop.xlane.xlu0 %7073
      %v7075 = vsel %vm5084, %v7031, -inf
      %7076 = vmax.xlane.f32.xlu0 %v7075
      %v7077 = vpop.xlane.xlu0 %7076
      %v7078 = vsel %vm5084, %v7032, -inf
      %7079 = vmax.xlane.f32.xlu0 %v7078
      %v7080 = vpop.xlane.xlu0 %7079
      %7081 = vset.pattern.permute.xlu0 6
      %7082 = vperm.xlu0 %7081, %v6091
      %v7083 = vpop.permute.xlu0 %7082
      %7084 = vset.pattern.permute.xlu0 6
      %7085 = vperm.xlu0 %7084, %v6092
      %v7086 = vpop.permute.xlu0 %7085
      %vm7087 = vcmp.eq.s32.totalorder %v7083, 1
      %vm7088 = vcmp.eq.s32.totalorder %v7086, 1
      %v7105 = vlaneseq
      %v7106 = vshrl.u32 %v7105, 7
      %v7107 = vsub.s32 %v63, %v7106
      %v7108 = vrot.slane %v7035, %v7107
      %v7109 = vlaneseq
      %v7110 = vshrl.u32 %v7109, 7
      %v7111 = vsub.s32 %v63, %v7110
      %v7112 = vrot.slane %v7038, %v7111
      %v7113 = vlaneseq
      %v7114 = vshrl.u32 %v7113, 7
      %v7115 = vsub.s32 %v63, %v7114
      %v7116 = vrot.slane %v7041, %v7115
      %v7117 = vlaneseq
      %v7118 = vshrl.u32 %v7117, 7
      %v7119 = vsub.s32 %v63, %v7118
      %v7120 = vrot.slane %v7044, %v7119
      %v7121 = vlaneseq
      %v7122 = vshrl.u32 %v7121, 7
      %v7123 = vsub.s32 %v63, %v7122
      %v7124 = vrot.slane %v7047, %v7123
      %v7125 = vlaneseq
      %v7126 = vshrl.u32 %v7125, 7
      %v7127 = vsub.s32 %v63, %v7126
      %v7128 = vrot.slane %v7050, %v7127
      %v7129 = vlaneseq
      %v7130 = vshrl.u32 %v7129, 7
      %v7131 = vsub.s32 %v63, %v7130
      %v7132 = vrot.slane %v7053, %v7131
      %v7133 = vlaneseq
      %v7134 = vshrl.u32 %v7133, 7
      %v7135 = vsub.s32 %v63, %v7134
      %v7136 = vrot.slane %v7056, %v7135
      %v7137 = vlaneseq
      %v7138 = vshrl.u32 %v7137, 7
      %v7139 = vsub.s32 %v63, %v7138
      %v7140 = vrot.slane %v7059, %v7139
      %v7141 = vlaneseq
      %v7142 = vshrl.u32 %v7141, 7
      %v7143 = vsub.s32 %v63, %v7142
      %v7144 = vrot.slane %v7062, %v7143
      %v7145 = vlaneseq
      %v7146 = vshrl.u32 %v7145, 7
      %v7147 = vsub.s32 %v63, %v7146
      %v7148 = vrot.slane %v7065, %v7147
      %v7149 = vlaneseq
      %v7150 = vshrl.u32 %v7149, 7
      %v7151 = vsub.s32 %v63, %v7150
      %v7152 = vrot.slane %v7068, %v7151
      %v7153 = vlaneseq
      %v7154 = vshrl.u32 %v7153, 7
      %v7155 = vsub.s32 %v63, %v7154
      %v7156 = vrot.slane %v7071, %v7155
      %v7157 = vlaneseq
      %v7158 = vshrl.u32 %v7157, 7
      %v7159 = vsub.s32 %v63, %v7158
      %v7160 = vrot.slane %v7074, %v7159
      %v7161 = vlaneseq
      %v7162 = vshrl.u32 %v7161, 7
      %v7163 = vsub.s32 %v63, %v7162
      %v7164 = vrot.slane %v7077, %v7163
      %v7165 = vlaneseq
      %v7166 = vshrl.u32 %v7165, 7
      %v7167 = vsub.s32 %v63, %v7166
      %v7168 = vrot.slane %v7080, %v7167
      %v7169 = vsel %vm5001, %v7112, %v7108
      %v7170 = vsel %vm5003, %v7116, %v7169
      %v7171 = vsel %vm5005, %v7120, %v7170
      %v7172 = vsel %vm5236, %v7124, %v7171
      %v7173 = vsel %vm5238, %v7128, %v7172
      %v7174 = vsel %vm5240, %v7132, %v7173
      %v7175 = vsel %vm5242, %v7136, %v7174
      %v7176 = vsel %vm5001, %v7144, %v7140
      %v7177 = vsel %vm5003, %v7148, %v7176
      %v7178 = vsel %vm5005, %v7152, %v7177
      %v7179 = vsel %vm5236, %v7156, %v7178
      %v7180 = vsel %vm5238, %v7160, %v7179
      %v7181 = vsel %vm5240, %v7164, %v7180
      %v7182 = vsel %vm5242, %v7168, %v7181
      %v7185 = vsel %vm7087, 0.0, %v7175
      %v7186 = vsel %vm7088, 0.0, %v7182
      %v7187 = vsel %vm5483, %v6775, -inf
      %v7188 = vsel %vm5484, %v6778, -inf
      %v7189 = vsel %vm5485, %v6781, -inf
      %v7190 = vsel %vm5486, %v6784, -inf
      %v7191 = vsel %vm5487, %v6787, -inf
      %v7192 = vsel %vm5488, %v6790, -inf
      %v7193 = vsel %vm5489, %v6793, -inf
      %v7194 = vsel %vm5490, %v6796, -inf
      %v7195 = vsel %vm5491, %v6799, -inf
      %v7196 = vsel %vm5492, %v6802, -inf
      %v7197 = vsel %vm5493, %v6805, -inf
      %v7198 = vsel %vm5494, %v6808, -inf
      %v7199 = vsel %vm5495, %v6811, -inf
      %v7200 = vsel %vm5496, %v6814, -inf
      %v7201 = vsel %vm5497, %v6817, -inf
      %v7202 = vsel %vm5498, %v6820, -inf
      %v7203 = vsel %vm5084, %v7187, -inf
      %7204 = vmax.xlane.f32.xlu0 %v7203
      %v7205 = vpop.xlane.xlu0 %7204
      %v7206 = vsel %vm5084, %v7188, -inf
      %7207 = vmax.xlane.f32.xlu0 %v7206
      %v7208 = vpop.xlane.xlu0 %7207
      %v7209 = vsel %vm5084, %v7189, -inf
      %7210 = vmax.xlane.f32.xlu0 %v7209
      %v7211 = vpop.xlane.xlu0 %7210
      %v7212 = vsel %vm5084, %v7190, -inf
      %7213 = vmax.xlane.f32.xlu0 %v7212
      %v7214 = vpop.xlane.xlu0 %7213
      %v7215 = vsel %vm5084, %v7191, -inf
      %7216 = vmax.xlane.f32.xlu0 %v7215
      %v7217 = vpop.xlane.xlu0 %7216
      %v7218 = vsel %vm5084, %v7192, -inf
      %7219 = vmax.xlane.f32.xlu0 %v7218
      %v7220 = vpop.xlane.xlu0 %7219
      %v7221 = vsel %vm5084, %v7193, -inf
      %7222 = vmax.xlane.f32.xlu0 %v7221
      %v7223 = vpop.xlane.xlu0 %7222
      %v7224 = vsel %vm5084, %v7194, -inf
      %7225 = vmax.xlane.f32.xlu0 %v7224
      %v7226 = vpop.xlane.xlu0 %7225
      %v7227 = vsel %vm5084, %v7195, -inf
      %7228 = vmax.xlane.f32.xlu0 %v7227
      %v7229 = vpop.xlane.xlu0 %7228
      %v7230 = vsel %vm5084, %v7196, -inf
      %7231 = vmax.xlane.f32.xlu0 %v7230
      %v7232 = vpop.xlane.xlu0 %7231
      %v7233 = vsel %vm5084, %v7197, -inf
      %7234 = vmax.xlane.f32.xlu0 %v7233
      %v7235 = vpop.xlane.xlu0 %7234
      %v7236 = vsel %vm5084, %v7198, -inf
      %7237 = vmax.xlane.f32.xlu0 %v7236
      %v7238 = vpop.xlane.xlu0 %7237
      %v7239 = vsel %vm5084, %v7199, -inf
      %7240 = vmax.xlane.f32.xlu0 %v7239
      %v7241 = vpop.xlane.xlu0 %7240
      %v7242 = vsel %vm5084, %v7200, -inf
      %7243 = vmax.xlane.f32.xlu0 %v7242
      %v7244 = vpop.xlane.xlu0 %7243
      %v7245 = vsel %vm5084, %v7201, -inf
      %7246 = vmax.xlane.f32.xlu0 %v7245
      %v7247 = vpop.xlane.xlu0 %7246
      %v7248 = vsel %vm5084, %v7202, -inf
      %7249 = vmax.xlane.f32.xlu0 %v7248
      %v7250 = vpop.xlane.xlu0 %7249
      %7251 = vset.pattern.permute.xlu0 6
      %7252 = vperm.xlu0 %7251, %v5143
      %v7253 = vpop.permute.xlu0 %7252
      %7254 = vset.pattern.permute.xlu0 6
      %7255 = vperm.xlu0 %7254, %v5144
      %v7256 = vpop.permute.xlu0 %7255
      %vm7257 = vcmp.eq.s32.totalorder %v7253, 1
      %vm7258 = vcmp.eq.s32.totalorder %v7256, 1
      %v7275 = vlaneseq
      %v7276 = vshrl.u32 %v7275, 7
      %v7277 = vsub.s32 %v63, %v7276
      %v7278 = vrot.slane %v7205, %v7277
      %v7279 = vlaneseq
      %v7280 = vshrl.u32 %v7279, 7
      %v7281 = vsub.s32 %v63, %v7280
      %v7282 = vrot.slane %v7208, %v7281
      %v7283 = vlaneseq
      %v7284 = vshrl.u32 %v7283, 7
      %v7285 = vsub.s32 %v63, %v7284
      %v7286 = vrot.slane %v7211, %v7285
      %v7287 = vlaneseq
      %v7288 = vshrl.u32 %v7287, 7
      %v7289 = vsub.s32 %v63, %v7288
      %v7290 = vrot.slane %v7214, %v7289
      %v7291 = vlaneseq
      %v7292 = vshrl.u32 %v7291, 7
      %v7293 = vsub.s32 %v63, %v7292
      %v7294 = vrot.slane %v7217, %v7293
      %v7295 = vlaneseq
      %v7296 = vshrl.u32 %v7295, 7
      %v7297 = vsub.s32 %v63, %v7296
      %v7298 = vrot.slane %v7220, %v7297
      %v7299 = vlaneseq
      %v7300 = vshrl.u32 %v7299, 7
      %v7301 = vsub.s32 %v63, %v7300
      %v7302 = vrot.slane %v7223, %v7301
      %v7303 = vlaneseq
      %v7304 = vshrl.u32 %v7303, 7
      %v7305 = vsub.s32 %v63, %v7304
      %v7306 = vrot.slane %v7226, %v7305
      %v7307 = vlaneseq
      %v7308 = vshrl.u32 %v7307, 7
      %v7309 = vsub.s32 %v63, %v7308
      %v7310 = vrot.slane %v7229, %v7309
      %v7311 = vlaneseq
      %v7312 = vshrl.u32 %v7311, 7
      %v7313 = vsub.s32 %v63, %v7312
      %v7314 = vrot.slane %v7232, %v7313
      %v7315 = vlaneseq
      %v7316 = vshrl.u32 %v7315, 7
      %v7317 = vsub.s32 %v63, %v7316
      %v7318 = vrot.slane %v7235, %v7317
      %v7319 = vlaneseq
      %v7320 = vshrl.u32 %v7319, 7
      %v7321 = vsub.s32 %v63, %v7320
      %v7322 = vrot.slane %v7238, %v7321
      %v7323 = vlaneseq
      %v7324 = vshrl.u32 %v7323, 7
      %v7325 = vsub.s32 %v63, %v7324
      %v7326 = vrot.slane %v7241, %v7325
      %v7327 = vlaneseq
      %v7328 = vshrl.u32 %v7327, 7
      %v7329 = vsub.s32 %v63, %v7328
      %v7330 = vrot.slane %v7244, %v7329
      %v7331 = vlaneseq
      %v7332 = vshrl.u32 %v7331, 7
      %v7333 = vsub.s32 %v63, %v7332
      %v7334 = vrot.slane %v7247, %v7333
      %v7335 = vlaneseq
      %v7336 = vshrl.u32 %v7335, 7
      %v7337 = vsub.s32 %v63, %v7336
      %v7338 = vrot.slane %v7250, %v7337
      %v7339 = vsel %vm5001, %v7282, %v7278
      %v7340 = vsel %vm5003, %v7286, %v7339
      %v7341 = vsel %vm5005, %v7290, %v7340
      %v7342 = vsel %vm5236, %v7294, %v7341
      %v7343 = vsel %vm5238, %v7298, %v7342
      %v7344 = vsel %vm5240, %v7302, %v7343
      %v7345 = vsel %vm5242, %v7306, %v7344
      %v7346 = vsel %vm5001, %v7314, %v7310
      %v7347 = vsel %vm5003, %v7318, %v7346
      %v7348 = vsel %vm5005, %v7322, %v7347
      %v7349 = vsel %vm5236, %v7326, %v7348
      %v7350 = vsel %vm5238, %v7330, %v7349
      %v7351 = vsel %vm5240, %v7334, %v7350
      %v7352 = vsel %vm5242, %v7338, %v7351
      %v7355 = vsel %vm7257, 0.0, %v7345
      %v7356 = vsel %vm7258, 0.0, %v7352
      %v7357 = vsel %vm5695, %v6775, -inf
      %v7358 = vsel %vm5696, %v6778, -inf
      %v7359 = vsel %vm5697, %v6781, -inf
      %v7360 = vsel %vm5698, %v6784, -inf
      %v7361 = vsel %vm5699, %v6787, -inf
      %v7362 = vsel %vm5700, %v6790, -inf
      %v7363 = vsel %vm5701, %v6793, -inf
      %v7364 = vsel %vm5702, %v6796, -inf
      %v7365 = vsel %vm5703, %v6799, -inf
      %v7366 = vsel %vm5704, %v6802, -inf
      %v7367 = vsel %vm5705, %v6805, -inf
      %v7368 = vsel %vm5706, %v6808, -inf
      %v7369 = vsel %vm5707, %v6811, -inf
      %v7370 = vsel %vm5708, %v6814, -inf
      %v7371 = vsel %vm5709, %v6817, -inf
      %v7372 = vsel %vm5710, %v6820, -inf
      %v7373 = vsel %vm5084, %v7357, -inf
      %7374 = vmax.xlane.f32.xlu0 %v7373
      %v7375 = vpop.xlane.xlu0 %7374
      %v7376 = vsel %vm5084, %v7358, -inf
      %7377 = vmax.xlane.f32.xlu0 %v7376
      %v7378 = vpop.xlane.xlu0 %7377
      %v7379 = vsel %vm5084, %v7359, -inf
      %7380 = vmax.xlane.f32.xlu0 %v7379
      %v7381 = vpop.xlane.xlu0 %7380
      %v7382 = vsel %vm5084, %v7360, -inf
      %7383 = vmax.xlane.f32.xlu0 %v7382
      %v7384 = vpop.xlane.xlu0 %7383
      %v7385 = vsel %vm5084, %v7361, -inf
      %7386 = vmax.xlane.f32.xlu0 %v7385
      %v7387 = vpop.xlane.xlu0 %7386
      %v7388 = vsel %vm5084, %v7362, -inf
      %7389 = vmax.xlane.f32.xlu0 %v7388
      %v7390 = vpop.xlane.xlu0 %7389
      %v7391 = vsel %vm5084, %v7363, -inf
      %7392 = vmax.xlane.f32.xlu0 %v7391
      %v7393 = vpop.xlane.xlu0 %7392
      %v7394 = vsel %vm5084, %v7364, -inf
      %7395 = vmax.xlane.f32.xlu0 %v7394
      %v7396 = vpop.xlane.xlu0 %7395
      %v7397 = vsel %vm5084, %v7365, -inf
      %7398 = vmax.xlane.f32.xlu0 %v7397
      %v7399 = vpop.xlane.xlu0 %7398
      %v7400 = vsel %vm5084, %v7366, -inf
      %7401 = vmax.xlane.f32.xlu0 %v7400
      %v7402 = vpop.xlane.xlu0 %7401
      %v7403 = vsel %vm5084, %v7367, -inf
      %7404 = vmax.xlane.f32.xlu0 %v7403
      %v7405 = vpop.xlane.xlu0 %7404
      %v7406 = vsel %vm5084, %v7368, -inf
      %7407 = vmax.xlane.f32.xlu0 %v7406
      %v7408 = vpop.xlane.xlu0 %7407
      %v7409 = vsel %vm5084, %v7369, -inf
      %7410 = vmax.xlane.f32.xlu0 %v7409
      %v7411 = vpop.xlane.xlu0 %7410
      %v7412 = vsel %vm5084, %v7370, -inf
      %7413 = vmax.xlane.f32.xlu0 %v7412
      %v7414 = vpop.xlane.xlu0 %7413
      %v7415 = vsel %vm5084, %v7371, -inf
      %7416 = vmax.xlane.f32.xlu0 %v7415
      %v7417 = vpop.xlane.xlu0 %7416
      %v7418 = vsel %vm5084, %v7372, -inf
      %7419 = vmax.xlane.f32.xlu0 %v7418
      %v7420 = vpop.xlane.xlu0 %7419
      %7421 = vset.pattern.permute.xlu0 6
      %7422 = vperm.xlu0 %7421, %v5359
      %v7423 = vpop.permute.xlu0 %7422
      %7424 = vset.pattern.permute.xlu0 6
      %7425 = vperm.xlu0 %7424, %v5360
      %v7426 = vpop.permute.xlu0 %7425
      %vm7427 = vcmp.eq.s32.totalorder %v7423, 1
      %vm7428 = vcmp.eq.s32.totalorder %v7426, 1
      %v7445 = vlaneseq
      %v7446 = vshrl.u32 %v7445, 7
      %v7447 = vsub.s32 %v63, %v7446
      %v7448 = vrot.slane %v7375, %v7447
      %v7449 = vlaneseq
      %v7450 = vshrl.u32 %v7449, 7
      %v7451 = vsub.s32 %v63, %v7450
      %v7452 = vrot.slane %v7378, %v7451
      %v7453 = vlaneseq
      %v7454 = vshrl.u32 %v7453, 7
      %v7455 = vsub.s32 %v63, %v7454
      %v7456 = vrot.slane %v7381, %v7455
      %v7457 = vlaneseq
      %v7458 = vshrl.u32 %v7457, 7
      %v7459 = vsub.s32 %v63, %v7458
      %v7460 = vrot.slane %v7384, %v7459
      %v7461 = vlaneseq
      %v7462 = vshrl.u32 %v7461, 7
      %v7463 = vsub.s32 %v63, %v7462
      %v7464 = vrot.slane %v7387, %v7463
      %v7465 = vlaneseq
      %v7466 = vshrl.u32 %v7465, 7
      %v7467 = vsub.s32 %v63, %v7466
      %v7468 = vrot.slane %v7390, %v7467
      %v7469 = vlaneseq
      %v7470 = vshrl.u32 %v7469, 7
      %v7471 = vsub.s32 %v63, %v7470
      %v7472 = vrot.slane %v7393, %v7471
      %v7473 = vlaneseq
      %v7474 = vshrl.u32 %v7473, 7
      %v7475 = vsub.s32 %v63, %v7474
      %v7476 = vrot.slane %v7396, %v7475
      %v7477 = vlaneseq
      %v7478 = vshrl.u32 %v7477, 7
      %v7479 = vsub.s32 %v63, %v7478
      %v7480 = vrot.slane %v7399, %v7479
      %v7481 = vlaneseq
      %v7482 = vshrl.u32 %v7481, 7
      %v7483 = vsub.s32 %v63, %v7482
      %v7484 = vrot.slane %v7402, %v7483
      %v7485 = vlaneseq
      %v7486 = vshrl.u32 %v7485, 7
      %v7487 = vsub.s32 %v63, %v7486
      %v7488 = vrot.slane %v7405, %v7487
      %v7489 = vlaneseq
      %v7490 = vshrl.u32 %v7489, 7
      %v7491 = vsub.s32 %v63, %v7490
      %v7492 = vrot.slane %v7408, %v7491
      %v7493 = vlaneseq
      %v7494 = vshrl.u32 %v7493, 7
      %v7495 = vsub.s32 %v63, %v7494
      %v7496 = vrot.slane %v7411, %v7495
      %v7497 = vlaneseq
      %v7498 = vshrl.u32 %v7497, 7
      %v7499 = vsub.s32 %v63, %v7498
      %v7500 = vrot.slane %v7414, %v7499
      %v7501 = vlaneseq
      %v7502 = vshrl.u32 %v7501, 7
      %v7503 = vsub.s32 %v63, %v7502
      %v7504 = vrot.slane %v7417, %v7503
      %v7505 = vlaneseq
      %v7506 = vshrl.u32 %v7505, 7
      %v7507 = vsub.s32 %v63, %v7506
      %v7508 = vrot.slane %v7420, %v7507
      %v7509 = vsel %vm5001, %v7452, %v7448
      %v7510 = vsel %vm5003, %v7456, %v7509
      %v7511 = vsel %vm5005, %v7460, %v7510
      %v7512 = vsel %vm5236, %v7464, %v7511
      %v7513 = vsel %vm5238, %v7468, %v7512
      %v7514 = vsel %vm5240, %v7472, %v7513
      %v7515 = vsel %vm5242, %v7476, %v7514
      %v7516 = vsel %vm5001, %v7484, %v7480
      %v7517 = vsel %vm5003, %v7488, %v7516
      %v7518 = vsel %vm5005, %v7492, %v7517
      %v7519 = vsel %vm5236, %v7496, %v7518
      %v7520 = vsel %vm5238, %v7500, %v7519
      %v7521 = vsel %vm5240, %v7504, %v7520
      %v7522 = vsel %vm5242, %v7508, %v7521
      %v7525 = vsel %vm7427, 0.0, %v7515
      %v7526 = vsel %vm7428, 0.0, %v7522
      %v7591 = vsel %vm5001, %v3258, %v3249
      %v7592 = vsel %vm5003, %v3267, %v7591
      %v7593 = vsel %vm5005, %v3276, %v7592
      %v7594 = vsel %vm5001, %v3294, %v3285
      %v7595 = vsel %vm5003, %v3303, %v7594
      %v7596 = vsel %vm5005, %v3312, %v7595
      %v7597 = vsel %vm5001, %v3330, %v3321
      %v7598 = vsel %vm5003, %v3339, %v7597
      %v7599 = vsel %vm5005, %v3348, %v7598
      %v7600 = vsel %vm5001, %v3366, %v3357
      %v7601 = vsel %vm5003, %v3375, %v7600
      %v7602 = vsel %vm5005, %v3384, %v7601
      %v7603 = vsel %vm5001, %v3402, %v3393
      %v7604 = vsel %vm5003, %v3411, %v7603
      %v7605 = vsel %vm5005, %v3420, %v7604
      %v7606 = vsel %vm5001, %v3438, %v3429
      %v7607 = vsel %vm5003, %v3447, %v7606
      %v7608 = vsel %vm5005, %v3456, %v7607
      %v7609 = vsel %vm5001, %v3474, %v3465
      %v7610 = vsel %vm5003, %v3483, %v7609
      %v7611 = vsel %vm5005, %v3492, %v7610
      %v7612 = vsel %vm5001, %v3510, %v3501
      %v7613 = vsel %vm5003, %v3519, %v7612
      %v7614 = vsel %vm5005, %v3528, %v7613
      %v7615 = vsel %vm5001, %v3546, %v3537
      %v7616 = vsel %vm5003, %v3555, %v7615
      %v7617 = vsel %vm5005, %v3564, %v7616
      %v7618 = vsel %vm5001, %v3582, %v3573
      %v7619 = vsel %vm5003, %v3591, %v7618
      %v7620 = vsel %vm5005, %v3600, %v7619
      %v7621 = vsel %vm5001, %v3618, %v3609
      %v7622 = vsel %vm5003, %v3627, %v7621
      %v7623 = vsel %vm5005, %v3636, %v7622
      %v7624 = vsel %vm5001, %v3654, %v3645
      %v7625 = vsel %vm5003, %v3663, %v7624
      %v7626 = vsel %vm5005, %v3672, %v7625
      %v7627 = vsel %vm5001, %v3690, %v3681
      %v7628 = vsel %vm5003, %v3699, %v7627
      %v7629 = vsel %vm5005, %v3708, %v7628
      %v7630 = vsel %vm5001, %v3726, %v3717
      %v7631 = vsel %vm5003, %v3735, %v7630
      %v7632 = vsel %vm5005, %v3744, %v7631
      %v7633 = vsel %vm5001, %v3762, %v3753
      %v7634 = vsel %vm5003, %v3771, %v7633
      %v7635 = vsel %vm5005, %v3780, %v7634
      %v7636 = vsel %vm5001, %v3798, %v3789
      %v7637 = vsel %vm5003, %v3807, %v7636
      %v7638 = vsel %vm5005, %v3816, %v7637
      %v7655 = vsel %vm4921, %v7593, -inf
      %v7656 = vsel %vm4922, %v7596, -inf
      %v7657 = vsel %vm4923, %v7599, -inf
      %v7658 = vsel %vm4924, %v7602, -inf
      %v7659 = vsel %vm4925, %v7605, -inf
      %v7660 = vsel %vm4926, %v7608, -inf
      %v7661 = vsel %vm4927, %v7611, -inf
      %v7662 = vsel %vm4928, %v7614, -inf
      %v7663 = vsel %vm4929, %v7617, -inf
      %v7664 = vsel %vm4930, %v7620, -inf
      %v7665 = vsel %vm4931, %v7623, -inf
      %v7666 = vsel %vm4932, %v7626, -inf
      %v7667 = vsel %vm4933, %v7629, -inf
      %v7668 = vsel %vm4934, %v7632, -inf
      %v7669 = vsel %vm4935, %v7635, -inf
      %v7670 = vsel %vm4936, %v7638, -inf
      %v7671 = vsel %vm5084, %v7655, -inf
      %7672 = vmax.xlane.f32.xlu0 %v7671
      %v7673 = vpop.xlane.xlu0 %7672
      %v7674 = vsel %vm5084, %v7656, -inf
      %7675 = vmax.xlane.f32.xlu0 %v7674
      %v7676 = vpop.xlane.xlu0 %7675
      %v7677 = vsel %vm5084, %v7657, -inf
      %7678 = vmax.xlane.f32.xlu0 %v7677
      %v7679 = vpop.xlane.xlu0 %7678
      %v7680 = vsel %vm5084, %v7658, -inf
      %7681 = vmax.xlane.f32.xlu0 %v7680
      %v7682 = vpop.xlane.xlu0 %7681
      %v7683 = vsel %vm5084, %v7659, -inf
      %7684 = vmax.xlane.f32.xlu0 %v7683
      %v7685 = vpop.xlane.xlu0 %7684
      %v7686 = vsel %vm5084, %v7660, -inf
      %7687 = vmax.xlane.f32.xlu0 %v7686
      %v7688 = vpop.xlane.xlu0 %7687
      %v7689 = vsel %vm5084, %v7661, -inf
      %7690 = vmax.xlane.f32.xlu0 %v7689
      %v7691 = vpop.xlane.xlu0 %7690
      %v7692 = vsel %vm5084, %v7662, -inf
      %7693 = vmax.xlane.f32.xlu0 %v7692
      %v7694 = vpop.xlane.xlu0 %7693
      %v7695 = vsel %vm5084, %v7663, -inf
      %7696 = vmax.xlane.f32.xlu0 %v7695
      %v7697 = vpop.xlane.xlu0 %7696
      %v7698 = vsel %vm5084, %v7664, -inf
      %7699 = vmax.xlane.f32.xlu0 %v7698
      %v7700 = vpop.xlane.xlu0 %7699
      %v7701 = vsel %vm5084, %v7665, -inf
      %7702 = vmax.xlane.f32.xlu0 %v7701
      %v7703 = vpop.xlane.xlu0 %7702
      %v7704 = vsel %vm5084, %v7666, -inf
      %7705 = vmax.xlane.f32.xlu0 %v7704
      %v7706 = vpop.xlane.xlu0 %7705
      %v7707 = vsel %vm5084, %v7667, -inf
      %7708 = vmax.xlane.f32.xlu0 %v7707
      %v7709 = vpop.xlane.xlu0 %7708
      %v7710 = vsel %vm5084, %v7668, -inf
      %7711 = vmax.xlane.f32.xlu0 %v7710
      %v7712 = vpop.xlane.xlu0 %7711
      %v7713 = vsel %vm5084, %v7669, -inf
      %7714 = vmax.xlane.f32.xlu0 %v7713
      %v7715 = vpop.xlane.xlu0 %7714
      %v7716 = vsel %vm5084, %v7670, -inf
      %7717 = vmax.xlane.f32.xlu0 %v7716
      %v7718 = vpop.xlane.xlu0 %7717
      %7719 = vrot.lane.b32.xlu0 %v5133, 123
      %v7720 = vpop.permute.xlu0 %7719
      %7721 = vrot.lane.b32.xlu0 %v5134, 123
      %v7722 = vpop.permute.xlu0 %7721
      %vm7723 = vcmp.ne.s32.totalorder %v7720, 0
      %vm7724 = vcmp.ne.s32.totalorder %v7722, 0
      %vm7725 = vmor %vm1319, %vm7723
      %vm7726 = vmor %vm1320, %vm7724
      %v7727 = vsel %vm7725, 1, 0
      %v7728 = vsel %vm7726, 1, 0
      %7729 = vset.pattern.permute.xlu0 7
      %7730 = vperm.xlu0 %7729, %v7727
      %v7731 = vpop.permute.xlu0 %7730
      %7732 = vset.pattern.permute.xlu0 7
      %7733 = vperm.xlu0 %7732, %v7728
      %v7734 = vpop.permute.xlu0 %7733
      %vm7735 = vcmp.eq.s32.totalorder %v7731, 1
      %vm7736 = vcmp.eq.s32.totalorder %v7734, 1
      %v7753 = vlaneseq
      %v7754 = vshrl.u32 %v7753, 7
      %v7755 = vsub.s32 %v63, %v7754
      %v7756 = vrot.slane %v7673, %v7755
      %v7757 = vlaneseq
      %v7758 = vshrl.u32 %v7757, 7
      %v7759 = vsub.s32 %v63, %v7758
      %v7760 = vrot.slane %v7676, %v7759
      %v7761 = vlaneseq
      %v7762 = vshrl.u32 %v7761, 7
      %v7763 = vsub.s32 %v63, %v7762
      %v7764 = vrot.slane %v7679, %v7763
      %v7765 = vlaneseq
      %v7766 = vshrl.u32 %v7765, 7
      %v7767 = vsub.s32 %v63, %v7766
      %v7768 = vrot.slane %v7682, %v7767
      %v7769 = vlaneseq
      %v7770 = vshrl.u32 %v7769, 7
      %v7771 = vsub.s32 %v63, %v7770
      %v7772 = vrot.slane %v7685, %v7771
      %v7773 = vlaneseq
      %v7774 = vshrl.u32 %v7773, 7
      %v7775 = vsub.s32 %v63, %v7774
      %v7776 = vrot.slane %v7688, %v7775
      %v7777 = vlaneseq
      %v7778 = vshrl.u32 %v7777, 7
      %v7779 = vsub.s32 %v63, %v7778
      %v7780 = vrot.slane %v7691, %v7779
      %v7781 = vlaneseq
      %v7782 = vshrl.u32 %v7781, 7
      %v7783 = vsub.s32 %v63, %v7782
      %v7784 = vrot.slane %v7694, %v7783
      %v7785 = vlaneseq
      %v7786 = vshrl.u32 %v7785, 7
      %v7787 = vsub.s32 %v63, %v7786
      %v7788 = vrot.slane %v7697, %v7787
      %v7789 = vlaneseq
      %v7790 = vshrl.u32 %v7789, 7
      %v7791 = vsub.s32 %v63, %v7790
      %v7792 = vrot.slane %v7700, %v7791
      %v7793 = vlaneseq
      %v7794 = vshrl.u32 %v7793, 7
      %v7795 = vsub.s32 %v63, %v7794
      %v7796 = vrot.slane %v7703, %v7795
      %v7797 = vlaneseq
      %v7798 = vshrl.u32 %v7797, 7
      %v7799 = vsub.s32 %v63, %v7798
      %v7800 = vrot.slane %v7706, %v7799
      %v7801 = vlaneseq
      %v7802 = vshrl.u32 %v7801, 7
      %v7803 = vsub.s32 %v63, %v7802
      %v7804 = vrot.slane %v7709, %v7803
      %v7805 = vlaneseq
      %v7806 = vshrl.u32 %v7805, 7
      %v7807 = vsub.s32 %v63, %v7806
      %v7808 = vrot.slane %v7712, %v7807
      %v7809 = vlaneseq
      %v7810 = vshrl.u32 %v7809, 7
      %v7811 = vsub.s32 %v63, %v7810
      %v7812 = vrot.slane %v7715, %v7811
      %v7813 = vlaneseq
      %v7814 = vshrl.u32 %v7813, 7
      %v7815 = vsub.s32 %v63, %v7814
      %v7816 = vrot.slane %v7718, %v7815
      %v7817 = vsel %vm5001, %v7760, %v7756
      %v7818 = vsel %vm5003, %v7764, %v7817
      %v7819 = vsel %vm5005, %v7768, %v7818
      %v7820 = vsel %vm5236, %v7772, %v7819
      %v7821 = vsel %vm5238, %v7776, %v7820
      %v7822 = vsel %vm5240, %v7780, %v7821
      %v7823 = vsel %vm5242, %v7784, %v7822
      %v7824 = vsel %vm5001, %v7792, %v7788
      %v7825 = vsel %vm5003, %v7796, %v7824
      %v7826 = vsel %vm5005, %v7800, %v7825
      %v7827 = vsel %vm5236, %v7804, %v7826
      %v7828 = vsel %vm5238, %v7808, %v7827
      %v7829 = vsel %vm5240, %v7812, %v7828
      %v7830 = vsel %vm5242, %v7816, %v7829
      %v7833 = vsel %vm7735, 0.0, %v7823
      %v7834 = vsel %vm7736, 0.0, %v7830
      %v7835 = vsel %vm5271, %v7593, -inf
      %v7836 = vsel %vm5272, %v7596, -inf
      %v7837 = vsel %vm5273, %v7599, -inf
      %v7838 = vsel %vm5274, %v7602, -inf
      %v7839 = vsel %vm5275, %v7605, -inf
      %v7840 = vsel %vm5276, %v7608, -inf
      %v7841 = vsel %vm5277, %v7611, -inf
      %v7842 = vsel %vm5278, %v7614, -inf
      %v7843 = vsel %vm5279, %v7617, -inf
      %v7844 = vsel %vm5280, %v7620, -inf
      %v7845 = vsel %vm5281, %v7623, -inf
      %v7846 = vsel %vm5282, %v7626, -inf
      %v7847 = vsel %vm5283, %v7629, -inf
      %v7848 = vsel %vm5284, %v7632, -inf
      %v7849 = vsel %vm5285, %v7635, -inf
      %v7850 = vsel %vm5286, %v7638, -inf
      %v7851 = vsel %vm5084, %v7835, -inf
      %7852 = vmax.xlane.f32.xlu0 %v7851
      %v7853 = vpop.xlane.xlu0 %7852
      %v7854 = vsel %vm5084, %v7836, -inf
      %7855 = vmax.xlane.f32.xlu0 %v7854
      %v7856 = vpop.xlane.xlu0 %7855
      %v7857 = vsel %vm5084, %v7837, -inf
      %7858 = vmax.xlane.f32.xlu0 %v7857
      %v7859 = vpop.xlane.xlu0 %7858
      %v7860 = vsel %vm5084, %v7838, -inf
      %7861 = vmax.xlane.f32.xlu0 %v7860
      %v7862 = vpop.xlane.xlu0 %7861
      %v7863 = vsel %vm5084, %v7839, -inf
      %7864 = vmax.xlane.f32.xlu0 %v7863
      %v7865 = vpop.xlane.xlu0 %7864
      %v7866 = vsel %vm5084, %v7840, -inf
      %7867 = vmax.xlane.f32.xlu0 %v7866
      %v7868 = vpop.xlane.xlu0 %7867
      %v7869 = vsel %vm5084, %v7841, -inf
      %7870 = vmax.xlane.f32.xlu0 %v7869
      %v7871 = vpop.xlane.xlu0 %7870
      %v7872 = vsel %vm5084, %v7842, -inf
      %7873 = vmax.xlane.f32.xlu0 %v7872
      %v7874 = vpop.xlane.xlu0 %7873
      %v7875 = vsel %vm5084, %v7843, -inf
      %7876 = vmax.xlane.f32.xlu0 %v7875
      %v7877 = vpop.xlane.xlu0 %7876
      %v7878 = vsel %vm5084, %v7844, -inf
      %7879 = vmax.xlane.f32.xlu0 %v7878
      %v7880 = vpop.xlane.xlu0 %7879
      %v7881 = vsel %vm5084, %v7845, -inf
      %7882 = vmax.xlane.f32.xlu0 %v7881
      %v7883 = vpop.xlane.xlu0 %7882
      %v7884 = vsel %vm5084, %v7846, -inf
      %7885 = vmax.xlane.f32.xlu0 %v7884
      %v7886 = vpop.xlane.xlu0 %7885
      %v7887 = vsel %vm5084, %v7847, -inf
      %7888 = vmax.xlane.f32.xlu0 %v7887
      %v7889 = vpop.xlane.xlu0 %7888
      %v7890 = vsel %vm5084, %v7848, -inf
      %7891 = vmax.xlane.f32.xlu0 %v7890
      %v7892 = vpop.xlane.xlu0 %7891
      %v7893 = vsel %vm5084, %v7849, -inf
      %7894 = vmax.xlane.f32.xlu0 %v7893
      %v7895 = vpop.xlane.xlu0 %7894
      %v7896 = vsel %vm5084, %v7850, -inf
      %7897 = vmax.xlane.f32.xlu0 %v7896
      %v7898 = vpop.xlane.xlu0 %7897
      %7899 = vset.pattern.permute.xlu0 7
      %7900 = vperm.xlu0 %7899, %v6909
      %v7901 = vpop.permute.xlu0 %7900
      %7902 = vset.pattern.permute.xlu0 7
      %7903 = vperm.xlu0 %7902, %v6910
      %v7904 = vpop.permute.xlu0 %7903
      %vm7905 = vcmp.eq.s32.totalorder %v7901, 1
      %vm7906 = vcmp.eq.s32.totalorder %v7904, 1
      %v7923 = vlaneseq
      %v7924 = vshrl.u32 %v7923, 7
      %v7925 = vsub.s32 %v63, %v7924
      %v7926 = vrot.slane %v7853, %v7925
      %v7927 = vlaneseq
      %v7928 = vshrl.u32 %v7927, 7
      %v7929 = vsub.s32 %v63, %v7928
      %v7930 = vrot.slane %v7856, %v7929
      %v7931 = vlaneseq
      %v7932 = vshrl.u32 %v7931, 7
      %v7933 = vsub.s32 %v63, %v7932
      %v7934 = vrot.slane %v7859, %v7933
      %v7935 = vlaneseq
      %v7936 = vshrl.u32 %v7935, 7
      %v7937 = vsub.s32 %v63, %v7936
      %v7938 = vrot.slane %v7862, %v7937
      %v7939 = vlaneseq
      %v7940 = vshrl.u32 %v7939, 7
      %v7941 = vsub.s32 %v63, %v7940
      %v7942 = vrot.slane %v7865, %v7941
      %v7943 = vlaneseq
      %v7944 = vshrl.u32 %v7943, 7
      %v7945 = vsub.s32 %v63, %v7944
      %v7946 = vrot.slane %v7868, %v7945
      %v7947 = vlaneseq
      %v7948 = vshrl.u32 %v7947, 7
      %v7949 = vsub.s32 %v63, %v7948
      %v7950 = vrot.slane %v7871, %v7949
      %v7951 = vlaneseq
      %v7952 = vshrl.u32 %v7951, 7
      %v7953 = vsub.s32 %v63, %v7952
      %v7954 = vrot.slane %v7874, %v7953
      %v7955 = vlaneseq
      %v7956 = vshrl.u32 %v7955, 7
      %v7957 = vsub.s32 %v63, %v7956
      %v7958 = vrot.slane %v7877, %v7957
      %v7959 = vlaneseq
      %v7960 = vshrl.u32 %v7959, 7
      %v7961 = vsub.s32 %v63, %v7960
      %v7962 = vrot.slane %v7880, %v7961
      %v7963 = vlaneseq
      %v7964 = vshrl.u32 %v7963, 7
      %v7965 = vsub.s32 %v63, %v7964
      %v7966 = vrot.slane %v7883, %v7965
      %v7967 = vlaneseq
      %v7968 = vshrl.u32 %v7967, 7
      %v7969 = vsub.s32 %v63, %v7968
      %v7970 = vrot.slane %v7886, %v7969
      %v7971 = vlaneseq
      %v7972 = vshrl.u32 %v7971, 7
      %v7973 = vsub.s32 %v63, %v7972
      %v7974 = vrot.slane %v7889, %v7973
      %v7975 = vlaneseq
      %v7976 = vshrl.u32 %v7975, 7
      %v7977 = vsub.s32 %v63, %v7976
      %v7978 = vrot.slane %v7892, %v7977
      %v7979 = vlaneseq
      %v7980 = vshrl.u32 %v7979, 7
      %v7981 = vsub.s32 %v63, %v7980
      %v7982 = vrot.slane %v7895, %v7981
      %v7983 = vlaneseq
      %v7984 = vshrl.u32 %v7983, 7
      %v7985 = vsub.s32 %v63, %v7984
      %v7986 = vrot.slane %v7898, %v7985
      %v7987 = vsel %vm5001, %v7930, %v7926
      %v7988 = vsel %vm5003, %v7934, %v7987
      %v7989 = vsel %vm5005, %v7938, %v7988
      %v7990 = vsel %vm5236, %v7942, %v7989
      %v7991 = vsel %vm5238, %v7946, %v7990
      %v7992 = vsel %vm5240, %v7950, %v7991
      %v7993 = vsel %vm5242, %v7954, %v7992
      %v7994 = vsel %vm5001, %v7962, %v7958
      %v7995 = vsel %vm5003, %v7966, %v7994
      %v7996 = vsel %vm5005, %v7970, %v7995
      %v7997 = vsel %vm5236, %v7974, %v7996
      %v7998 = vsel %vm5238, %v7978, %v7997
      %v7999 = vsel %vm5240, %v7982, %v7998
      %v8000 = vsel %vm5242, %v7986, %v7999
      %v8003 = vsel %vm7905, 0.0, %v7993
      %v8004 = vsel %vm7906, 0.0, %v8000
      %v8005 = vsel %vm5483, %v7593, -inf
      %v8006 = vsel %vm5484, %v7596, -inf
      %v8007 = vsel %vm5485, %v7599, -inf
      %v8008 = vsel %vm5486, %v7602, -inf
      %v8009 = vsel %vm5487, %v7605, -inf
      %v8010 = vsel %vm5488, %v7608, -inf
      %v8011 = vsel %vm5489, %v7611, -inf
      %v8012 = vsel %vm5490, %v7614, -inf
      %v8013 = vsel %vm5491, %v7617, -inf
      %v8014 = vsel %vm5492, %v7620, -inf
      %v8015 = vsel %vm5493, %v7623, -inf
      %v8016 = vsel %vm5494, %v7626, -inf
      %v8017 = vsel %vm5495, %v7629, -inf
      %v8018 = vsel %vm5496, %v7632, -inf
      %v8019 = vsel %vm5497, %v7635, -inf
      %v8020 = vsel %vm5498, %v7638, -inf
      %v8021 = vsel %vm5084, %v8005, -inf
      %8022 = vmax.xlane.f32.xlu0 %v8021
      %v8023 = vpop.xlane.xlu0 %8022
      %v8024 = vsel %vm5084, %v8006, -inf
      %8025 = vmax.xlane.f32.xlu0 %v8024
      %v8026 = vpop.xlane.xlu0 %8025
      %v8027 = vsel %vm5084, %v8007, -inf
      %8028 = vmax.xlane.f32.xlu0 %v8027
      %v8029 = vpop.xlane.xlu0 %8028
      %v8030 = vsel %vm5084, %v8008, -inf
      %8031 = vmax.xlane.f32.xlu0 %v8030
      %v8032 = vpop.xlane.xlu0 %8031
      %v8033 = vsel %vm5084, %v8009, -inf
      %8034 = vmax.xlane.f32.xlu0 %v8033
      %v8035 = vpop.xlane.xlu0 %8034
      %v8036 = vsel %vm5084, %v8010, -inf
      %8037 = vmax.xlane.f32.xlu0 %v8036
      %v8038 = vpop.xlane.xlu0 %8037
      %v8039 = vsel %vm5084, %v8011, -inf
      %8040 = vmax.xlane.f32.xlu0 %v8039
      %v8041 = vpop.xlane.xlu0 %8040
      %v8042 = vsel %vm5084, %v8012, -inf
      %8043 = vmax.xlane.f32.xlu0 %v8042
      %v8044 = vpop.xlane.xlu0 %8043
      %v8045 = vsel %vm5084, %v8013, -inf
      %8046 = vmax.xlane.f32.xlu0 %v8045
      %v8047 = vpop.xlane.xlu0 %8046
      %v8048 = vsel %vm5084, %v8014, -inf
      %8049 = vmax.xlane.f32.xlu0 %v8048
      %v8050 = vpop.xlane.xlu0 %8049
      %v8051 = vsel %vm5084, %v8015, -inf
      %8052 = vmax.xlane.f32.xlu0 %v8051
      %v8053 = vpop.xlane.xlu0 %8052
      %v8054 = vsel %vm5084, %v8016, -inf
      %8055 = vmax.xlane.f32.xlu0 %v8054
      %v8056 = vpop.xlane.xlu0 %8055
      %v8057 = vsel %vm5084, %v8017, -inf
      %8058 = vmax.xlane.f32.xlu0 %v8057
      %v8059 = vpop.xlane.xlu0 %8058
      %v8060 = vsel %vm5084, %v8018, -inf
      %8061 = vmax.xlane.f32.xlu0 %v8060
      %v8062 = vpop.xlane.xlu0 %8061
      %v8063 = vsel %vm5084, %v8019, -inf
      %8064 = vmax.xlane.f32.xlu0 %v8063
      %v8065 = vpop.xlane.xlu0 %8064
      %v8066 = vsel %vm5084, %v8020, -inf
      %8067 = vmax.xlane.f32.xlu0 %v8066
      %v8068 = vpop.xlane.xlu0 %8067
      %8069 = vset.pattern.permute.xlu0 7
      %8070 = vperm.xlu0 %8069, %v6091
      %v8071 = vpop.permute.xlu0 %8070
      %8072 = vset.pattern.permute.xlu0 7
      %8073 = vperm.xlu0 %8072, %v6092
      %v8074 = vpop.permute.xlu0 %8073
      %vm8075 = vcmp.eq.s32.totalorder %v8071, 1
      %vm8076 = vcmp.eq.s32.totalorder %v8074, 1
      %v8093 = vlaneseq
      %v8094 = vshrl.u32 %v8093, 7
      %v8095 = vsub.s32 %v63, %v8094
      %v8096 = vrot.slane %v8023, %v8095
      %v8097 = vlaneseq
      %v8098 = vshrl.u32 %v8097, 7
      %v8099 = vsub.s32 %v63, %v8098
      %v8100 = vrot.slane %v8026, %v8099
      %v8101 = vlaneseq
      %v8102 = vshrl.u32 %v8101, 7
      %v8103 = vsub.s32 %v63, %v8102
      %v8104 = vrot.slane %v8029, %v8103
      %v8105 = vlaneseq
      %v8106 = vshrl.u32 %v8105, 7
      %v8107 = vsub.s32 %v63, %v8106
      %v8108 = vrot.slane %v8032, %v8107
      %v8109 = vlaneseq
      %v8110 = vshrl.u32 %v8109, 7
      %v8111 = vsub.s32 %v63, %v8110
      %v8112 = vrot.slane %v8035, %v8111
      %v8113 = vlaneseq
      %v8114 = vshrl.u32 %v8113, 7
      %v8115 = vsub.s32 %v63, %v8114
      %v8116 = vrot.slane %v8038, %v8115
      %v8117 = vlaneseq
      %v8118 = vshrl.u32 %v8117, 7
      %v8119 = vsub.s32 %v63, %v8118
      %v8120 = vrot.slane %v8041, %v8119
      %v8121 = vlaneseq
      %v8122 = vshrl.u32 %v8121, 7
      %v8123 = vsub.s32 %v63, %v8122
      %v8124 = vrot.slane %v8044, %v8123
      %v8125 = vlaneseq
      %v8126 = vshrl.u32 %v8125, 7
      %v8127 = vsub.s32 %v63, %v8126
      %v8128 = vrot.slane %v8047, %v8127
      %v8129 = vlaneseq
      %v8130 = vshrl.u32 %v8129, 7
      %v8131 = vsub.s32 %v63, %v8130
      %v8132 = vrot.slane %v8050, %v8131
      %v8133 = vlaneseq
      %v8134 = vshrl.u32 %v8133, 7
      %v8135 = vsub.s32 %v63, %v8134
      %v8136 = vrot.slane %v8053, %v8135
      %v8137 = vlaneseq
      %v8138 = vshrl.u32 %v8137, 7
      %v8139 = vsub.s32 %v63, %v8138
      %v8140 = vrot.slane %v8056, %v8139
      %v8141 = vlaneseq
      %v8142 = vshrl.u32 %v8141, 7
      %v8143 = vsub.s32 %v63, %v8142
      %v8144 = vrot.slane %v8059, %v8143
      %v8145 = vlaneseq
      %v8146 = vshrl.u32 %v8145, 7
      %v8147 = vsub.s32 %v63, %v8146
      %v8148 = vrot.slane %v8062, %v8147
      %v8149 = vlaneseq
      %v8150 = vshrl.u32 %v8149, 7
      %v8151 = vsub.s32 %v63, %v8150
      %v8152 = vrot.slane %v8065, %v8151
      %v8153 = vlaneseq
      %v8154 = vshrl.u32 %v8153, 7
      %v8155 = vsub.s32 %v63, %v8154
      %v8156 = vrot.slane %v8068, %v8155
      %v8157 = vsel %vm5001, %v8100, %v8096
      %v8158 = vsel %vm5003, %v8104, %v8157
      %v8159 = vsel %vm5005, %v8108, %v8158
      %v8160 = vsel %vm5236, %v8112, %v8159
      %v8161 = vsel %vm5238, %v8116, %v8160
      %v8162 = vsel %vm5240, %v8120, %v8161
      %v8163 = vsel %vm5242, %v8124, %v8162
      %v8164 = vsel %vm5001, %v8132, %v8128
      %v8165 = vsel %vm5003, %v8136, %v8164
      %v8166 = vsel %vm5005, %v8140, %v8165
      %v8167 = vsel %vm5236, %v8144, %v8166
      %v8168 = vsel %vm5238, %v8148, %v8167
      %v8169 = vsel %vm5240, %v8152, %v8168
      %v8170 = vsel %vm5242, %v8156, %v8169
      %v8173 = vsel %vm8075, 0.0, %v8163
      %v8174 = vsel %vm8076, 0.0, %v8170
      %v8175 = vsel %vm5695, %v7593, -inf
      %v8176 = vsel %vm5696, %v7596, -inf
      %v8177 = vsel %vm5697, %v7599, -inf
      %v8178 = vsel %vm5698, %v7602, -inf
      %v8179 = vsel %vm5699, %v7605, -inf
      %v8180 = vsel %vm5700, %v7608, -inf
      %v8181 = vsel %vm5701, %v7611, -inf
      %v8182 = vsel %vm5702, %v7614, -inf
      %v8183 = vsel %vm5703, %v7617, -inf
      %v8184 = vsel %vm5704, %v7620, -inf
      %v8185 = vsel %vm5705, %v7623, -inf
      %v8186 = vsel %vm5706, %v7626, -inf
      %v8187 = vsel %vm5707, %v7629, -inf
      %v8188 = vsel %vm5708, %v7632, -inf
      %v8189 = vsel %vm5709, %v7635, -inf
      %v8190 = vsel %vm5710, %v7638, -inf
      %v8191 = vsel %vm5084, %v8175, -inf
      %8192 = vmax.xlane.f32.xlu0 %v8191
      %v8193 = vpop.xlane.xlu0 %8192
      %v8194 = vsel %vm5084, %v8176, -inf
      %8195 = vmax.xlane.f32.xlu0 %v8194
      %v8196 = vpop.xlane.xlu0 %8195
      %v8197 = vsel %vm5084, %v8177, -inf
      %8198 = vmax.xlane.f32.xlu0 %v8197
      %v8199 = vpop.xlane.xlu0 %8198
      %v8200 = vsel %vm5084, %v8178, -inf
      %8201 = vmax.xlane.f32.xlu0 %v8200
      %v8202 = vpop.xlane.xlu0 %8201
      %v8203 = vsel %vm5084, %v8179, -inf
      %8204 = vmax.xlane.f32.xlu0 %v8203
      %v8205 = vpop.xlane.xlu0 %8204
      %v8206 = vsel %vm5084, %v8180, -inf
      %8207 = vmax.xlane.f32.xlu0 %v8206
      %v8208 = vpop.xlane.xlu0 %8207
      %v8209 = vsel %vm5084, %v8181, -inf
      %8210 = vmax.xlane.f32.xlu0 %v8209
      %v8211 = vpop.xlane.xlu0 %8210
      %v8212 = vsel %vm5084, %v8182, -inf
      %8213 = vmax.xlane.f32.xlu0 %v8212
      %v8214 = vpop.xlane.xlu0 %8213
      %v8215 = vsel %vm5084, %v8183, -inf
      %8216 = vmax.xlane.f32.xlu0 %v8215
      %v8217 = vpop.xlane.xlu0 %8216
      %v8218 = vsel %vm5084, %v8184, -inf
      %8219 = vmax.xlane.f32.xlu0 %v8218
      %v8220 = vpop.xlane.xlu0 %8219
      %v8221 = vsel %vm5084, %v8185, -inf
      %8222 = vmax.xlane.f32.xlu0 %v8221
      %v8223 = vpop.xlane.xlu0 %8222
      %v8224 = vsel %vm5084, %v8186, -inf
      %8225 = vmax.xlane.f32.xlu0 %v8224
      %v8226 = vpop.xlane.xlu0 %8225
      %v8227 = vsel %vm5084, %v8187, -inf
      %8228 = vmax.xlane.f32.xlu0 %v8227
      %v8229 = vpop.xlane.xlu0 %8228
      %v8230 = vsel %vm5084, %v8188, -inf
      %8231 = vmax.xlane.f32.xlu0 %v8230
      %v8232 = vpop.xlane.xlu0 %8231
      %v8233 = vsel %vm5084, %v8189, -inf
      %8234 = vmax.xlane.f32.xlu0 %v8233
      %v8235 = vpop.xlane.xlu0 %8234
      %v8236 = vsel %vm5084, %v8190, -inf
      %8237 = vmax.xlane.f32.xlu0 %v8236
      %v8238 = vpop.xlane.xlu0 %8237
      %8239 = vset.pattern.permute.xlu0 7
      %8240 = vperm.xlu0 %8239, %v5143
      %v8241 = vpop.permute.xlu0 %8240
      %8242 = vset.pattern.permute.xlu0 7
      %8243 = vperm.xlu0 %8242, %v5144
      %v8244 = vpop.permute.xlu0 %8243
      %vm8245 = vcmp.eq.s32.totalorder %v8241, 1
      %vm8246 = vcmp.eq.s32.totalorder %v8244, 1
      %v8263 = vlaneseq
      %v8264 = vshrl.u32 %v8263, 7
      %v8265 = vsub.s32 %v63, %v8264
      %v8266 = vrot.slane %v8193, %v8265
      %v8267 = vlaneseq
      %v8268 = vshrl.u32 %v8267, 7
      %v8269 = vsub.s32 %v63, %v8268
      %v8270 = vrot.slane %v8196, %v8269
      %v8271 = vlaneseq
      %v8272 = vshrl.u32 %v8271, 7
      %v8273 = vsub.s32 %v63, %v8272
      %v8274 = vrot.slane %v8199, %v8273
      %v8275 = vlaneseq
      %v8276 = vshrl.u32 %v8275, 7
      %v8277 = vsub.s32 %v63, %v8276
      %v8278 = vrot.slane %v8202, %v8277
      %v8279 = vlaneseq
      %v8280 = vshrl.u32 %v8279, 7
      %v8281 = vsub.s32 %v63, %v8280
      %v8282 = vrot.slane %v8205, %v8281
      %v8283 = vlaneseq
      %v8284 = vshrl.u32 %v8283, 7
      %v8285 = vsub.s32 %v63, %v8284
      %v8286 = vrot.slane %v8208, %v8285
      %v8287 = vlaneseq
      %v8288 = vshrl.u32 %v8287, 7
      %v8289 = vsub.s32 %v63, %v8288
      %v8290 = vrot.slane %v8211, %v8289
      %v8291 = vlaneseq
      %v8292 = vshrl.u32 %v8291, 7
      %v8293 = vsub.s32 %v63, %v8292
      %v8294 = vrot.slane %v8214, %v8293
      %v8295 = vlaneseq
      %v8296 = vshrl.u32 %v8295, 7
      %v8297 = vsub.s32 %v63, %v8296
      %v8298 = vrot.slane %v8217, %v8297
      %v8299 = vlaneseq
      %v8300 = vshrl.u32 %v8299, 7
      %v8301 = vsub.s32 %v63, %v8300
      %v8302 = vrot.slane %v8220, %v8301
      %v8303 = vlaneseq
      %v8304 = vshrl.u32 %v8303, 7
      %v8305 = vsub.s32 %v63, %v8304
      %v8306 = vrot.slane %v8223, %v8305
      %v8307 = vlaneseq
      %v8308 = vshrl.u32 %v8307, 7
      %v8309 = vsub.s32 %v63, %v8308
      %v8310 = vrot.slane %v8226, %v8309
      %v8311 = vlaneseq
      %v8312 = vshrl.u32 %v8311, 7
      %v8313 = vsub.s32 %v63, %v8312
      %v8314 = vrot.slane %v8229, %v8313
      %v8315 = vlaneseq
      %v8316 = vshrl.u32 %v8315, 7
      %v8317 = vsub.s32 %v63, %v8316
      %v8318 = vrot.slane %v8232, %v8317
      %v8319 = vlaneseq
      %v8320 = vshrl.u32 %v8319, 7
      %v8321 = vsub.s32 %v63, %v8320
      %v8322 = vrot.slane %v8235, %v8321
      %v8323 = vlaneseq
      %v8324 = vshrl.u32 %v8323, 7
      %v8325 = vsub.s32 %v63, %v8324
      %v8326 = vrot.slane %v8238, %v8325
      %v8327 = vsel %vm5001, %v8270, %v8266
      %v8328 = vsel %vm5003, %v8274, %v8327
      %v8329 = vsel %vm5005, %v8278, %v8328
      %v8330 = vsel %vm5236, %v8282, %v8329
      %v8331 = vsel %vm5238, %v8286, %v8330
      %v8332 = vsel %vm5240, %v8290, %v8331
      %v8333 = vsel %vm5242, %v8294, %v8332
      %v8334 = vsel %vm5001, %v8302, %v8298
      %v8335 = vsel %vm5003, %v8306, %v8334
      %v8336 = vsel %vm5005, %v8310, %v8335
      %v8337 = vsel %vm5236, %v8314, %v8336
      %v8338 = vsel %vm5238, %v8318, %v8337
      %v8339 = vsel %vm5240, %v8322, %v8338
      %v8340 = vsel %vm5242, %v8326, %v8339
      %v8343 = vsel %vm8245, 0.0, %v8333
      %v8344 = vsel %vm8246, 0.0, %v8340
      %8347 = vrot.lane.b32.xlu0 %v5465, 4
      %v8348 = vpop.permute.xlu0 %8347
      %8349 = vrot.lane.b32.xlu0 %v5466, 4
      %v8350 = vpop.permute.xlu0 %8349
      %8355 = vrot.lane.b32.xlu0 %v5677, 8
      %v8356 = vpop.permute.xlu0 %8355
      %8357 = vrot.lane.b32.xlu0 %v5678, 8
      %v8358 = vpop.permute.xlu0 %8357
      %8363 = vrot.lane.b32.xlu0 %v5889, 12
      %v8364 = vpop.permute.xlu0 %8363
      %8365 = vrot.lane.b32.xlu0 %v5890, 12
      %v8366 = vpop.permute.xlu0 %8365
      %8371 = vrot.lane.b32.xlu0 %v6197, 16
      %v8372 = vpop.permute.xlu0 %8371
      %8373 = vrot.lane.b32.xlu0 %v6198, 16
      %v8374 = vpop.permute.xlu0 %8373
      %8379 = vrot.lane.b32.xlu0 %v6367, 20
      %v8380 = vpop.permute.xlu0 %8379
      %8381 = vrot.lane.b32.xlu0 %v6368, 20
      %v8382 = vpop.permute.xlu0 %8381
      %8387 = vrot.lane.b32.xlu0 %v6537, 24
      %v8388 = vpop.permute.xlu0 %8387
      %8389 = vrot.lane.b32.xlu0 %v6538, 24
      %v8390 = vpop.permute.xlu0 %8389
      %8395 = vrot.lane.b32.xlu0 %v6707, 28
      %v8396 = vpop.permute.xlu0 %8395
      %8397 = vrot.lane.b32.xlu0 %v6708, 28
      %v8398 = vpop.permute.xlu0 %8397
      %8403 = vrot.lane.b32.xlu0 %v7015, 32
      %v8404 = vpop.permute.xlu0 %8403
      %8405 = vrot.lane.b32.xlu0 %v7016, 32
      %v8406 = vpop.permute.xlu0 %8405
      %8411 = vrot.lane.b32.xlu0 %v7185, 36
      %v8412 = vpop.permute.xlu0 %8411
      %8413 = vrot.lane.b32.xlu0 %v7186, 36
      %v8414 = vpop.permute.xlu0 %8413
      %8419 = vrot.lane.b32.xlu0 %v7355, 40
      %v8420 = vpop.permute.xlu0 %8419
      %8421 = vrot.lane.b32.xlu0 %v7356, 40
      %v8422 = vpop.permute.xlu0 %8421
      %8427 = vrot.lane.b32.xlu0 %v7525, 44
      %v8428 = vpop.permute.xlu0 %8427
      %8429 = vrot.lane.b32.xlu0 %v7526, 44
      %v8430 = vpop.permute.xlu0 %8429
      %8435 = vrot.lane.b32.xlu0 %v7833, 48
      %v8436 = vpop.permute.xlu0 %8435
      %8437 = vrot.lane.b32.xlu0 %v7834, 48
      %v8438 = vpop.permute.xlu0 %8437
      %8443 = vrot.lane.b32.xlu0 %v8003, 52
      %v8444 = vpop.permute.xlu0 %8443
      %8445 = vrot.lane.b32.xlu0 %v8004, 52
      %v8446 = vpop.permute.xlu0 %8445
      %8451 = vrot.lane.b32.xlu0 %v8173, 56
      %v8452 = vpop.permute.xlu0 %8451
      %8453 = vrot.lane.b32.xlu0 %v8174, 56
      %v8454 = vpop.permute.xlu0 %8453
      %8459 = vrot.lane.b32.xlu0 %v8343, 60
      %v8460 = vpop.permute.xlu0 %8459
      %8461 = vrot.lane.b32.xlu0 %v8344, 60
      %v8462 = vpop.permute.xlu0 %8461
      %vm8465 = vcmask 31744
      %v8466 = vsel %vm8465, %v5253, %v8348
      %v8467 = vsel %vm8465, %v5254, %v8350
      %vm8468 = vcmask 64512
      %v8469 = vsel %vm8468, %v8466, %v8356
      %v8470 = vsel %vm8468, %v8467, %v8358
      %vm8471 = vcmask 97280
      %v8472 = vsel %vm8471, %v8469, %v8364
      %v8473 = vsel %vm8471, %v8470, %v8366
      %v8474 = vsel %vm738, %v8472, %v8372
      %v8475 = vsel %vm738, %v8473, %v8374
      %vm8476 = vcmask 162816
      %v8477 = vsel %vm8476, %v8474, %v8380
      %v8478 = vsel %vm8476, %v8475, %v8382
      %vm8479 = vcmask 195584
      %v8480 = vsel %vm8479, %v8477, %v8388
      %v8481 = vsel %vm8479, %v8478, %v8390
      %vm8482 = vcmask 228352
      %v8483 = vsel %vm8482, %v8480, %v8396
      %v8484 = vsel %vm8482, %v8481, %v8398
      %vm8485 = vcmask 261120
      %v8486 = vsel %vm8485, %v8483, %v8404
      %v8487 = vsel %vm8485, %v8484, %v8406
      %vm8488 = vcmask 293888
      %v8489 = vsel %vm8488, %v8486, %v8412
      %v8490 = vsel %vm8488, %v8487, %v8414
      %vm8491 = vcmask 326656
      %v8492 = vsel %vm8491, %v8489, %v8420
      %v8493 = vsel %vm8491, %v8490, %v8422
      %vm8494 = vcmask 359424
      %v8495 = vsel %vm8494, %v8492, %v8428
      %v8496 = vsel %vm8494, %v8493, %v8430
      %vm8497 = vcmask 392192
      %v8498 = vsel %vm8497, %v8495, %v8436
      %v8499 = vsel %vm8497, %v8496, %v8438
      %vm8500 = vcmask 424960
      %v8501 = vsel %vm8500, %v8498, %v8444
      %v8502 = vsel %vm8500, %v8499, %v8446
      %vm8503 = vcmask 457728
      %v8504 = vsel %vm8503, %v8501, %v8452
      %v8505 = vsel %vm8503, %v8502, %v8454
      %vm8506 = vcmask 490496
      %v8507 = vsel %vm8506, %v8504, %v8460
      %v8508 = vsel %vm8506, %v8505, %v8462
      %v8509 = vpack.c.bf16 %v8508, %v8507
      %vm8510 = vcmask 523264
      %8511 = vst.msk [vmem:[#allocation2] sm:$0xff] %vm8510, %v8509
      %8512 = vst.msk [vmem:[#allocation3] sm:$0xff] %vm8485, 0.0
      %8513 = vst.msk [vmem:[#allocation3 + $0x8] sm:$0xff] %vm8485, 0.0
    $region41: #{tpu_custom_call.1} parent=1 // pred_fallthru
      _
    %v8514 = vld [vmem:[#allocation2] sm:$0xff]
    %v8515 = vld [vmem:[#allocation3] sm:$0xff]
    %v8516 = vld [vmem:[#allocation3 + $0x8] sm:$0xff]
    %v8517 = vld [vmem:[%s2] sm:$0xf]
    %v8518 = vld [vmem:[%s2 + $0x4] sm:$0xf]
    %v8519 = vld [vmem:[%s2 + $0x8] sm:$0xf]
    %v8520 = vld [vmem:[%s2 + $0xc] sm:$0xf]
    %v8521 = vld [vmem:[%s2 + $0x10] sm:$0xf]
    %v8522 = vld [vmem:[%s2 + $0x14] sm:$0xf]
    %v8523 = vld [vmem:[%s2 + $0x18] sm:$0xf]
    %v8524 = vld [vmem:[%s2 + $0x1c] sm:$0xf]
    %v8533 = vunpack.c.l.b16 %v8517
    %v8534 = vunpack.c.l.b16 %v8518
    %v8535 = vunpack.c.l.b16 %v8519
    %v8536 = vunpack.c.l.b16 %v8520
    %v8537 = vunpack.c.l.b16 %v8521
    %v8538 = vunpack.c.l.b16 %v8522
    %v8539 = vunpack.c.l.b16 %v8523
    %v8540 = vunpack.c.l.b16 %v8524
    %v8541 = vpack.c.b16 %v8534, %v8533
    %v8542 = vpack.c.b16 %v8536, %v8535
    %v8543 = vpack.c.b16 %v8538, %v8537
    %v8544 = vpack.c.b16 %v8540, %v8539
    %vm8549 = vcmask 523264
    %v8551 = vsel %vm8549, %v8514, 0
    %8553 = vmatprep.subr.bf16.mxu0 0
    %8554 = vmatpush1.bf16.msra.mxu0 %v8541
    %8555 = vmatprep.subr.bf16.mxu0 0
    %8556 = vmatpush1.bf16.msra.mxu0 %v8542
    %8557 = vmatprep.subr.bf16.mxu0 0
    %8558 = vmatpush1.bf16.msra.mxu0 %v8543
    %8559 = vmatprep.subr.bf16.mxu0 0
    %8560 = vmatpush1.bf16.msra.mxu0 %v8544
    %8561 = vmatprep.subr.bf16.mxu0 0
    %8562 = vmatpush1.bf16.msra.mxu0 0
    %8563 = vmatprep.subr.bf16.mxu0 0
    %8564 = vmatpush1.bf16.msra.mxu0 0
    %8565 = vmatprep.subr.bf16.mxu0 0
    %8566 = vmatpush1.bf16.msra.mxu0 0
    %8567 = vmatprep.subr.bf16.mxu0 0
    %8568 = vmatpush1.bf16.msra.mxu0 0
    %8569 = vmatprep.subr.bf16.mxu0 0
    %8570 = vmatpush1.bf16.msra.mxu0 0
    %8571 = vmatprep.subr.bf16.mxu0 0
    %8572 = vmatpush1.bf16.msra.mxu0 0
    %8573 = vmatprep.subr.bf16.mxu0 0
    %8574 = vmatpush1.bf16.msra.mxu0 0
    %8575 = vmatprep.subr.bf16.mxu0 0
    %8576 = vmatpush1.bf16.msra.mxu0 0
    %8577 = vmatprep.subr.bf16.mxu0 0
    %8578 = vmatpush1.bf16.msra.mxu0 0
    %8579 = vmatprep.subr.bf16.mxu0 0
    %8580 = vmatpush1.bf16.msra.mxu0 0
    %8581 = vmatprep.subr.bf16.mxu0 0
    %8582 = vmatpush1.bf16.msra.mxu0 0
    %8583 = vmatprep.subr.bf16.mxu0 0
    %8584 = vmatpush1.bf16.msra.mxu0 0
    %8585 = vmatprep.mubr.bf16.mxu0 0
    %8586 = vmatmul.mubr.bf16.gmra.mrb[0].mxu0 %v8551
    %v8587 = vpop.f32.mrb[0].mxu0
    %v8588 = vadd.f32 0.0, %v8587
    %v8589 = vpop.f32.mrb[0].mxu0
    %v8590 = vpop.f32.mrb[0].mxu0
    %v8591 = vadd.f32 0.0, %v8590
    %v8592 = vpop.f32.mrb[0].mxu0
    %8593 = vdwg.mxu0
    %v8594 = vadd.f32 %v8515, %v8588
    %v8595 = vadd.f32 %v8516, %v8591
    %vm8596 = vcmask 261120
    %8597 = vst.msk [vmem:[#allocation3] sm:$0xff] %vm8596, %v8594
    %8598 = vst.msk [vmem:[#allocation3 + $0x8] sm:$0xff] %vm8596, %v8595
    // Predicated region
    $region42: #{tpu_custom_call.1} parent=1 // pred_check
      %p8599 = pneg %p45
    $region43: #{tpu_custom_call.1} parent=1 // pred_check_branch
      %8601 = sbr.rel (%p8599) target = $region45
    $region44: #{tpu_custom_call.1} parent=1 // pred_region
      %v8602 = vld [vmem:[#allocation3] sm:$0xff]
      %v8603 = vld [vmem:[#allocation3 + $0x8] sm:$0xff]
      %v8604 = vld [vmem:[%s3] sm:$0x1]
      %v8606 = vlaneseq
      %v8607 = vshrl.u32 %v8606, 7
      %v8608 = vsub.s32 0, %v8607
      %v8609 = vrot.slane %v8604, %v8608
      %v8611 = vadd.f32 %v8602, %v8609
      %v8612 = vadd.f32 %v8603, %v8609
      %v8613 = vmax.f32 %v8611, 0.0
      %v8614 = vmax.f32 %v8612, 0.0
      %v8615 = vpack.c.bf16 %v8614, %v8613
      %v8616 = vld [vmem:[%s4] sm:$0xf]
      %v8617 = vld [vmem:[%s4 + $0x4] sm:$0xf]
      %v8618 = vld [vmem:[%s4 + $0x8] sm:$0xf]
      %v8619 = vld [vmem:[%s4 + $0xc] sm:$0xf]
      %v8620 = vld [vmem:[%s5] sm:$0x1]
      %v8622 = vlaneseq
      %v8623 = vshrl.u32 %v8622, 7
      %v8624 = vsub.s32 0, %v8623
      %v8625 = vrot.slane %v8620, %v8624
      %v8631 = vunpack.c.l.b16 %v8616
      %v8632 = vunpack.c.l.b16 %v8617
      %v8633 = vunpack.c.l.b16 %v8618
      %v8634 = vunpack.c.l.b16 %v8619
      %v8635 = vpack.c.b16 %v8632, %v8631
      %v8636 = vpack.c.b16 %v8634, %v8633
      %v8640 = vsel %vm8596, %v8615, 0
      %8642 = vmatprep.subr.bf16.mxu0 0
      %8643 = vmatpush1.bf16.msra.mxu0 %v8635
      %8644 = vmatprep.subr.bf16.mxu0 0
      %8645 = vmatpush1.bf16.msra.mxu0 %v8636
      %8646 = vmatprep.subr.bf16.mxu0 0
      %8647 = vmatpush1.bf16.msra.mxu0 0
      %8648 = vmatprep.subr.bf16.mxu0 0
      %8649 = vmatpush1.bf16.msra.mxu0 0
      %8650 = vmatprep.subr.bf16.mxu0 0
      %8651 = vmatpush1.bf16.msra.mxu0 0
      %8652 = vmatprep.subr.bf16.mxu0 0
      %8653 = vmatpush1.bf16.msra.mxu0 0
      %8654 = vmatprep.subr.bf16.mxu0 0
      %8655 = vmatpush1.bf16.msra.mxu0 0
      %8656 = vmatprep.subr.bf16.mxu0 0
      %8657 = vmatpush1.bf16.msra.mxu0 0
      %8658 = vmatprep.subr.bf16.mxu0 0
      %8659 = vmatpush1.bf16.msra.mxu0 0
      %8660 = vmatprep.subr.bf16.mxu0 0
      %8661 = vmatpush1.bf16.msra.mxu0 0
      %8662 = vmatprep.subr.bf16.mxu0 0
      %8663 = vmatpush1.bf16.msra.mxu0 0
      %8664 = vmatprep.subr.bf16.mxu0 0
      %8665 = vmatpush1.bf16.msra.mxu0 0
      %8666 = vmatprep.subr.bf16.mxu0 0
      %8667 = vmatpush1.bf16.msra.mxu0 0
      %8668 = vmatprep.subr.bf16.mxu0 0
      %8669 = vmatpush1.bf16.msra.mxu0 0
      %8670 = vmatprep.subr.bf16.mxu0 0
      %8671 = vmatpush1.bf16.msra.mxu0 0
      %8672 = vmatprep.subr.bf16.mxu0 0
      %8673 = vmatpush1.bf16.msra.mxu0 0
      %8674 = vmatprep.mubr.bf16.mxu0 0
      %8675 = vmatmul.mubr.bf16.gmra.mrb[0].mxu0 %v8640
      %v8676 = vpop.f32.mrb[0].mxu0
      %v8677 = vadd.f32 %v8625, %v8676
      %v8678 = vpop.f32.mrb[0].mxu0
      %v8679 = vpop.f32.mrb[0].mxu0
      %v8680 = vadd.f32 %v8625, %v8679
      %v8681 = vpop.f32.mrb[0].mxu0
      %8682 = vdwg.mxu0
      %v8683 = vmax.f32 %v8677, 0.0
      %v8684 = vmax.f32 %v8680, 0.0
      %v8685 = vpack.c.bf16 %v8684, %v8683
      %v8686 = vld [vmem:[%s6] sm:$0xf]
      %v8687 = vld [vmem:[%s6 + $0x4] sm:$0xf]
      %v8688 = vld [vmem:[%s6 + $0x8] sm:$0xf]
      %v8689 = vld [vmem:[%s6 + $0xc] sm:$0xf]
      %v8690 = vld [vmem:[%s7] sm:$0x1]
      %v8692 = vlaneseq
      %v8693 = vshrl.u32 %v8692, 7
      %v8694 = vsub.s32 0, %v8693
      %v8695 = vrot.slane %v8690, %v8694
      %v8701 = vunpack.c.l.b16 %v8686
      %v8702 = vunpack.c.l.b16 %v8687
      %v8703 = vunpack.c.l.b16 %v8688
      %v8704 = vunpack.c.l.b16 %v8689
      %v8705 = vpack.c.b16 %v8702, %v8701
      %v8706 = vpack.c.b16 %v8704, %v8703
      %v8710 = vsel %vm8596, %v8685, 0
      %8712 = vmatprep.subr.bf16.mxu0 0
      %8713 = vmatpush1.bf16.msra.mxu0 %v8705
      %8714 = vmatprep.subr.bf16.mxu0 0
      %8715 = vmatpush1.bf16.msra.mxu0 %v8706
      %8716 = vmatprep.subr.bf16.mxu0 0
      %8717 = vmatpush1.bf16.msra.mxu0 0
      %8718 = vmatprep.subr.bf16.mxu0 0
      %8719 = vmatpush1.bf16.msra.mxu0 0
      %8720 = vmatprep.subr.bf16.mxu0 0
      %8721 = vmatpush1.bf16.msra.mxu0 0
      %8722 = vmatprep.subr.bf16.mxu0 0
      %8723 = vmatpush1.bf16.msra.mxu0 0
      %8724 = vmatprep.subr.bf16.mxu0 0
      %8725 = vmatpush1.bf16.msra.mxu0 0
      %8726 = vmatprep.subr.bf16.mxu0 0
      %8727 = vmatpush1.bf16.msra.mxu0 0
      %8728 = vmatprep.subr.bf16.mxu0 0
      %8729 = vmatpush1.bf16.msra.mxu0 0
      %8730 = vmatprep.subr.bf16.mxu0 0
      %8731 = vmatpush1.bf16.msra.mxu0 0
      %8732 = vmatprep.subr.bf16.mxu0 0
      %8733 = vmatpush1.bf16.msra.mxu0 0
      %8734 = vmatprep.subr.bf16.mxu0 0
      %8735 = vmatpush1.bf16.msra.mxu0 0
      %8736 = vmatprep.subr.bf16.mxu0 0
      %8737 = vmatpush1.bf16.msra.mxu0 0
      %8738 = vmatprep.subr.bf16.mxu0 0
      %8739 = vmatpush1.bf16.msra.mxu0 0
      %8740 = vmatprep.subr.bf16.mxu0 0
      %8741 = vmatpush1.bf16.msra.mxu0 0
      %8742 = vmatprep.subr.bf16.mxu0 0
      %8743 = vmatpush1.bf16.msra.mxu0 0
      %8744 = vmatprep.mubr.bf16.mxu0 0
      %8745 = vmatmul.mubr.bf16.gmra.mrb[0].mxu0 %v8710
      %v8746 = vpop.f32.mrb[0].mxu0
      %v8747 = vadd.f32 %v8695, %v8746
      %v8748 = vpop.f32.mrb[0].mxu0
      %v8749 = vpop.f32.mrb[0].mxu0
      %v8750 = vadd.f32 %v8695, %v8749
      %v8751 = vpop.f32.mrb[0].mxu0
      %8752 = vdwg.mxu0
      %vm8753 = vcmask 39936
      %v8754 = vsel %vm8753, %v8747, -inf
      %8755 = vmax.xlane.f32.xlu0 %v8754
      %v8756 = vpop.xlane.xlu0 %8755
      %v8757 = vsel %vm8753, %v8750, -inf
      %8758 = vmax.xlane.f32.xlu0 %v8757
      %v8759 = vpop.xlane.xlu0 %8758
      %v8760 = vsub.f32 %v8747, %v8756
      %v8761 = vsub.f32 %v8750, %v8759
      %v8762 = vmul.f32 %v8760, 1.442695
      %v8763 = vpow.pop %v8762
      %v8764 = vmul.f32 %v8761, 1.442695
      %v8765 = vpow.pop %v8764
      %v8766 = vsel %vm8753, %v8763, 0.0
      %8767 = vadd.xlane.f32.xlu0 %v8766
      %v8768 = vpop.xlane.xlu0 %8767
      %v8769 = vsel %vm8753, %v8765, 0.0
      %8770 = vadd.xlane.f32.xlu0 %v8769
      %v8771 = vpop.xlane.xlu0 %8770
      %v8772 = vrcp.pop %v8768
      %v8773 = vmul.f32 %v8763, %v8772
      %v8774 = vrcp.pop %v8771
      %v8775 = vmul.f32 %v8765, %v8774
      %8778 = vrot.lane.b32.xlu0 %v8773, 5
      %v8779 = vpop.permute.xlu0 %8778
      %8780 = vrot.lane.b32.xlu0 %v8775, 5
      %v8781 = vpop.permute.xlu0 %8780
      %8786 = vrot.lane.b32.xlu0 %v8747, 5
      %v8787 = vpop.permute.xlu0 %8786
      %8788 = vrot.lane.b32.xlu0 %v8750, 5
      %v8789 = vpop.permute.xlu0 %8788
      %v8792 = vsel %vm8753, %v8747, %v8779
      %v8793 = vsel %vm8753, %v8750, %v8781
      %vm8794 = vcmask 80896
      %v8795 = vsel %vm8794, %v8792, %v8787
      %v8796 = vsel %vm8794, %v8793, %v8789
      %vm8797 = vcmask 244736
      %v8798 = vsel %vm8797, %v8795, 0.0
      %v8799 = vsel %vm8797, %v8796, 0.0
      %8800 = vst [vmem:[#allocation7] sm:$0xff] %v8798
      %8801 = vst [vmem:[#allocation7 + $0x8] sm:$0xff] %v8799
    $region45: #{tpu_custom_call.1} parent=1 // pred_fallthru
      _
    // Predicated region
    $region46: #{tpu_custom_call.1} parent=1 // pred_check
      _
    $region47: #{tpu_custom_call.1} parent=1 // pred_check_branch
      %8803 = sbr.rel (0) target = $region49
    $region48: #{tpu_custom_call.1} parent=1 // pred_region
      %s8805 = ssub.s32 256, 256
      %8806 = vsyncadd [#allocation6], %s8805
      %s8807 = sshll.u32 [#allocation7], 4
      %s8808 = int_to_ptr.vmem [resolvable:$true] %s8807
      %8813 = dma.vmem_to_hbm [thread:$0]  %s8808, 256, %s8, [#allocation6], 128, 128, 8
    $region49: #{tpu_custom_call.1} parent=1 // pred_fallthru
      _
    // Predicated region
    $region50: #{tpu_custom_call.1} parent=1 // pred_check
      _
    $region51: #{tpu_custom_call.1} parent=1 // pred_check_branch
      %8815 = sbr.rel (0) target = $region53
    $region52: #{tpu_custom_call.1} parent=1 // pred_region
      %8816 = dma.done [#allocation6], 256
    $region53: #{tpu_custom_call.1} parent=1 // pred_fallthru
      _
    %8817 = vsyncpa [#allocation5], 1
    %8818 = vsyncpa [#allocation6], 1

</llo_original>
